<compile_context>
chip_gen: v5e
topology: v5e:2x2
jax: 0.10.0
libtpu: 0.0.40
codegen_flags: <defaults>
</compile_context>

<pallas_src>
import functools
import math

import jax
import jax.numpy as jnp
from jax.experimental import pallas as pl
from jax.experimental.pallas import tpu as pltpu


LN_EPS = 1e-5


def _layer_norm(v, g, b):
    """v: (N, D) f32; g, b: (1, D) f32."""
    mu = jnp.mean(v, axis=-1, keepdims=True)
    var = jnp.mean((v - mu) ** 2, axis=-1, keepdims=True)
    return (v - mu) * jax.lax.rsqrt(var + LN_EPS) * g + b


def _block_kernel(n_head, mlp_chunk,
                  x_ref,
                  g1_ref, b1_ref,
                  wq_ref, bq_ref, wk_ref, bk_ref, wv_ref, bv_ref,
                  wo_ref, bo_ref,
                  g2_ref, b2_ref,
                  wfc_ref, bfc_ref, wpr_ref, bpr_ref,
                  o_ref):
    S, TB, D = x_ref.shape
    H = n_head
    Dh = D // H
    G = TB * H                      # one group per (batch-in-tile, head)
    N = S * TB                      # flattened token rows (row = s*TB + b)

    x = x_ref[...].astype(jnp.float32).reshape(N, D)

    # ---- x = x + attn(ln_1(x)) -------------------------------------------
    h = _layer_norm(x, g1_ref[...], b1_ref[...]).astype(jnp.bfloat16)

    def proj(w_ref, b_ref):
        return (jnp.dot(h, w_ref[...], preferred_element_type=jnp.float32)
                + b_ref[...])

    # 1/sqrt(Dh) is already folded into wq/bq at parameter-prep time.
    q = proj(wq_ref, bq_ref)        # (N, D) f32
    k = proj(wk_ref, bk_ref)
    v = proj(wv_ref, bv_ref)

    def to_heads(t):
        # (N, D) -> (G, S, Dh) with group index g = b*H + head.
        return jnp.transpose(t.reshape(S, G, Dh), (1, 0, 2))

    qh = to_heads(q).astype(jnp.bfloat16)
    kh = to_heads(k).astype(jnp.bfloat16)
    vh = to_heads(v).astype(jnp.bfloat16)

    # Batched-head scores: K consumed transposed by the MXU (no kh.T).
    s = jnp.einsum('gqd,gkd->gqk', qh, kh,
                   preferred_element_type=jnp.float32)           # (G, S, S)
    s = s - jnp.max(s, axis=-1, keepdims=True)
    e = jnp.exp(s)
    p = e * pl.reciprocal(jnp.sum(e, axis=-1, keepdims=True), approx=True)

    o = jnp.einsum('gqk,gkd->gqd', p.astype(jnp.bfloat16), vh,
                   preferred_element_type=jnp.float32)           # (G, S, Dh)
    attn = jnp.transpose(o, (1, 0, 2)).reshape(N, D)             # (N, D)

    attn = (jnp.dot(attn.astype(jnp.bfloat16), wo_ref[...],
                    preferred_element_type=jnp.float32) + bo_ref[...])
    x = x + attn

    # ---- x = x + mlp(ln_2(x)) ----------------------------------------------
    # Chunk the 4*D hidden dim so the (N, 4D) f32 activation never exists.
    h2 = _layer_norm(x, g2_ref[...], b2_ref[...]).astype(jnp.bfloat16)
    d4 = wfc_ref.shape[1]
    acc = jnp.zeros((N, D), jnp.float32)
    for c0 in range(0, d4, mlp_chunk):
        c1 = c0 + mlp_chunk
        f = (jnp.dot(h2, wfc_ref[:, c0:c1],
                     preferred_element_type=jnp.float32) + bfc_ref[:, c0:c1])
        f = f * jax.nn.sigmoid(1.702 * f)                        # QuickGELU (f32)
        acc = acc + jnp.dot(f.astype(jnp.bfloat16), wpr_ref[c0:c1, :],
                            preferred_element_type=jnp.float32)
    x = x + acc + bpr_ref[...]

    o_ref[...] = x.reshape(S, TB, D).astype(o_ref.dtype)


def _vmem_capacity_bytes():
    try:
        return int(pltpu.get_tpu_info().vmem_capacity_bytes)
    except Exception:
        return 64 * 2**20            # conservative (v7x-sized) fallback


def _inter_bytes(S, TB, D, H, mlp_chunk):
    """Generous f32 intermediate estimate for one grid step (incl. chunked MLP)."""
    N, G = S * TB, TB * H
    return 4 * (14 * N * D + 3 * G * S * S + 3 * N * mlp_chunk)


def _pick_batch_tile(S, B, D, H, mlp_chunk, budget_bytes):
    """Largest batch tile (multiple of 8, divisor of B) that fits the budget,
    preferring >=2 grid steps so v7x's two TensorCores both get work."""
    def est(tb):
        return 4 * S * tb * D * 4 + _inter_bytes(S, tb, D, H, mlp_chunk)
    cands = [t for t in range(B, 0, -1) if B % t == 0 and (t % 8 == 0 or t == B)]
    multi = [t for t in cands if B // t >= 2 and est(t) <= budget_bytes]
    if multi:
        return multi[0]
    fitting = [t for t in cands if est(t) <= budget_bytes]
    return fitting[0] if fitting else cands[-1]


def residual_attention_block(x, kparams, n_head):
    """x: (S, B, D) float32 -> (S, B, D).  Layout preserved (no HBM transposes).

    `kparams` must come from prepare_kernel_params (bf16 weights, scale folded).
    """
    S, B, D = x.shape
    assert D % n_head == 0
    d4 = kparams['wfc_t'].shape[1]

    # MLP hidden-dim chunk: 512-wide (lane-aligned) when it divides 4*D.
    mlp_chunk = d4
    for c in (512, 1024, 256, 128):
        if d4 % c == 0:
            mlp_chunk = c
            break

    p = kparams
    operands = (
        x,
        p['ln1_g'], p['ln1_b'],
        p['wq_t'], p['bq'], p['wk_t'], p['bk'], p['wv_t'], p['bv'],
        p['wo_t'], p['bo'],
        p['ln2_g'], p['ln2_b'],
        p['wfc_t'], p['bfc'], p['wpr_t'], p['bpr'],
    )
    w_bytes = sum(int(a.size) * a.dtype.itemsize for a in operands[1:])

    cap_usable = int(_vmem_capacity_bytes() * 0.85)
    budget = max(cap_usable - w_bytes - 4 * 2**20, 8 * 2**20)
    TB = _pick_batch_tile(S, B, D, n_head, mlp_chunk, budget)
    grid = (B // TB,)

    # Per-step VMEM need: double-buffered in/out blocks + single-copy resident
    # weights + f32 intermediates (incl. per-chunk MLP slabs) + slack.
    blk_bytes = S * TB * D * x.dtype.itemsize
    need = (4 * blk_bytes + w_bytes
            + _inter_bytes(S, TB, D, n_head, mlp_chunk) + 4 * 2**20)
    vmem_limit = min(cap_usable, max(need, 32 * 2**20))

    # Weights: whole-array VMEM residency, outside the block pipeline (no
    # double-buffering of never-changing operands).
    vmem_full = pl.BlockSpec(memory_space=pltpu.MemorySpace.VMEM)
    in_specs = [pl.BlockSpec((S, TB, D), lambda i: (0, i, 0))]
    in_specs += [vmem_full] * (len(operands) - 1)
    out_spec = pl.BlockSpec((S, TB, D), lambda i: (0, i, 0))

    out = pl.pallas_call(
        functools.partial(_block_kernel, n_head, mlp_chunk),
        grid=grid,
        in_specs=in_specs,
        out_specs=out_spec,
        out_shape=jax.ShapeDtypeStruct((S, B, D), x.dtype),
        compiler_params=pltpu.CompilerParams(
            dimension_semantics=("parallel",),
            vmem_limit_bytes=int(vmem_limit)),
    )(*operands)
    return out


def prepare_kernel_params(params, n_head):
    """One-time offline prep: bf16 weights (MXU-native, halves VMEM/DMA) and
    the 1/sqrt(Dh) attention scale folded into the query projection."""
    d_model = params['wq_t'].shape[0]
    scale = 1.0 / math.sqrt(d_model // n_head)
    f32, bf16 = jnp.float32, jnp.bfloat16
    return {
        'ln1_g': params['ln1_g'].astype(f32), 'ln1_b': params['ln1_b'].astype(f32),
        'wq_t': (params['wq_t'] * scale).astype(bf16),
        'bq': (params['bq'] * scale).astype(f32),
        'wk_t': params['wk_t'].astype(bf16), 'bk': params['bk'].astype(f32),
        'wv_t': params['wv_t'].astype(bf16), 'bv': params['bv'].astype(f32),
        'wo_t': params['wo_t'].astype(bf16), 'bo': params['bo'].astype(f32),
        'ln2_g': params['ln2_g'].astype(f32), 'ln2_b': params['ln2_b'].astype(f32),
        'wfc_t': params['wfc_t'].astype(bf16), 'bfc': params['bfc'].astype(f32),
        'wpr_t': params['wpr_t'].astype(bf16), 'bpr': params['bpr'].astype(f32),
    }


def init_params(key, d_model):
    """Deterministic synthetic parameters matching the PyTorch module shapes."""
    ks = jax.random.split(key, 8)
    sd = 0.02
    d4 = 4 * d_model
    # nn.MultiheadAttention: in_proj_weight (3D, D) split into q/k/v; out_proj (D, D).
    wq = jax.random.normal(ks[0], (d_model, d_model), jnp.float32) * sd
    wk = jax.random.normal(ks[1], (d_model, d_model), jnp.float32) * sd
    wv = jax.random.normal(ks[2], (d_model, d_model), jnp.float32) * sd
    wo = jax.random.normal(ks[3], (d_model, d_model), jnp.float32) * sd
    wfc = jax.random.normal(ks[4], (d4, d_model), jnp.float32) * sd
    wpr = jax.random.normal(ks[5], (d_model, d4), jnp.float32) * sd
    bq = jax.random.normal(ks[6], (d_model,), jnp.float32) * sd
    bfc = jax.random.normal(ks[7], (d4,), jnp.float32) * sd
    return {
        'ln1_g': jnp.ones((1, d_model), jnp.float32),
        'ln1_b': jnp.zeros((1, d_model), jnp.float32),
        # Linear layers compute y = x @ W.T + b, so store transposed weights.
        'wq_t': wq.T, 'bq': bq.reshape(1, d_model),
        'wk_t': wk.T, 'bk': jnp.zeros((1, d_model), jnp.float32),
        'wv_t': wv.T, 'bv': jnp.zeros((1, d_model), jnp.float32),
        'wo_t': wo.T, 'bo': jnp.zeros((1, d_model), jnp.float32),
        'ln2_g': jnp.ones((1, d_model), jnp.float32),
        'ln2_b': jnp.zeros((1, d_model), jnp.float32),
        'wfc_t': wfc.T, 'bfc': bfc.reshape(1, d4),
        'wpr_t': wpr.T, 'bpr': jnp.zeros((1, d_model), jnp.float32),
    }


def reference_block(x, p, n_head):
    """Pure-JAX f32 reference of the PyTorch forward (for correctness check)."""
    S, B, D = x.shape
    Dh = D // n_head

    def ln(v, g, b):
        mu = jnp.mean(v, -1, keepdims=True)
        var = jnp.mean((v - mu) ** 2, -1, keepdims=True)
        return (v - mu) / jnp.sqrt(var + LN_EPS) * g + b

    h = ln(x, p['ln1_g'][0], p['ln1_b'][0])
    q = h @ p['wq_t'] + p['bq'][0]
    k = h @ p['wk_t'] + p['bk'][0]
    v = h @ p['wv_t'] + p['bv'][0]

    def split(t):  # (S, B, H, Dh) -> (B, H, S, Dh)
        return jnp.transpose(t.reshape(S, B, n_head, Dh), (1, 2, 0, 3))

    qh, kh, vh = split(q) / math.sqrt(Dh), split(k), split(v)
    s = jnp.einsum('bhqd,bhkd->bhqk', qh, kh)
    pw = jax.nn.softmax(s, axis=-1)
    o = jnp.einsum('bhqk,bhkd->bhqd', pw, vh)
    o = jnp.transpose(o, (2, 0, 1, 3)).reshape(S, B, D)
    x = x + (o @ p['wo_t'] + p['bo'][0])

    h2 = ln(x, p['ln2_g'][0], p['ln2_b'][0])
    f = h2 @ p['wfc_t'] + p['bfc'][0]
    f = f * jax.nn.sigmoid(1.702 * f)
    return x + (f @ p['wpr_t'] + p['bpr'][0])


if __name__ == "__main__":
    # Small but tile-friendly shapes: S=8 (sublane-aligned), B=16 -> two
    # batch tiles of 8 (exercises the parallel grid / v7x 2-TC sharding),
    # D=256, H=2 -> Dh=128 (lane-aligned head split), 4*D=1024 -> two MLP
    # hidden chunks of 512 (exercises the chunked-MLP path).
    S, B, D, H = 8, 16, 256, 2
    key = jax.random.PRNGKey(0)
    kx, kp = jax.random.split(key)
    x = jax.random.normal(kx, (S, B, D), jnp.float32)
    params = init_params(kp, D)
    kparams = prepare_kernel_params(params, H)       # one-time offline prep

    out = residual_attention_block(x, kparams, H)
    out = jax.block_until_ready(out)

    ref = reference_block(x, params, H)
    assert out.shape == (S, B, D)
    err = float(jnp.max(jnp.abs(out - ref)))
    # bf16 matmul operands + approx reciprocal => loosened tolerance vs f32 ref.
    assert jnp.allclose(out, ref, atol=2e-2, rtol=2e-2), f"max err {err}"
    print("KERNEL_OK")
</pallas_src>

<mosaic_0001>
module attributes {stable_mosaic.version = 11 : i64} {
  func.func @_block_kernel(%arg0: i32, %arg1: memref<8x8x256xf32, #tpu.memory_space<vmem>>, %arg2: memref<1x256xf32, #tpu.memory_space<vmem>>, %arg3: memref<1x256xf32, #tpu.memory_space<vmem>>, %arg4: memref<256x256xbf16, #tpu.memory_space<vmem>>, %arg5: memref<1x256xf32, #tpu.memory_space<vmem>>, %arg6: memref<256x256xbf16, #tpu.memory_space<vmem>>, %arg7: memref<1x256xf32, #tpu.memory_space<vmem>>, %arg8: memref<256x256xbf16, #tpu.memory_space<vmem>>, %arg9: memref<1x256xf32, #tpu.memory_space<vmem>>, %arg10: memref<256x256xbf16, #tpu.memory_space<vmem>>, %arg11: memref<1x256xf32, #tpu.memory_space<vmem>>, %arg12: memref<1x256xf32, #tpu.memory_space<vmem>>, %arg13: memref<1x256xf32, #tpu.memory_space<vmem>>, %arg14: memref<256x1024xbf16, #tpu.memory_space<vmem>>, %arg15: memref<1x1024xf32, #tpu.memory_space<vmem>>, %arg16: memref<1024x256xbf16, #tpu.memory_space<vmem>>, %arg17: memref<1x256xf32, #tpu.memory_space<vmem>>, %arg18: memref<8x8x256xf32, #tpu.memory_space<vmem>>) attributes {dimension_semantics = [#tpu.dimension_semantics<parallel>], iteration_bounds = array<i64: 2>, scalar_prefetch = 0 : i64, scratch_operands = 0 : i64, tpu.core_type = #tpu.core_type<tc>, window_params = [{transform_indices = @transform_0, window_bounds = array<i64: 8, 8, 256>}, {pipeline_mode = #tpu.pipeline_mode<synchronous>, transform_indices = @transform_1, window_bounds = array<i64: 1, 256>}, {pipeline_mode = #tpu.pipeline_mode<synchronous>, transform_indices = @transform_2, window_bounds = array<i64: 1, 256>}, {pipeline_mode = #tpu.pipeline_mode<synchronous>, transform_indices = @transform_3, window_bounds = array<i64: 256, 256>}, {pipeline_mode = #tpu.pipeline_mode<synchronous>, transform_indices = @transform_4, window_bounds = array<i64: 1, 256>}, {pipeline_mode = #tpu.pipeline_mode<synchronous>, transform_indices = @transform_5, window_bounds = array<i64: 256, 256>}, {pipeline_mode = #tpu.pipeline_mode<synchronous>, transform_indices = @transform_6, window_bounds = array<i64: 1, 256>}, {pipeline_mode = #tpu.pipeline_mode<synchronous>, transform_indices = @transform_7, window_bounds = array<i64: 256, 256>}, {pipeline_mode = #tpu.pipeline_mode<synchronous>, transform_indices = @transform_8, window_bounds = array<i64: 1, 256>}, {pipeline_mode = #tpu.pipeline_mode<synchronous>, transform_indices = @transform_9, window_bounds = array<i64: 256, 256>}, {pipeline_mode = #tpu.pipeline_mode<synchronous>, transform_indices = @transform_10, window_bounds = array<i64: 1, 256>}, {pipeline_mode = #tpu.pipeline_mode<synchronous>, transform_indices = @transform_11, window_bounds = array<i64: 1, 256>}, {pipeline_mode = #tpu.pipeline_mode<synchronous>, transform_indices = @transform_12, window_bounds = array<i64: 1, 256>}, {pipeline_mode = #tpu.pipeline_mode<synchronous>, transform_indices = @transform_13, window_bounds = array<i64: 256, 1024>}, {pipeline_mode = #tpu.pipeline_mode<synchronous>, transform_indices = @transform_14, window_bounds = array<i64: 1, 1024>}, {pipeline_mode = #tpu.pipeline_mode<synchronous>, transform_indices = @transform_15, window_bounds = array<i64: 1024, 256>}, {pipeline_mode = #tpu.pipeline_mode<synchronous>, transform_indices = @transform_16, window_bounds = array<i64: 1, 256>}, {transform_indices = @transform_17, window_bounds = array<i64: 8, 8, 256>}]} {
    %c0 = arith.constant 0 : index
    %c0_0 = arith.constant 0 : index
    %c0_1 = arith.constant 0 : index
    %0 = vector.load %arg1[%c0, %c0_0, %c0_1] : memref<8x8x256xf32, #tpu.memory_space<vmem>>, vector<8x8x256xf32>
    %1 = vector.shape_cast %0 : vector<8x8x256xf32> to vector<64x256xf32>
    %c0_2 = arith.constant 0 : index
    %c0_3 = arith.constant 0 : index
    %2 = vector.load %arg2[%c0_2, %c0_3] : memref<1x256xf32, #tpu.memory_space<vmem>>, vector<1x256xf32>
    %c0_4 = arith.constant 0 : index
    %c0_5 = arith.constant 0 : index
    %3 = vector.load %arg3[%c0_4, %c0_5] : memref<1x256xf32, #tpu.memory_space<vmem>>, vector<1x256xf32>
    %cst = arith.constant dense<0.000000e+00> : vector<64xf32>
    %4 = vector.multi_reduction <add>, %1, %cst [1] : vector<64x256xf32> to vector<64xf32>
    %5 = vector.shape_cast %4 : vector<64xf32> to vector<64x1xf32>
    %cst_6 = arith.constant 2.560000e+02 : f32
    %6 = vector.broadcast %cst_6 : f32 to vector<64x1xf32>
    %7 = arith.divf %5, %6 : vector<64x1xf32>
    %8 = vector.broadcast %7 : vector<64x1xf32> to vector<64x256xf32>
    %9 = arith.subf %1, %8 : vector<64x256xf32>
    %10 = arith.mulf %9, %9 : vector<64x256xf32>
    %cst_7 = arith.constant dense<0.000000e+00> : vector<64xf32>
    %11 = vector.multi_reduction <add>, %10, %cst_7 [1] : vector<64x256xf32> to vector<64xf32>
    %12 = vector.shape_cast %11 : vector<64xf32> to vector<64x1xf32>
    %cst_8 = arith.constant 2.560000e+02 : f32
    %13 = vector.broadcast %cst_8 : f32 to vector<64x1xf32>
    %14 = arith.divf %12, %13 : vector<64x1xf32>
    %15 = vector.broadcast %7 : vector<64x1xf32> to vector<64x256xf32>
    %16 = arith.subf %1, %15 : vector<64x256xf32>
    %cst_9 = arith.constant 9.99999974E-6 : f32
    %17 = vector.broadcast %cst_9 : f32 to vector<64x1xf32>
    %18 = arith.addf %14, %17 : vector<64x1xf32>
    %19 = math.rsqrt %18 : vector<64x1xf32>
    %20 = vector.broadcast %19 : vector<64x1xf32> to vector<64x256xf32>
    %21 = arith.mulf %16, %20 : vector<64x256xf32>
    %22 = vector.broadcast %2 : vector<1x256xf32> to vector<64x256xf32>
    %23 = arith.mulf %21, %22 : vector<64x256xf32>
    %24 = vector.broadcast %3 : vector<1x256xf32> to vector<64x256xf32>
    %25 = arith.addf %23, %24 : vector<64x256xf32>
    %26 = arith.truncf %25 : vector<64x256xf32> to vector<64x256xbf16>
    %c0_10 = arith.constant 0 : index
    %c0_11 = arith.constant 0 : index
    %27 = vector.load %arg4[%c0_10, %c0_11] : memref<256x256xbf16, #tpu.memory_space<vmem>>, vector<256x256xbf16>
    %cst_12 = arith.constant dense<0.000000e+00> : vector<64x256xf32>
    %28 = tpu.matmul %26, %27, %cst_12 {dimension_numbers = #tpu.dot_dimension_numbers<[1], [0], [0], [1], [0, 0, 1, 1], [], []>} : vector<64x256xbf16>, vector<256x256xbf16>, vector<64x256xf32> -> vector<64x256xf32>
    %c0_13 = arith.constant 0 : index
    %c0_14 = arith.constant 0 : index
    %29 = vector.load %arg5[%c0_13, %c0_14] : memref<1x256xf32, #tpu.memory_space<vmem>>, vector<1x256xf32>
    %30 = vector.broadcast %29 : vector<1x256xf32> to vector<64x256xf32>
    %31 = arith.addf %28, %30 : vector<64x256xf32>
    %c0_15 = arith.constant 0 : index
    %c0_16 = arith.constant 0 : index
    %32 = vector.load %arg6[%c0_15, %c0_16] : memref<256x256xbf16, #tpu.memory_space<vmem>>, vector<256x256xbf16>
    %cst_17 = arith.constant dense<0.000000e+00> : vector<64x256xf32>
    %33 = tpu.matmul %26, %32, %cst_17 {dimension_numbers = #tpu.dot_dimension_numbers<[1], [0], [0], [1], [0, 0, 1, 1], [], []>} : vector<64x256xbf16>, vector<256x256xbf16>, vector<64x256xf32> -> vector<64x256xf32>
    %c0_18 = arith.constant 0 : index
    %c0_19 = arith.constant 0 : index
    %34 = vector.load %arg7[%c0_18, %c0_19] : memref<1x256xf32, #tpu.memory_space<vmem>>, vector<1x256xf32>
    %35 = vector.broadcast %34 : vector<1x256xf32> to vector<64x256xf32>
    %36 = arith.addf %33, %35 : vector<64x256xf32>
    %c0_20 = arith.constant 0 : index
    %c0_21 = arith.constant 0 : index
    %37 = vector.load %arg8[%c0_20, %c0_21] : memref<256x256xbf16, #tpu.memory_space<vmem>>, vector<256x256xbf16>
    %cst_22 = arith.constant dense<0.000000e+00> : vector<64x256xf32>
    %38 = tpu.matmul %26, %37, %cst_22 {dimension_numbers = #tpu.dot_dimension_numbers<[1], [0], [0], [1], [0, 0, 1, 1], [], []>} : vector<64x256xbf16>, vector<256x256xbf16>, vector<64x256xf32> -> vector<64x256xf32>
    %c0_23 = arith.constant 0 : index
    %c0_24 = arith.constant 0 : index
    %39 = vector.load %arg9[%c0_23, %c0_24] : memref<1x256xf32, #tpu.memory_space<vmem>>, vector<1x256xf32>
    %40 = vector.broadcast %39 : vector<1x256xf32> to vector<64x256xf32>
    %41 = arith.addf %38, %40 : vector<64x256xf32>
    %42 = vector.shape_cast %31 : vector<64x256xf32> to vector<8x16x128xf32>
    %43 = tpu.transpose %42, [1, 0, 2] : vector<8x16x128xf32> -> vector<16x8x128xf32>
    %44 = arith.truncf %43 : vector<16x8x128xf32> to vector<16x8x128xbf16>
    %45 = vector.shape_cast %36 : vector<64x256xf32> to vector<8x16x128xf32>
    %46 = tpu.transpose %45, [1, 0, 2] : vector<8x16x128xf32> -> vector<16x8x128xf32>
    %47 = arith.truncf %46 : vector<16x8x128xf32> to vector<16x8x128xbf16>
    %48 = vector.shape_cast %41 : vector<64x256xf32> to vector<8x16x128xf32>
    %49 = tpu.transpose %48, [1, 0, 2] : vector<8x16x128xf32> -> vector<16x8x128xf32>
    %50 = arith.truncf %49 : vector<16x8x128xf32> to vector<16x8x128xbf16>
    "tpu.trace_start"() <{level = 10 : i32, message = "gqd,gkd->gqk"}> : () -> ()
    %cst_25 = arith.constant dense<0.000000e+00> : vector<16x8x8xf32>
    %51 = tpu.matmul %44, %47, %cst_25 {dimension_numbers = #tpu.dot_dimension_numbers<[2], [2], [1], [1], [0, 0, 0, 1, 1, 1], [0], [0]>} : vector<16x8x128xbf16>, vector<16x8x128xbf16>, vector<16x8x8xf32> -> vector<16x8x8xf32>
    "tpu.trace_stop"() : () -> ()
    %cst_26 = arith.constant dense<0xFF800000> : vector<16x8xf32>
    %52 = vector.multi_reduction <maximumf>, %51, %cst_26 [2] : vector<16x8x8xf32> to vector<16x8xf32>
    %53 = vector.shape_cast %52 : vector<16x8xf32> to vector<16x8x1xf32>
    %54 = vector.broadcast %53 : vector<16x8x1xf32> to vector<16x8x8xf32>
    %55 = arith.subf %51, %54 : vector<16x8x8xf32>
    %56 = math.exp %55 : vector<16x8x8xf32>
    %cst_27 = arith.constant dense<0.000000e+00> : vector<16x8xf32>
    %57 = vector.multi_reduction <add>, %56, %cst_27 [2] : vector<16x8x8xf32> to vector<16x8xf32>
    %58 = vector.shape_cast %57 : vector<16x8xf32> to vector<16x8x1xf32>
    %59 = tpu.reciprocal %58 {approx = true} : vector<16x8x1xf32> -> vector<16x8x1xf32>
    %60 = vector.broadcast %59 : vector<16x8x1xf32> to vector<16x8x8xf32>
    %61 = arith.mulf %56, %60 : vector<16x8x8xf32>
    %62 = arith.truncf %61 : vector<16x8x8xf32> to vector<16x8x8xbf16>
    "tpu.trace_start"() <{level = 10 : i32, message = "gqk,gkd->gqd"}> : () -> ()
    %cst_28 = arith.constant dense<0.000000e+00> : vector<16x8x128xf32>
    %63 = tpu.matmul %62, %50, %cst_28 {dimension_numbers = #tpu.dot_dimension_numbers<[2], [1], [1], [2], [0, 0, 0, 1, 1, 2], [0], [0]>} : vector<16x8x8xbf16>, vector<16x8x128xbf16>, vector<16x8x128xf32> -> vector<16x8x128xf32>
    "tpu.trace_stop"() : () -> ()
    %64 = tpu.transpose %63, [1, 0, 2] : vector<16x8x128xf32> -> vector<8x16x128xf32>
    %65 = vector.shape_cast %64 : vector<8x16x128xf32> to vector<64x256xf32>
    %66 = arith.truncf %65 : vector<64x256xf32> to vector<64x256xbf16>
    %c0_29 = arith.constant 0 : index
    %c0_30 = arith.constant 0 : index
    %67 = vector.load %arg10[%c0_29, %c0_30] : memref<256x256xbf16, #tpu.memory_space<vmem>>, vector<256x256xbf16>
    %cst_31 = arith.constant dense<0.000000e+00> : vector<64x256xf32>
    %68 = tpu.matmul %66, %67, %cst_31 {dimension_numbers = #tpu.dot_dimension_numbers<[1], [0], [0], [1], [0, 0, 1, 1], [], []>} : vector<64x256xbf16>, vector<256x256xbf16>, vector<64x256xf32> -> vector<64x256xf32>
    %c0_32 = arith.constant 0 : index
    %c0_33 = arith.constant 0 : index
    %69 = vector.load %arg11[%c0_32, %c0_33] : memref<1x256xf32, #tpu.memory_space<vmem>>, vector<1x256xf32>
    %70 = vector.broadcast %69 : vector<1x256xf32> to vector<64x256xf32>
    %71 = arith.addf %68, %70 : vector<64x256xf32>
    %72 = arith.addf %1, %71 : vector<64x256xf32>
    %c0_34 = arith.constant 0 : index
    %c0_35 = arith.constant 0 : index
    %73 = vector.load %arg12[%c0_34, %c0_35] : memref<1x256xf32, #tpu.memory_space<vmem>>, vector<1x256xf32>
    %c0_36 = arith.constant 0 : index
    %c0_37 = arith.constant 0 : index
    %74 = vector.load %arg13[%c0_36, %c0_37] : memref<1x256xf32, #tpu.memory_space<vmem>>, vector<1x256xf32>
    %cst_38 = arith.constant dense<0.000000e+00> : vector<64xf32>
    %75 = vector.multi_reduction <add>, %72, %cst_38 [1] : vector<64x256xf32> to vector<64xf32>
    %76 = vector.shape_cast %75 : vector<64xf32> to vector<64x1xf32>
    %cst_39 = arith.constant 2.560000e+02 : f32
    %77 = vector.broadcast %cst_39 : f32 to vector<64x1xf32>
    %78 = arith.divf %76, %77 : vector<64x1xf32>
    %79 = vector.broadcast %78 : vector<64x1xf32> to vector<64x256xf32>
    %80 = arith.subf %72, %79 : vector<64x256xf32>
    %81 = arith.mulf %80, %80 : vector<64x256xf32>
    %cst_40 = arith.constant dense<0.000000e+00> : vector<64xf32>
    %82 = vector.multi_reduction <add>, %81, %cst_40 [1] : vector<64x256xf32> to vector<64xf32>
    %83 = vector.shape_cast %82 : vector<64xf32> to vector<64x1xf32>
    %cst_41 = arith.constant 2.560000e+02 : f32
    %84 = vector.broadcast %cst_41 : f32 to vector<64x1xf32>
    %85 = arith.divf %83, %84 : vector<64x1xf32>
    %86 = vector.broadcast %78 : vector<64x1xf32> to vector<64x256xf32>
    %87 = arith.subf %72, %86 : vector<64x256xf32>
    %cst_42 = arith.constant 9.99999974E-6 : f32
    %88 = vector.broadcast %cst_42 : f32 to vector<64x1xf32>
    %89 = arith.addf %85, %88 : vector<64x1xf32>
    %90 = math.rsqrt %89 : vector<64x1xf32>
    %91 = vector.broadcast %90 : vector<64x1xf32> to vector<64x256xf32>
    %92 = arith.mulf %87, %91 : vector<64x256xf32>
    %93 = vector.broadcast %73 : vector<1x256xf32> to vector<64x256xf32>
    %94 = arith.mulf %92, %93 : vector<64x256xf32>
    %95 = vector.broadcast %74 : vector<1x256xf32> to vector<64x256xf32>
    %96 = arith.addf %94, %95 : vector<64x256xf32>
    %97 = arith.truncf %96 : vector<64x256xf32> to vector<64x256xbf16>
    %cst_43 = arith.constant 0.000000e+00 : f32
    %98 = vector.broadcast %cst_43 : f32 to vector<64x256xf32>
    %c0_44 = arith.constant 0 : index
    %c0_45 = arith.constant 0 : index
    %99 = vector.load %arg14[%c0_44, %c0_45] : memref<256x1024xbf16, #tpu.memory_space<vmem>>, vector<256x512xbf16>
    %cst_46 = arith.constant dense<0.000000e+00> : vector<64x512xf32>
    %100 = tpu.matmul %97, %99, %cst_46 {dimension_numbers = #tpu.dot_dimension_numbers<[1], [0], [0], [1], [0, 0, 1, 1], [], []>} : vector<64x256xbf16>, vector<256x512xbf16>, vector<64x512xf32> -> vector<64x512xf32>
    %c0_47 = arith.constant 0 : index
    %c0_48 = arith.constant 0 : index
    %101 = vector.load %arg15[%c0_47, %c0_48] : memref<1x1024xf32, #tpu.memory_space<vmem>>, vector<1x512xf32>
    %102 = vector.broadcast %101 : vector<1x512xf32> to vector<64x512xf32>
    %103 = arith.addf %100, %102 : vector<64x512xf32>
    %cst_49 = arith.constant 1.702000e+00 : f32
    %104 = vector.broadcast %cst_49 : f32 to vector<64x512xf32>
    %105 = arith.mulf %104, %103 : vector<64x512xf32>
    %106 = arith.negf %105 : vector<64x512xf32>
    %107 = math.exp %106 : vector<64x512xf32>
    %cst_50 = arith.constant 1.000000e+00 : f32
    %108 = vector.broadcast %cst_50 : f32 to vector<64x512xf32>
    %109 = arith.addf %108, %107 : vector<64x512xf32>
    %110 = arith.divf %108, %109 : vector<64x512xf32>
    %111 = arith.mulf %103, %110 : vector<64x512xf32>
    %112 = arith.truncf %111 : vector<64x512xf32> to vector<64x512xbf16>
    %c0_51 = arith.constant 0 : index
    %c0_52 = arith.constant 0 : index
    %113 = vector.load %arg16[%c0_51, %c0_52] : memref<1024x256xbf16, #tpu.memory_space<vmem>>, vector<512x256xbf16>
    %cst_53 = arith.constant dense<0.000000e+00> : vector<64x256xf32>
    %114 = tpu.matmul %112, %113, %cst_53 {dimension_numbers = #tpu.dot_dimension_numbers<[1], [0], [0], [1], [0, 0, 1, 1], [], []>} : vector<64x512xbf16>, vector<512x256xbf16>, vector<64x256xf32> -> vector<64x256xf32>
    %115 = arith.addf %98, %114 : vector<64x256xf32>
    %c0_54 = arith.constant 0 : index
    %c512 = arith.constant 512 : index
    %116 = vector.load %arg14[%c0_54, %c512] : memref<256x1024xbf16, #tpu.memory_space<vmem>>, vector<256x512xbf16>
    %cst_55 = arith.constant dense<0.000000e+00> : vector<64x512xf32>
    %117 = tpu.matmul %97, %116, %cst_55 {dimension_numbers = #tpu.dot_dimension_numbers<[1], [0], [0], [1], [0, 0, 1, 1], [], []>} : vector<64x256xbf16>, vector<256x512xbf16>, vector<64x512xf32> -> vector<64x512xf32>
    %c0_56 = arith.constant 0 : index
    %c512_57 = arith.constant 512 : index
    %118 = vector.load %arg15[%c0_56, %c512_57] : memref<1x1024xf32, #tpu.memory_space<vmem>>, vector<1x512xf32>
    %119 = vector.broadcast %118 : vector<1x512xf32> to vector<64x512xf32>
    %120 = arith.addf %117, %119 : vector<64x512xf32>
    %cst_58 = arith.constant 1.702000e+00 : f32
    %121 = vector.broadcast %cst_58 : f32 to vector<64x512xf32>
    %122 = arith.mulf %121, %120 : vector<64x512xf32>
    %123 = arith.negf %122 : vector<64x512xf32>
    %124 = math.exp %123 : vector<64x512xf32>
    %cst_59 = arith.constant 1.000000e+00 : f32
    %125 = vector.broadcast %cst_59 : f32 to vector<64x512xf32>
    %126 = arith.addf %125, %124 : vector<64x512xf32>
    %127 = arith.divf %125, %126 : vector<64x512xf32>
    %128 = arith.mulf %120, %127 : vector<64x512xf32>
    %129 = arith.truncf %128 : vector<64x512xf32> to vector<64x512xbf16>
    %c512_60 = arith.constant 512 : index
    %c0_61 = arith.constant 0 : index
    %130 = vector.load %arg16[%c512_60, %c0_61] : memref<1024x256xbf16, #tpu.memory_space<vmem>>, vector<512x256xbf16>
    %cst_62 = arith.constant dense<0.000000e+00> : vector<64x256xf32>
    %131 = tpu.matmul %129, %130, %cst_62 {dimension_numbers = #tpu.dot_dimension_numbers<[1], [0], [0], [1], [0, 0, 1, 1], [], []>} : vector<64x512xbf16>, vector<512x256xbf16>, vector<64x256xf32> -> vector<64x256xf32>
    %132 = arith.addf %115, %131 : vector<64x256xf32>
    %133 = arith.addf %72, %132 : vector<64x256xf32>
    %c0_63 = arith.constant 0 : index
    %c0_64 = arith.constant 0 : index
    %134 = vector.load %arg17[%c0_63, %c0_64] : memref<1x256xf32, #tpu.memory_space<vmem>>, vector<1x256xf32>
    %135 = vector.broadcast %134 : vector<1x256xf32> to vector<64x256xf32>
    %136 = arith.addf %133, %135 : vector<64x256xf32>
    %137 = vector.shape_cast %136 : vector<64x256xf32> to vector<8x8x256xf32>
    %c0_65 = arith.constant 0 : index
    %c0_66 = arith.constant 0 : index
    %c0_67 = arith.constant 0 : index
    %138 = vector.load %arg18[%c0_65, %c0_66, %c0_67] : memref<8x8x256xf32, #tpu.memory_space<vmem>>, vector<8x8x256xf32>
    tpu.vector_store %arg18[%c0_65, %c0_66, %c0_67], %137 {strides = array<i32>} : memref<8x8x256xf32, #tpu.memory_space<vmem>>, vector<8x8x256xf32>,
    return
  }
  func.func @transform_0(%arg0: i32) -> (i32, i32, i32) {
    %c0_i32 = arith.constant 0 : i32
    %c0_i32_0 = arith.constant 0 : i32
    %c0_i32_1 = arith.constant 0 : i32
    return %c0_i32, %arg0, %c0_i32_0 : i32, i32, i32
  }
  func.func @transform_1(%arg0: i32) -> (i32, i32) {
    %c0_i32 = arith.constant 0 : i32
    %c0_i32_0 = arith.constant 0 : i32
    %c0_i32_1 = arith.constant 0 : i32
    return %c0_i32, %c0_i32_0 : i32, i32
  }
  func.func @transform_2(%arg0: i32) -> (i32, i32) {
    %c0_i32 = arith.constant 0 : i32
    %c0_i32_0 = arith.constant 0 : i32
    %c0_i32_1 = arith.constant 0 : i32
    return %c0_i32, %c0_i32_0 : i32, i32
  }
  func.func @transform_3(%arg0: i32) -> (i32, i32) {
    %c0_i32 = arith.constant 0 : i32
    %c0_i32_0 = arith.constant 0 : i32
    %c0_i32_1 = arith.constant 0 : i32
    return %c0_i32, %c0_i32_0 : i32, i32
  }
  func.func @transform_4(%arg0: i32) -> (i32, i32) {
    %c0_i32 = arith.constant 0 : i32
    %c0_i32_0 = arith.constant 0 : i32
    %c0_i32_1 = arith.constant 0 : i32
    return %c0_i32, %c0_i32_0 : i32, i32
  }
  func.func @transform_5(%arg0: i32) -> (i32, i32) {
    %c0_i32 = arith.constant 0 : i32
    %c0_i32_0 = arith.constant 0 : i32
    %c0_i32_1 = arith.constant 0 : i32
    return %c0_i32, %c0_i32_0 : i32, i32
  }
  func.func @transform_6(%arg0: i32) -> (i32, i32) {
    %c0_i32 = arith.constant 0 : i32
    %c0_i32_0 = arith.constant 0 : i32
    %c0_i32_1 = arith.constant 0 : i32
    return %c0_i32, %c0_i32_0 : i32, i32
  }
  func.func @transform_7(%arg0: i32) -> (i32, i32) {
    %c0_i32 = arith.constant 0 : i32
    %c0_i32_0 = arith.constant 0 : i32
    %c0_i32_1 = arith.constant 0 : i32
    return %c0_i32, %c0_i32_0 : i32, i32
  }
  func.func @transform_8(%arg0: i32) -> (i32, i32) {
    %c0_i32 = arith.constant 0 : i32
    %c0_i32_0 = arith.constant 0 : i32
    %c0_i32_1 = arith.constant 0 : i32
    return %c0_i32, %c0_i32_0 : i32, i32
  }
  func.func @transform_9(%arg0: i32) -> (i32, i32) {
    %c0_i32 = arith.constant 0 : i32
    %c0_i32_0 = arith.constant 0 : i32
    %c0_i32_1 = arith.constant 0 : i32
    return %c0_i32, %c0_i32_0 : i32, i32
  }
  func.func @transform_10(%arg0: i32) -> (i32, i32) {
    %c0_i32 = arith.constant 0 : i32
    %c0_i32_0 = arith.constant 0 : i32
    %c0_i32_1 = arith.constant 0 : i32
    return %c0_i32, %c0_i32_0 : i32, i32
  }
  func.func @transform_11(%arg0: i32) -> (i32, i32) {
    %c0_i32 = arith.constant 0 : i32
    %c0_i32_0 = arith.constant 0 : i32
    %c0_i32_1 = arith.constant 0 : i32
    return %c0_i32, %c0_i32_0 : i32, i32
  }
  func.func @transform_12(%arg0: i32) -> (i32, i32) {
    %c0_i32 = arith.constant 0 : i32
    %c0_i32_0 = arith.constant 0 : i32
    %c0_i32_1 = arith.constant 0 : i32
    return %c0_i32, %c0_i32_0 : i32, i32
  }
  func.func @transform_13(%arg0: i32) -> (i32, i32) {
    %c0_i32 = arith.constant 0 : i32
    %c0_i32_0 = arith.constant 0 : i32
    %c0_i32_1 = arith.constant 0 : i32
    return %c0_i32, %c0_i32_0 : i32, i32
  }
  func.func @transform_14(%arg0: i32) -> (i32, i32) {
    %c0_i32 = arith.constant 0 : i32
    %c0_i32_0 = arith.constant 0 : i32
    %c0_i32_1 = arith.constant 0 : i32
    return %c0_i32, %c0_i32_0 : i32, i32
  }
  func.func @transform_15(%arg0: i32) -> (i32, i32) {
    %c0_i32 = arith.constant 0 : i32
    %c0_i32_0 = arith.constant 0 : i32
    %c0_i32_1 = arith.constant 0 : i32
    return %c0_i32, %c0_i32_0 : i32, i32
  }
  func.func @transform_16(%arg0: i32) -> (i32, i32) {
    %c0_i32 = arith.constant 0 : i32
    %c0_i32_0 = arith.constant 0 : i32
    %c0_i32_1 = arith.constant 0 : i32
    return %c0_i32, %c0_i32_0 : i32, i32
  }
  func.func @transform_17(%arg0: i32) -> (i32, i32, i32) {
    %c0_i32 = arith.constant 0 : i32
    %c0_i32_0 = arith.constant 0 : i32
    %c0_i32_1 = arith.constant 0 : i32
    return %c0_i32, %arg0, %c0_i32_0 : i32, i32, i32
  }
}

</mosaic_0001>

<llo_original>
// kernel: tpu_custom_call.1
$region0: #{tpu_custom_call.1}
  #allocation0 [shape = 'u32[]', space=smem, size = 0x4, offset = 0x4, fixed_abs, tag = 'smem constant byte address 0x4 - core index']
  #allocation1 [shape = 'u32[72,128]{1,0:T(1,128)}', space=vmem, size = 0x9000, scoped, tag = 'internal scratch']
  %s0 = inlined_call_operand.hbm [shape: f32[8,16,256], index: 0, kind: input, shape index: {}]
  %s1 = inlined_call_operand.hbm [shape: f32[1,256], index: 1, kind: input, shape index: {}]
  %s2 = inlined_call_operand.hbm [shape: f32[1,256], index: 2, kind: input, shape index: {}]
  %s3 = inlined_call_operand.hbm [shape: bf16[256,256], index: 3, kind: input, shape index: {}]
  %s4 = inlined_call_operand.vmem [shape: f32[1,256], index: 4, kind: input, shape index: {}]
  %s5 = inlined_call_operand.hbm [shape: bf16[256,256], index: 5, kind: input, shape index: {}]
  %s6 = inlined_call_operand.vmem [shape: f32[1,256], index: 6, kind: input, shape index: {}]
  %s7 = inlined_call_operand.hbm [shape: bf16[256,256], index: 7, kind: input, shape index: {}]
  %s8 = inlined_call_operand.hbm [shape: f32[1,256], index: 8, kind: input, shape index: {}]
  %s9 = inlined_call_operand.hbm [shape: bf16[256,256], index: 9, kind: input, shape index: {}]
  %s10 = inlined_call_operand.hbm [shape: f32[1,256], index: 10, kind: input, shape index: {}]
  %s11 = inlined_call_operand.hbm [shape: f32[1,256], index: 11, kind: input, shape index: {}]
  %s12 = inlined_call_operand.hbm [shape: f32[1,256], index: 12, kind: input, shape index: {}]
  %s13 = inlined_call_operand.hbm [shape: bf16[256,1024], index: 13, kind: input, shape index: {}]
  %s14 = inlined_call_operand.vmem [shape: f32[1,1024], index: 14, kind: input, shape index: {}]
  %s15 = inlined_call_operand.hbm [shape: bf16[1024,256], index: 15, kind: input, shape index: {}]
  %s16 = inlined_call_operand.vmem [shape: f32[1,256], index: 16, kind: input, shape index: {}]
  %s17 = inlined_call_operand.hbm [shape: f32[8,16,256], index: 17, kind: output, shape index: {}]
  %s18 = sld [smem:[#allocation0]]
  $region153: #{tpu_custom_call.1} parent=0
    _
  %s20 = ssub.s32 1, %s18
  %s21 = scalar_select 0, %s20, %s18
  $region1: #{tpu_custom_call.1} parent=0
    #allocation2 [shape = 'u8[131072]{0}', space=vmem, size = 0x20000, scoped, tag = 'input window, operand 0']
    #allocation3 [shape = 's32[2]{0}', space=sflag, size = 0x8, scoped, tag = 'scoped memory for tpu_custom_call.1']
    #allocation4 [shape = 's32[2]{0}', space=sflag, size = 0x8, scoped, tag = 'scoped memory for tpu_custom_call.1']
    #allocation5 [shape = 'u8[1024]{0}', space=vmem, size = 0x400, scoped, tag = 'input window, operand 1, single buffered']
    #allocation6 [shape = 's32[1]{0}', space=sflag, size = 0x4, scoped, tag = 'scoped memory for tpu_custom_call.1']
    #allocation7 [shape = 'u8[1024]{0}', space=vmem, size = 0x400, scoped, tag = 'input window, operand 2, single buffered']
    #allocation8 [shape = 'u8[131072]{0}', space=vmem, size = 0x20000, scoped, tag = 'input window, operand 3, single buffered']
    #allocation9 [shape = 's32[1]{0}', space=sflag, size = 0x4, scoped, tag = 'scoped memory for tpu_custom_call.1']
    #allocation10 [shape = 'u8[131072]{0}', space=vmem, size = 0x20000, scoped, tag = 'input window, operand 5, single buffered']
    #allocation11 [shape = 'u8[131072]{0}', space=vmem, size = 0x20000, scoped, tag = 'input window, operand 7, single buffered']
    #allocation12 [shape = 's32[1]{0}', space=sflag, size = 0x4, scoped, tag = 'scoped memory for tpu_custom_call.1']
    #allocation13 [shape = 'u8[1024]{0}', space=vmem, size = 0x400, scoped, tag = 'input window, operand 8, single buffered']
    #allocation14 [shape = 'u8[131072]{0}', space=vmem, size = 0x20000, scoped, tag = 'input window, operand 9, single buffered']
    #allocation15 [shape = 's32[1]{0}', space=sflag, size = 0x4, scoped, tag = 'scoped memory for tpu_custom_call.1']
    #allocation16 [shape = 'u8[1024]{0}', space=vmem, size = 0x400, scoped, tag = 'input window, operand 10, single buffered']
    #allocation17 [shape = 'u8[1024]{0}', space=vmem, size = 0x400, scoped, tag = 'input window, operand 11, single buffered']
    #allocation18 [shape = 's32[1]{0}', space=sflag, size = 0x4, scoped, tag = 'scoped memory for tpu_custom_call.1']
    #allocation19 [shape = 'u8[1024]{0}', space=vmem, size = 0x400, scoped, tag = 'input window, operand 12, single buffered']
    #allocation20 [shape = 'u8[524288]{0}', space=vmem, size = 0x80000, scoped, tag = 'input window, operand 13, single buffered']
    #allocation21 [shape = 's32[1]{0}', space=sflag, size = 0x4, scoped, tag = 'scoped memory for tpu_custom_call.1']
    #allocation22 [shape = 'u8[524288]{0}', space=vmem, size = 0x80000, scoped, tag = 'input window, operand 15, single buffered']
    #allocation23 [shape = 'u8[131072]{0}', space=vmem, size = 0x20000, scoped, tag = 'output window, operand 0']
    %22 = vsyncpa [#allocation3], 0
    %s23 = scalar_lea.sflag [#allocation3], 1
    %24 = vsyncpa %s23, 0
    %25 = vsyncpa [#allocation6], 0
    %26 = vsyncpa [#allocation9], 0
    %27 = vsyncpa [#allocation12], 0
    %28 = vsyncpa [#allocation15], 0
    %29 = vsyncpa [#allocation18], 0
    %30 = vsyncpa [#allocation21], 0
    %31 = vsyncpa [#allocation4], 0
    %s32 = scalar_lea.sflag [#allocation4], 1
    %33 = vsyncpa %s32, 0
    loop: start=0, step=1, limit=4
    $region2: #{tpu_custom_call.1} parent=1 // loop_pre_header
      _
    $region3: #{tpu_custom_call.1} parent=1 // loop_header
      %s35 = sphi 0, %s39
      %p36 = scmp.ge.s32.totalorder %s35, 4
      %s45 = sphi 0, %s47
      %s48 = sphi 0, %s45
      %s49 = sphi 0, %s48
      %s65 = sphi 0, %s49
      %s69 = sphi 0, %s69
      %s71 = sphi 0, %s69
      %s72 = sphi 0, %s71
      %s86 = sphi 0, %s72
      %s90 = sphi 0, %s90
      %s92 = sphi 0, %s90
      %s93 = sphi 0, %s92
      %s107 = sphi 0, %s93
      %s111 = sphi 0, %s111
      %s113 = sphi 0, %s111
      %s114 = sphi 0, %s113
      %s128 = sphi 0, %s114
      %s132 = sphi 0, %s132
      %s134 = sphi 0, %s132
      %s135 = sphi 0, %s134
      %s149 = sphi 0, %s135
      %s153 = sphi 0, %s153
      %s155 = sphi 0, %s153
      %s156 = sphi 0, %s155
      %s170 = sphi 0, %s156
      %s174 = sphi 0, %s174
      %s176 = sphi 0, %s174
      %s177 = sphi 0, %s176
      %s191 = sphi 0, %s177
      %s195 = sphi 0, %s195
      %s197 = sphi 0, %s195
      %s198 = sphi 0, %s197
      %s212 = sphi 0, %s198
      %s216 = sphi 0, %s216
      %s218 = sphi 0, %s216
      %s219 = sphi 0, %s218
      %s233 = sphi 0, %s219
      %s237 = sphi 0, %s237
      %s239 = sphi 0, %s237
      %s240 = sphi 0, %s239
      %s254 = sphi 0, %s240
      %s258 = sphi 0, %s258
      %s260 = sphi 0, %s258
      %s261 = sphi 0, %s260
      %s275 = sphi 0, %s261
      %s279 = sphi 0, %s279
      %s281 = sphi 0, %s279
      %s282 = sphi 0, %s281
      %s296 = sphi 0, %s282
      %s300 = sphi 0, %s300
      %s302 = sphi 0, %s300
      %s303 = sphi 0, %s302
      %s317 = sphi 0, %s303
      %s321 = sphi 0, %s321
      %s323 = sphi 0, %s321
      %s324 = sphi 0, %s323
      %s338 = sphi 0, %s324
      %s342 = sphi 0, %s342
      %s344 = sphi 0, %s342
      %s345 = sphi 0, %s344
      %s359 = sphi 0, %s345
      %s363 = sphi 0, %s363
      %s365 = sphi 0, %s363
      %s366 = sphi 0, %s365
      %s380 = sphi 0, %s366
      %s384 = sphi 0, %s384
      %s386 = sphi 0, %s384
      %s387 = sphi 0, %s386
      %s401 = sphi 0, %s387
      %s407 = sphi 0, %s409
      %s410 = sphi 0, %s407
      %s411 = sphi 0, %s410
      %s427 = sphi 0, %s411
    $region4: #{tpu_custom_call.1} parent=1 // loop_header_branch
      %38 = sbr.rel (%p36) target = $region8
    $region5: #{tpu_custom_call.1} parent=1 // loop_body
      %s40 = ssub.s32 %s35, 1
      %s41 = ssub.s32 %s35, 2
      %s42 = sadd.s32 %s35, 1
      %s43 = ssub.s32 %s35, %s42
      %p44 = scmp.eq.s32.totalorder %s43, 0
      %s46 = sadd.s32 %s45, 1
      %s47 = scalar_select %p44, %s45, %s46
      %p50 = pneg %p44
      %p51 = scmp.eq.s32.totalorder %s35, 1
      %p52 = por %p50, %p51
      %p53 = scmp.ne.s32.totalorder %s45, %s48
      %p54 = scmp.eq.s32.totalorder %s35, 0
      %p55 = por %p53, %p54
      %p56 = scmp.ne.s32.totalorder %s45, %s48
      %p57 = scmp.eq.s32.totalorder %s40, 1
      %p58 = por %p56, %p57
      %p59 = scmp.ne.s32.totalorder %s48, %s49
      %p60 = scmp.eq.s32.totalorder %s40, 0
      %p61 = por %p59, %p60
      %p62 = scmp.ne.s32.totalorder %s48, %s49
      %p63 = scmp.eq.s32.totalorder %s41, 1
      %p64 = por %p62, %p63
      %p66 = scmp.ne.s32.totalorder %s49, %s65
      %p67 = scmp.eq.s32.totalorder %s41, 0
      %p68 = por %p66, %p67
      %s70 = sadd.s32 %s69, 1
      %p73 = scmp.eq.s32.totalorder %s35, 1
      %p74 = scmp.ne.s32.totalorder %s69, %s71
      %p75 = scmp.eq.s32.totalorder %s35, 0
      %p76 = por %p74, %p75
      %p77 = scmp.ne.s32.totalorder %s69, %s71
      %p78 = scmp.eq.s32.totalorder %s40, 1
      %p79 = por %p77, %p78
      %p80 = scmp.ne.s32.totalorder %s71, %s72
      %p81 = scmp.eq.s32.totalorder %s40, 0
      %p82 = por %p80, %p81
      %p83 = scmp.ne.s32.totalorder %s71, %s72
      %p84 = scmp.eq.s32.totalorder %s41, 1
      %p85 = por %p83, %p84
      %p87 = scmp.ne.s32.totalorder %s72, %s86
      %p88 = scmp.eq.s32.totalorder %s41, 0
      %p89 = por %p87, %p88
      %s91 = sadd.s32 %s90, 1
      %p94 = scmp.eq.s32.totalorder %s35, 1
      %p95 = scmp.ne.s32.totalorder %s90, %s92
      %p96 = scmp.eq.s32.totalorder %s35, 0
      %p97 = por %p95, %p96
      %p98 = scmp.ne.s32.totalorder %s90, %s92
      %p99 = scmp.eq.s32.totalorder %s40, 1
      %p100 = por %p98, %p99
      %p101 = scmp.ne.s32.totalorder %s92, %s93
      %p102 = scmp.eq.s32.totalorder %s40, 0
      %p103 = por %p101, %p102
      %p104 = scmp.ne.s32.totalorder %s92, %s93
      %p105 = scmp.eq.s32.totalorder %s41, 1
      %p106 = por %p104, %p105
      %p108 = scmp.ne.s32.totalorder %s93, %s107
      %p109 = scmp.eq.s32.totalorder %s41, 0
      %p110 = por %p108, %p109
      %s112 = sadd.s32 %s111, 1
      %p115 = scmp.eq.s32.totalorder %s35, 1
      %p116 = scmp.ne.s32.totalorder %s111, %s113
      %p117 = scmp.eq.s32.totalorder %s35, 0
      %p118 = por %p116, %p117
      %p119 = scmp.ne.s32.totalorder %s111, %s113
      %p120 = scmp.eq.s32.totalorder %s40, 1
      %p121 = por %p119, %p120
      %p122 = scmp.ne.s32.totalorder %s113, %s114
      %p123 = scmp.eq.s32.totalorder %s40, 0
      %p124 = por %p122, %p123
      %p125 = scmp.ne.s32.totalorder %s113, %s114
      %p126 = scmp.eq.s32.totalorder %s41, 1
      %p127 = por %p125, %p126
      %p129 = scmp.ne.s32.totalorder %s114, %s128
      %p130 = scmp.eq.s32.totalorder %s41, 0
      %p131 = por %p129, %p130
      %s133 = sadd.s32 %s132, 1
      %p136 = scmp.eq.s32.totalorder %s35, 1
      %p137 = scmp.ne.s32.totalorder %s132, %s134
      %p138 = scmp.eq.s32.totalorder %s35, 0
      %p139 = por %p137, %p138
      %p140 = scmp.ne.s32.totalorder %s132, %s134
      %p141 = scmp.eq.s32.totalorder %s40, 1
      %p142 = por %p140, %p141
      %p143 = scmp.ne.s32.totalorder %s134, %s135
      %p144 = scmp.eq.s32.totalorder %s40, 0
      %p145 = por %p143, %p144
      %p146 = scmp.ne.s32.totalorder %s134, %s135
      %p147 = scmp.eq.s32.totalorder %s41, 1
      %p148 = por %p146, %p147
      %p150 = scmp.ne.s32.totalorder %s135, %s149
      %p151 = scmp.eq.s32.totalorder %s41, 0
      %p152 = por %p150, %p151
      %s154 = sadd.s32 %s153, 1
      %p157 = scmp.eq.s32.totalorder %s35, 1
      %p158 = scmp.ne.s32.totalorder %s153, %s155
      %p159 = scmp.eq.s32.totalorder %s35, 0
      %p160 = por %p158, %p159
      %p161 = scmp.ne.s32.totalorder %s153, %s155
      %p162 = scmp.eq.s32.totalorder %s40, 1
      %p163 = por %p161, %p162
      %p164 = scmp.ne.s32.totalorder %s155, %s156
      %p165 = scmp.eq.s32.totalorder %s40, 0
      %p166 = por %p164, %p165
      %p167 = scmp.ne.s32.totalorder %s155, %s156
      %p168 = scmp.eq.s32.totalorder %s41, 1
      %p169 = por %p167, %p168
      %p171 = scmp.ne.s32.totalorder %s156, %s170
      %p172 = scmp.eq.s32.totalorder %s41, 0
      %p173 = por %p171, %p172
      %s175 = sadd.s32 %s174, 1
      %p178 = scmp.eq.s32.totalorder %s35, 1
      %p179 = scmp.ne.s32.totalorder %s174, %s176
      %p180 = scmp.eq.s32.totalorder %s35, 0
      %p181 = por %p179, %p180
      %p182 = scmp.ne.s32.totalorder %s174, %s176
      %p183 = scmp.eq.s32.totalorder %s40, 1
      %p184 = por %p182, %p183
      %p185 = scmp.ne.s32.totalorder %s176, %s177
      %p186 = scmp.eq.s32.totalorder %s40, 0
      %p187 = por %p185, %p186
      %p188 = scmp.ne.s32.totalorder %s176, %s177
      %p189 = scmp.eq.s32.totalorder %s41, 1
      %p190 = por %p188, %p189
      %p192 = scmp.ne.s32.totalorder %s177, %s191
      %p193 = scmp.eq.s32.totalorder %s41, 0
      %p194 = por %p192, %p193
      %s196 = sadd.s32 %s195, 1
      %p199 = scmp.eq.s32.totalorder %s35, 1
      %p200 = scmp.ne.s32.totalorder %s195, %s197
      %p201 = scmp.eq.s32.totalorder %s35, 0
      %p202 = por %p200, %p201
      %p203 = scmp.ne.s32.totalorder %s195, %s197
      %p204 = scmp.eq.s32.totalorder %s40, 1
      %p205 = por %p203, %p204
      %p206 = scmp.ne.s32.totalorder %s197, %s198
      %p207 = scmp.eq.s32.totalorder %s40, 0
      %p208 = por %p206, %p207
      %p209 = scmp.ne.s32.totalorder %s197, %s198
      %p210 = scmp.eq.s32.totalorder %s41, 1
      %p211 = por %p209, %p210
      %p213 = scmp.ne.s32.totalorder %s198, %s212
      %p214 = scmp.eq.s32.totalorder %s41, 0
      %p215 = por %p213, %p214
      %s217 = sadd.s32 %s216, 1
      %p220 = scmp.eq.s32.totalorder %s35, 1
      %p221 = scmp.ne.s32.totalorder %s216, %s218
      %p222 = scmp.eq.s32.totalorder %s35, 0
      %p223 = por %p221, %p222
      %p224 = scmp.ne.s32.totalorder %s216, %s218
      %p225 = scmp.eq.s32.totalorder %s40, 1
      %p226 = por %p224, %p225
      %p227 = scmp.ne.s32.totalorder %s218, %s219
      %p228 = scmp.eq.s32.totalorder %s40, 0
      %p229 = por %p227, %p228
      %p230 = scmp.ne.s32.totalorder %s218, %s219
      %p231 = scmp.eq.s32.totalorder %s41, 1
      %p232 = por %p230, %p231
      %p234 = scmp.ne.s32.totalorder %s219, %s233
      %p235 = scmp.eq.s32.totalorder %s41, 0
      %p236 = por %p234, %p235
      %s238 = sadd.s32 %s237, 1
      %p241 = scmp.eq.s32.totalorder %s35, 1
      %p242 = scmp.ne.s32.totalorder %s237, %s239
      %p243 = scmp.eq.s32.totalorder %s35, 0
      %p244 = por %p242, %p243
      %p245 = scmp.ne.s32.totalorder %s237, %s239
      %p246 = scmp.eq.s32.totalorder %s40, 1
      %p247 = por %p245, %p246
      %p248 = scmp.ne.s32.totalorder %s239, %s240
      %p249 = scmp.eq.s32.totalorder %s40, 0
      %p250 = por %p248, %p249
      %p251 = scmp.ne.s32.totalorder %s239, %s240
      %p252 = scmp.eq.s32.totalorder %s41, 1
      %p253 = por %p251, %p252
      %p255 = scmp.ne.s32.totalorder %s240, %s254
      %p256 = scmp.eq.s32.totalorder %s41, 0
      %p257 = por %p255, %p256
      %s259 = sadd.s32 %s258, 1
      %p262 = scmp.eq.s32.totalorder %s35, 1
      %p263 = scmp.ne.s32.totalorder %s258, %s260
      %p264 = scmp.eq.s32.totalorder %s35, 0
      %p265 = por %p263, %p264
      %p266 = scmp.ne.s32.totalorder %s258, %s260
      %p267 = scmp.eq.s32.totalorder %s40, 1
      %p268 = por %p266, %p267
      %p269 = scmp.ne.s32.totalorder %s260, %s261
      %p270 = scmp.eq.s32.totalorder %s40, 0
      %p271 = por %p269, %p270
      %p272 = scmp.ne.s32.totalorder %s260, %s261
      %p273 = scmp.eq.s32.totalorder %s41, 1
      %p274 = por %p272, %p273
      %p276 = scmp.ne.s32.totalorder %s261, %s275
      %p277 = scmp.eq.s32.totalorder %s41, 0
      %p278 = por %p276, %p277
      %s280 = sadd.s32 %s279, 1
      %p283 = scmp.eq.s32.totalorder %s35, 1
      %p284 = scmp.ne.s32.totalorder %s279, %s281
      %p285 = scmp.eq.s32.totalorder %s35, 0
      %p286 = por %p284, %p285
      %p287 = scmp.ne.s32.totalorder %s279, %s281
      %p288 = scmp.eq.s32.totalorder %s40, 1
      %p289 = por %p287, %p288
      %p290 = scmp.ne.s32.totalorder %s281, %s282
      %p291 = scmp.eq.s32.totalorder %s40, 0
      %p292 = por %p290, %p291
      %p293 = scmp.ne.s32.totalorder %s281, %s282
      %p294 = scmp.eq.s32.totalorder %s41, 1
      %p295 = por %p293, %p294
      %p297 = scmp.ne.s32.totalorder %s282, %s296
      %p298 = scmp.eq.s32.totalorder %s41, 0
      %p299 = por %p297, %p298
      %s301 = sadd.s32 %s300, 1
      %p304 = scmp.eq.s32.totalorder %s35, 1
      %p305 = scmp.ne.s32.totalorder %s300, %s302
      %p306 = scmp.eq.s32.totalorder %s35, 0
      %p307 = por %p305, %p306
      %p308 = scmp.ne.s32.totalorder %s300, %s302
      %p309 = scmp.eq.s32.totalorder %s40, 1
      %p310 = por %p308, %p309
      %p311 = scmp.ne.s32.totalorder %s302, %s303
      %p312 = scmp.eq.s32.totalorder %s40, 0
      %p313 = por %p311, %p312
      %p314 = scmp.ne.s32.totalorder %s302, %s303
      %p315 = scmp.eq.s32.totalorder %s41, 1
      %p316 = por %p314, %p315
      %p318 = scmp.ne.s32.totalorder %s303, %s317
      %p319 = scmp.eq.s32.totalorder %s41, 0
      %p320 = por %p318, %p319
      %s322 = sadd.s32 %s321, 1
      %p325 = scmp.eq.s32.totalorder %s35, 1
      %p326 = scmp.ne.s32.totalorder %s321, %s323
      %p327 = scmp.eq.s32.totalorder %s35, 0
      %p328 = por %p326, %p327
      %p329 = scmp.ne.s32.totalorder %s321, %s323
      %p330 = scmp.eq.s32.totalorder %s40, 1
      %p331 = por %p329, %p330
      %p332 = scmp.ne.s32.totalorder %s323, %s324
      %p333 = scmp.eq.s32.totalorder %s40, 0
      %p334 = por %p332, %p333
      %p335 = scmp.ne.s32.totalorder %s323, %s324
      %p336 = scmp.eq.s32.totalorder %s41, 1
      %p337 = por %p335, %p336
      %p339 = scmp.ne.s32.totalorder %s324, %s338
      %p340 = scmp.eq.s32.totalorder %s41, 0
      %p341 = por %p339, %p340
      %s343 = sadd.s32 %s342, 1
      %p346 = scmp.eq.s32.totalorder %s35, 1
      %p347 = scmp.ne.s32.totalorder %s342, %s344
      %p348 = scmp.eq.s32.totalorder %s35, 0
      %p349 = por %p347, %p348
      %p350 = scmp.ne.s32.totalorder %s342, %s344
      %p351 = scmp.eq.s32.totalorder %s40, 1
      %p352 = por %p350, %p351
      %p353 = scmp.ne.s32.totalorder %s344, %s345
      %p354 = scmp.eq.s32.totalorder %s40, 0
      %p355 = por %p353, %p354
      %p356 = scmp.ne.s32.totalorder %s344, %s345
      %p357 = scmp.eq.s32.totalorder %s41, 1
      %p358 = por %p356, %p357
      %p360 = scmp.ne.s32.totalorder %s345, %s359
      %p361 = scmp.eq.s32.totalorder %s41, 0
      %p362 = por %p360, %p361
      %s364 = sadd.s32 %s363, 1
      %p367 = scmp.eq.s32.totalorder %s35, 1
      %p368 = scmp.ne.s32.totalorder %s363, %s365
      %p369 = scmp.eq.s32.totalorder %s35, 0
      %p370 = por %p368, %p369
      %p371 = scmp.ne.s32.totalorder %s363, %s365
      %p372 = scmp.eq.s32.totalorder %s40, 1
      %p373 = por %p371, %p372
      %p374 = scmp.ne.s32.totalorder %s365, %s366
      %p375 = scmp.eq.s32.totalorder %s40, 0
      %p376 = por %p374, %p375
      %p377 = scmp.ne.s32.totalorder %s365, %s366
      %p378 = scmp.eq.s32.totalorder %s41, 1
      %p379 = por %p377, %p378
      %p381 = scmp.ne.s32.totalorder %s366, %s380
      %p382 = scmp.eq.s32.totalorder %s41, 0
      %p383 = por %p381, %p382
      %s385 = sadd.s32 %s384, 1
      %p388 = scmp.eq.s32.totalorder %s35, 1
      %p389 = scmp.ne.s32.totalorder %s384, %s386
      %p390 = scmp.eq.s32.totalorder %s35, 0
      %p391 = por %p389, %p390
      %p392 = scmp.ne.s32.totalorder %s384, %s386
      %p393 = scmp.eq.s32.totalorder %s40, 1
      %p394 = por %p392, %p393
      %p395 = scmp.ne.s32.totalorder %s386, %s387
      %p396 = scmp.eq.s32.totalorder %s40, 0
      %p397 = por %p395, %p396
      %p398 = scmp.ne.s32.totalorder %s386, %s387
      %p399 = scmp.eq.s32.totalorder %s41, 1
      %p400 = por %p398, %p399
      %p402 = scmp.ne.s32.totalorder %s387, %s401
      %p403 = scmp.eq.s32.totalorder %s41, 0
      %p404 = por %p402, %p403
      %s405 = ssub.s32 %s35, %s42
      %p406 = scmp.eq.s32.totalorder %s405, 0
      %s408 = sadd.s32 %s407, 1
      %s409 = scalar_select %p406, %s407, %s408
      %p412 = pneg %p406
      %p413 = scmp.eq.s32.totalorder %s35, 1
      %p414 = por %p412, %p413
      %p415 = scmp.ne.s32.totalorder %s407, %s410
      %p416 = scmp.eq.s32.totalorder %s35, 0
      %p417 = por %p415, %p416
      %p418 = scmp.ne.s32.totalorder %s407, %s410
      %p419 = scmp.eq.s32.totalorder %s40, 1
      %p420 = por %p418, %p419
      %p421 = scmp.ne.s32.totalorder %s410, %s411
      %p422 = scmp.eq.s32.totalorder %s40, 0
      %p423 = por %p421, %p422
      %p424 = scmp.ne.s32.totalorder %s410, %s411
      %p425 = scmp.eq.s32.totalorder %s41, 1
      %p426 = por %p424, %p425
      %p428 = scmp.ne.s32.totalorder %s411, %s427
      %p429 = scmp.eq.s32.totalorder %s41, 0
      %p430 = por %p428, %p429
      %p431 = scmp.le.s32.totalorder 1, %s35
      %p432 = scmp.lt.s32.totalorder %s35, 3
      %p433 = pnand %p431, %p432
      %p434 = pneg %p433
      // Predicated region
      $region9: #{tpu_custom_call.1} parent=5 // pred_check
        _
      $region10: #{tpu_custom_call.1} parent=5 // pred_check_branch
        %436 = sbr.rel (%p433) target = $region12
      $region11: #{tpu_custom_call.1} parent=5 // pred_region
        %s437 = ssub.s32 %s35, 1
        // Predicated region
        $region13: #{tpu_custom_call.1} parent=11 // pred_check
          %p438 = pneg %p82
        $region14: #{tpu_custom_call.1} parent=11 // pred_check_branch
          %440 = sbr.rel (%p438) target = $region16
        $region15: #{tpu_custom_call.1} parent=11 // pred_region
          %442 = vsyncadd [#allocation6], 0
          %s444 = sshll.u32 %s1, 4
          %s445 = int_to_ptr.hbm [resolvable:$true] %s444
          %s446 = sshll.u32 [#allocation5], 4
          %s447 = int_to_ptr.vmem [resolvable:$true] %s446
          %449 = dma.hbm_to_vmem [thread:$0]  %s445, 32, %s447, [#allocation6]
        $region16: #{tpu_custom_call.1} parent=11 // pred_fallthru
          _
        // Predicated region
        $region17: #{tpu_custom_call.1} parent=11 // pred_check
          %p450 = pneg %p103
        $region18: #{tpu_custom_call.1} parent=11 // pred_check_branch
          %452 = sbr.rel (%p450) target = $region20
        $region19: #{tpu_custom_call.1} parent=11 // pred_region
          %454 = vsyncadd [#allocation6], 0
          %s456 = sshll.u32 %s2, 4
          %s457 = int_to_ptr.hbm [resolvable:$true] %s456
          %s458 = sshll.u32 [#allocation7], 4
          %s459 = int_to_ptr.vmem [resolvable:$true] %s458
          %461 = dma.hbm_to_vmem [thread:$0]  %s457, 32, %s459, [#allocation6]
        $region20: #{tpu_custom_call.1} parent=11 // pred_fallthru
          _
        // Predicated region
        $region21: #{tpu_custom_call.1} parent=11 // pred_check
          %p462 = pneg %p124
        $region22: #{tpu_custom_call.1} parent=11 // pred_check_branch
          %464 = sbr.rel (%p462) target = $region24
        $region23: #{tpu_custom_call.1} parent=11 // pred_region
          %466 = vsyncadd [#allocation9], 0
          %s467 = sshll.u32 %s3, 4
          %s468 = int_to_ptr.hbm [resolvable:$true] %s467
          %s469 = sshll.u32 [#allocation8], 4
          %s470 = int_to_ptr.vmem [resolvable:$true] %s469
          %475 = dma.hbm_to_vmem [thread:$0]  %s468, 4096, %s470, [#allocation9], 128, 128, 8
        $region24: #{tpu_custom_call.1} parent=11 // pred_fallthru
          _
        // Predicated region
        $region25: #{tpu_custom_call.1} parent=11 // pred_check
          %p476 = pneg %p145
        $region26: #{tpu_custom_call.1} parent=11 // pred_check_branch
          %478 = sbr.rel (%p476) target = $region28
        $region27: #{tpu_custom_call.1} parent=11 // pred_region
          _
        $region28: #{tpu_custom_call.1} parent=11 // pred_fallthru
          _
        // Predicated region
        $region29: #{tpu_custom_call.1} parent=11 // pred_check
          %p479 = pneg %p166
        $region30: #{tpu_custom_call.1} parent=11 // pred_check_branch
          %481 = sbr.rel (%p479) target = $region32
        $region31: #{tpu_custom_call.1} parent=11 // pred_region
          %483 = vsyncadd [#allocation9], 0
          %s484 = sshll.u32 %s5, 4
          %s485 = int_to_ptr.hbm [resolvable:$true] %s484
          %s486 = sshll.u32 [#allocation10], 4
          %s487 = int_to_ptr.vmem [resolvable:$true] %s486
          %492 = dma.hbm_to_vmem [thread:$0]  %s485, 4096, %s487, [#allocation9], 128, 128, 8
        $region32: #{tpu_custom_call.1} parent=11 // pred_fallthru
          _
        // Predicated region
        $region33: #{tpu_custom_call.1} parent=11 // pred_check
          %p493 = pneg %p187
        $region34: #{tpu_custom_call.1} parent=11 // pred_check_branch
          %495 = sbr.rel (%p493) target = $region36
        $region35: #{tpu_custom_call.1} parent=11 // pred_region
          _
        $region36: #{tpu_custom_call.1} parent=11 // pred_fallthru
          _
        // Predicated region
        $region37: #{tpu_custom_call.1} parent=11 // pred_check
          %p496 = pneg %p208
        $region38: #{tpu_custom_call.1} parent=11 // pred_check_branch
          %498 = sbr.rel (%p496) target = $region40
        $region39: #{tpu_custom_call.1} parent=11 // pred_region
          %500 = vsyncadd [#allocation12], 0
          %s501 = sshll.u32 %s7, 4
          %s502 = int_to_ptr.hbm [resolvable:$true] %s501
          %s503 = sshll.u32 [#allocation11], 4
          %s504 = int_to_ptr.vmem [resolvable:$true] %s503
          %509 = dma.hbm_to_vmem [thread:$0]  %s502, 4096, %s504, [#allocation12], 128, 128, 8
        $region40: #{tpu_custom_call.1} parent=11 // pred_fallthru
          _
        // Predicated region
        $region41: #{tpu_custom_call.1} parent=11 // pred_check
          %p510 = pneg %p229
        $region42: #{tpu_custom_call.1} parent=11 // pred_check_branch
          %512 = sbr.rel (%p510) target = $region44
        $region43: #{tpu_custom_call.1} parent=11 // pred_region
          %514 = vsyncadd [#allocation12], 0
          %s516 = sshll.u32 %s8, 4
          %s517 = int_to_ptr.hbm [resolvable:$true] %s516
          %s518 = sshll.u32 [#allocation13], 4
          %s519 = int_to_ptr.vmem [resolvable:$true] %s518
          %521 = dma.hbm_to_vmem [thread:$0]  %s517, 32, %s519, [#allocation12]
        $region44: #{tpu_custom_call.1} parent=11 // pred_fallthru
          _
        // Predicated region
        $region45: #{tpu_custom_call.1} parent=11 // pred_check
          %p522 = pneg %p250
        $region46: #{tpu_custom_call.1} parent=11 // pred_check_branch
          %524 = sbr.rel (%p522) target = $region48
        $region47: #{tpu_custom_call.1} parent=11 // pred_region
          %526 = vsyncadd [#allocation15], 0
          %s527 = sshll.u32 %s9, 4
          %s528 = int_to_ptr.hbm [resolvable:$true] %s527
          %s529 = sshll.u32 [#allocation14], 4
          %s530 = int_to_ptr.vmem [resolvable:$true] %s529
          %535 = dma.hbm_to_vmem [thread:$0]  %s528, 4096, %s530, [#allocation15], 128, 128, 8
        $region48: #{tpu_custom_call.1} parent=11 // pred_fallthru
          _
        // Predicated region
        $region49: #{tpu_custom_call.1} parent=11 // pred_check
          %p536 = pneg %p271
        $region50: #{tpu_custom_call.1} parent=11 // pred_check_branch
          %538 = sbr.rel (%p536) target = $region52
        $region51: #{tpu_custom_call.1} parent=11 // pred_region
          %540 = vsyncadd [#allocation15], 0
          %s542 = sshll.u32 %s10, 4
          %s543 = int_to_ptr.hbm [resolvable:$true] %s542
          %s544 = sshll.u32 [#allocation16], 4
          %s545 = int_to_ptr.vmem [resolvable:$true] %s544
          %547 = dma.hbm_to_vmem [thread:$0]  %s543, 32, %s545, [#allocation15]
        $region52: #{tpu_custom_call.1} parent=11 // pred_fallthru
          _
        // Predicated region
        $region53: #{tpu_custom_call.1} parent=11 // pred_check
          %p548 = pneg %p292
        $region54: #{tpu_custom_call.1} parent=11 // pred_check_branch
          %550 = sbr.rel (%p548) target = $region56
        $region55: #{tpu_custom_call.1} parent=11 // pred_region
          %552 = vsyncadd [#allocation18], 0
          %s554 = sshll.u32 %s11, 4
          %s555 = int_to_ptr.hbm [resolvable:$true] %s554
          %s556 = sshll.u32 [#allocation17], 4
          %s557 = int_to_ptr.vmem [resolvable:$true] %s556
          %559 = dma.hbm_to_vmem [thread:$0]  %s555, 32, %s557, [#allocation18]
        $region56: #{tpu_custom_call.1} parent=11 // pred_fallthru
          _
        // Predicated region
        $region57: #{tpu_custom_call.1} parent=11 // pred_check
          %p560 = pneg %p313
        $region58: #{tpu_custom_call.1} parent=11 // pred_check_branch
          %562 = sbr.rel (%p560) target = $region60
        $region59: #{tpu_custom_call.1} parent=11 // pred_region
          %564 = vsyncadd [#allocation18], 0
          %s566 = sshll.u32 %s12, 4
          %s567 = int_to_ptr.hbm [resolvable:$true] %s566
          %s568 = sshll.u32 [#allocation19], 4
          %s569 = int_to_ptr.vmem [resolvable:$true] %s568
          %571 = dma.hbm_to_vmem [thread:$0]  %s567, 32, %s569, [#allocation18]
        $region60: #{tpu_custom_call.1} parent=11 // pred_fallthru
          _
        // Predicated region
        $region61: #{tpu_custom_call.1} parent=11 // pred_check
          %p572 = pneg %p334
        $region62: #{tpu_custom_call.1} parent=11 // pred_check_branch
          %574 = sbr.rel (%p572) target = $region64
        $region63: #{tpu_custom_call.1} parent=11 // pred_region
          %576 = vsyncadd [#allocation21], 0
          %s577 = sshll.u32 %s13, 4
          %s578 = int_to_ptr.hbm [resolvable:$true] %s577
          %s579 = sshll.u32 [#allocation20], 4
          %s580 = int_to_ptr.vmem [resolvable:$true] %s579
          %585 = dma.hbm_to_vmem [thread:$0]  %s578, 16384, %s580, [#allocation21], 512, 512, 32
        $region64: #{tpu_custom_call.1} parent=11 // pred_fallthru
          _
        // Predicated region
        $region65: #{tpu_custom_call.1} parent=11 // pred_check
          %p586 = pneg %p355
        $region66: #{tpu_custom_call.1} parent=11 // pred_check_branch
          %588 = sbr.rel (%p586) target = $region68
        $region67: #{tpu_custom_call.1} parent=11 // pred_region
          _
        $region68: #{tpu_custom_call.1} parent=11 // pred_fallthru
          _
        // Predicated region
        $region69: #{tpu_custom_call.1} parent=11 // pred_check
          %p589 = pneg %p376
        $region70: #{tpu_custom_call.1} parent=11 // pred_check_branch
          %591 = sbr.rel (%p589) target = $region72
        $region71: #{tpu_custom_call.1} parent=11 // pred_region
          %593 = vsyncadd [#allocation21], 0
          %s594 = sshll.u32 %s15, 4
          %s595 = int_to_ptr.hbm [resolvable:$true] %s594
          %s596 = sshll.u32 [#allocation22], 4
          %s597 = int_to_ptr.vmem [resolvable:$true] %s596
          %602 = dma.hbm_to_vmem [thread:$0]  %s595, 16384, %s597, [#allocation21], 128, 128, 8
        $region72: #{tpu_custom_call.1} parent=11 // pred_fallthru
          _
        // Predicated region
        $region73: #{tpu_custom_call.1} parent=11 // pred_check
          %p603 = pneg %p397
        $region74: #{tpu_custom_call.1} parent=11 // pred_check_branch
          %605 = sbr.rel (%p603) target = $region76
        $region75: #{tpu_custom_call.1} parent=11 // pred_region
          _
        $region76: #{tpu_custom_call.1} parent=11 // pred_fallthru
          _
      $region12: #{tpu_custom_call.1} parent=5 // pred_fallthru
        _
      %p606 = scmp.lt.s32.totalorder %s35, 2
      // Predicated region
      $region77: #{tpu_custom_call.1} parent=5 // pred_check
        %p607 = pneg %p606
      $region78: #{tpu_custom_call.1} parent=5 // pred_check_branch
        %609 = sbr.rel (%p607) target = $region80
      $region79: #{tpu_custom_call.1} parent=5 // pred_region
        // Predicated region
        $region81: #{tpu_custom_call.1} parent=79 // pred_check
          %p610 = pneg %p55
        $region82: #{tpu_custom_call.1} parent=79 // pred_check_branch
          %612 = sbr.rel (%p610) target = $region84
        $region83: #{tpu_custom_call.1} parent=79 // pred_region
          %s613 = sand.u32 %s45, 1
          %s614 = scalar_lea.sflag [#allocation3], %s613
          %s615 = sand.u32 %s45, 1
          %s616 = smul.addr %s615, 128
          %s617 = scalar_lea.vmem [#allocation2], %s616
          %619 = vsyncadd %s614, 0
          %s620 = smul.addr %s35, 2
          %s621 = smul.addr %s620, 8
          %s622 = scalar_lea.hbm %s0, %s621
          %s623 = sshll.u32 %s622, 4
          %s624 = int_to_ptr.hbm [resolvable:$true] %s623
          %s625 = sshll.u32 %s617, 4
          %s626 = int_to_ptr.vmem [resolvable:$true] %s625
          %631 = dma.hbm_to_vmem [thread:$0]  %s624, 2048, %s626, %s614, 512, 256, 16
        $region84: #{tpu_custom_call.1} parent=79 // pred_fallthru
          _
      $region80: #{tpu_custom_call.1} parent=5 // pred_fallthru
        _
      %p632 = scmp.le.s32.totalorder 1, %s35
      %p633 = scmp.lt.s32.totalorder %s35, 3
      %p634 = pnand %p632, %p633
      %p635 = pneg %p634
      // Predicated region
      $region85: #{tpu_custom_call.1} parent=5 // pred_check
        _
      $region86: #{tpu_custom_call.1} parent=5 // pred_check_branch
        %637 = sbr.rel (%p634) target = $region88
      $region87: #{tpu_custom_call.1} parent=5 // pred_region
        %s638 = ssub.s32 %s35, 1
        %s639 = sand.u32 %s48, 1
        %s640 = scalar_lea.sflag [#allocation3], %s639
        %s641 = sand.u32 %s48, 1
        %s642 = smul.addr %s641, 128
        %s643 = scalar_lea.vmem [#allocation2], %s642
        // Predicated region
        $region89: #{tpu_custom_call.1} parent=87 // pred_check
          %p644 = pneg %p61
        $region90: #{tpu_custom_call.1} parent=87 // pred_check_branch
          %646 = sbr.rel (%p644) target = $region92
        $region91: #{tpu_custom_call.1} parent=87 // pred_region
          %648 = dma.done %s640, 2048
        $region92: #{tpu_custom_call.1} parent=87 // pred_fallthru
          _
        // Predicated region
        $region93: #{tpu_custom_call.1} parent=87 // pred_check
          %p649 = pneg %p82
        $region94: #{tpu_custom_call.1} parent=87 // pred_check_branch
          %651 = sbr.rel (%p649) target = $region96
        $region95: #{tpu_custom_call.1} parent=87 // pred_region
          %653 = dma.done [#allocation6], 32
        $region96: #{tpu_custom_call.1} parent=87 // pred_fallthru
          _
        // Predicated region
        $region97: #{tpu_custom_call.1} parent=87 // pred_check
          %p654 = pneg %p103
        $region98: #{tpu_custom_call.1} parent=87 // pred_check_branch
          %656 = sbr.rel (%p654) target = $region100
        $region99: #{tpu_custom_call.1} parent=87 // pred_region
          %658 = dma.done [#allocation6], 32
        $region100: #{tpu_custom_call.1} parent=87 // pred_fallthru
          _
        // Predicated region
        $region101: #{tpu_custom_call.1} parent=87 // pred_check
          %p659 = pneg %p124
        $region102: #{tpu_custom_call.1} parent=87 // pred_check_branch
          %661 = sbr.rel (%p659) target = $region104
        $region103: #{tpu_custom_call.1} parent=87 // pred_region
          %663 = dma.done [#allocation9], 4096
        $region104: #{tpu_custom_call.1} parent=87 // pred_fallthru
          _
        // Predicated region
        $region105: #{tpu_custom_call.1} parent=87 // pred_check
          %p664 = pneg %p166
        $region106: #{tpu_custom_call.1} parent=87 // pred_check_branch
          %666 = sbr.rel (%p664) target = $region108
        $region107: #{tpu_custom_call.1} parent=87 // pred_region
          %668 = dma.done [#allocation9], 4096
        $region108: #{tpu_custom_call.1} parent=87 // pred_fallthru
          _
        // Predicated region
        $region109: #{tpu_custom_call.1} parent=87 // pred_check
          %p669 = pneg %p208
        $region110: #{tpu_custom_call.1} parent=87 // pred_check_branch
          %671 = sbr.rel (%p669) target = $region112
        $region111: #{tpu_custom_call.1} parent=87 // pred_region
          %673 = dma.done [#allocation12], 4096
        $region112: #{tpu_custom_call.1} parent=87 // pred_fallthru
          _
        // Predicated region
        $region113: #{tpu_custom_call.1} parent=87 // pred_check
          %p674 = pneg %p229
        $region114: #{tpu_custom_call.1} parent=87 // pred_check_branch
          %676 = sbr.rel (%p674) target = $region116
        $region115: #{tpu_custom_call.1} parent=87 // pred_region
          %678 = dma.done [#allocation12], 32
        $region116: #{tpu_custom_call.1} parent=87 // pred_fallthru
          _
        // Predicated region
        $region117: #{tpu_custom_call.1} parent=87 // pred_check
          %p679 = pneg %p250
        $region118: #{tpu_custom_call.1} parent=87 // pred_check_branch
          %681 = sbr.rel (%p679) target = $region120
        $region119: #{tpu_custom_call.1} parent=87 // pred_region
          %683 = dma.done [#allocation15], 4096
        $region120: #{tpu_custom_call.1} parent=87 // pred_fallthru
          _
        // Predicated region
        $region121: #{tpu_custom_call.1} parent=87 // pred_check
          %p684 = pneg %p271
        $region122: #{tpu_custom_call.1} parent=87 // pred_check_branch
          %686 = sbr.rel (%p684) target = $region124
        $region123: #{tpu_custom_call.1} parent=87 // pred_region
          %688 = dma.done [#allocation15], 32
        $region124: #{tpu_custom_call.1} parent=87 // pred_fallthru
          _
        // Predicated region
        $region125: #{tpu_custom_call.1} parent=87 // pred_check
          %p689 = pneg %p292
        $region126: #{tpu_custom_call.1} parent=87 // pred_check_branch
          %691 = sbr.rel (%p689) target = $region128
        $region127: #{tpu_custom_call.1} parent=87 // pred_region
          %693 = dma.done [#allocation18], 32
        $region128: #{tpu_custom_call.1} parent=87 // pred_fallthru
          _
        // Predicated region
        $region129: #{tpu_custom_call.1} parent=87 // pred_check
          %p694 = pneg %p313
        $region130: #{tpu_custom_call.1} parent=87 // pred_check_branch
          %696 = sbr.rel (%p694) target = $region132
        $region131: #{tpu_custom_call.1} parent=87 // pred_region
          %698 = dma.done [#allocation18], 32
        $region132: #{tpu_custom_call.1} parent=87 // pred_fallthru
          _
        // Predicated region
        $region133: #{tpu_custom_call.1} parent=87 // pred_check
          %p699 = pneg %p334
        $region134: #{tpu_custom_call.1} parent=87 // pred_check_branch
          %701 = sbr.rel (%p699) target = $region136
        $region135: #{tpu_custom_call.1} parent=87 // pred_region
          %703 = dma.done [#allocation21], 16384
        $region136: #{tpu_custom_call.1} parent=87 // pred_fallthru
          _
        // Predicated region
        $region137: #{tpu_custom_call.1} parent=87 // pred_check
          %p704 = pneg %p376
        $region138: #{tpu_custom_call.1} parent=87 // pred_check_branch
          %706 = sbr.rel (%p704) target = $region140
        $region139: #{tpu_custom_call.1} parent=87 // pred_region
          %708 = dma.done [#allocation21], 16384
        $region140: #{tpu_custom_call.1} parent=87 // pred_fallthru
          _
        %s709 = sand.u32 %s48, 1
        %s710 = scalar_lea.sflag [#allocation3], %s709
        %s711 = sand.u32 %s48, 1
        %s712 = smul.addr %s711, 128
        %s713 = scalar_lea.vmem [#allocation2], %s712
        %p714 = pneg %p61
        %p715 = pneg %p58
        %p716 = pneg %p82
        %p717 = pneg %p79
        %p718 = pneg %p103
        %p719 = pneg %p100
        %p720 = pneg %p124
        %p721 = pneg %p121
        %p722 = pneg %p145
        %p723 = pneg %p142
        %p724 = pneg %p166
        %p725 = pneg %p163
        %p726 = pneg %p187
        %p727 = pneg %p184
        %p728 = pneg %p208
        %p729 = pneg %p205
        %p730 = pneg %p229
        %p731 = pneg %p226
        %p732 = pneg %p250
        %p733 = pneg %p247
        %p734 = pneg %p271
        %p735 = pneg %p268
        %p736 = pneg %p292
        %p737 = pneg %p289
        %p738 = pneg %p313
        %p739 = pneg %p310
        %p740 = pneg %p334
        %p741 = pneg %p331
        %p742 = pneg %p355
        %p743 = pneg %p352
        %p744 = pneg %p376
        %p745 = pneg %p373
        %p746 = pneg %p397
        %p747 = pneg %p394
        %p748 = pneg %p423
        %p749 = pneg %p420
        %s750 = sand.u32 %s410, 1
        %s751 = scalar_lea.sflag [#allocation4], %s750
        %s752 = sand.u32 %s410, 1
        %s753 = smul.addr %s752, 128
        %s754 = scalar_lea.vmem [#allocation23], %s753
        %v756 = vld [vmem:[%s643] sm:$0xff]
        %v757 = vld [vmem:[%s643 + $0x8] sm:$0xff]
        %v758 = vld [vmem:[%s643 + $0x10] sm:$0xff]
        %v759 = vld [vmem:[%s643 + $0x18] sm:$0xff]
        %v760 = vld [vmem:[%s643 + $0x20] sm:$0xff]
        %v761 = vld [vmem:[%s643 + $0x28] sm:$0xff]
        %v762 = vld [vmem:[%s643 + $0x30] sm:$0xff]
        %v763 = vld [vmem:[%s643 + $0x38] sm:$0xff]
        %v764 = vld [vmem:[%s643 + $0x40] sm:$0xff]
        %v765 = vld [vmem:[%s643 + $0x48] sm:$0xff]
        %v766 = vld [vmem:[%s643 + $0x50] sm:$0xff]
        %v767 = vld [vmem:[%s643 + $0x58] sm:$0xff]
        %v768 = vld [vmem:[%s643 + $0x60] sm:$0xff]
        %v769 = vld [vmem:[%s643 + $0x68] sm:$0xff]
        %v770 = vld [vmem:[%s643 + $0x70] sm:$0xff]
        %v771 = vld [vmem:[%s643 + $0x78] sm:$0xff]
        %v772 = vld [vmem:[#allocation5] sm:$0x3]
        %v773 = vld [vmem:[#allocation7] sm:$0x3]
        %v774 = vadd.f32 %v756, %v757
        %775 = vadd.xlane.f32.xlu0 %v774
        %v776 = vpop.xlane.xlu0 %775
        %v777 = vadd.f32 %v758, %v759
        %778 = vadd.xlane.f32.xlu0 %v777
        %v779 = vpop.xlane.xlu0 %778
        %v780 = vadd.f32 %v760, %v761
        %781 = vadd.xlane.f32.xlu0 %v780
        %v782 = vpop.xlane.xlu0 %781
        %v783 = vadd.f32 %v762, %v763
        %784 = vadd.xlane.f32.xlu0 %v783
        %v785 = vpop.xlane.xlu0 %784
        %v786 = vadd.f32 %v764, %v765
        %787 = vadd.xlane.f32.xlu0 %v786
        %v788 = vpop.xlane.xlu0 %787
        %v789 = vadd.f32 %v766, %v767
        %790 = vadd.xlane.f32.xlu0 %v789
        %v791 = vpop.xlane.xlu0 %790
        %v792 = vadd.f32 %v768, %v769
        %793 = vadd.xlane.f32.xlu0 %v792
        %v794 = vpop.xlane.xlu0 %793
        %v795 = vadd.f32 %v770, %v771
        %796 = vadd.xlane.f32.xlu0 %v795
        %v797 = vpop.xlane.xlu0 %796
        %v798 = vrcp.pop 256.0
        %v799 = vmul.f32 256.0, %v798
        %v800 = vsub.f32 1.0, %v799
        %v801 = vmul.f32 %v798, %v800
        %v802 = vadd.f32 %v798, %v801
        %vm803 = vweird.f32 %v798
        %v804 = vsel %vm803, %v798, %v802
        %v805 = vmul.f32 %v776, %v804
        %v806 = vmul.f32 %v779, %v804
        %v807 = vmul.f32 %v782, %v804
        %v808 = vmul.f32 %v785, %v804
        %v809 = vmul.f32 %v788, %v804
        %v810 = vmul.f32 %v791, %v804
        %v811 = vmul.f32 %v794, %v804
        %v812 = vmul.f32 %v797, %v804
        %v813 = vsub.f32 %v756, %v805
        %v814 = vsub.f32 %v757, %v805
        %v815 = vsub.f32 %v758, %v806
        %v816 = vsub.f32 %v759, %v806
        %v817 = vsub.f32 %v760, %v807
        %v818 = vsub.f32 %v761, %v807
        %v819 = vsub.f32 %v762, %v808
        %v820 = vsub.f32 %v763, %v808
        %v821 = vsub.f32 %v764, %v809
        %v822 = vsub.f32 %v765, %v809
        %v823 = vsub.f32 %v766, %v810
        %v824 = vsub.f32 %v767, %v810
        %v825 = vsub.f32 %v768, %v811
        %v826 = vsub.f32 %v769, %v811
        %v827 = vsub.f32 %v770, %v812
        %v828 = vsub.f32 %v771, %v812
        %v829 = vmul.f32 %v813, %v813
        %v830 = vmul.f32 %v814, %v814
        %v831 = vmul.f32 %v815, %v815
        %v832 = vmul.f32 %v816, %v816
        %v833 = vmul.f32 %v817, %v817
        %v834 = vmul.f32 %v818, %v818
        %v835 = vmul.f32 %v819, %v819
        %v836 = vmul.f32 %v820, %v820
        %v837 = vmul.f32 %v821, %v821
        %v838 = vmul.f32 %v822, %v822
        %v839 = vmul.f32 %v823, %v823
        %v840 = vmul.f32 %v824, %v824
        %v841 = vmul.f32 %v825, %v825
        %v842 = vmul.f32 %v826, %v826
        %v843 = vmul.f32 %v827, %v827
        %v844 = vmul.f32 %v828, %v828
        %v845 = vadd.f32 %v829, %v830
        %846 = vadd.xlane.f32.xlu0 %v845
        %v847 = vpop.xlane.xlu0 %846
        %v848 = vadd.f32 %v831, %v832
        %849 = vadd.xlane.f32.xlu0 %v848
        %v850 = vpop.xlane.xlu0 %849
        %v851 = vadd.f32 %v833, %v834
        %852 = vadd.xlane.f32.xlu0 %v851
        %v853 = vpop.xlane.xlu0 %852
        %v854 = vadd.f32 %v835, %v836
        %855 = vadd.xlane.f32.xlu0 %v854
        %v856 = vpop.xlane.xlu0 %855
        %v857 = vadd.f32 %v837, %v838
        %858 = vadd.xlane.f32.xlu0 %v857
        %v859 = vpop.xlane.xlu0 %858
        %v860 = vadd.f32 %v839, %v840
        %861 = vadd.xlane.f32.xlu0 %v860
        %v862 = vpop.xlane.xlu0 %861
        %v863 = vadd.f32 %v841, %v842
        %864 = vadd.xlane.f32.xlu0 %v863
        %v865 = vpop.xlane.xlu0 %864
        %v866 = vadd.f32 %v843, %v844
        %867 = vadd.xlane.f32.xlu0 %v866
        %v868 = vpop.xlane.xlu0 %867
        %v869 = vmul.f32 %v847, %v804
        %v870 = vmul.f32 %v850, %v804
        %v871 = vmul.f32 %v853, %v804
        %v872 = vmul.f32 %v856, %v804
        %v873 = vmul.f32 %v859, %v804
        %v874 = vmul.f32 %v862, %v804
        %v875 = vmul.f32 %v865, %v804
        %v876 = vmul.f32 %v868, %v804
        %v877 = vadd.f32 %v869, 1e-05
        %v878 = vadd.f32 %v870, 1e-05
        %v879 = vadd.f32 %v871, 1e-05
        %v880 = vadd.f32 %v872, 1e-05
        %v881 = vadd.f32 %v873, 1e-05
        %v882 = vadd.f32 %v874, 1e-05
        %v883 = vadd.f32 %v875, 1e-05
        %v884 = vadd.f32 %v876, 1e-05
        %v885 = vrsqrt.pop %v877
        %v886 = vmul.f32 %v885, %v877
        %v887 = vmul.f32 %v886, %v885
        %v888 = vmul.f32 0.5, %v887
        %v889 = vsub.f32 1.5, %v888
        %v890 = vmul.f32 %v885, %v889
        %vm891 = vweird.f32 %v877
        %vm892 = vweird.f32 %v885
        %vm893 = vmor %vm891, %vm892
        %v894 = vsel %vm893, %v885, %v890
        %v895 = vrsqrt.pop %v878
        %v896 = vmul.f32 %v895, %v878
        %v897 = vmul.f32 %v896, %v895
        %v898 = vmul.f32 0.5, %v897
        %v899 = vsub.f32 1.5, %v898
        %v900 = vmul.f32 %v895, %v899
        %vm901 = vweird.f32 %v878
        %vm902 = vweird.f32 %v895
        %vm903 = vmor %vm901, %vm902
        %v904 = vsel %vm903, %v895, %v900
        %v905 = vrsqrt.pop %v879
        %v906 = vmul.f32 %v905, %v879
        %v907 = vmul.f32 %v906, %v905
        %v908 = vmul.f32 0.5, %v907
        %v909 = vsub.f32 1.5, %v908
        %v910 = vmul.f32 %v905, %v909
        %vm911 = vweird.f32 %v879
        %vm912 = vweird.f32 %v905
        %vm913 = vmor %vm911, %vm912
        %v914 = vsel %vm913, %v905, %v910
        %v915 = vrsqrt.pop %v880
        %v916 = vmul.f32 %v915, %v880
        %v917 = vmul.f32 %v916, %v915
        %v918 = vmul.f32 0.5, %v917
        %v919 = vsub.f32 1.5, %v918
        %v920 = vmul.f32 %v915, %v919
        %vm921 = vweird.f32 %v880
        %vm922 = vweird.f32 %v915
        %vm923 = vmor %vm921, %vm922
        %v924 = vsel %vm923, %v915, %v920
        %v925 = vrsqrt.pop %v881
        %v926 = vmul.f32 %v925, %v881
        %v927 = vmul.f32 %v926, %v925
        %v928 = vmul.f32 0.5, %v927
        %v929 = vsub.f32 1.5, %v928
        %v930 = vmul.f32 %v925, %v929
        %vm931 = vweird.f32 %v881
        %vm932 = vweird.f32 %v925
        %vm933 = vmor %vm931, %vm932
        %v934 = vsel %vm933, %v925, %v930
        %v935 = vrsqrt.pop %v882
        %v936 = vmul.f32 %v935, %v882
        %v937 = vmul.f32 %v936, %v935
        %v938 = vmul.f32 0.5, %v937
        %v939 = vsub.f32 1.5, %v938
        %v940 = vmul.f32 %v935, %v939
        %vm941 = vweird.f32 %v882
        %vm942 = vweird.f32 %v935
        %vm943 = vmor %vm941, %vm942
        %v944 = vsel %vm943, %v935, %v940
        %v945 = vrsqrt.pop %v883
        %v946 = vmul.f32 %v945, %v883
        %v947 = vmul.f32 %v946, %v945
        %v948 = vmul.f32 0.5, %v947
        %v949 = vsub.f32 1.5, %v948
        %v950 = vmul.f32 %v945, %v949
        %vm951 = vweird.f32 %v883
        %vm952 = vweird.f32 %v945
        %vm953 = vmor %vm951, %vm952
        %v954 = vsel %vm953, %v945, %v950
        %v955 = vrsqrt.pop %v884
        %v956 = vmul.f32 %v955, %v884
        %v957 = vmul.f32 %v956, %v955
        %v958 = vmul.f32 0.5, %v957
        %v959 = vsub.f32 1.5, %v958
        %v960 = vmul.f32 %v955, %v959
        %vm961 = vweird.f32 %v884
        %vm962 = vweird.f32 %v955
        %vm963 = vmor %vm961, %vm962
        %v964 = vsel %vm963, %v955, %v960
        %v965 = vmul.f32 %v813, %v894
        %v966 = vmul.f32 %v814, %v894
        %v967 = vmul.f32 %v815, %v904
        %v968 = vmul.f32 %v816, %v904
        %v969 = vmul.f32 %v817, %v914
        %v970 = vmul.f32 %v818, %v914
        %v971 = vmul.f32 %v819, %v924
        %v972 = vmul.f32 %v820, %v924
        %v973 = vmul.f32 %v821, %v934
        %v974 = vmul.f32 %v822, %v934
        %v975 = vmul.f32 %v823, %v944
        %v976 = vmul.f32 %v824, %v944
        %v977 = vmul.f32 %v825, %v954
        %v978 = vmul.f32 %v826, %v954
        %v979 = vmul.f32 %v827, %v964
        %v980 = vmul.f32 %v828, %v964
        %v982 = vperm.slane %v772, 0
        %v983 = vperm.slane %v772, 1
        %v986 = vmul.f32 %v965, %v982
        %v987 = vmul.f32 %v966, %v983
        %v988 = vmul.f32 %v967, %v982
        %v989 = vmul.f32 %v968, %v983
        %v990 = vmul.f32 %v969, %v982
        %v991 = vmul.f32 %v970, %v983
        %v992 = vmul.f32 %v971, %v982
        %v993 = vmul.f32 %v972, %v983
        %v994 = vmul.f32 %v973, %v982
        %v995 = vmul.f32 %v974, %v983
        %v996 = vmul.f32 %v975, %v982
        %v997 = vmul.f32 %v976, %v983
        %v998 = vmul.f32 %v977, %v982
        %v999 = vmul.f32 %v978, %v983
        %v1000 = vmul.f32 %v979, %v982
        %v1001 = vmul.f32 %v980, %v983
        %v1003 = vperm.slane %v773, 0
        %v1004 = vperm.slane %v773, 1
        %v1007 = vadd.f32 %v986, %v1003
        %v1008 = vadd.f32 %v987, %v1004
        %v1009 = vadd.f32 %v988, %v1003
        %v1010 = vadd.f32 %v989, %v1004
        %v1011 = vadd.f32 %v990, %v1003
        %v1012 = vadd.f32 %v991, %v1004
        %v1013 = vadd.f32 %v992, %v1003
        %v1014 = vadd.f32 %v993, %v1004
        %v1015 = vadd.f32 %v994, %v1003
        %v1016 = vadd.f32 %v995, %v1004
        %v1017 = vadd.f32 %v996, %v1003
        %v1018 = vadd.f32 %v997, %v1004
        %v1019 = vadd.f32 %v998, %v1003
        %v1020 = vadd.f32 %v999, %v1004
        %v1021 = vadd.f32 %v1000, %v1003
        %v1022 = vadd.f32 %v1001, %v1004
        %v1023 = vpack.c.bf16 %v1009, %v1007
        %v1024 = vpack.c.bf16 %v1010, %v1008
        %v1025 = vpack.c.bf16 %v1013, %v1011
        %v1026 = vpack.c.bf16 %v1014, %v1012
        %v1027 = vpack.c.bf16 %v1017, %v1015
        %v1028 = vpack.c.bf16 %v1018, %v1016
        %v1029 = vpack.c.bf16 %v1021, %v1019
        %v1030 = vpack.c.bf16 %v1022, %v1020
        %v1031 = vld [vmem:[#allocation8] sm:$0xff]
        %v1032 = vld [vmem:[#allocation8 + $0x8] sm:$0xff]
        %v1033 = vld [vmem:[#allocation8 + $0x10] sm:$0xff]
        %v1034 = vld [vmem:[#allocation8 + $0x18] sm:$0xff]
        %v1035 = vld [vmem:[#allocation8 + $0x20] sm:$0xff]
        %v1036 = vld [vmem:[#allocation8 + $0x28] sm:$0xff]
        %v1037 = vld [vmem:[#allocation8 + $0x30] sm:$0xff]
        %v1038 = vld [vmem:[#allocation8 + $0x38] sm:$0xff]
        %v1039 = vld [vmem:[#allocation8 + $0x40] sm:$0xff]
        %v1040 = vld [vmem:[#allocation8 + $0x48] sm:$0xff]
        %v1041 = vld [vmem:[#allocation8 + $0x50] sm:$0xff]
        %v1042 = vld [vmem:[#allocation8 + $0x58] sm:$0xff]
        %v1043 = vld [vmem:[#allocation8 + $0x60] sm:$0xff]
        %v1044 = vld [vmem:[#allocation8 + $0x68] sm:$0xff]
        %v1045 = vld [vmem:[#allocation8 + $0x70] sm:$0xff]
        %v1046 = vld [vmem:[#allocation8 + $0x78] sm:$0xff]
        %v1047 = vld [vmem:[#allocation8 + $0x80] sm:$0xff]
        %v1048 = vld [vmem:[#allocation8 + $0x88] sm:$0xff]
        %v1049 = vld [vmem:[#allocation8 + $0x90] sm:$0xff]
        %v1050 = vld [vmem:[#allocation8 + $0x98] sm:$0xff]
        %v1051 = vld [vmem:[#allocation8 + $0xa0] sm:$0xff]
        %v1052 = vld [vmem:[#allocation8 + $0xa8] sm:$0xff]
        %v1053 = vld [vmem:[#allocation8 + $0xb0] sm:$0xff]
        %v1054 = vld [vmem:[#allocation8 + $0xb8] sm:$0xff]
        %v1055 = vld [vmem:[#allocation8 + $0xc0] sm:$0xff]
        %v1056 = vld [vmem:[#allocation8 + $0xc8] sm:$0xff]
        %v1057 = vld [vmem:[#allocation8 + $0xd0] sm:$0xff]
        %v1058 = vld [vmem:[#allocation8 + $0xd8] sm:$0xff]
        %v1059 = vld [vmem:[#allocation8 + $0xe0] sm:$0xff]
        %v1060 = vld [vmem:[#allocation8 + $0xe8] sm:$0xff]
        %v1061 = vld [vmem:[#allocation8 + $0xf0] sm:$0xff]
        %v1062 = vld [vmem:[#allocation8 + $0xf8] sm:$0xff]
        %v1063 = vld [vmem:[%s4] sm:$0x3]
        %v1065 = vperm.slane %v1063, 0
        %v1066 = vperm.slane %v1063, 1
        %v1101 = vunpack.c.l.b16 %v1031
        %v1102 = vunpack.c.h.b16 %v1031
        %v1103 = vunpack.c.l.b16 %v1032
        %v1104 = vunpack.c.h.b16 %v1032
        %v1105 = vunpack.c.l.b16 %v1033
        %v1106 = vunpack.c.h.b16 %v1033
        %v1107 = vunpack.c.l.b16 %v1034
        %v1108 = vunpack.c.h.b16 %v1034
        %v1109 = vunpack.c.l.b16 %v1035
        %v1110 = vunpack.c.h.b16 %v1035
        %v1111 = vunpack.c.l.b16 %v1036
        %v1112 = vunpack.c.h.b16 %v1036
        %v1113 = vunpack.c.l.b16 %v1037
        %v1114 = vunpack.c.h.b16 %v1037
        %v1115 = vunpack.c.l.b16 %v1038
        %v1116 = vunpack.c.h.b16 %v1038
        %v1117 = vunpack.c.l.b16 %v1039
        %v1118 = vunpack.c.h.b16 %v1039
        %v1119 = vunpack.c.l.b16 %v1040
        %v1120 = vunpack.c.h.b16 %v1040
        %v1121 = vunpack.c.l.b16 %v1041
        %v1122 = vunpack.c.h.b16 %v1041
        %v1123 = vunpack.c.l.b16 %v1042
        %v1124 = vunpack.c.h.b16 %v1042
        %v1125 = vunpack.c.l.b16 %v1043
        %v1126 = vunpack.c.h.b16 %v1043
        %v1127 = vunpack.c.l.b16 %v1044
        %v1128 = vunpack.c.h.b16 %v1044
        %v1129 = vunpack.c.l.b16 %v1045
        %v1130 = vunpack.c.h.b16 %v1045
        %v1131 = vunpack.c.l.b16 %v1046
        %v1132 = vunpack.c.h.b16 %v1046
        %v1133 = vunpack.c.l.b16 %v1047
        %v1134 = vunpack.c.h.b16 %v1047
        %v1135 = vunpack.c.l.b16 %v1048
        %v1136 = vunpack.c.h.b16 %v1048
        %v1137 = vunpack.c.l.b16 %v1049
        %v1138 = vunpack.c.h.b16 %v1049
        %v1139 = vunpack.c.l.b16 %v1050
        %v1140 = vunpack.c.h.b16 %v1050
        %v1141 = vunpack.c.l.b16 %v1051
        %v1142 = vunpack.c.h.b16 %v1051
        %v1143 = vunpack.c.l.b16 %v1052
        %v1144 = vunpack.c.h.b16 %v1052
        %v1145 = vunpack.c.l.b16 %v1053
        %v1146 = vunpack.c.h.b16 %v1053
        %v1147 = vunpack.c.l.b16 %v1054
        %v1148 = vunpack.c.h.b16 %v1054
        %v1149 = vunpack.c.l.b16 %v1055
        %v1150 = vunpack.c.h.b16 %v1055
        %v1151 = vunpack.c.l.b16 %v1056
        %v1152 = vunpack.c.h.b16 %v1056
        %v1153 = vunpack.c.l.b16 %v1057
        %v1154 = vunpack.c.h.b16 %v1057
        %v1155 = vunpack.c.l.b16 %v1058
        %v1156 = vunpack.c.h.b16 %v1058
        %v1157 = vunpack.c.l.b16 %v1059
        %v1158 = vunpack.c.h.b16 %v1059
        %v1159 = vunpack.c.l.b16 %v1060
        %v1160 = vunpack.c.h.b16 %v1060
        %v1161 = vunpack.c.l.b16 %v1061
        %v1162 = vunpack.c.h.b16 %v1061
        %v1163 = vunpack.c.l.b16 %v1062
        %v1164 = vunpack.c.h.b16 %v1062
        %v1165 = vpack.c.b16 %v1103, %v1101
        %v1166 = vpack.c.b16 %v1104, %v1102
        %v1167 = vpack.c.b16 %v1107, %v1105
        %v1168 = vpack.c.b16 %v1108, %v1106
        %v1169 = vpack.c.b16 %v1111, %v1109
        %v1170 = vpack.c.b16 %v1112, %v1110
        %v1171 = vpack.c.b16 %v1115, %v1113
        %v1172 = vpack.c.b16 %v1116, %v1114
        %v1173 = vpack.c.b16 %v1119, %v1117
        %v1174 = vpack.c.b16 %v1120, %v1118
        %v1175 = vpack.c.b16 %v1123, %v1121
        %v1176 = vpack.c.b16 %v1124, %v1122
        %v1177 = vpack.c.b16 %v1127, %v1125
        %v1178 = vpack.c.b16 %v1128, %v1126
        %v1179 = vpack.c.b16 %v1131, %v1129
        %v1180 = vpack.c.b16 %v1132, %v1130
        %v1181 = vpack.c.b16 %v1135, %v1133
        %v1182 = vpack.c.b16 %v1136, %v1134
        %v1183 = vpack.c.b16 %v1139, %v1137
        %v1184 = vpack.c.b16 %v1140, %v1138
        %v1185 = vpack.c.b16 %v1143, %v1141
        %v1186 = vpack.c.b16 %v1144, %v1142
        %v1187 = vpack.c.b16 %v1147, %v1145
        %v1188 = vpack.c.b16 %v1148, %v1146
        %v1189 = vpack.c.b16 %v1151, %v1149
        %v1190 = vpack.c.b16 %v1152, %v1150
        %v1191 = vpack.c.b16 %v1155, %v1153
        %v1192 = vpack.c.b16 %v1156, %v1154
        %v1193 = vpack.c.b16 %v1159, %v1157
        %v1194 = vpack.c.b16 %v1160, %v1158
        %v1195 = vpack.c.b16 %v1163, %v1161
        %v1196 = vpack.c.b16 %v1164, %v1162
        %1229 = vmatpush.bf16.msra.mxu0 %v1179
        %1230 = vmatpush.bf16.msra.mxu0 %v1177
        %1231 = vmatpush.bf16.msra.mxu0 %v1175
        %1232 = vmatpush.bf16.msra.mxu0 %v1173
        %1233 = vmatpush.bf16.msra.mxu0 %v1171
        %1234 = vmatpush.bf16.msra.mxu0 %v1169
        %1235 = vmatpush.bf16.msra.mxu0 %v1167
        %1236 = vmatpush.bf16.msra.mxu0 %v1165
        %1237 = vmatmul.bf16.gmra.mxu0 %v1023
        %v1238 = vpop.f32.mrf.mxu0
        %v1239 = vadd.f32 %v1065, %v1238
        %v1240 = vpop.f32.mrf.mxu0
        %v1241 = vadd.f32 %v1065, %v1240
        %1242 = vmatmul.bf16.gmra.mxu0 %v1025
        %v1243 = vpop.f32.mrf.mxu0
        %v1244 = vadd.f32 %v1065, %v1243
        %v1245 = vpop.f32.mrf.mxu0
        %v1246 = vadd.f32 %v1065, %v1245
        %1247 = vmatmul.bf16.gmra.mxu0 %v1027
        %v1248 = vpop.f32.mrf.mxu0
        %v1249 = vadd.f32 %v1065, %v1248
        %v1250 = vpop.f32.mrf.mxu0
        %v1251 = vadd.f32 %v1065, %v1250
        %1252 = vmatmul.bf16.gmra.mxu0 %v1029
        %v1253 = vpop.f32.mrf.mxu0
        %v1254 = vadd.f32 %v1065, %v1253
        %v1255 = vpop.f32.mrf.mxu0
        %v1256 = vadd.f32 %v1065, %v1255
        %1257 = vdwg.mxu0
        %1258 = vmatpush.bf16.msra.mxu0 %v1195
        %1259 = vmatpush.bf16.msra.mxu0 %v1193
        %1260 = vmatpush.bf16.msra.mxu0 %v1191
        %1261 = vmatpush.bf16.msra.mxu0 %v1189
        %1262 = vmatpush.bf16.msra.mxu0 %v1187
        %1263 = vmatpush.bf16.msra.mxu0 %v1185
        %1264 = vmatpush.bf16.msra.mxu0 %v1183
        %1265 = vmatpush.bf16.msra.mxu0 %v1181
        %1266 = vmatmul.bf16.gmra.mxu0 %v1024
        %v1267 = vpop.f32.mrf.mxu0
        %v1268 = vadd.f32 %v1239, %v1267
        %v1269 = vpop.f32.mrf.mxu0
        %v1270 = vadd.f32 %v1241, %v1269
        %1271 = vmatmul.bf16.gmra.mxu0 %v1026
        %v1272 = vpop.f32.mrf.mxu0
        %v1273 = vadd.f32 %v1244, %v1272
        %v1274 = vpop.f32.mrf.mxu0
        %v1275 = vadd.f32 %v1246, %v1274
        %1276 = vmatmul.bf16.gmra.mxu0 %v1028
        %v1277 = vpop.f32.mrf.mxu0
        %v1278 = vadd.f32 %v1249, %v1277
        %v1279 = vpop.f32.mrf.mxu0
        %v1280 = vadd.f32 %v1251, %v1279
        %1281 = vmatmul.bf16.gmra.mxu0 %v1030
        %v1282 = vpop.f32.mrf.mxu0
        %v1283 = vadd.f32 %v1254, %v1282
        %v1284 = vpop.f32.mrf.mxu0
        %v1285 = vadd.f32 %v1256, %v1284
        %1286 = vdwg.mxu0
        %1287 = vmatpush.bf16.msra.mxu0 %v1180
        %1288 = vmatpush.bf16.msra.mxu0 %v1178
        %1289 = vmatpush.bf16.msra.mxu0 %v1176
        %1290 = vmatpush.bf16.msra.mxu0 %v1174
        %1291 = vmatpush.bf16.msra.mxu0 %v1172
        %1292 = vmatpush.bf16.msra.mxu0 %v1170
        %1293 = vmatpush.bf16.msra.mxu0 %v1168
        %1294 = vmatpush.bf16.msra.mxu0 %v1166
        %1295 = vmatmul.bf16.gmra.mxu0 %v1023
        %v1296 = vpop.f32.mrf.mxu0
        %v1297 = vadd.f32 %v1066, %v1296
        %v1298 = vpop.f32.mrf.mxu0
        %v1299 = vadd.f32 %v1066, %v1298
        %1300 = vmatmul.bf16.gmra.mxu0 %v1025
        %v1301 = vpop.f32.mrf.mxu0
        %v1302 = vadd.f32 %v1066, %v1301
        %v1303 = vpop.f32.mrf.mxu0
        %v1304 = vadd.f32 %v1066, %v1303
        %1305 = vmatmul.bf16.gmra.mxu0 %v1027
        %v1306 = vpop.f32.mrf.mxu0
        %v1307 = vadd.f32 %v1066, %v1306
        %v1308 = vpop.f32.mrf.mxu0
        %v1309 = vadd.f32 %v1066, %v1308
        %1310 = vmatmul.bf16.gmra.mxu0 %v1029
        %v1311 = vpop.f32.mrf.mxu0
        %v1312 = vadd.f32 %v1066, %v1311
        %v1313 = vpop.f32.mrf.mxu0
        %v1314 = vadd.f32 %v1066, %v1313
        %1315 = vdwg.mxu0
        %1316 = vmatpush.bf16.msra.mxu0 %v1196
        %1317 = vmatpush.bf16.msra.mxu0 %v1194
        %1318 = vmatpush.bf16.msra.mxu0 %v1192
        %1319 = vmatpush.bf16.msra.mxu0 %v1190
        %1320 = vmatpush.bf16.msra.mxu0 %v1188
        %1321 = vmatpush.bf16.msra.mxu0 %v1186
        %1322 = vmatpush.bf16.msra.mxu0 %v1184
        %1323 = vmatpush.bf16.msra.mxu0 %v1182
        %1324 = vmatmul.bf16.gmra.mxu0 %v1024
        %v1325 = vpop.f32.mrf.mxu0
        %v1326 = vadd.f32 %v1297, %v1325
        %v1327 = vpop.f32.mrf.mxu0
        %v1328 = vadd.f32 %v1299, %v1327
        %1329 = vmatmul.bf16.gmra.mxu0 %v1026
        %v1330 = vpop.f32.mrf.mxu0
        %v1331 = vadd.f32 %v1302, %v1330
        %v1332 = vpop.f32.mrf.mxu0
        %v1333 = vadd.f32 %v1304, %v1332
        %1334 = vmatmul.bf16.gmra.mxu0 %v1028
        %v1335 = vpop.f32.mrf.mxu0
        %v1336 = vadd.f32 %v1307, %v1335
        %v1337 = vpop.f32.mrf.mxu0
        %v1338 = vadd.f32 %v1309, %v1337
        %1339 = vmatmul.bf16.gmra.mxu0 %v1030
        %v1340 = vpop.f32.mrf.mxu0
        %v1341 = vadd.f32 %v1312, %v1340
        %v1342 = vpop.f32.mrf.mxu0
        %v1343 = vadd.f32 %v1314, %v1342
        %1344 = vdwg.mxu0
        %v1345 = vld [vmem:[#allocation10] sm:$0xff]
        %v1346 = vld [vmem:[#allocation10 + $0x8] sm:$0xff]
        %v1347 = vld [vmem:[#allocation10 + $0x10] sm:$0xff]
        %v1348 = vld [vmem:[#allocation10 + $0x18] sm:$0xff]
        %v1349 = vld [vmem:[#allocation10 + $0x20] sm:$0xff]
        %v1350 = vld [vmem:[#allocation10 + $0x28] sm:$0xff]
        %v1351 = vld [vmem:[#allocation10 + $0x30] sm:$0xff]
        %v1352 = vld [vmem:[#allocation10 + $0x38] sm:$0xff]
        %v1353 = vld [vmem:[#allocation10 + $0x40] sm:$0xff]
        %v1354 = vld [vmem:[#allocation10 + $0x48] sm:$0xff]
        %v1355 = vld [vmem:[#allocation10 + $0x50] sm:$0xff]
        %v1356 = vld [vmem:[#allocation10 + $0x58] sm:$0xff]
        %v1357 = vld [vmem:[#allocation10 + $0x60] sm:$0xff]
        %v1358 = vld [vmem:[#allocation10 + $0x68] sm:$0xff]
        %v1359 = vld [vmem:[#allocation10 + $0x70] sm:$0xff]
        %v1360 = vld [vmem:[#allocation10 + $0x78] sm:$0xff]
        %v1361 = vld [vmem:[#allocation10 + $0x80] sm:$0xff]
        %v1362 = vld [vmem:[#allocation10 + $0x88] sm:$0xff]
        %v1363 = vld [vmem:[#allocation10 + $0x90] sm:$0xff]
        %v1364 = vld [vmem:[#allocation10 + $0x98] sm:$0xff]
        %v1365 = vld [vmem:[#allocation10 + $0xa0] sm:$0xff]
        %v1366 = vld [vmem:[#allocation10 + $0xa8] sm:$0xff]
        %v1367 = vld [vmem:[#allocation10 + $0xb0] sm:$0xff]
        %v1368 = vld [vmem:[#allocation10 + $0xb8] sm:$0xff]
        %v1369 = vld [vmem:[#allocation10 + $0xc0] sm:$0xff]
        %v1370 = vld [vmem:[#allocation10 + $0xc8] sm:$0xff]
        %v1371 = vld [vmem:[#allocation10 + $0xd0] sm:$0xff]
        %v1372 = vld [vmem:[#allocation10 + $0xd8] sm:$0xff]
        %v1373 = vld [vmem:[#allocation10 + $0xe0] sm:$0xff]
        %v1374 = vld [vmem:[#allocation10 + $0xe8] sm:$0xff]
        %v1375 = vld [vmem:[#allocation10 + $0xf0] sm:$0xff]
        %v1376 = vld [vmem:[#allocation10 + $0xf8] sm:$0xff]
        %v1377 = vld [vmem:[%s6] sm:$0x3]
        %v1379 = vperm.slane %v1377, 0
        %v1380 = vperm.slane %v1377, 1
        %v1415 = vunpack.c.l.b16 %v1345
        %v1416 = vunpack.c.h.b16 %v1345
        %v1417 = vunpack.c.l.b16 %v1346
        %v1418 = vunpack.c.h.b16 %v1346
        %v1419 = vunpack.c.l.b16 %v1347
        %v1420 = vunpack.c.h.b16 %v1347
        %v1421 = vunpack.c.l.b16 %v1348
        %v1422 = vunpack.c.h.b16 %v1348
        %v1423 = vunpack.c.l.b16 %v1349
        %v1424 = vunpack.c.h.b16 %v1349
        %v1425 = vunpack.c.l.b16 %v1350
        %v1426 = vunpack.c.h.b16 %v1350
        %v1427 = vunpack.c.l.b16 %v1351
        %v1428 = vunpack.c.h.b16 %v1351
        %v1429 = vunpack.c.l.b16 %v1352
        %v1430 = vunpack.c.h.b16 %v1352
        %v1431 = vunpack.c.l.b16 %v1353
        %v1432 = vunpack.c.h.b16 %v1353
        %v1433 = vunpack.c.l.b16 %v1354
        %v1434 = vunpack.c.h.b16 %v1354
        %v1435 = vunpack.c.l.b16 %v1355
        %v1436 = vunpack.c.h.b16 %v1355
        %v1437 = vunpack.c.l.b16 %v1356
        %v1438 = vunpack.c.h.b16 %v1356
        %v1439 = vunpack.c.l.b16 %v1357
        %v1440 = vunpack.c.h.b16 %v1357
        %v1441 = vunpack.c.l.b16 %v1358
        %v1442 = vunpack.c.h.b16 %v1358
        %v1443 = vunpack.c.l.b16 %v1359
        %v1444 = vunpack.c.h.b16 %v1359
        %v1445 = vunpack.c.l.b16 %v1360
        %v1446 = vunpack.c.h.b16 %v1360
        %v1447 = vunpack.c.l.b16 %v1361
        %v1448 = vunpack.c.h.b16 %v1361
        %v1449 = vunpack.c.l.b16 %v1362
        %v1450 = vunpack.c.h.b16 %v1362
        %v1451 = vunpack.c.l.b16 %v1363
        %v1452 = vunpack.c.h.b16 %v1363
        %v1453 = vunpack.c.l.b16 %v1364
        %v1454 = vunpack.c.h.b16 %v1364
        %v1455 = vunpack.c.l.b16 %v1365
        %v1456 = vunpack.c.h.b16 %v1365
        %v1457 = vunpack.c.l.b16 %v1366
        %v1458 = vunpack.c.h.b16 %v1366
        %v1459 = vunpack.c.l.b16 %v1367
        %v1460 = vunpack.c.h.b16 %v1367
        %v1461 = vunpack.c.l.b16 %v1368
        %v1462 = vunpack.c.h.b16 %v1368
        %v1463 = vunpack.c.l.b16 %v1369
        %v1464 = vunpack.c.h.b16 %v1369
        %v1465 = vunpack.c.l.b16 %v1370
        %v1466 = vunpack.c.h.b16 %v1370
        %v1467 = vunpack.c.l.b16 %v1371
        %v1468 = vunpack.c.h.b16 %v1371
        %v1469 = vunpack.c.l.b16 %v1372
        %v1470 = vunpack.c.h.b16 %v1372
        %v1471 = vunpack.c.l.b16 %v1373
        %v1472 = vunpack.c.h.b16 %v1373
        %v1473 = vunpack.c.l.b16 %v1374
        %v1474 = vunpack.c.h.b16 %v1374
        %v1475 = vunpack.c.l.b16 %v1375
        %v1476 = vunpack.c.h.b16 %v1375
        %v1477 = vunpack.c.l.b16 %v1376
        %v1478 = vunpack.c.h.b16 %v1376
        %v1479 = vpack.c.b16 %v1417, %v1415
        %v1480 = vpack.c.b16 %v1418, %v1416
        %v1481 = vpack.c.b16 %v1421, %v1419
        %v1482 = vpack.c.b16 %v1422, %v1420
        %v1483 = vpack.c.b16 %v1425, %v1423
        %v1484 = vpack.c.b16 %v1426, %v1424
        %v1485 = vpack.c.b16 %v1429, %v1427
        %v1486 = vpack.c.b16 %v1430, %v1428
        %v1487 = vpack.c.b16 %v1433, %v1431
        %v1488 = vpack.c.b16 %v1434, %v1432
        %v1489 = vpack.c.b16 %v1437, %v1435
        %v1490 = vpack.c.b16 %v1438, %v1436
        %v1491 = vpack.c.b16 %v1441, %v1439
        %v1492 = vpack.c.b16 %v1442, %v1440
        %v1493 = vpack.c.b16 %v1445, %v1443
        %v1494 = vpack.c.b16 %v1446, %v1444
        %v1495 = vpack.c.b16 %v1449, %v1447
        %v1496 = vpack.c.b16 %v1450, %v1448
        %v1497 = vpack.c.b16 %v1453, %v1451
        %v1498 = vpack.c.b16 %v1454, %v1452
        %v1499 = vpack.c.b16 %v1457, %v1455
        %v1500 = vpack.c.b16 %v1458, %v1456
        %v1501 = vpack.c.b16 %v1461, %v1459
        %v1502 = vpack.c.b16 %v1462, %v1460
        %v1503 = vpack.c.b16 %v1465, %v1463
        %v1504 = vpack.c.b16 %v1466, %v1464
        %v1505 = vpack.c.b16 %v1469, %v1467
        %v1506 = vpack.c.b16 %v1470, %v1468
        %v1507 = vpack.c.b16 %v1473, %v1471
        %v1508 = vpack.c.b16 %v1474, %v1472
        %v1509 = vpack.c.b16 %v1477, %v1475
        %v1510 = vpack.c.b16 %v1478, %v1476
        %1543 = vmatpush.bf16.msra.mxu0 %v1493
        %1544 = vmatpush.bf16.msra.mxu0 %v1491
        %1545 = vmatpush.bf16.msra.mxu0 %v1489
        %1546 = vmatpush.bf16.msra.mxu0 %v1487
        %1547 = vmatpush.bf16.msra.mxu0 %v1485
        %1548 = vmatpush.bf16.msra.mxu0 %v1483
        %1549 = vmatpush.bf16.msra.mxu0 %v1481
        %1550 = vmatpush.bf16.msra.mxu0 %v1479
        %1551 = vmatmul.bf16.gmra.mxu0 %v1023
        %v1552 = vpop.f32.mrf.mxu0
        %v1553 = vadd.f32 %v1379, %v1552
        %v1554 = vpop.f32.mrf.mxu0
        %v1555 = vadd.f32 %v1379, %v1554
        %1556 = vmatmul.bf16.gmra.mxu0 %v1025
        %v1557 = vpop.f32.mrf.mxu0
        %v1558 = vadd.f32 %v1379, %v1557
        %v1559 = vpop.f32.mrf.mxu0
        %v1560 = vadd.f32 %v1379, %v1559
        %1561 = vmatmul.bf16.gmra.mxu0 %v1027
        %v1562 = vpop.f32.mrf.mxu0
        %v1563 = vadd.f32 %v1379, %v1562
        %v1564 = vpop.f32.mrf.mxu0
        %v1565 = vadd.f32 %v1379, %v1564
        %1566 = vmatmul.bf16.gmra.mxu0 %v1029
        %v1567 = vpop.f32.mrf.mxu0
        %v1568 = vadd.f32 %v1379, %v1567
        %v1569 = vpop.f32.mrf.mxu0
        %v1570 = vadd.f32 %v1379, %v1569
        %1571 = vdwg.mxu0
        %1572 = vmatpush.bf16.msra.mxu0 %v1509
        %1573 = vmatpush.bf16.msra.mxu0 %v1507
        %1574 = vmatpush.bf16.msra.mxu0 %v1505
        %1575 = vmatpush.bf16.msra.mxu0 %v1503
        %1576 = vmatpush.bf16.msra.mxu0 %v1501
        %1577 = vmatpush.bf16.msra.mxu0 %v1499
        %1578 = vmatpush.bf16.msra.mxu0 %v1497
        %1579 = vmatpush.bf16.msra.mxu0 %v1495
        %1580 = vmatmul.bf16.gmra.mxu0 %v1024
        %v1581 = vpop.f32.mrf.mxu0
        %v1582 = vadd.f32 %v1553, %v1581
        %v1583 = vpop.f32.mrf.mxu0
        %v1584 = vadd.f32 %v1555, %v1583
        %1585 = vmatmul.bf16.gmra.mxu0 %v1026
        %v1586 = vpop.f32.mrf.mxu0
        %v1587 = vadd.f32 %v1558, %v1586
        %v1588 = vpop.f32.mrf.mxu0
        %v1589 = vadd.f32 %v1560, %v1588
        %1590 = vmatmul.bf16.gmra.mxu0 %v1028
        %v1591 = vpop.f32.mrf.mxu0
        %v1592 = vadd.f32 %v1563, %v1591
        %v1593 = vpop.f32.mrf.mxu0
        %v1594 = vadd.f32 %v1565, %v1593
        %1595 = vmatmul.bf16.gmra.mxu0 %v1030
        %v1596 = vpop.f32.mrf.mxu0
        %v1597 = vadd.f32 %v1568, %v1596
        %v1598 = vpop.f32.mrf.mxu0
        %v1599 = vadd.f32 %v1570, %v1598
        %1600 = vdwg.mxu0
        %1601 = vmatpush.bf16.msra.mxu0 %v1494
        %1602 = vmatpush.bf16.msra.mxu0 %v1492
        %1603 = vmatpush.bf16.msra.mxu0 %v1490
        %1604 = vmatpush.bf16.msra.mxu0 %v1488
        %1605 = vmatpush.bf16.msra.mxu0 %v1486
        %1606 = vmatpush.bf16.msra.mxu0 %v1484
        %1607 = vmatpush.bf16.msra.mxu0 %v1482
        %1608 = vmatpush.bf16.msra.mxu0 %v1480
        %1609 = vmatmul.bf16.gmra.mxu0 %v1023
        %v1610 = vpop.f32.mrf.mxu0
        %v1611 = vadd.f32 %v1380, %v1610
        %v1612 = vpop.f32.mrf.mxu0
        %v1613 = vadd.f32 %v1380, %v1612
        %1614 = vmatmul.bf16.gmra.mxu0 %v1025
        %v1615 = vpop.f32.mrf.mxu0
        %v1616 = vadd.f32 %v1380, %v1615
        %v1617 = vpop.f32.mrf.mxu0
        %v1618 = vadd.f32 %v1380, %v1617
        %1619 = vmatmul.bf16.gmra.mxu0 %v1027
        %v1620 = vpop.f32.mrf.mxu0
        %v1621 = vadd.f32 %v1380, %v1620
        %v1622 = vpop.f32.mrf.mxu0
        %v1623 = vadd.f32 %v1380, %v1622
        %1624 = vmatmul.bf16.gmra.mxu0 %v1029
        %v1625 = vpop.f32.mrf.mxu0
        %v1626 = vadd.f32 %v1380, %v1625
        %v1627 = vpop.f32.mrf.mxu0
        %v1628 = vadd.f32 %v1380, %v1627
        %1629 = vdwg.mxu0
        %1630 = vmatpush.bf16.msra.mxu0 %v1510
        %1631 = vmatpush.bf16.msra.mxu0 %v1508
        %1632 = vmatpush.bf16.msra.mxu0 %v1506
        %1633 = vmatpush.bf16.msra.mxu0 %v1504
        %1634 = vmatpush.bf16.msra.mxu0 %v1502
        %1635 = vmatpush.bf16.msra.mxu0 %v1500
        %1636 = vmatpush.bf16.msra.mxu0 %v1498
        %1637 = vmatpush.bf16.msra.mxu0 %v1496
        %1638 = vmatmul.bf16.gmra.mxu0 %v1024
        %v1639 = vpop.f32.mrf.mxu0
        %v1640 = vadd.f32 %v1611, %v1639
        %v1641 = vpop.f32.mrf.mxu0
        %v1642 = vadd.f32 %v1613, %v1641
        %1643 = vmatmul.bf16.gmra.mxu0 %v1026
        %v1644 = vpop.f32.mrf.mxu0
        %v1645 = vadd.f32 %v1616, %v1644
        %v1646 = vpop.f32.mrf.mxu0
        %v1647 = vadd.f32 %v1618, %v1646
        %1648 = vmatmul.bf16.gmra.mxu0 %v1028
        %v1649 = vpop.f32.mrf.mxu0
        %v1650 = vadd.f32 %v1621, %v1649
        %v1651 = vpop.f32.mrf.mxu0
        %v1652 = vadd.f32 %v1623, %v1651
        %1653 = vmatmul.bf16.gmra.mxu0 %v1030
        %v1654 = vpop.f32.mrf.mxu0
        %v1655 = vadd.f32 %v1626, %v1654
        %v1656 = vpop.f32.mrf.mxu0
        %v1657 = vadd.f32 %v1628, %v1656
        %1658 = vdwg.mxu0
        %v1659 = vld [vmem:[#allocation11] sm:$0xff]
        %v1660 = vld [vmem:[#allocation11 + $0x8] sm:$0xff]
        %v1661 = vld [vmem:[#allocation11 + $0x10] sm:$0xff]
        %v1662 = vld [vmem:[#allocation11 + $0x18] sm:$0xff]
        %v1663 = vld [vmem:[#allocation11 + $0x20] sm:$0xff]
        %v1664 = vld [vmem:[#allocation11 + $0x28] sm:$0xff]
        %v1665 = vld [vmem:[#allocation11 + $0x30] sm:$0xff]
        %v1666 = vld [vmem:[#allocation11 + $0x38] sm:$0xff]
        %v1667 = vld [vmem:[#allocation11 + $0x40] sm:$0xff]
        %v1668 = vld [vmem:[#allocation11 + $0x48] sm:$0xff]
        %v1669 = vld [vmem:[#allocation11 + $0x50] sm:$0xff]
        %v1670 = vld [vmem:[#allocation11 + $0x58] sm:$0xff]
        %v1671 = vld [vmem:[#allocation11 + $0x60] sm:$0xff]
        %v1672 = vld [vmem:[#allocation11 + $0x68] sm:$0xff]
        %v1673 = vld [vmem:[#allocation11 + $0x70] sm:$0xff]
        %v1674 = vld [vmem:[#allocation11 + $0x78] sm:$0xff]
        %v1675 = vld [vmem:[#allocation11 + $0x80] sm:$0xff]
        %v1676 = vld [vmem:[#allocation11 + $0x88] sm:$0xff]
        %v1677 = vld [vmem:[#allocation11 + $0x90] sm:$0xff]
        %v1678 = vld [vmem:[#allocation11 + $0x98] sm:$0xff]
        %v1679 = vld [vmem:[#allocation11 + $0xa0] sm:$0xff]
        %v1680 = vld [vmem:[#allocation11 + $0xa8] sm:$0xff]
        %v1681 = vld [vmem:[#allocation11 + $0xb0] sm:$0xff]
        %v1682 = vld [vmem:[#allocation11 + $0xb8] sm:$0xff]
        %v1683 = vld [vmem:[#allocation11 + $0xc0] sm:$0xff]
        %v1684 = vld [vmem:[#allocation11 + $0xc8] sm:$0xff]
        %v1685 = vld [vmem:[#allocation11 + $0xd0] sm:$0xff]
        %v1686 = vld [vmem:[#allocation11 + $0xd8] sm:$0xff]
        %v1687 = vld [vmem:[#allocation11 + $0xe0] sm:$0xff]
        %v1688 = vld [vmem:[#allocation11 + $0xe8] sm:$0xff]
        %v1689 = vld [vmem:[#allocation11 + $0xf0] sm:$0xff]
        %v1690 = vld [vmem:[#allocation11 + $0xf8] sm:$0xff]
        %v1691 = vld [vmem:[#allocation13] sm:$0x3]
        %v1693 = vperm.slane %v1691, 0
        %v1694 = vperm.slane %v1691, 1
        %v1729 = vunpack.c.l.b16 %v1659
        %v1730 = vunpack.c.h.b16 %v1659
        %v1731 = vunpack.c.l.b16 %v1660
        %v1732 = vunpack.c.h.b16 %v1660
        %v1733 = vunpack.c.l.b16 %v1661
        %v1734 = vunpack.c.h.b16 %v1661
        %v1735 = vunpack.c.l.b16 %v1662
        %v1736 = vunpack.c.h.b16 %v1662
        %v1737 = vunpack.c.l.b16 %v1663
        %v1738 = vunpack.c.h.b16 %v1663
        %v1739 = vunpack.c.l.b16 %v1664
        %v1740 = vunpack.c.h.b16 %v1664
        %v1741 = vunpack.c.l.b16 %v1665
        %v1742 = vunpack.c.h.b16 %v1665
        %v1743 = vunpack.c.l.b16 %v1666
        %v1744 = vunpack.c.h.b16 %v1666
        %v1745 = vunpack.c.l.b16 %v1667
        %v1746 = vunpack.c.h.b16 %v1667
        %v1747 = vunpack.c.l.b16 %v1668
        %v1748 = vunpack.c.h.b16 %v1668
        %v1749 = vunpack.c.l.b16 %v1669
        %v1750 = vunpack.c.h.b16 %v1669
        %v1751 = vunpack.c.l.b16 %v1670
        %v1752 = vunpack.c.h.b16 %v1670
        %v1753 = vunpack.c.l.b16 %v1671
        %v1754 = vunpack.c.h.b16 %v1671
        %v1755 = vunpack.c.l.b16 %v1672
        %v1756 = vunpack.c.h.b16 %v1672
        %v1757 = vunpack.c.l.b16 %v1673
        %v1758 = vunpack.c.h.b16 %v1673
        %v1759 = vunpack.c.l.b16 %v1674
        %v1760 = vunpack.c.h.b16 %v1674
        %v1761 = vunpack.c.l.b16 %v1675
        %v1762 = vunpack.c.h.b16 %v1675
        %v1763 = vunpack.c.l.b16 %v1676
        %v1764 = vunpack.c.h.b16 %v1676
        %v1765 = vunpack.c.l.b16 %v1677
        %v1766 = vunpack.c.h.b16 %v1677
        %v1767 = vunpack.c.l.b16 %v1678
        %v1768 = vunpack.c.h.b16 %v1678
        %v1769 = vunpack.c.l.b16 %v1679
        %v1770 = vunpack.c.h.b16 %v1679
        %v1771 = vunpack.c.l.b16 %v1680
        %v1772 = vunpack.c.h.b16 %v1680
        %v1773 = vunpack.c.l.b16 %v1681
        %v1774 = vunpack.c.h.b16 %v1681
        %v1775 = vunpack.c.l.b16 %v1682
        %v1776 = vunpack.c.h.b16 %v1682
        %v1777 = vunpack.c.l.b16 %v1683
        %v1778 = vunpack.c.h.b16 %v1683
        %v1779 = vunpack.c.l.b16 %v1684
        %v1780 = vunpack.c.h.b16 %v1684
        %v1781 = vunpack.c.l.b16 %v1685
        %v1782 = vunpack.c.h.b16 %v1685
        %v1783 = vunpack.c.l.b16 %v1686
        %v1784 = vunpack.c.h.b16 %v1686
        %v1785 = vunpack.c.l.b16 %v1687
        %v1786 = vunpack.c.h.b16 %v1687
        %v1787 = vunpack.c.l.b16 %v1688
        %v1788 = vunpack.c.h.b16 %v1688
        %v1789 = vunpack.c.l.b16 %v1689
        %v1790 = vunpack.c.h.b16 %v1689
        %v1791 = vunpack.c.l.b16 %v1690
        %v1792 = vunpack.c.h.b16 %v1690
        %v1793 = vpack.c.b16 %v1731, %v1729
        %v1794 = vpack.c.b16 %v1732, %v1730
        %v1795 = vpack.c.b16 %v1735, %v1733
        %v1796 = vpack.c.b16 %v1736, %v1734
        %v1797 = vpack.c.b16 %v1739, %v1737
        %v1798 = vpack.c.b16 %v1740, %v1738
        %v1799 = vpack.c.b16 %v1743, %v1741
        %v1800 = vpack.c.b16 %v1744, %v1742
        %v1801 = vpack.c.b16 %v1747, %v1745
        %v1802 = vpack.c.b16 %v1748, %v1746
        %v1803 = vpack.c.b16 %v1751, %v1749
        %v1804 = vpack.c.b16 %v1752, %v1750
        %v1805 = vpack.c.b16 %v1755, %v1753
        %v1806 = vpack.c.b16 %v1756, %v1754
        %v1807 = vpack.c.b16 %v1759, %v1757
        %v1808 = vpack.c.b16 %v1760, %v1758
        %v1809 = vpack.c.b16 %v1763, %v1761
        %v1810 = vpack.c.b16 %v1764, %v1762
        %v1811 = vpack.c.b16 %v1767, %v1765
        %v1812 = vpack.c.b16 %v1768, %v1766
        %v1813 = vpack.c.b16 %v1771, %v1769
        %v1814 = vpack.c.b16 %v1772, %v1770
        %v1815 = vpack.c.b16 %v1775, %v1773
        %v1816 = vpack.c.b16 %v1776, %v1774
        %v1817 = vpack.c.b16 %v1779, %v1777
        %v1818 = vpack.c.b16 %v1780, %v1778
        %v1819 = vpack.c.b16 %v1783, %v1781
        %v1820 = vpack.c.b16 %v1784, %v1782
        %v1821 = vpack.c.b16 %v1787, %v1785
        %v1822 = vpack.c.b16 %v1788, %v1786
        %v1823 = vpack.c.b16 %v1791, %v1789
        %v1824 = vpack.c.b16 %v1792, %v1790
        %1857 = vmatpush.bf16.msra.mxu0 %v1807
        %1858 = vmatpush.bf16.msra.mxu0 %v1805
        %1859 = vmatpush.bf16.msra.mxu0 %v1803
        %1860 = vmatpush.bf16.msra.mxu0 %v1801
        %1861 = vmatpush.bf16.msra.mxu0 %v1799
        %1862 = vmatpush.bf16.msra.mxu0 %v1797
        %1863 = vmatpush.bf16.msra.mxu0 %v1795
        %1864 = vmatpush.bf16.msra.mxu0 %v1793
        %1865 = vmatmul.bf16.gmra.mxu0 %v1023
        %v1866 = vpop.f32.mrf.mxu0
        %v1867 = vadd.f32 %v1693, %v1866
        %v1868 = vpop.f32.mrf.mxu0
        %v1869 = vadd.f32 %v1693, %v1868
        %1870 = vmatmul.bf16.gmra.mxu0 %v1025
        %v1871 = vpop.f32.mrf.mxu0
        %v1872 = vadd.f32 %v1693, %v1871
        %v1873 = vpop.f32.mrf.mxu0
        %v1874 = vadd.f32 %v1693, %v1873
        %1875 = vmatmul.bf16.gmra.mxu0 %v1027
        %v1876 = vpop.f32.mrf.mxu0
        %v1877 = vadd.f32 %v1693, %v1876
        %v1878 = vpop.f32.mrf.mxu0
        %v1879 = vadd.f32 %v1693, %v1878
        %1880 = vmatmul.bf16.gmra.mxu0 %v1029
        %v1881 = vpop.f32.mrf.mxu0
        %v1882 = vadd.f32 %v1693, %v1881
        %v1883 = vpop.f32.mrf.mxu0
        %v1884 = vadd.f32 %v1693, %v1883
        %1885 = vdwg.mxu0
        %1886 = vmatpush.bf16.msra.mxu0 %v1823
        %1887 = vmatpush.bf16.msra.mxu0 %v1821
        %1888 = vmatpush.bf16.msra.mxu0 %v1819
        %1889 = vmatpush.bf16.msra.mxu0 %v1817
        %1890 = vmatpush.bf16.msra.mxu0 %v1815
        %1891 = vmatpush.bf16.msra.mxu0 %v1813
        %1892 = vmatpush.bf16.msra.mxu0 %v1811
        %1893 = vmatpush.bf16.msra.mxu0 %v1809
        %1894 = vmatmul.bf16.gmra.mxu0 %v1024
        %v1895 = vpop.f32.mrf.mxu0
        %v1896 = vadd.f32 %v1867, %v1895
        %v1897 = vpop.f32.mrf.mxu0
        %v1898 = vadd.f32 %v1869, %v1897
        %1899 = vmatmul.bf16.gmra.mxu0 %v1026
        %v1900 = vpop.f32.mrf.mxu0
        %v1901 = vadd.f32 %v1872, %v1900
        %v1902 = vpop.f32.mrf.mxu0
        %v1903 = vadd.f32 %v1874, %v1902
        %1904 = vmatmul.bf16.gmra.mxu0 %v1028
        %v1905 = vpop.f32.mrf.mxu0
        %v1906 = vadd.f32 %v1877, %v1905
        %v1907 = vpop.f32.mrf.mxu0
        %v1908 = vadd.f32 %v1879, %v1907
        %1909 = vmatmul.bf16.gmra.mxu0 %v1030
        %v1910 = vpop.f32.mrf.mxu0
        %v1911 = vadd.f32 %v1882, %v1910
        %v1912 = vpop.f32.mrf.mxu0
        %v1913 = vadd.f32 %v1884, %v1912
        %1914 = vdwg.mxu0
        %1915 = vmatpush.bf16.msra.mxu0 %v1808
        %1916 = vmatpush.bf16.msra.mxu0 %v1806
        %1917 = vmatpush.bf16.msra.mxu0 %v1804
        %1918 = vmatpush.bf16.msra.mxu0 %v1802
        %1919 = vmatpush.bf16.msra.mxu0 %v1800
        %1920 = vmatpush.bf16.msra.mxu0 %v1798
        %1921 = vmatpush.bf16.msra.mxu0 %v1796
        %1922 = vmatpush.bf16.msra.mxu0 %v1794
        %1923 = vmatmul.bf16.gmra.mxu0 %v1023
        %v1924 = vpop.f32.mrf.mxu0
        %v1925 = vadd.f32 %v1694, %v1924
        %v1926 = vpop.f32.mrf.mxu0
        %v1927 = vadd.f32 %v1694, %v1926
        %1928 = vmatmul.bf16.gmra.mxu0 %v1025
        %v1929 = vpop.f32.mrf.mxu0
        %v1930 = vadd.f32 %v1694, %v1929
        %v1931 = vpop.f32.mrf.mxu0
        %v1932 = vadd.f32 %v1694, %v1931
        %1933 = vmatmul.bf16.gmra.mxu0 %v1027
        %v1934 = vpop.f32.mrf.mxu0
        %v1935 = vadd.f32 %v1694, %v1934
        %v1936 = vpop.f32.mrf.mxu0
        %v1937 = vadd.f32 %v1694, %v1936
        %1938 = vmatmul.bf16.gmra.mxu0 %v1029
        %v1939 = vpop.f32.mrf.mxu0
        %v1940 = vadd.f32 %v1694, %v1939
        %v1941 = vpop.f32.mrf.mxu0
        %v1942 = vadd.f32 %v1694, %v1941
        %1943 = vdwg.mxu0
        %1944 = vmatpush.bf16.msra.mxu0 %v1824
        %1945 = vmatpush.bf16.msra.mxu0 %v1822
        %1946 = vmatpush.bf16.msra.mxu0 %v1820
        %1947 = vmatpush.bf16.msra.mxu0 %v1818
        %1948 = vmatpush.bf16.msra.mxu0 %v1816
        %1949 = vmatpush.bf16.msra.mxu0 %v1814
        %1950 = vmatpush.bf16.msra.mxu0 %v1812
        %1951 = vmatpush.bf16.msra.mxu0 %v1810
        %1952 = vmatmul.bf16.gmra.mxu0 %v1024
        %v1953 = vpop.f32.mrf.mxu0
        %v1954 = vadd.f32 %v1925, %v1953
        %v1955 = vpop.f32.mrf.mxu0
        %v1956 = vadd.f32 %v1927, %v1955
        %1957 = vmatmul.bf16.gmra.mxu0 %v1026
        %v1958 = vpop.f32.mrf.mxu0
        %v1959 = vadd.f32 %v1930, %v1958
        %v1960 = vpop.f32.mrf.mxu0
        %v1961 = vadd.f32 %v1932, %v1960
        %1962 = vmatmul.bf16.gmra.mxu0 %v1028
        %v1963 = vpop.f32.mrf.mxu0
        %v1964 = vadd.f32 %v1935, %v1963
        %v1965 = vpop.f32.mrf.mxu0
        %v1966 = vadd.f32 %v1937, %v1965
        %1967 = vmatmul.bf16.gmra.mxu0 %v1030
        %v1968 = vpop.f32.mrf.mxu0
        %v1969 = vadd.f32 %v1940, %v1968
        %v1970 = vpop.f32.mrf.mxu0
        %v1971 = vadd.f32 %v1942, %v1970
        %1972 = vdwg.mxu0
        %v1989 = vrot.slane %v1326, 4
        %v1990 = vrot.slane %v1328, 4
        %v1991 = vrot.slane %v1331, 4
        %v1992 = vrot.slane %v1333, 4
        %v1993 = vrot.slane %v1336, 4
        %v1994 = vrot.slane %v1338, 4
        %v1995 = vrot.slane %v1341, 4
        %v1996 = vrot.slane %v1343, 4
        %vm1997 = vcmask 1043456
        %v1998 = vsel %vm1997, %v1268, %v1989
        %v1999 = vsel %vm1997, %v1989, %v1268
        %v2000 = vrot.slane %v1999, 4
        %v2001 = vsel %vm1997, %v1270, %v1990
        %v2002 = vsel %vm1997, %v1990, %v1270
        %v2003 = vrot.slane %v2002, 4
        %v2004 = vsel %vm1997, %v1273, %v1991
        %v2005 = vsel %vm1997, %v1991, %v1273
        %v2006 = vrot.slane %v2005, 4
        %v2007 = vsel %vm1997, %v1275, %v1992
        %v2008 = vsel %vm1997, %v1992, %v1275
        %v2009 = vrot.slane %v2008, 4
        %v2010 = vsel %vm1997, %v1278, %v1993
        %v2011 = vsel %vm1997, %v1993, %v1278
        %v2012 = vrot.slane %v2011, 4
        %v2013 = vsel %vm1997, %v1280, %v1994
        %v2014 = vsel %vm1997, %v1994, %v1280
        %v2015 = vrot.slane %v2014, 4
        %v2016 = vsel %vm1997, %v1283, %v1995
        %v2017 = vsel %vm1997, %v1995, %v1283
        %v2018 = vrot.slane %v2017, 4
        %v2019 = vsel %vm1997, %v1285, %v1996
        %v2020 = vsel %vm1997, %v1996, %v1285
        %v2021 = vrot.slane %v2020, 4
        %v2039 = vunpack.c.l.s4 1935823168
        %v2040 = vunpack.c.0.s8 %v2039
        %v2041 = vperm.slane %v1998, %v2040
        %v2043 = vunpack.c.l.s4 1935823168
        %v2044 = vunpack.c.0.s8 %v2043
        %v2045 = vperm.slane %v2000, %v2044
        %v2047 = vunpack.c.l.s4 1935823168
        %v2048 = vunpack.c.0.s8 %v2047
        %v2049 = vperm.slane %v2001, %v2048
        %v2051 = vunpack.c.l.s4 1935823168
        %v2052 = vunpack.c.0.s8 %v2051
        %v2053 = vperm.slane %v2003, %v2052
        %v2055 = vunpack.c.l.s4 1935823168
        %v2056 = vunpack.c.0.s8 %v2055
        %v2057 = vperm.slane %v2004, %v2056
        %v2059 = vunpack.c.l.s4 1935823168
        %v2060 = vunpack.c.0.s8 %v2059
        %v2061 = vperm.slane %v2006, %v2060
        %v2063 = vunpack.c.l.s4 1935823168
        %v2064 = vunpack.c.0.s8 %v2063
        %v2065 = vperm.slane %v2007, %v2064
        %v2067 = vunpack.c.l.s4 1935823168
        %v2068 = vunpack.c.0.s8 %v2067
        %v2069 = vperm.slane %v2009, %v2068
        %v2071 = vunpack.c.l.s4 1935823168
        %v2072 = vunpack.c.0.s8 %v2071
        %v2073 = vperm.slane %v2010, %v2072
        %v2075 = vunpack.c.l.s4 1935823168
        %v2076 = vunpack.c.0.s8 %v2075
        %v2077 = vperm.slane %v2012, %v2076
        %v2079 = vunpack.c.l.s4 1935823168
        %v2080 = vunpack.c.0.s8 %v2079
        %v2081 = vperm.slane %v2013, %v2080
        %v2083 = vunpack.c.l.s4 1935823168
        %v2084 = vunpack.c.0.s8 %v2083
        %v2085 = vperm.slane %v2015, %v2084
        %v2087 = vunpack.c.l.s4 1935823168
        %v2088 = vunpack.c.0.s8 %v2087
        %v2089 = vperm.slane %v2016, %v2088
        %v2091 = vunpack.c.l.s4 1935823168
        %v2092 = vunpack.c.0.s8 %v2091
        %v2093 = vperm.slane %v2018, %v2092
        %v2095 = vunpack.c.l.s4 1935823168
        %v2096 = vunpack.c.0.s8 %v2095
        %v2097 = vperm.slane %v2019, %v2096
        %v2099 = vunpack.c.l.s4 1935823168
        %v2100 = vunpack.c.0.s8 %v2099
        %v2101 = vperm.slane %v2021, %v2100
        %v2102 = vrot.slane %v2057, 4
        %vm2103 = vcmask 1047556
        %v2104 = vsel %vm2103, %v2102, %v2041
        %v2105 = vrot.slane %v2041, 4
        %v2106 = vsel %vm2103, %v2057, %v2105
        %v2108 = vunpack.c.l.s4 1983009808
        %v2109 = vunpack.c.0.s8 %v2108
        %v2110 = vperm.slane %v2104, %v2109
        %v2112 = vunpack.c.l.s4 1983009808
        %v2113 = vunpack.c.0.s8 %v2112
        %v2114 = vperm.slane %v2106, %v2113
        %v2115 = vrot.slane %v2065, 4
        %v2116 = vsel %vm2103, %v2115, %v2049
        %v2117 = vrot.slane %v2049, 4
        %v2118 = vsel %vm2103, %v2065, %v2117
        %v2120 = vunpack.c.l.s4 1983009808
        %v2121 = vunpack.c.0.s8 %v2120
        %v2122 = vperm.slane %v2116, %v2121
        %v2124 = vunpack.c.l.s4 1983009808
        %v2125 = vunpack.c.0.s8 %v2124
        %v2126 = vperm.slane %v2118, %v2125
        %v2127 = vrot.slane %v2089, 4
        %v2128 = vsel %vm2103, %v2127, %v2073
        %v2129 = vrot.slane %v2073, 4
        %v2130 = vsel %vm2103, %v2089, %v2129
        %v2132 = vunpack.c.l.s4 1983009808
        %v2133 = vunpack.c.0.s8 %v2132
        %v2134 = vperm.slane %v2128, %v2133
        %v2136 = vunpack.c.l.s4 1983009808
        %v2137 = vunpack.c.0.s8 %v2136
        %v2138 = vperm.slane %v2130, %v2137
        %v2139 = vrot.slane %v2097, 4
        %v2140 = vsel %vm2103, %v2139, %v2081
        %v2141 = vrot.slane %v2081, 4
        %v2142 = vsel %vm2103, %v2097, %v2141
        %v2144 = vunpack.c.l.s4 1983009808
        %v2145 = vunpack.c.0.s8 %v2144
        %v2146 = vperm.slane %v2140, %v2145
        %v2148 = vunpack.c.l.s4 1983009808
        %v2149 = vunpack.c.0.s8 %v2148
        %v2150 = vperm.slane %v2142, %v2149
        %v2151 = vrot.slane %v2122, 4
        %v2152 = vsel %vm2103, %v2151, %v2110
        %v2153 = vrot.slane %v2110, 4
        %v2154 = vsel %vm2103, %v2122, %v2153
        %v2156 = vunpack.c.l.s4 1934713408
        %v2157 = vunpack.c.0.s8 %v2156
        %v2158 = vperm.slane %v2152, %v2157
        %v2160 = vunpack.c.l.s4 1934713408
        %v2161 = vunpack.c.0.s8 %v2160
        %v2162 = vperm.slane %v2154, %v2161
        %v2163 = vrot.slane %v2126, 4
        %v2164 = vsel %vm2103, %v2163, %v2114
        %v2165 = vrot.slane %v2114, 4
        %v2166 = vsel %vm2103, %v2126, %v2165
        %v2168 = vunpack.c.l.s4 1934713408
        %v2169 = vunpack.c.0.s8 %v2168
        %v2170 = vperm.slane %v2164, %v2169
        %v2172 = vunpack.c.l.s4 1934713408
        %v2173 = vunpack.c.0.s8 %v2172
        %v2174 = vperm.slane %v2166, %v2173
        %v2175 = vrot.slane %v2146, 4
        %v2176 = vsel %vm2103, %v2175, %v2134
        %v2177 = vrot.slane %v2134, 4
        %v2178 = vsel %vm2103, %v2146, %v2177
        %v2180 = vunpack.c.l.s4 1934713408
        %v2181 = vunpack.c.0.s8 %v2180
        %v2182 = vperm.slane %v2176, %v2181
        %v2184 = vunpack.c.l.s4 1934713408
        %v2185 = vunpack.c.0.s8 %v2184
        %v2186 = vperm.slane %v2178, %v2185
        %v2187 = vrot.slane %v2150, 4
        %v2188 = vsel %vm2103, %v2187, %v2138
        %v2189 = vrot.slane %v2138, 4
        %v2190 = vsel %vm2103, %v2150, %v2189
        %v2192 = vunpack.c.l.s4 1934713408
        %v2193 = vunpack.c.0.s8 %v2192
        %v2194 = vperm.slane %v2188, %v2193
        %v2196 = vunpack.c.l.s4 1934713408
        %v2197 = vunpack.c.0.s8 %v2196
        %v2198 = vperm.slane %v2190, %v2197
        %v2199 = vrot.slane %v2182, 4
        %v2200 = vsel %vm2103, %v2199, %v2158
        %v2201 = vrot.slane %v2158, 4
        %v2202 = vsel %vm2103, %v2182, %v2201
        %v2203 = vrot.slane %v2186, 4
        %v2204 = vsel %vm2103, %v2203, %v2162
        %v2205 = vrot.slane %v2162, 4
        %v2206 = vsel %vm2103, %v2186, %v2205
        %v2207 = vrot.slane %v2194, 4
        %v2208 = vsel %vm2103, %v2207, %v2170
        %v2209 = vrot.slane %v2170, 4
        %v2210 = vsel %vm2103, %v2194, %v2209
        %v2211 = vrot.slane %v2198, 4
        %v2212 = vsel %vm2103, %v2211, %v2174
        %v2213 = vrot.slane %v2174, 4
        %v2214 = vsel %vm2103, %v2198, %v2213
        %v2215 = vrot.slane %v2061, 4
        %v2216 = vsel %vm2103, %v2215, %v2045
        %v2217 = vrot.slane %v2045, 4
        %v2218 = vsel %vm2103, %v2061, %v2217
        %v2220 = vunpack.c.l.s4 1983009808
        %v2221 = vunpack.c.0.s8 %v2220
        %v2222 = vperm.slane %v2216, %v2221
        %v2224 = vunpack.c.l.s4 1983009808
        %v2225 = vunpack.c.0.s8 %v2224
        %v2226 = vperm.slane %v2218, %v2225
        %v2227 = vrot.slane %v2069, 4
        %v2228 = vsel %vm2103, %v2227, %v2053
        %v2229 = vrot.slane %v2053, 4
        %v2230 = vsel %vm2103, %v2069, %v2229
        %v2232 = vunpack.c.l.s4 1983009808
        %v2233 = vunpack.c.0.s8 %v2232
        %v2234 = vperm.slane %v2228, %v2233
        %v2236 = vunpack.c.l.s4 1983009808
        %v2237 = vunpack.c.0.s8 %v2236
        %v2238 = vperm.slane %v2230, %v2237
        %v2239 = vrot.slane %v2093, 4
        %v2240 = vsel %vm2103, %v2239, %v2077
        %v2241 = vrot.slane %v2077, 4
        %v2242 = vsel %vm2103, %v2093, %v2241
        %v2244 = vunpack.c.l.s4 1983009808
        %v2245 = vunpack.c.0.s8 %v2244
        %v2246 = vperm.slane %v2240, %v2245
        %v2248 = vunpack.c.l.s4 1983009808
        %v2249 = vunpack.c.0.s8 %v2248
        %v2250 = vperm.slane %v2242, %v2249
        %v2251 = vrot.slane %v2101, 4
        %v2252 = vsel %vm2103, %v2251, %v2085
        %v2253 = vrot.slane %v2085, 4
        %v2254 = vsel %vm2103, %v2101, %v2253
        %v2256 = vunpack.c.l.s4 1983009808
        %v2257 = vunpack.c.0.s8 %v2256
        %v2258 = vperm.slane %v2252, %v2257
        %v2260 = vunpack.c.l.s4 1983009808
        %v2261 = vunpack.c.0.s8 %v2260
        %v2262 = vperm.slane %v2254, %v2261
        %v2263 = vrot.slane %v2234, 4
        %v2264 = vsel %vm2103, %v2263, %v2222
        %v2265 = vrot.slane %v2222, 4
        %v2266 = vsel %vm2103, %v2234, %v2265
        %v2268 = vunpack.c.l.s4 1934713408
        %v2269 = vunpack.c.0.s8 %v2268
        %v2270 = vperm.slane %v2264, %v2269
        %v2272 = vunpack.c.l.s4 1934713408
        %v2273 = vunpack.c.0.s8 %v2272
        %v2274 = vperm.slane %v2266, %v2273
        %v2275 = vrot.slane %v2238, 4
        %v2276 = vsel %vm2103, %v2275, %v2226
        %v2277 = vrot.slane %v2226, 4
        %v2278 = vsel %vm2103, %v2238, %v2277
        %v2280 = vunpack.c.l.s4 1934713408
        %v2281 = vunpack.c.0.s8 %v2280
        %v2282 = vperm.slane %v2276, %v2281
        %v2284 = vunpack.c.l.s4 1934713408
        %v2285 = vunpack.c.0.s8 %v2284
        %v2286 = vperm.slane %v2278, %v2285
        %v2287 = vrot.slane %v2258, 4
        %v2288 = vsel %vm2103, %v2287, %v2246
        %v2289 = vrot.slane %v2246, 4
        %v2290 = vsel %vm2103, %v2258, %v2289
        %v2292 = vunpack.c.l.s4 1934713408
        %v2293 = vunpack.c.0.s8 %v2292
        %v2294 = vperm.slane %v2288, %v2293
        %v2296 = vunpack.c.l.s4 1934713408
        %v2297 = vunpack.c.0.s8 %v2296
        %v2298 = vperm.slane %v2290, %v2297
        %v2299 = vrot.slane %v2262, 4
        %v2300 = vsel %vm2103, %v2299, %v2250
        %v2301 = vrot.slane %v2250, 4
        %v2302 = vsel %vm2103, %v2262, %v2301
        %v2304 = vunpack.c.l.s4 1934713408
        %v2305 = vunpack.c.0.s8 %v2304
        %v2306 = vperm.slane %v2300, %v2305
        %v2308 = vunpack.c.l.s4 1934713408
        %v2309 = vunpack.c.0.s8 %v2308
        %v2310 = vperm.slane %v2302, %v2309
        %v2311 = vrot.slane %v2294, 4
        %v2312 = vsel %vm2103, %v2311, %v2270
        %v2313 = vrot.slane %v2270, 4
        %v2314 = vsel %vm2103, %v2294, %v2313
        %v2315 = vrot.slane %v2298, 4
        %v2316 = vsel %vm2103, %v2315, %v2274
        %v2317 = vrot.slane %v2274, 4
        %v2318 = vsel %vm2103, %v2298, %v2317
        %v2319 = vrot.slane %v2306, 4
        %v2320 = vsel %vm2103, %v2319, %v2282
        %v2321 = vrot.slane %v2282, 4
        %v2322 = vsel %vm2103, %v2306, %v2321
        %v2323 = vrot.slane %v2310, 4
        %v2324 = vsel %vm2103, %v2323, %v2286
        %v2325 = vrot.slane %v2286, 4
        %v2326 = vsel %vm2103, %v2310, %v2325
        %v2327 = vpack.c.bf16 %v2200, %v2200
        %v2328 = vpack.c.bf16 %v2202, %v2202
        %v2329 = vpack.c.bf16 %v2204, %v2204
        %v2330 = vpack.c.bf16 %v2206, %v2206
        %v2331 = vpack.c.bf16 %v2208, %v2208
        %v2332 = vpack.c.bf16 %v2210, %v2210
        %v2333 = vpack.c.bf16 %v2212, %v2212
        %v2334 = vpack.c.bf16 %v2214, %v2214
        %v2335 = vpack.c.bf16 %v2312, %v2312
        %v2336 = vpack.c.bf16 %v2314, %v2314
        %v2337 = vpack.c.bf16 %v2316, %v2316
        %v2338 = vpack.c.bf16 %v2318, %v2318
        %v2339 = vpack.c.bf16 %v2320, %v2320
        %v2340 = vpack.c.bf16 %v2322, %v2322
        %v2341 = vpack.c.bf16 %v2324, %v2324
        %v2342 = vpack.c.bf16 %v2326, %v2326
        %v2359 = vrot.slane %v1640, 4
        %v2360 = vrot.slane %v1642, 4
        %v2361 = vrot.slane %v1645, 4
        %v2362 = vrot.slane %v1647, 4
        %v2363 = vrot.slane %v1650, 4
        %v2364 = vrot.slane %v1652, 4
        %v2365 = vrot.slane %v1655, 4
        %v2366 = vrot.slane %v1657, 4
        %v2367 = vsel %vm1997, %v1582, %v2359
        %v2368 = vsel %vm1997, %v2359, %v1582
        %v2369 = vrot.slane %v2368, 4
        %v2370 = vsel %vm1997, %v1584, %v2360
        %v2371 = vsel %vm1997, %v2360, %v1584
        %v2372 = vrot.slane %v2371, 4
        %v2373 = vsel %vm1997, %v1587, %v2361
        %v2374 = vsel %vm1997, %v2361, %v1587
        %v2375 = vrot.slane %v2374, 4
        %v2376 = vsel %vm1997, %v1589, %v2362
        %v2377 = vsel %vm1997, %v2362, %v1589
        %v2378 = vrot.slane %v2377, 4
        %v2379 = vsel %vm1997, %v1592, %v2363
        %v2380 = vsel %vm1997, %v2363, %v1592
        %v2381 = vrot.slane %v2380, 4
        %v2382 = vsel %vm1997, %v1594, %v2364
        %v2383 = vsel %vm1997, %v2364, %v1594
        %v2384 = vrot.slane %v2383, 4
        %v2385 = vsel %vm1997, %v1597, %v2365
        %v2386 = vsel %vm1997, %v2365, %v1597
        %v2387 = vrot.slane %v2386, 4
        %v2388 = vsel %vm1997, %v1599, %v2366
        %v2389 = vsel %vm1997, %v2366, %v1599
        %v2390 = vrot.slane %v2389, 4
        %v2408 = vunpack.c.l.s4 1935823168
        %v2409 = vunpack.c.0.s8 %v2408
        %v2410 = vperm.slane %v2367, %v2409
        %v2412 = vunpack.c.l.s4 1935823168
        %v2413 = vunpack.c.0.s8 %v2412
        %v2414 = vperm.slane %v2369, %v2413
        %v2416 = vunpack.c.l.s4 1935823168
        %v2417 = vunpack.c.0.s8 %v2416
        %v2418 = vperm.slane %v2370, %v2417
        %v2420 = vunpack.c.l.s4 1935823168
        %v2421 = vunpack.c.0.s8 %v2420
        %v2422 = vperm.slane %v2372, %v2421
        %v2424 = vunpack.c.l.s4 1935823168
        %v2425 = vunpack.c.0.s8 %v2424
        %v2426 = vperm.slane %v2373, %v2425
        %v2428 = vunpack.c.l.s4 1935823168
        %v2429 = vunpack.c.0.s8 %v2428
        %v2430 = vperm.slane %v2375, %v2429
        %v2432 = vunpack.c.l.s4 1935823168
        %v2433 = vunpack.c.0.s8 %v2432
        %v2434 = vperm.slane %v2376, %v2433
        %v2436 = vunpack.c.l.s4 1935823168
        %v2437 = vunpack.c.0.s8 %v2436
        %v2438 = vperm.slane %v2378, %v2437
        %v2440 = vunpack.c.l.s4 1935823168
        %v2441 = vunpack.c.0.s8 %v2440
        %v2442 = vperm.slane %v2379, %v2441
        %v2444 = vunpack.c.l.s4 1935823168
        %v2445 = vunpack.c.0.s8 %v2444
        %v2446 = vperm.slane %v2381, %v2445
        %v2448 = vunpack.c.l.s4 1935823168
        %v2449 = vunpack.c.0.s8 %v2448
        %v2450 = vperm.slane %v2382, %v2449
        %v2452 = vunpack.c.l.s4 1935823168
        %v2453 = vunpack.c.0.s8 %v2452
        %v2454 = vperm.slane %v2384, %v2453
        %v2456 = vunpack.c.l.s4 1935823168
        %v2457 = vunpack.c.0.s8 %v2456
        %v2458 = vperm.slane %v2385, %v2457
        %v2460 = vunpack.c.l.s4 1935823168
        %v2461 = vunpack.c.0.s8 %v2460
        %v2462 = vperm.slane %v2387, %v2461
        %v2464 = vunpack.c.l.s4 1935823168
        %v2465 = vunpack.c.0.s8 %v2464
        %v2466 = vperm.slane %v2388, %v2465
        %v2468 = vunpack.c.l.s4 1935823168
        %v2469 = vunpack.c.0.s8 %v2468
        %v2470 = vperm.slane %v2390, %v2469
        %v2471 = vrot.slane %v2426, 4
        %v2472 = vsel %vm2103, %v2471, %v2410
        %v2473 = vrot.slane %v2410, 4
        %v2474 = vsel %vm2103, %v2426, %v2473
        %v2476 = vunpack.c.l.s4 1983009808
        %v2477 = vunpack.c.0.s8 %v2476
        %v2478 = vperm.slane %v2472, %v2477
        %v2480 = vunpack.c.l.s4 1983009808
        %v2481 = vunpack.c.0.s8 %v2480
        %v2482 = vperm.slane %v2474, %v2481
        %v2483 = vrot.slane %v2434, 4
        %v2484 = vsel %vm2103, %v2483, %v2418
        %v2485 = vrot.slane %v2418, 4
        %v2486 = vsel %vm2103, %v2434, %v2485
        %v2488 = vunpack.c.l.s4 1983009808
        %v2489 = vunpack.c.0.s8 %v2488
        %v2490 = vperm.slane %v2484, %v2489
        %v2492 = vunpack.c.l.s4 1983009808
        %v2493 = vunpack.c.0.s8 %v2492
        %v2494 = vperm.slane %v2486, %v2493
        %v2495 = vrot.slane %v2458, 4
        %v2496 = vsel %vm2103, %v2495, %v2442
        %v2497 = vrot.slane %v2442, 4
        %v2498 = vsel %vm2103, %v2458, %v2497
        %v2500 = vunpack.c.l.s4 1983009808
        %v2501 = vunpack.c.0.s8 %v2500
        %v2502 = vperm.slane %v2496, %v2501
        %v2504 = vunpack.c.l.s4 1983009808
        %v2505 = vunpack.c.0.s8 %v2504
        %v2506 = vperm.slane %v2498, %v2505
        %v2507 = vrot.slane %v2466, 4
        %v2508 = vsel %vm2103, %v2507, %v2450
        %v2509 = vrot.slane %v2450, 4
        %v2510 = vsel %vm2103, %v2466, %v2509
        %v2512 = vunpack.c.l.s4 1983009808
        %v2513 = vunpack.c.0.s8 %v2512
        %v2514 = vperm.slane %v2508, %v2513
        %v2516 = vunpack.c.l.s4 1983009808
        %v2517 = vunpack.c.0.s8 %v2516
        %v2518 = vperm.slane %v2510, %v2517
        %v2519 = vrot.slane %v2490, 4
        %v2520 = vsel %vm2103, %v2519, %v2478
        %v2521 = vrot.slane %v2478, 4
        %v2522 = vsel %vm2103, %v2490, %v2521
        %v2524 = vunpack.c.l.s4 1934713408
        %v2525 = vunpack.c.0.s8 %v2524
        %v2526 = vperm.slane %v2520, %v2525
        %v2528 = vunpack.c.l.s4 1934713408
        %v2529 = vunpack.c.0.s8 %v2528
        %v2530 = vperm.slane %v2522, %v2529
        %v2531 = vrot.slane %v2494, 4
        %v2532 = vsel %vm2103, %v2531, %v2482
        %v2533 = vrot.slane %v2482, 4
        %v2534 = vsel %vm2103, %v2494, %v2533
        %v2536 = vunpack.c.l.s4 1934713408
        %v2537 = vunpack.c.0.s8 %v2536
        %v2538 = vperm.slane %v2532, %v2537
        %v2540 = vunpack.c.l.s4 1934713408
        %v2541 = vunpack.c.0.s8 %v2540
        %v2542 = vperm.slane %v2534, %v2541
        %v2543 = vrot.slane %v2514, 4
        %v2544 = vsel %vm2103, %v2543, %v2502
        %v2545 = vrot.slane %v2502, 4
        %v2546 = vsel %vm2103, %v2514, %v2545
        %v2548 = vunpack.c.l.s4 1934713408
        %v2549 = vunpack.c.0.s8 %v2548
        %v2550 = vperm.slane %v2544, %v2549
        %v2552 = vunpack.c.l.s4 1934713408
        %v2553 = vunpack.c.0.s8 %v2552
        %v2554 = vperm.slane %v2546, %v2553
        %v2555 = vrot.slane %v2518, 4
        %v2556 = vsel %vm2103, %v2555, %v2506
        %v2557 = vrot.slane %v2506, 4
        %v2558 = vsel %vm2103, %v2518, %v2557
        %v2560 = vunpack.c.l.s4 1934713408
        %v2561 = vunpack.c.0.s8 %v2560
        %v2562 = vperm.slane %v2556, %v2561
        %v2564 = vunpack.c.l.s4 1934713408
        %v2565 = vunpack.c.0.s8 %v2564
        %v2566 = vperm.slane %v2558, %v2565
        %v2567 = vrot.slane %v2550, 4
        %v2568 = vsel %vm2103, %v2567, %v2526
        %v2569 = vrot.slane %v2526, 4
        %v2570 = vsel %vm2103, %v2550, %v2569
        %v2571 = vrot.slane %v2554, 4
        %v2572 = vsel %vm2103, %v2571, %v2530
        %v2573 = vrot.slane %v2530, 4
        %v2574 = vsel %vm2103, %v2554, %v2573
        %v2575 = vrot.slane %v2562, 4
        %v2576 = vsel %vm2103, %v2575, %v2538
        %v2577 = vrot.slane %v2538, 4
        %v2578 = vsel %vm2103, %v2562, %v2577
        %v2579 = vrot.slane %v2566, 4
        %v2580 = vsel %vm2103, %v2579, %v2542
        %v2581 = vrot.slane %v2542, 4
        %v2582 = vsel %vm2103, %v2566, %v2581
        %v2583 = vrot.slane %v2430, 4
        %v2584 = vsel %vm2103, %v2583, %v2414
        %v2585 = vrot.slane %v2414, 4
        %v2586 = vsel %vm2103, %v2430, %v2585
        %v2588 = vunpack.c.l.s4 1983009808
        %v2589 = vunpack.c.0.s8 %v2588
        %v2590 = vperm.slane %v2584, %v2589
        %v2592 = vunpack.c.l.s4 1983009808
        %v2593 = vunpack.c.0.s8 %v2592
        %v2594 = vperm.slane %v2586, %v2593
        %v2595 = vrot.slane %v2438, 4
        %v2596 = vsel %vm2103, %v2595, %v2422
        %v2597 = vrot.slane %v2422, 4
        %v2598 = vsel %vm2103, %v2438, %v2597
        %v2600 = vunpack.c.l.s4 1983009808
        %v2601 = vunpack.c.0.s8 %v2600
        %v2602 = vperm.slane %v2596, %v2601
        %v2604 = vunpack.c.l.s4 1983009808
        %v2605 = vunpack.c.0.s8 %v2604
        %v2606 = vperm.slane %v2598, %v2605
        %v2607 = vrot.slane %v2462, 4
        %v2608 = vsel %vm2103, %v2607, %v2446
        %v2609 = vrot.slane %v2446, 4
        %v2610 = vsel %vm2103, %v2462, %v2609
        %v2612 = vunpack.c.l.s4 1983009808
        %v2613 = vunpack.c.0.s8 %v2612
        %v2614 = vperm.slane %v2608, %v2613
        %v2616 = vunpack.c.l.s4 1983009808
        %v2617 = vunpack.c.0.s8 %v2616
        %v2618 = vperm.slane %v2610, %v2617
        %v2619 = vrot.slane %v2470, 4
        %v2620 = vsel %vm2103, %v2619, %v2454
        %v2621 = vrot.slane %v2454, 4
        %v2622 = vsel %vm2103, %v2470, %v2621
        %v2624 = vunpack.c.l.s4 1983009808
        %v2625 = vunpack.c.0.s8 %v2624
        %v2626 = vperm.slane %v2620, %v2625
        %v2628 = vunpack.c.l.s4 1983009808
        %v2629 = vunpack.c.0.s8 %v2628
        %v2630 = vperm.slane %v2622, %v2629
        %v2631 = vrot.slane %v2602, 4
        %v2632 = vsel %vm2103, %v2631, %v2590
        %v2633 = vrot.slane %v2590, 4
        %v2634 = vsel %vm2103, %v2602, %v2633
        %v2636 = vunpack.c.l.s4 1934713408
        %v2637 = vunpack.c.0.s8 %v2636
        %v2638 = vperm.slane %v2632, %v2637
        %v2640 = vunpack.c.l.s4 1934713408
        %v2641 = vunpack.c.0.s8 %v2640
        %v2642 = vperm.slane %v2634, %v2641
        %v2643 = vrot.slane %v2606, 4
        %v2644 = vsel %vm2103, %v2643, %v2594
        %v2645 = vrot.slane %v2594, 4
        %v2646 = vsel %vm2103, %v2606, %v2645
        %v2648 = vunpack.c.l.s4 1934713408
        %v2649 = vunpack.c.0.s8 %v2648
        %v2650 = vperm.slane %v2644, %v2649
        %v2652 = vunpack.c.l.s4 1934713408
        %v2653 = vunpack.c.0.s8 %v2652
        %v2654 = vperm.slane %v2646, %v2653
        %v2655 = vrot.slane %v2626, 4
        %v2656 = vsel %vm2103, %v2655, %v2614
        %v2657 = vrot.slane %v2614, 4
        %v2658 = vsel %vm2103, %v2626, %v2657
        %v2660 = vunpack.c.l.s4 1934713408
        %v2661 = vunpack.c.0.s8 %v2660
        %v2662 = vperm.slane %v2656, %v2661
        %v2664 = vunpack.c.l.s4 1934713408
        %v2665 = vunpack.c.0.s8 %v2664
        %v2666 = vperm.slane %v2658, %v2665
        %v2667 = vrot.slane %v2630, 4
        %v2668 = vsel %vm2103, %v2667, %v2618
        %v2669 = vrot.slane %v2618, 4
        %v2670 = vsel %vm2103, %v2630, %v2669
        %v2672 = vunpack.c.l.s4 1934713408
        %v2673 = vunpack.c.0.s8 %v2672
        %v2674 = vperm.slane %v2668, %v2673
        %v2676 = vunpack.c.l.s4 1934713408
        %v2677 = vunpack.c.0.s8 %v2676
        %v2678 = vperm.slane %v2670, %v2677
        %v2679 = vrot.slane %v2662, 4
        %v2680 = vsel %vm2103, %v2679, %v2638
        %v2681 = vrot.slane %v2638, 4
        %v2682 = vsel %vm2103, %v2662, %v2681
        %v2683 = vrot.slane %v2666, 4
        %v2684 = vsel %vm2103, %v2683, %v2642
        %v2685 = vrot.slane %v2642, 4
        %v2686 = vsel %vm2103, %v2666, %v2685
        %v2687 = vrot.slane %v2674, 4
        %v2688 = vsel %vm2103, %v2687, %v2650
        %v2689 = vrot.slane %v2650, 4
        %v2690 = vsel %vm2103, %v2674, %v2689
        %v2691 = vrot.slane %v2678, 4
        %v2692 = vsel %vm2103, %v2691, %v2654
        %v2693 = vrot.slane %v2654, 4
        %v2694 = vsel %vm2103, %v2678, %v2693
        %v2695 = vpack.c.bf16 %v2568, %v2568
        %v2696 = vpack.c.bf16 %v2570, %v2570
        %v2697 = vpack.c.bf16 %v2572, %v2572
        %v2698 = vpack.c.bf16 %v2574, %v2574
        %v2699 = vpack.c.bf16 %v2576, %v2576
        %v2700 = vpack.c.bf16 %v2578, %v2578
        %v2701 = vpack.c.bf16 %v2580, %v2580
        %v2702 = vpack.c.bf16 %v2582, %v2582
        %v2703 = vpack.c.bf16 %v2680, %v2680
        %v2704 = vpack.c.bf16 %v2682, %v2682
        %v2705 = vpack.c.bf16 %v2684, %v2684
        %v2706 = vpack.c.bf16 %v2686, %v2686
        %v2707 = vpack.c.bf16 %v2688, %v2688
        %v2708 = vpack.c.bf16 %v2690, %v2690
        %v2709 = vpack.c.bf16 %v2692, %v2692
        %v2710 = vpack.c.bf16 %v2694, %v2694
        %v2727 = vrot.slane %v1954, 4
        %v2728 = vrot.slane %v1956, 4
        %v2729 = vrot.slane %v1959, 4
        %v2730 = vrot.slane %v1961, 4
        %v2731 = vrot.slane %v1964, 4
        %v2732 = vrot.slane %v1966, 4
        %v2733 = vrot.slane %v1969, 4
        %v2734 = vrot.slane %v1971, 4
        %v2735 = vsel %vm1997, %v1896, %v2727
        %v2736 = vsel %vm1997, %v2727, %v1896
        %v2737 = vrot.slane %v2736, 4
        %v2738 = vsel %vm1997, %v1898, %v2728
        %v2739 = vsel %vm1997, %v2728, %v1898
        %v2740 = vrot.slane %v2739, 4
        %v2741 = vsel %vm1997, %v1901, %v2729
        %v2742 = vsel %vm1997, %v2729, %v1901
        %v2743 = vrot.slane %v2742, 4
        %v2744 = vsel %vm1997, %v1903, %v2730
        %v2745 = vsel %vm1997, %v2730, %v1903
        %v2746 = vrot.slane %v2745, 4
        %v2747 = vsel %vm1997, %v1906, %v2731
        %v2748 = vsel %vm1997, %v2731, %v1906
        %v2749 = vrot.slane %v2748, 4
        %v2750 = vsel %vm1997, %v1908, %v2732
        %v2751 = vsel %vm1997, %v2732, %v1908
        %v2752 = vrot.slane %v2751, 4
        %v2753 = vsel %vm1997, %v1911, %v2733
        %v2754 = vsel %vm1997, %v2733, %v1911
        %v2755 = vrot.slane %v2754, 4
        %v2756 = vsel %vm1997, %v1913, %v2734
        %v2757 = vsel %vm1997, %v2734, %v1913
        %v2758 = vrot.slane %v2757, 4
        %v2776 = vunpack.c.l.s4 1935823168
        %v2777 = vunpack.c.0.s8 %v2776
        %v2778 = vperm.slane %v2735, %v2777
        %v2780 = vunpack.c.l.s4 1935823168
        %v2781 = vunpack.c.0.s8 %v2780
        %v2782 = vperm.slane %v2737, %v2781
        %v2784 = vunpack.c.l.s4 1935823168
        %v2785 = vunpack.c.0.s8 %v2784
        %v2786 = vperm.slane %v2738, %v2785
        %v2788 = vunpack.c.l.s4 1935823168
        %v2789 = vunpack.c.0.s8 %v2788
        %v2790 = vperm.slane %v2740, %v2789
        %v2792 = vunpack.c.l.s4 1935823168
        %v2793 = vunpack.c.0.s8 %v2792
        %v2794 = vperm.slane %v2741, %v2793
        %v2796 = vunpack.c.l.s4 1935823168
        %v2797 = vunpack.c.0.s8 %v2796
        %v2798 = vperm.slane %v2743, %v2797
        %v2800 = vunpack.c.l.s4 1935823168
        %v2801 = vunpack.c.0.s8 %v2800
        %v2802 = vperm.slane %v2744, %v2801
        %v2804 = vunpack.c.l.s4 1935823168
        %v2805 = vunpack.c.0.s8 %v2804
        %v2806 = vperm.slane %v2746, %v2805
        %v2808 = vunpack.c.l.s4 1935823168
        %v2809 = vunpack.c.0.s8 %v2808
        %v2810 = vperm.slane %v2747, %v2809
        %v2812 = vunpack.c.l.s4 1935823168
        %v2813 = vunpack.c.0.s8 %v2812
        %v2814 = vperm.slane %v2749, %v2813
        %v2816 = vunpack.c.l.s4 1935823168
        %v2817 = vunpack.c.0.s8 %v2816
        %v2818 = vperm.slane %v2750, %v2817
        %v2820 = vunpack.c.l.s4 1935823168
        %v2821 = vunpack.c.0.s8 %v2820
        %v2822 = vperm.slane %v2752, %v2821
        %v2824 = vunpack.c.l.s4 1935823168
        %v2825 = vunpack.c.0.s8 %v2824
        %v2826 = vperm.slane %v2753, %v2825
        %v2828 = vunpack.c.l.s4 1935823168
        %v2829 = vunpack.c.0.s8 %v2828
        %v2830 = vperm.slane %v2755, %v2829
        %v2832 = vunpack.c.l.s4 1935823168
        %v2833 = vunpack.c.0.s8 %v2832
        %v2834 = vperm.slane %v2756, %v2833
        %v2836 = vunpack.c.l.s4 1935823168
        %v2837 = vunpack.c.0.s8 %v2836
        %v2838 = vperm.slane %v2758, %v2837
        %v2839 = vrot.slane %v2794, 4
        %v2840 = vsel %vm2103, %v2839, %v2778
        %v2841 = vrot.slane %v2778, 4
        %v2842 = vsel %vm2103, %v2794, %v2841
        %v2844 = vunpack.c.l.s4 1983009808
        %v2845 = vunpack.c.0.s8 %v2844
        %v2846 = vperm.slane %v2840, %v2845
        %v2848 = vunpack.c.l.s4 1983009808
        %v2849 = vunpack.c.0.s8 %v2848
        %v2850 = vperm.slane %v2842, %v2849
        %v2851 = vrot.slane %v2802, 4
        %v2852 = vsel %vm2103, %v2851, %v2786
        %v2853 = vrot.slane %v2786, 4
        %v2854 = vsel %vm2103, %v2802, %v2853
        %v2856 = vunpack.c.l.s4 1983009808
        %v2857 = vunpack.c.0.s8 %v2856
        %v2858 = vperm.slane %v2852, %v2857
        %v2860 = vunpack.c.l.s4 1983009808
        %v2861 = vunpack.c.0.s8 %v2860
        %v2862 = vperm.slane %v2854, %v2861
        %v2863 = vrot.slane %v2826, 4
        %v2864 = vsel %vm2103, %v2863, %v2810
        %v2865 = vrot.slane %v2810, 4
        %v2866 = vsel %vm2103, %v2826, %v2865
        %v2868 = vunpack.c.l.s4 1983009808
        %v2869 = vunpack.c.0.s8 %v2868
        %v2870 = vperm.slane %v2864, %v2869
        %v2872 = vunpack.c.l.s4 1983009808
        %v2873 = vunpack.c.0.s8 %v2872
        %v2874 = vperm.slane %v2866, %v2873
        %v2875 = vrot.slane %v2834, 4
        %v2876 = vsel %vm2103, %v2875, %v2818
        %v2877 = vrot.slane %v2818, 4
        %v2878 = vsel %vm2103, %v2834, %v2877
        %v2880 = vunpack.c.l.s4 1983009808
        %v2881 = vunpack.c.0.s8 %v2880
        %v2882 = vperm.slane %v2876, %v2881
        %v2884 = vunpack.c.l.s4 1983009808
        %v2885 = vunpack.c.0.s8 %v2884
        %v2886 = vperm.slane %v2878, %v2885
        %v2887 = vrot.slane %v2858, 4
        %v2888 = vsel %vm2103, %v2887, %v2846
        %v2889 = vrot.slane %v2846, 4
        %v2890 = vsel %vm2103, %v2858, %v2889
        %v2892 = vunpack.c.l.s4 1934713408
        %v2893 = vunpack.c.0.s8 %v2892
        %v2894 = vperm.slane %v2888, %v2893
        %v2896 = vunpack.c.l.s4 1934713408
        %v2897 = vunpack.c.0.s8 %v2896
        %v2898 = vperm.slane %v2890, %v2897
        %v2899 = vrot.slane %v2862, 4
        %v2900 = vsel %vm2103, %v2899, %v2850
        %v2901 = vrot.slane %v2850, 4
        %v2902 = vsel %vm2103, %v2862, %v2901
        %v2904 = vunpack.c.l.s4 1934713408
        %v2905 = vunpack.c.0.s8 %v2904
        %v2906 = vperm.slane %v2900, %v2905
        %v2908 = vunpack.c.l.s4 1934713408
        %v2909 = vunpack.c.0.s8 %v2908
        %v2910 = vperm.slane %v2902, %v2909
        %v2911 = vrot.slane %v2882, 4
        %v2912 = vsel %vm2103, %v2911, %v2870
        %v2913 = vrot.slane %v2870, 4
        %v2914 = vsel %vm2103, %v2882, %v2913
        %v2916 = vunpack.c.l.s4 1934713408
        %v2917 = vunpack.c.0.s8 %v2916
        %v2918 = vperm.slane %v2912, %v2917
        %v2920 = vunpack.c.l.s4 1934713408
        %v2921 = vunpack.c.0.s8 %v2920
        %v2922 = vperm.slane %v2914, %v2921
        %v2923 = vrot.slane %v2886, 4
        %v2924 = vsel %vm2103, %v2923, %v2874
        %v2925 = vrot.slane %v2874, 4
        %v2926 = vsel %vm2103, %v2886, %v2925
        %v2928 = vunpack.c.l.s4 1934713408
        %v2929 = vunpack.c.0.s8 %v2928
        %v2930 = vperm.slane %v2924, %v2929
        %v2932 = vunpack.c.l.s4 1934713408
        %v2933 = vunpack.c.0.s8 %v2932
        %v2934 = vperm.slane %v2926, %v2933
        %v2935 = vrot.slane %v2918, 4
        %v2936 = vsel %vm2103, %v2935, %v2894
        %v2937 = vrot.slane %v2894, 4
        %v2938 = vsel %vm2103, %v2918, %v2937
        %v2939 = vrot.slane %v2922, 4
        %v2940 = vsel %vm2103, %v2939, %v2898
        %v2941 = vrot.slane %v2898, 4
        %v2942 = vsel %vm2103, %v2922, %v2941
        %v2943 = vrot.slane %v2930, 4
        %v2944 = vsel %vm2103, %v2943, %v2906
        %v2945 = vrot.slane %v2906, 4
        %v2946 = vsel %vm2103, %v2930, %v2945
        %v2947 = vrot.slane %v2934, 4
        %v2948 = vsel %vm2103, %v2947, %v2910
        %v2949 = vrot.slane %v2910, 4
        %v2950 = vsel %vm2103, %v2934, %v2949
        %v2951 = vrot.slane %v2798, 4
        %v2952 = vsel %vm2103, %v2951, %v2782
        %v2953 = vrot.slane %v2782, 4
        %v2954 = vsel %vm2103, %v2798, %v2953
        %v2956 = vunpack.c.l.s4 1983009808
        %v2957 = vunpack.c.0.s8 %v2956
        %v2958 = vperm.slane %v2952, %v2957
        %v2960 = vunpack.c.l.s4 1983009808
        %v2961 = vunpack.c.0.s8 %v2960
        %v2962 = vperm.slane %v2954, %v2961
        %v2963 = vrot.slane %v2806, 4
        %v2964 = vsel %vm2103, %v2963, %v2790
        %v2965 = vrot.slane %v2790, 4
        %v2966 = vsel %vm2103, %v2806, %v2965
        %v2968 = vunpack.c.l.s4 1983009808
        %v2969 = vunpack.c.0.s8 %v2968
        %v2970 = vperm.slane %v2964, %v2969
        %v2972 = vunpack.c.l.s4 1983009808
        %v2973 = vunpack.c.0.s8 %v2972
        %v2974 = vperm.slane %v2966, %v2973
        %v2975 = vrot.slane %v2830, 4
        %v2976 = vsel %vm2103, %v2975, %v2814
        %v2977 = vrot.slane %v2814, 4
        %v2978 = vsel %vm2103, %v2830, %v2977
        %v2980 = vunpack.c.l.s4 1983009808
        %v2981 = vunpack.c.0.s8 %v2980
        %v2982 = vperm.slane %v2976, %v2981
        %v2984 = vunpack.c.l.s4 1983009808
        %v2985 = vunpack.c.0.s8 %v2984
        %v2986 = vperm.slane %v2978, %v2985
        %v2987 = vrot.slane %v2838, 4
        %v2988 = vsel %vm2103, %v2987, %v2822
        %v2989 = vrot.slane %v2822, 4
        %v2990 = vsel %vm2103, %v2838, %v2989
        %v2992 = vunpack.c.l.s4 1983009808
        %v2993 = vunpack.c.0.s8 %v2992
        %v2994 = vperm.slane %v2988, %v2993
        %v2996 = vunpack.c.l.s4 1983009808
        %v2997 = vunpack.c.0.s8 %v2996
        %v2998 = vperm.slane %v2990, %v2997
        %v2999 = vrot.slane %v2970, 4
        %v3000 = vsel %vm2103, %v2999, %v2958
        %v3001 = vrot.slane %v2958, 4
        %v3002 = vsel %vm2103, %v2970, %v3001
        %v3004 = vunpack.c.l.s4 1934713408
        %v3005 = vunpack.c.0.s8 %v3004
        %v3006 = vperm.slane %v3000, %v3005
        %v3008 = vunpack.c.l.s4 1934713408
        %v3009 = vunpack.c.0.s8 %v3008
        %v3010 = vperm.slane %v3002, %v3009
        %v3011 = vrot.slane %v2974, 4
        %v3012 = vsel %vm2103, %v3011, %v2962
        %v3013 = vrot.slane %v2962, 4
        %v3014 = vsel %vm2103, %v2974, %v3013
        %v3016 = vunpack.c.l.s4 1934713408
        %v3017 = vunpack.c.0.s8 %v3016
        %v3018 = vperm.slane %v3012, %v3017
        %v3020 = vunpack.c.l.s4 1934713408
        %v3021 = vunpack.c.0.s8 %v3020
        %v3022 = vperm.slane %v3014, %v3021
        %v3023 = vrot.slane %v2994, 4
        %v3024 = vsel %vm2103, %v3023, %v2982
        %v3025 = vrot.slane %v2982, 4
        %v3026 = vsel %vm2103, %v2994, %v3025
        %v3028 = vunpack.c.l.s4 1934713408
        %v3029 = vunpack.c.0.s8 %v3028
        %v3030 = vperm.slane %v3024, %v3029
        %v3032 = vunpack.c.l.s4 1934713408
        %v3033 = vunpack.c.0.s8 %v3032
        %v3034 = vperm.slane %v3026, %v3033
        %v3035 = vrot.slane %v2998, 4
        %v3036 = vsel %vm2103, %v3035, %v2986
        %v3037 = vrot.slane %v2986, 4
        %v3038 = vsel %vm2103, %v2998, %v3037
        %v3040 = vunpack.c.l.s4 1934713408
        %v3041 = vunpack.c.0.s8 %v3040
        %v3042 = vperm.slane %v3036, %v3041
        %v3044 = vunpack.c.l.s4 1934713408
        %v3045 = vunpack.c.0.s8 %v3044
        %v3046 = vperm.slane %v3038, %v3045
        %v3047 = vrot.slane %v3030, 4
        %v3048 = vsel %vm2103, %v3047, %v3006
        %v3049 = vrot.slane %v3006, 4
        %v3050 = vsel %vm2103, %v3030, %v3049
        %v3051 = vrot.slane %v3034, 4
        %v3052 = vsel %vm2103, %v3051, %v3010
        %v3053 = vrot.slane %v3010, 4
        %v3054 = vsel %vm2103, %v3034, %v3053
        %v3055 = vrot.slane %v3042, 4
        %v3056 = vsel %vm2103, %v3055, %v3018
        %v3057 = vrot.slane %v3018, 4
        %v3058 = vsel %vm2103, %v3042, %v3057
        %v3059 = vrot.slane %v3046, 4
        %v3060 = vsel %vm2103, %v3059, %v3022
        %v3061 = vrot.slane %v3022, 4
        %v3062 = vsel %vm2103, %v3046, %v3061
        %v3063 = vpack.c.bf16 %v2936, %v2936
        %v3064 = vpack.c.bf16 %v2938, %v2938
        %v3065 = vpack.c.bf16 %v2940, %v2940
        %v3066 = vpack.c.bf16 %v2942, %v2942
        %v3067 = vpack.c.bf16 %v2944, %v2944
        %v3068 = vpack.c.bf16 %v2946, %v2946
        %v3069 = vpack.c.bf16 %v2948, %v2948
        %v3070 = vpack.c.bf16 %v2950, %v2950
        %v3071 = vpack.c.bf16 %v3048, %v3048
        %v3072 = vpack.c.bf16 %v3050, %v3050
        %v3073 = vpack.c.bf16 %v3052, %v3052
        %v3074 = vpack.c.bf16 %v3054, %v3054
        %v3075 = vpack.c.bf16 %v3056, %v3056
        %v3076 = vpack.c.bf16 %v3058, %v3058
        %v3077 = vpack.c.bf16 %v3060, %v3060
        %v3078 = vpack.c.bf16 %v3062, %v3062
        %3079 = vmatpush.bf16.xpose.msra.mxu0 0
        %3080 = vmatpush.bf16.xpose.msra.mxu0 0
        %3081 = vmatpush.bf16.xpose.msra.mxu0 0
        %3082 = vmatpush.bf16.xpose.msra.mxu0 0
        %3083 = vmatpush.bf16.xpose.msra.mxu0 0
        %3084 = vmatpush.bf16.xpose.msra.mxu0 0
        %3085 = vmatpush.bf16.xpose.msra.mxu0 0
        %3086 = vmatpush.bf16.xpose.msra.mxu0 %v2695
        %3087 = vmatmul.bf16.gmra.mxu0 %v2327
        %v3088 = vpop.f32.mrf.mxu0
        %v3089 = vadd.f32 0.0, %v3088
        %v3090 = vpop.f32.mrf.mxu0
        %3091 = vdwg.mxu0
        %3092 = vmatpush.bf16.xpose.msra.mxu0 0
        %3093 = vmatpush.bf16.xpose.msra.mxu0 0
        %3094 = vmatpush.bf16.xpose.msra.mxu0 0
        %3095 = vmatpush.bf16.xpose.msra.mxu0 0
        %3096 = vmatpush.bf16.xpose.msra.mxu0 0
        %3097 = vmatpush.bf16.xpose.msra.mxu0 0
        %3098 = vmatpush.bf16.xpose.msra.mxu0 0
        %3099 = vmatpush.bf16.xpose.msra.mxu0 %v2696
        %3100 = vmatmul.bf16.gmra.mxu0 %v2328
        %v3101 = vpop.f32.mrf.mxu0
        %v3102 = vadd.f32 0.0, %v3101
        %v3103 = vpop.f32.mrf.mxu0
        %3104 = vdwg.mxu0
        %3105 = vmatpush.bf16.xpose.msra.mxu0 0
        %3106 = vmatpush.bf16.xpose.msra.mxu0 0
        %3107 = vmatpush.bf16.xpose.msra.mxu0 0
        %3108 = vmatpush.bf16.xpose.msra.mxu0 0
        %3109 = vmatpush.bf16.xpose.msra.mxu0 0
        %3110 = vmatpush.bf16.xpose.msra.mxu0 0
        %3111 = vmatpush.bf16.xpose.msra.mxu0 0
        %3112 = vmatpush.bf16.xpose.msra.mxu0 %v2697
        %3113 = vmatmul.bf16.gmra.mxu0 %v2329
        %v3114 = vpop.f32.mrf.mxu0
        %v3115 = vadd.f32 0.0, %v3114
        %v3116 = vpop.f32.mrf.mxu0
        %3117 = vdwg.mxu0
        %3118 = vmatpush.bf16.xpose.msra.mxu0 0
        %3119 = vmatpush.bf16.xpose.msra.mxu0 0
        %3120 = vmatpush.bf16.xpose.msra.mxu0 0
        %3121 = vmatpush.bf16.xpose.msra.mxu0 0
        %3122 = vmatpush.bf16.xpose.msra.mxu0 0
        %3123 = vmatpush.bf16.xpose.msra.mxu0 0
        %3124 = vmatpush.bf16.xpose.msra.mxu0 0
        %3125 = vmatpush.bf16.xpose.msra.mxu0 %v2698
        %3126 = vmatmul.bf16.gmra.mxu0 %v2330
        %v3127 = vpop.f32.mrf.mxu0
        %v3128 = vadd.f32 0.0, %v3127
        %v3129 = vpop.f32.mrf.mxu0
        %3130 = vdwg.mxu0
        %3131 = vmatpush.bf16.xpose.msra.mxu0 0
        %3132 = vmatpush.bf16.xpose.msra.mxu0 0
        %3133 = vmatpush.bf16.xpose.msra.mxu0 0
        %3134 = vmatpush.bf16.xpose.msra.mxu0 0
        %3135 = vmatpush.bf16.xpose.msra.mxu0 0
        %3136 = vmatpush.bf16.xpose.msra.mxu0 0
        %3137 = vmatpush.bf16.xpose.msra.mxu0 0
        %3138 = vmatpush.bf16.xpose.msra.mxu0 %v2699
        %3139 = vmatmul.bf16.gmra.mxu0 %v2331
        %v3140 = vpop.f32.mrf.mxu0
        %v3141 = vadd.f32 0.0, %v3140
        %v3142 = vpop.f32.mrf.mxu0
        %3143 = vdwg.mxu0
        %3144 = vmatpush.bf16.xpose.msra.mxu0 0
        %3145 = vmatpush.bf16.xpose.msra.mxu0 0
        %3146 = vmatpush.bf16.xpose.msra.mxu0 0
        %3147 = vmatpush.bf16.xpose.msra.mxu0 0
        %3148 = vmatpush.bf16.xpose.msra.mxu0 0
        %3149 = vmatpush.bf16.xpose.msra.mxu0 0
        %3150 = vmatpush.bf16.xpose.msra.mxu0 0
        %3151 = vmatpush.bf16.xpose.msra.mxu0 %v2700
        %3152 = vmatmul.bf16.gmra.mxu0 %v2332
        %v3153 = vpop.f32.mrf.mxu0
        %v3154 = vadd.f32 0.0, %v3153
        %v3155 = vpop.f32.mrf.mxu0
        %3156 = vdwg.mxu0
        %3157 = vmatpush.bf16.xpose.msra.mxu0 0
        %3158 = vmatpush.bf16.xpose.msra.mxu0 0
        %3159 = vmatpush.bf16.xpose.msra.mxu0 0
        %3160 = vmatpush.bf16.xpose.msra.mxu0 0
        %3161 = vmatpush.bf16.xpose.msra.mxu0 0
        %3162 = vmatpush.bf16.xpose.msra.mxu0 0
        %3163 = vmatpush.bf16.xpose.msra.mxu0 0
        %3164 = vmatpush.bf16.xpose.msra.mxu0 %v2701
        %3165 = vmatmul.bf16.gmra.mxu0 %v2333
        %v3166 = vpop.f32.mrf.mxu0
        %v3167 = vadd.f32 0.0, %v3166
        %v3168 = vpop.f32.mrf.mxu0
        %3169 = vdwg.mxu0
        %3170 = vmatpush.bf16.xpose.msra.mxu0 0
        %3171 = vmatpush.bf16.xpose.msra.mxu0 0
        %3172 = vmatpush.bf16.xpose.msra.mxu0 0
        %3173 = vmatpush.bf16.xpose.msra.mxu0 0
        %3174 = vmatpush.bf16.xpose.msra.mxu0 0
        %3175 = vmatpush.bf16.xpose.msra.mxu0 0
        %3176 = vmatpush.bf16.xpose.msra.mxu0 0
        %3177 = vmatpush.bf16.xpose.msra.mxu0 %v2702
        %3178 = vmatmul.bf16.gmra.mxu0 %v2334
        %v3179 = vpop.f32.mrf.mxu0
        %v3180 = vadd.f32 0.0, %v3179
        %v3181 = vpop.f32.mrf.mxu0
        %3182 = vdwg.mxu0
        %3183 = vmatpush.bf16.xpose.msra.mxu0 0
        %3184 = vmatpush.bf16.xpose.msra.mxu0 0
        %3185 = vmatpush.bf16.xpose.msra.mxu0 0
        %3186 = vmatpush.bf16.xpose.msra.mxu0 0
        %3187 = vmatpush.bf16.xpose.msra.mxu0 0
        %3188 = vmatpush.bf16.xpose.msra.mxu0 0
        %3189 = vmatpush.bf16.xpose.msra.mxu0 0
        %3190 = vmatpush.bf16.xpose.msra.mxu0 %v2703
        %3191 = vmatmul.bf16.gmra.mxu0 %v2335
        %v3192 = vpop.f32.mrf.mxu0
        %v3193 = vadd.f32 0.0, %v3192
        %v3194 = vpop.f32.mrf.mxu0
        %3195 = vdwg.mxu0
        %3196 = vmatpush.bf16.xpose.msra.mxu0 0
        %3197 = vmatpush.bf16.xpose.msra.mxu0 0
        %3198 = vmatpush.bf16.xpose.msra.mxu0 0
        %3199 = vmatpush.bf16.xpose.msra.mxu0 0
        %3200 = vmatpush.bf16.xpose.msra.mxu0 0
        %3201 = vmatpush.bf16.xpose.msra.mxu0 0
        %3202 = vmatpush.bf16.xpose.msra.mxu0 0
        %3203 = vmatpush.bf16.xpose.msra.mxu0 %v2704
        %3204 = vmatmul.bf16.gmra.mxu0 %v2336
        %v3205 = vpop.f32.mrf.mxu0
        %v3206 = vadd.f32 0.0, %v3205
        %v3207 = vpop.f32.mrf.mxu0
        %3208 = vdwg.mxu0
        %3209 = vmatpush.bf16.xpose.msra.mxu0 0
        %3210 = vmatpush.bf16.xpose.msra.mxu0 0
        %3211 = vmatpush.bf16.xpose.msra.mxu0 0
        %3212 = vmatpush.bf16.xpose.msra.mxu0 0
        %3213 = vmatpush.bf16.xpose.msra.mxu0 0
        %3214 = vmatpush.bf16.xpose.msra.mxu0 0
        %3215 = vmatpush.bf16.xpose.msra.mxu0 0
        %3216 = vmatpush.bf16.xpose.msra.mxu0 %v2705
        %3217 = vmatmul.bf16.gmra.mxu0 %v2337
        %v3218 = vpop.f32.mrf.mxu0
        %v3219 = vadd.f32 0.0, %v3218
        %v3220 = vpop.f32.mrf.mxu0
        %3221 = vdwg.mxu0
        %3222 = vmatpush.bf16.xpose.msra.mxu0 0
        %3223 = vmatpush.bf16.xpose.msra.mxu0 0
        %3224 = vmatpush.bf16.xpose.msra.mxu0 0
        %3225 = vmatpush.bf16.xpose.msra.mxu0 0
        %3226 = vmatpush.bf16.xpose.msra.mxu0 0
        %3227 = vmatpush.bf16.xpose.msra.mxu0 0
        %3228 = vmatpush.bf16.xpose.msra.mxu0 0
        %3229 = vmatpush.bf16.xpose.msra.mxu0 %v2706
        %3230 = vmatmul.bf16.gmra.mxu0 %v2338
        %v3231 = vpop.f32.mrf.mxu0
        %v3232 = vadd.f32 0.0, %v3231
        %v3233 = vpop.f32.mrf.mxu0
        %3234 = vdwg.mxu0
        %3235 = vmatpush.bf16.xpose.msra.mxu0 0
        %3236 = vmatpush.bf16.xpose.msra.mxu0 0
        %3237 = vmatpush.bf16.xpose.msra.mxu0 0
        %3238 = vmatpush.bf16.xpose.msra.mxu0 0
        %3239 = vmatpush.bf16.xpose.msra.mxu0 0
        %3240 = vmatpush.bf16.xpose.msra.mxu0 0
        %3241 = vmatpush.bf16.xpose.msra.mxu0 0
        %3242 = vmatpush.bf16.xpose.msra.mxu0 %v2707
        %3243 = vmatmul.bf16.gmra.mxu0 %v2339
        %v3244 = vpop.f32.mrf.mxu0
        %v3245 = vadd.f32 0.0, %v3244
        %v3246 = vpop.f32.mrf.mxu0
        %3247 = vdwg.mxu0
        %3248 = vmatpush.bf16.xpose.msra.mxu0 0
        %3249 = vmatpush.bf16.xpose.msra.mxu0 0
        %3250 = vmatpush.bf16.xpose.msra.mxu0 0
        %3251 = vmatpush.bf16.xpose.msra.mxu0 0
        %3252 = vmatpush.bf16.xpose.msra.mxu0 0
        %3253 = vmatpush.bf16.xpose.msra.mxu0 0
        %3254 = vmatpush.bf16.xpose.msra.mxu0 0
        %3255 = vmatpush.bf16.xpose.msra.mxu0 %v2708
        %3256 = vmatmul.bf16.gmra.mxu0 %v2340
        %v3257 = vpop.f32.mrf.mxu0
        %v3258 = vadd.f32 0.0, %v3257
        %v3259 = vpop.f32.mrf.mxu0
        %3260 = vdwg.mxu0
        %3261 = vmatpush.bf16.xpose.msra.mxu0 0
        %3262 = vmatpush.bf16.xpose.msra.mxu0 0
        %3263 = vmatpush.bf16.xpose.msra.mxu0 0
        %3264 = vmatpush.bf16.xpose.msra.mxu0 0
        %3265 = vmatpush.bf16.xpose.msra.mxu0 0
        %3266 = vmatpush.bf16.xpose.msra.mxu0 0
        %3267 = vmatpush.bf16.xpose.msra.mxu0 0
        %3268 = vmatpush.bf16.xpose.msra.mxu0 %v2709
        %3269 = vmatmul.bf16.gmra.mxu0 %v2341
        %v3270 = vpop.f32.mrf.mxu0
        %v3271 = vadd.f32 0.0, %v3270
        %v3272 = vpop.f32.mrf.mxu0
        %3273 = vdwg.mxu0
        %3274 = vmatpush.bf16.xpose.msra.mxu0 0
        %3275 = vmatpush.bf16.xpose.msra.mxu0 0
        %3276 = vmatpush.bf16.xpose.msra.mxu0 0
        %3277 = vmatpush.bf16.xpose.msra.mxu0 0
        %3278 = vmatpush.bf16.xpose.msra.mxu0 0
        %3279 = vmatpush.bf16.xpose.msra.mxu0 0
        %3280 = vmatpush.bf16.xpose.msra.mxu0 0
        %3281 = vmatpush.bf16.xpose.msra.mxu0 %v2710
        %3282 = vmatmul.bf16.gmra.mxu0 %v2342
        %v3283 = vpop.f32.mrf.mxu0
        %v3284 = vadd.f32 0.0, %v3283
        %v3285 = vpop.f32.mrf.mxu0
        %3286 = vdwg.mxu0
        %vm3287 = vcmask 64512
        %v3288 = vsel %vm3287, %v3089, -inf
        %3289 = vmax.xlane.f32.xlu0 %v3288
        %v3290 = vpop.xlane.xlu0 %3289
        %v3291 = vsel %vm3287, %v3102, -inf
        %3292 = vmax.xlane.f32.xlu0 %v3291
        %v3293 = vpop.xlane.xlu0 %3292
        %v3294 = vsel %vm3287, %v3115, -inf
        %3295 = vmax.xlane.f32.xlu0 %v3294
        %v3296 = vpop.xlane.xlu0 %3295
        %v3297 = vsel %vm3287, %v3128, -inf
        %3298 = vmax.xlane.f32.xlu0 %v3297
        %v3299 = vpop.xlane.xlu0 %3298
        %v3300 = vsel %vm3287, %v3141, -inf
        %3301 = vmax.xlane.f32.xlu0 %v3300
        %v3302 = vpop.xlane.xlu0 %3301
        %v3303 = vsel %vm3287, %v3154, -inf
        %3304 = vmax.xlane.f32.xlu0 %v3303
        %v3305 = vpop.xlane.xlu0 %3304
        %v3306 = vsel %vm3287, %v3167, -inf
        %3307 = vmax.xlane.f32.xlu0 %v3306
        %v3308 = vpop.xlane.xlu0 %3307
        %v3309 = vsel %vm3287, %v3180, -inf
        %3310 = vmax.xlane.f32.xlu0 %v3309
        %v3311 = vpop.xlane.xlu0 %3310
        %v3312 = vsel %vm3287, %v3193, -inf
        %3313 = vmax.xlane.f32.xlu0 %v3312
        %v3314 = vpop.xlane.xlu0 %3313
        %v3315 = vsel %vm3287, %v3206, -inf
        %3316 = vmax.xlane.f32.xlu0 %v3315
        %v3317 = vpop.xlane.xlu0 %3316
        %v3318 = vsel %vm3287, %v3219, -inf
        %3319 = vmax.xlane.f32.xlu0 %v3318
        %v3320 = vpop.xlane.xlu0 %3319
        %v3321 = vsel %vm3287, %v3232, -inf
        %3322 = vmax.xlane.f32.xlu0 %v3321
        %v3323 = vpop.xlane.xlu0 %3322
        %v3324 = vsel %vm3287, %v3245, -inf
        %3325 = vmax.xlane.f32.xlu0 %v3324
        %v3326 = vpop.xlane.xlu0 %3325
        %v3327 = vsel %vm3287, %v3258, -inf
        %3328 = vmax.xlane.f32.xlu0 %v3327
        %v3329 = vpop.xlane.xlu0 %3328
        %v3330 = vsel %vm3287, %v3271, -inf
        %3331 = vmax.xlane.f32.xlu0 %v3330
        %v3332 = vpop.xlane.xlu0 %3331
        %v3333 = vsel %vm3287, %v3284, -inf
        %3334 = vmax.xlane.f32.xlu0 %v3333
        %v3335 = vpop.xlane.xlu0 %3334
        %v3336 = vsub.f32 %v3089, %v3290
        %v3337 = vsub.f32 %v3102, %v3293
        %v3338 = vsub.f32 %v3115, %v3296
        %v3339 = vsub.f32 %v3128, %v3299
        %v3340 = vsub.f32 %v3141, %v3302
        %v3341 = vsub.f32 %v3154, %v3305
        %v3342 = vsub.f32 %v3167, %v3308
        %v3343 = vsub.f32 %v3180, %v3311
        %v3344 = vsub.f32 %v3193, %v3314
        %v3345 = vsub.f32 %v3206, %v3317
        %v3346 = vsub.f32 %v3219, %v3320
        %v3347 = vsub.f32 %v3232, %v3323
        %v3348 = vsub.f32 %v3245, %v3326
        %v3349 = vsub.f32 %v3258, %v3329
        %v3350 = vsub.f32 %v3271, %v3332
        %v3351 = vsub.f32 %v3284, %v3335
        %v3352 = vmul.f32 %v3336, 1.442695
        %v3353 = vpow.pop %v3352
        %v3354 = vmul.f32 %v3337, 1.442695
        %v3355 = vpow.pop %v3354
        %v3356 = vmul.f32 %v3338, 1.442695
        %v3357 = vpow.pop %v3356
        %v3358 = vmul.f32 %v3339, 1.442695
        %v3359 = vpow.pop %v3358
        %v3360 = vmul.f32 %v3340, 1.442695
        %v3361 = vpow.pop %v3360
        %v3362 = vmul.f32 %v3341, 1.442695
        %v3363 = vpow.pop %v3362
        %v3364 = vmul.f32 %v3342, 1.442695
        %v3365 = vpow.pop %v3364
        %v3366 = vmul.f32 %v3343, 1.442695
        %v3367 = vpow.pop %v3366
        %v3368 = vmul.f32 %v3344, 1.442695
        %v3369 = vpow.pop %v3368
        %v3370 = vmul.f32 %v3345, 1.442695
        %v3371 = vpow.pop %v3370
        %v3372 = vmul.f32 %v3346, 1.442695
        %v3373 = vpow.pop %v3372
        %v3374 = vmul.f32 %v3347, 1.442695
        %v3375 = vpow.pop %v3374
        %v3376 = vmul.f32 %v3348, 1.442695
        %v3377 = vpow.pop %v3376
        %v3378 = vmul.f32 %v3349, 1.442695
        %v3379 = vpow.pop %v3378
        %v3380 = vmul.f32 %v3350, 1.442695
        %v3381 = vpow.pop %v3380
        %v3382 = vmul.f32 %v3351, 1.442695
        %v3383 = vpow.pop %v3382
        %v3384 = vsel %vm3287, %v3353, 0.0
        %3385 = vadd.xlane.f32.xlu0 %v3384
        %v3386 = vpop.xlane.xlu0 %3385
        %v3387 = vsel %vm3287, %v3355, 0.0
        %3388 = vadd.xlane.f32.xlu0 %v3387
        %v3389 = vpop.xlane.xlu0 %3388
        %v3390 = vsel %vm3287, %v3357, 0.0
        %3391 = vadd.xlane.f32.xlu0 %v3390
        %v3392 = vpop.xlane.xlu0 %3391
        %v3393 = vsel %vm3287, %v3359, 0.0
        %3394 = vadd.xlane.f32.xlu0 %v3393
        %v3395 = vpop.xlane.xlu0 %3394
        %v3396 = vsel %vm3287, %v3361, 0.0
        %3397 = vadd.xlane.f32.xlu0 %v3396
        %v3398 = vpop.xlane.xlu0 %3397
        %v3399 = vsel %vm3287, %v3363, 0.0
        %3400 = vadd.xlane.f32.xlu0 %v3399
        %v3401 = vpop.xlane.xlu0 %3400
        %v3402 = vsel %vm3287, %v3365, 0.0
        %3403 = vadd.xlane.f32.xlu0 %v3402
        %v3404 = vpop.xlane.xlu0 %3403
        %v3405 = vsel %vm3287, %v3367, 0.0
        %3406 = vadd.xlane.f32.xlu0 %v3405
        %v3407 = vpop.xlane.xlu0 %3406
        %v3408 = vsel %vm3287, %v3369, 0.0
        %3409 = vadd.xlane.f32.xlu0 %v3408
        %v3410 = vpop.xlane.xlu0 %3409
        %v3411 = vsel %vm3287, %v3371, 0.0
        %3412 = vadd.xlane.f32.xlu0 %v3411
        %v3413 = vpop.xlane.xlu0 %3412
        %v3414 = vsel %vm3287, %v3373, 0.0
        %3415 = vadd.xlane.f32.xlu0 %v3414
        %v3416 = vpop.xlane.xlu0 %3415
        %v3417 = vsel %vm3287, %v3375, 0.0
        %3418 = vadd.xlane.f32.xlu0 %v3417
        %v3419 = vpop.xlane.xlu0 %3418
        %v3420 = vsel %vm3287, %v3377, 0.0
        %3421 = vadd.xlane.f32.xlu0 %v3420
        %v3422 = vpop.xlane.xlu0 %3421
        %v3423 = vsel %vm3287, %v3379, 0.0
        %3424 = vadd.xlane.f32.xlu0 %v3423
        %v3425 = vpop.xlane.xlu0 %3424
        %v3426 = vsel %vm3287, %v3381, 0.0
        %3427 = vadd.xlane.f32.xlu0 %v3426
        %v3428 = vpop.xlane.xlu0 %3427
        %v3429 = vsel %vm3287, %v3383, 0.0
        %3430 = vadd.xlane.f32.xlu0 %v3429
        %v3431 = vpop.xlane.xlu0 %3430
        %v3432 = vrcp.pop %v3386
        %v3433 = vrcp.pop %v3389
        %v3434 = vrcp.pop %v3392
        %v3435 = vrcp.pop %v3395
        %v3436 = vrcp.pop %v3398
        %v3437 = vrcp.pop %v3401
        %v3438 = vrcp.pop %v3404
        %v3439 = vrcp.pop %v3407
        %v3440 = vrcp.pop %v3410
        %v3441 = vrcp.pop %v3413
        %v3442 = vrcp.pop %v3416
        %v3443 = vrcp.pop %v3419
        %v3444 = vrcp.pop %v3422
        %v3445 = vrcp.pop %v3425
        %v3446 = vrcp.pop %v3428
        %v3447 = vrcp.pop %v3431
        %v3448 = vmul.f32 %v3353, %v3432
        %v3449 = vmul.f32 %v3355, %v3433
        %v3450 = vmul.f32 %v3357, %v3434
        %v3451 = vmul.f32 %v3359, %v3435
        %v3452 = vmul.f32 %v3361, %v3436
        %v3453 = vmul.f32 %v3363, %v3437
        %v3454 = vmul.f32 %v3365, %v3438
        %v3455 = vmul.f32 %v3367, %v3439
        %v3456 = vmul.f32 %v3369, %v3440
        %v3457 = vmul.f32 %v3371, %v3441
        %v3458 = vmul.f32 %v3373, %v3442
        %v3459 = vmul.f32 %v3375, %v3443
        %v3460 = vmul.f32 %v3377, %v3444
        %v3461 = vmul.f32 %v3379, %v3445
        %v3462 = vmul.f32 %v3381, %v3446
        %v3463 = vmul.f32 %v3383, %v3447
        %v3464 = vpack.c.bf16 %v3448, %v3448
        %v3465 = vpack.c.bf16 %v3449, %v3449
        %v3466 = vpack.c.bf16 %v3450, %v3450
        %v3467 = vpack.c.bf16 %v3451, %v3451
        %v3468 = vpack.c.bf16 %v3452, %v3452
        %v3469 = vpack.c.bf16 %v3453, %v3453
        %v3470 = vpack.c.bf16 %v3454, %v3454
        %v3471 = vpack.c.bf16 %v3455, %v3455
        %v3472 = vpack.c.bf16 %v3456, %v3456
        %v3473 = vpack.c.bf16 %v3457, %v3457
        %v3474 = vpack.c.bf16 %v3458, %v3458
        %v3475 = vpack.c.bf16 %v3459, %v3459
        %v3476 = vpack.c.bf16 %v3460, %v3460
        %v3477 = vpack.c.bf16 %v3461, %v3461
        %v3478 = vpack.c.bf16 %v3462, %v3462
        %v3479 = vpack.c.bf16 %v3463, %v3463
        %v3481 = vsel %vm3287, %v3464, 0
        %v3484 = vsel %vm1997, %v3063, 0
        %3486 = vmatpush.bf16.msra.mxu0 0
        %3487 = vmatpush.bf16.msra.mxu0 0
        %3488 = vmatpush.bf16.msra.mxu0 0
        %3489 = vmatpush.bf16.msra.mxu0 0
        %3490 = vmatpush.bf16.msra.mxu0 0
        %3491 = vmatpush.bf16.msra.mxu0 0
        %3492 = vmatpush.bf16.msra.mxu0 0
        %3493 = vmatpush.bf16.msra.mxu0 %v3484
        %3494 = vmatmul.bf16.gmra.mxu0 %v3481
        %v3495 = vpop.f32.mrf.mxu0
        %v3496 = vadd.f32 0.0, %v3495
        %v3497 = vpop.f32.mrf.mxu0
        %3498 = vdwg.mxu0
        %v3500 = vsel %vm3287, %v3465, 0
        %v3503 = vsel %vm1997, %v3064, 0
        %3505 = vmatpush.bf16.msra.mxu0 0
        %3506 = vmatpush.bf16.msra.mxu0 0
        %3507 = vmatpush.bf16.msra.mxu0 0
        %3508 = vmatpush.bf16.msra.mxu0 0
        %3509 = vmatpush.bf16.msra.mxu0 0
        %3510 = vmatpush.bf16.msra.mxu0 0
        %3511 = vmatpush.bf16.msra.mxu0 0
        %3512 = vmatpush.bf16.msra.mxu0 %v3503
        %3513 = vmatmul.bf16.gmra.mxu0 %v3500
        %v3514 = vpop.f32.mrf.mxu0
        %v3515 = vadd.f32 0.0, %v3514
        %v3516 = vpop.f32.mrf.mxu0
        %3517 = vdwg.mxu0
        %v3519 = vsel %vm3287, %v3466, 0
        %v3522 = vsel %vm1997, %v3065, 0
        %3524 = vmatpush.bf16.msra.mxu0 0
        %3525 = vmatpush.bf16.msra.mxu0 0
        %3526 = vmatpush.bf16.msra.mxu0 0
        %3527 = vmatpush.bf16.msra.mxu0 0
        %3528 = vmatpush.bf16.msra.mxu0 0
        %3529 = vmatpush.bf16.msra.mxu0 0
        %3530 = vmatpush.bf16.msra.mxu0 0
        %3531 = vmatpush.bf16.msra.mxu0 %v3522
        %3532 = vmatmul.bf16.gmra.mxu0 %v3519
        %v3533 = vpop.f32.mrf.mxu0
        %v3534 = vadd.f32 0.0, %v3533
        %v3535 = vpop.f32.mrf.mxu0
        %3536 = vdwg.mxu0
        %v3538 = vsel %vm3287, %v3467, 0
        %v3541 = vsel %vm1997, %v3066, 0
        %3543 = vmatpush.bf16.msra.mxu0 0
        %3544 = vmatpush.bf16.msra.mxu0 0
        %3545 = vmatpush.bf16.msra.mxu0 0
        %3546 = vmatpush.bf16.msra.mxu0 0
        %3547 = vmatpush.bf16.msra.mxu0 0
        %3548 = vmatpush.bf16.msra.mxu0 0
        %3549 = vmatpush.bf16.msra.mxu0 0
        %3550 = vmatpush.bf16.msra.mxu0 %v3541
        %3551 = vmatmul.bf16.gmra.mxu0 %v3538
        %v3552 = vpop.f32.mrf.mxu0
        %v3553 = vadd.f32 0.0, %v3552
        %v3554 = vpop.f32.mrf.mxu0
        %3555 = vdwg.mxu0
        %v3557 = vsel %vm3287, %v3468, 0
        %v3560 = vsel %vm1997, %v3067, 0
        %3562 = vmatpush.bf16.msra.mxu0 0
        %3563 = vmatpush.bf16.msra.mxu0 0
        %3564 = vmatpush.bf16.msra.mxu0 0
        %3565 = vmatpush.bf16.msra.mxu0 0
        %3566 = vmatpush.bf16.msra.mxu0 0
        %3567 = vmatpush.bf16.msra.mxu0 0
        %3568 = vmatpush.bf16.msra.mxu0 0
        %3569 = vmatpush.bf16.msra.mxu0 %v3560
        %3570 = vmatmul.bf16.gmra.mxu0 %v3557
        %v3571 = vpop.f32.mrf.mxu0
        %v3572 = vadd.f32 0.0, %v3571
        %v3573 = vpop.f32.mrf.mxu0
        %3574 = vdwg.mxu0
        %v3576 = vsel %vm3287, %v3469, 0
        %v3579 = vsel %vm1997, %v3068, 0
        %3581 = vmatpush.bf16.msra.mxu0 0
        %3582 = vmatpush.bf16.msra.mxu0 0
        %3583 = vmatpush.bf16.msra.mxu0 0
        %3584 = vmatpush.bf16.msra.mxu0 0
        %3585 = vmatpush.bf16.msra.mxu0 0
        %3586 = vmatpush.bf16.msra.mxu0 0
        %3587 = vmatpush.bf16.msra.mxu0 0
        %3588 = vmatpush.bf16.msra.mxu0 %v3579
        %3589 = vmatmul.bf16.gmra.mxu0 %v3576
        %v3590 = vpop.f32.mrf.mxu0
        %v3591 = vadd.f32 0.0, %v3590
        %v3592 = vpop.f32.mrf.mxu0
        %3593 = vdwg.mxu0
        %v3595 = vsel %vm3287, %v3470, 0
        %v3598 = vsel %vm1997, %v3069, 0
        %3600 = vmatpush.bf16.msra.mxu0 0
        %3601 = vmatpush.bf16.msra.mxu0 0
        %3602 = vmatpush.bf16.msra.mxu0 0
        %3603 = vmatpush.bf16.msra.mxu0 0
        %3604 = vmatpush.bf16.msra.mxu0 0
        %3605 = vmatpush.bf16.msra.mxu0 0
        %3606 = vmatpush.bf16.msra.mxu0 0
        %3607 = vmatpush.bf16.msra.mxu0 %v3598
        %3608 = vmatmul.bf16.gmra.mxu0 %v3595
        %v3609 = vpop.f32.mrf.mxu0
        %v3610 = vadd.f32 0.0, %v3609
        %v3611 = vpop.f32.mrf.mxu0
        %3612 = vdwg.mxu0
        %v3614 = vsel %vm3287, %v3471, 0
        %v3617 = vsel %vm1997, %v3070, 0
        %3619 = vmatpush.bf16.msra.mxu0 0
        %3620 = vmatpush.bf16.msra.mxu0 0
        %3621 = vmatpush.bf16.msra.mxu0 0
        %3622 = vmatpush.bf16.msra.mxu0 0
        %3623 = vmatpush.bf16.msra.mxu0 0
        %3624 = vmatpush.bf16.msra.mxu0 0
        %3625 = vmatpush.bf16.msra.mxu0 0
        %3626 = vmatpush.bf16.msra.mxu0 %v3617
        %3627 = vmatmul.bf16.gmra.mxu0 %v3614
        %v3628 = vpop.f32.mrf.mxu0
        %v3629 = vadd.f32 0.0, %v3628
        %v3630 = vpop.f32.mrf.mxu0
        %3631 = vdwg.mxu0
        %v3633 = vsel %vm3287, %v3472, 0
        %v3636 = vsel %vm1997, %v3071, 0
        %3638 = vmatpush.bf16.msra.mxu0 0
        %3639 = vmatpush.bf16.msra.mxu0 0
        %3640 = vmatpush.bf16.msra.mxu0 0
        %3641 = vmatpush.bf16.msra.mxu0 0
        %3642 = vmatpush.bf16.msra.mxu0 0
        %3643 = vmatpush.bf16.msra.mxu0 0
        %3644 = vmatpush.bf16.msra.mxu0 0
        %3645 = vmatpush.bf16.msra.mxu0 %v3636
        %3646 = vmatmul.bf16.gmra.mxu0 %v3633
        %v3647 = vpop.f32.mrf.mxu0
        %v3648 = vadd.f32 0.0, %v3647
        %v3649 = vpop.f32.mrf.mxu0
        %3650 = vdwg.mxu0
        %v3652 = vsel %vm3287, %v3473, 0
        %v3655 = vsel %vm1997, %v3072, 0
        %3657 = vmatpush.bf16.msra.mxu0 0
        %3658 = vmatpush.bf16.msra.mxu0 0
        %3659 = vmatpush.bf16.msra.mxu0 0
        %3660 = vmatpush.bf16.msra.mxu0 0
        %3661 = vmatpush.bf16.msra.mxu0 0
        %3662 = vmatpush.bf16.msra.mxu0 0
        %3663 = vmatpush.bf16.msra.mxu0 0
        %3664 = vmatpush.bf16.msra.mxu0 %v3655
        %3665 = vmatmul.bf16.gmra.mxu0 %v3652
        %v3666 = vpop.f32.mrf.mxu0
        %v3667 = vadd.f32 0.0, %v3666
        %v3668 = vpop.f32.mrf.mxu0
        %3669 = vdwg.mxu0
        %v3671 = vsel %vm3287, %v3474, 0
        %v3674 = vsel %vm1997, %v3073, 0
        %3676 = vmatpush.bf16.msra.mxu0 0
        %3677 = vmatpush.bf16.msra.mxu0 0
        %3678 = vmatpush.bf16.msra.mxu0 0
        %3679 = vmatpush.bf16.msra.mxu0 0
        %3680 = vmatpush.bf16.msra.mxu0 0
        %3681 = vmatpush.bf16.msra.mxu0 0
        %3682 = vmatpush.bf16.msra.mxu0 0
        %3683 = vmatpush.bf16.msra.mxu0 %v3674
        %3684 = vmatmul.bf16.gmra.mxu0 %v3671
        %v3685 = vpop.f32.mrf.mxu0
        %v3686 = vadd.f32 0.0, %v3685
        %v3687 = vpop.f32.mrf.mxu0
        %3688 = vdwg.mxu0
        %v3690 = vsel %vm3287, %v3475, 0
        %v3693 = vsel %vm1997, %v3074, 0
        %3695 = vmatpush.bf16.msra.mxu0 0
        %3696 = vmatpush.bf16.msra.mxu0 0
        %3697 = vmatpush.bf16.msra.mxu0 0
        %3698 = vmatpush.bf16.msra.mxu0 0
        %3699 = vmatpush.bf16.msra.mxu0 0
        %3700 = vmatpush.bf16.msra.mxu0 0
        %3701 = vmatpush.bf16.msra.mxu0 0
        %3702 = vmatpush.bf16.msra.mxu0 %v3693
        %3703 = vmatmul.bf16.gmra.mxu0 %v3690
        %v3704 = vpop.f32.mrf.mxu0
        %v3705 = vadd.f32 0.0, %v3704
        %v3706 = vpop.f32.mrf.mxu0
        %3707 = vdwg.mxu0
        %v3709 = vsel %vm3287, %v3476, 0
        %v3712 = vsel %vm1997, %v3075, 0
        %3714 = vmatpush.bf16.msra.mxu0 0
        %3715 = vmatpush.bf16.msra.mxu0 0
        %3716 = vmatpush.bf16.msra.mxu0 0
        %3717 = vmatpush.bf16.msra.mxu0 0
        %3718 = vmatpush.bf16.msra.mxu0 0
        %3719 = vmatpush.bf16.msra.mxu0 0
        %3720 = vmatpush.bf16.msra.mxu0 0
        %3721 = vmatpush.bf16.msra.mxu0 %v3712
        %3722 = vmatmul.bf16.gmra.mxu0 %v3709
        %v3723 = vpop.f32.mrf.mxu0
        %v3724 = vadd.f32 0.0, %v3723
        %v3725 = vpop.f32.mrf.mxu0
        %3726 = vdwg.mxu0
        %v3728 = vsel %vm3287, %v3477, 0
        %v3731 = vsel %vm1997, %v3076, 0
        %3733 = vmatpush.bf16.msra.mxu0 0
        %3734 = vmatpush.bf16.msra.mxu0 0
        %3735 = vmatpush.bf16.msra.mxu0 0
        %3736 = vmatpush.bf16.msra.mxu0 0
        %3737 = vmatpush.bf16.msra.mxu0 0
        %3738 = vmatpush.bf16.msra.mxu0 0
        %3739 = vmatpush.bf16.msra.mxu0 0
        %3740 = vmatpush.bf16.msra.mxu0 %v3731
        %3741 = vmatmul.bf16.gmra.mxu0 %v3728
        %v3742 = vpop.f32.mrf.mxu0
        %v3743 = vadd.f32 0.0, %v3742
        %v3744 = vpop.f32.mrf.mxu0
        %3745 = vdwg.mxu0
        %v3747 = vsel %vm3287, %v3478, 0
        %v3750 = vsel %vm1997, %v3077, 0
        %3752 = vmatpush.bf16.msra.mxu0 0
        %3753 = vmatpush.bf16.msra.mxu0 0
        %3754 = vmatpush.bf16.msra.mxu0 0
        %3755 = vmatpush.bf16.msra.mxu0 0
        %3756 = vmatpush.bf16.msra.mxu0 0
        %3757 = vmatpush.bf16.msra.mxu0 0
        %3758 = vmatpush.bf16.msra.mxu0 0
        %3759 = vmatpush.bf16.msra.mxu0 %v3750
        %3760 = vmatmul.bf16.gmra.mxu0 %v3747
        %v3761 = vpop.f32.mrf.mxu0
        %v3762 = vadd.f32 0.0, %v3761
        %v3763 = vpop.f32.mrf.mxu0
        %3764 = vdwg.mxu0
        %v3766 = vsel %vm3287, %v3479, 0
        %v3769 = vsel %vm1997, %v3078, 0
        %3771 = vmatpush.bf16.msra.mxu0 0
        %3772 = vmatpush.bf16.msra.mxu0 0
        %3773 = vmatpush.bf16.msra.mxu0 0
        %3774 = vmatpush.bf16.msra.mxu0 0
        %3775 = vmatpush.bf16.msra.mxu0 0
        %3776 = vmatpush.bf16.msra.mxu0 0
        %3777 = vmatpush.bf16.msra.mxu0 0
        %3778 = vmatpush.bf16.msra.mxu0 %v3769
        %3779 = vmatmul.bf16.gmra.mxu0 %v3766
        %v3780 = vpop.f32.mrf.mxu0
        %v3781 = vadd.f32 0.0, %v3780
        %v3782 = vpop.f32.mrf.mxu0
        %3783 = vdwg.mxu0
        %v3784 = vrot.slane %v3534, 4
        %v3785 = vsel %vm2103, %v3784, %v3496
        %v3786 = vrot.slane %v3496, 4
        %v3787 = vsel %vm2103, %v3534, %v3786
        %v3789 = vunpack.c.l.s4 1983009808
        %v3790 = vunpack.c.0.s8 %v3789
        %v3791 = vperm.slane %v3785, %v3790
        %v3793 = vunpack.c.l.s4 1983009808
        %v3794 = vunpack.c.0.s8 %v3793
        %v3795 = vperm.slane %v3787, %v3794
        %v3796 = vrot.slane %v3553, 4
        %v3797 = vsel %vm2103, %v3796, %v3515
        %v3798 = vrot.slane %v3515, 4
        %v3799 = vsel %vm2103, %v3553, %v3798
        %v3801 = vunpack.c.l.s4 1983009808
        %v3802 = vunpack.c.0.s8 %v3801
        %v3803 = vperm.slane %v3797, %v3802
        %v3805 = vunpack.c.l.s4 1983009808
        %v3806 = vunpack.c.0.s8 %v3805
        %v3807 = vperm.slane %v3799, %v3806
        %v3808 = vrot.slane %v3610, 4
        %v3809 = vsel %vm2103, %v3808, %v3572
        %v3810 = vrot.slane %v3572, 4
        %v3811 = vsel %vm2103, %v3610, %v3810
        %v3813 = vunpack.c.l.s4 1983009808
        %v3814 = vunpack.c.0.s8 %v3813
        %v3815 = vperm.slane %v3809, %v3814
        %v3817 = vunpack.c.l.s4 1983009808
        %v3818 = vunpack.c.0.s8 %v3817
        %v3819 = vperm.slane %v3811, %v3818
        %v3820 = vrot.slane %v3629, 4
        %v3821 = vsel %vm2103, %v3820, %v3591
        %v3822 = vrot.slane %v3591, 4
        %v3823 = vsel %vm2103, %v3629, %v3822
        %v3825 = vunpack.c.l.s4 1983009808
        %v3826 = vunpack.c.0.s8 %v3825
        %v3827 = vperm.slane %v3821, %v3826
        %v3829 = vunpack.c.l.s4 1983009808
        %v3830 = vunpack.c.0.s8 %v3829
        %v3831 = vperm.slane %v3823, %v3830
        %v3832 = vrot.slane %v3803, 4
        %v3833 = vsel %vm2103, %v3832, %v3791
        %v3834 = vrot.slane %v3791, 4
        %v3835 = vsel %vm2103, %v3803, %v3834
        %v3837 = vunpack.c.l.s4 1934713408
        %v3838 = vunpack.c.0.s8 %v3837
        %v3839 = vperm.slane %v3833, %v3838
        %v3841 = vunpack.c.l.s4 1934713408
        %v3842 = vunpack.c.0.s8 %v3841
        %v3843 = vperm.slane %v3835, %v3842
        %v3844 = vrot.slane %v3807, 4
        %v3845 = vsel %vm2103, %v3844, %v3795
        %v3846 = vrot.slane %v3795, 4
        %v3847 = vsel %vm2103, %v3807, %v3846
        %v3849 = vunpack.c.l.s4 1934713408
        %v3850 = vunpack.c.0.s8 %v3849
        %v3851 = vperm.slane %v3845, %v3850
        %v3853 = vunpack.c.l.s4 1934713408
        %v3854 = vunpack.c.0.s8 %v3853
        %v3855 = vperm.slane %v3847, %v3854
        %v3856 = vrot.slane %v3827, 4
        %v3857 = vsel %vm2103, %v3856, %v3815
        %v3858 = vrot.slane %v3815, 4
        %v3859 = vsel %vm2103, %v3827, %v3858
        %v3861 = vunpack.c.l.s4 1934713408
        %v3862 = vunpack.c.0.s8 %v3861
        %v3863 = vperm.slane %v3857, %v3862
        %v3865 = vunpack.c.l.s4 1934713408
        %v3866 = vunpack.c.0.s8 %v3865
        %v3867 = vperm.slane %v3859, %v3866
        %v3868 = vrot.slane %v3831, 4
        %v3869 = vsel %vm2103, %v3868, %v3819
        %v3870 = vrot.slane %v3819, 4
        %v3871 = vsel %vm2103, %v3831, %v3870
        %v3873 = vunpack.c.l.s4 1934713408
        %v3874 = vunpack.c.0.s8 %v3873
        %v3875 = vperm.slane %v3869, %v3874
        %v3877 = vunpack.c.l.s4 1934713408
        %v3878 = vunpack.c.0.s8 %v3877
        %v3879 = vperm.slane %v3871, %v3878
        %v3880 = vrot.slane %v3863, 4
        %v3881 = vsel %vm2103, %v3880, %v3839
        %v3882 = vrot.slane %v3839, 4
        %v3883 = vsel %vm2103, %v3863, %v3882
        %v3884 = vrot.slane %v3867, 4
        %v3885 = vsel %vm2103, %v3884, %v3843
        %v3886 = vrot.slane %v3843, 4
        %v3887 = vsel %vm2103, %v3867, %v3886
        %v3888 = vrot.slane %v3875, 4
        %v3889 = vsel %vm2103, %v3888, %v3851
        %v3890 = vrot.slane %v3851, 4
        %v3891 = vsel %vm2103, %v3875, %v3890
        %v3892 = vrot.slane %v3879, 4
        %v3893 = vsel %vm2103, %v3892, %v3855
        %v3894 = vrot.slane %v3855, 4
        %v3895 = vsel %vm2103, %v3879, %v3894
        %v3896 = vrot.slane %v3686, 4
        %v3897 = vsel %vm2103, %v3896, %v3648
        %v3898 = vrot.slane %v3648, 4
        %v3899 = vsel %vm2103, %v3686, %v3898
        %v3901 = vunpack.c.l.s4 1983009808
        %v3902 = vunpack.c.0.s8 %v3901
        %v3903 = vperm.slane %v3897, %v3902
        %v3905 = vunpack.c.l.s4 1983009808
        %v3906 = vunpack.c.0.s8 %v3905
        %v3907 = vperm.slane %v3899, %v3906
        %v3908 = vrot.slane %v3705, 4
        %v3909 = vsel %vm2103, %v3908, %v3667
        %v3910 = vrot.slane %v3667, 4
        %v3911 = vsel %vm2103, %v3705, %v3910
        %v3913 = vunpack.c.l.s4 1983009808
        %v3914 = vunpack.c.0.s8 %v3913
        %v3915 = vperm.slane %v3909, %v3914
        %v3917 = vunpack.c.l.s4 1983009808
        %v3918 = vunpack.c.0.s8 %v3917
        %v3919 = vperm.slane %v3911, %v3918
        %v3920 = vrot.slane %v3762, 4
        %v3921 = vsel %vm2103, %v3920, %v3724
        %v3922 = vrot.slane %v3724, 4
        %v3923 = vsel %vm2103, %v3762, %v3922
        %v3925 = vunpack.c.l.s4 1983009808
        %v3926 = vunpack.c.0.s8 %v3925
        %v3927 = vperm.slane %v3921, %v3926
        %v3929 = vunpack.c.l.s4 1983009808
        %v3930 = vunpack.c.0.s8 %v3929
        %v3931 = vperm.slane %v3923, %v3930
        %v3932 = vrot.slane %v3781, 4
        %v3933 = vsel %vm2103, %v3932, %v3743
        %v3934 = vrot.slane %v3743, 4
        %v3935 = vsel %vm2103, %v3781, %v3934
        %v3937 = vunpack.c.l.s4 1983009808
        %v3938 = vunpack.c.0.s8 %v3937
        %v3939 = vperm.slane %v3933, %v3938
        %v3941 = vunpack.c.l.s4 1983009808
        %v3942 = vunpack.c.0.s8 %v3941
        %v3943 = vperm.slane %v3935, %v3942
        %v3944 = vrot.slane %v3915, 4
        %v3945 = vsel %vm2103, %v3944, %v3903
        %v3946 = vrot.slane %v3903, 4
        %v3947 = vsel %vm2103, %v3915, %v3946
        %v3949 = vunpack.c.l.s4 1934713408
        %v3950 = vunpack.c.0.s8 %v3949
        %v3951 = vperm.slane %v3945, %v3950
        %v3953 = vunpack.c.l.s4 1934713408
        %v3954 = vunpack.c.0.s8 %v3953
        %v3955 = vperm.slane %v3947, %v3954
        %v3956 = vrot.slane %v3919, 4
        %v3957 = vsel %vm2103, %v3956, %v3907
        %v3958 = vrot.slane %v3907, 4
        %v3959 = vsel %vm2103, %v3919, %v3958
        %v3961 = vunpack.c.l.s4 1934713408
        %v3962 = vunpack.c.0.s8 %v3961
        %v3963 = vperm.slane %v3957, %v3962
        %v3965 = vunpack.c.l.s4 1934713408
        %v3966 = vunpack.c.0.s8 %v3965
        %v3967 = vperm.slane %v3959, %v3966
        %v3968 = vrot.slane %v3939, 4
        %v3969 = vsel %vm2103, %v3968, %v3927
        %v3970 = vrot.slane %v3927, 4
        %v3971 = vsel %vm2103, %v3939, %v3970
        %v3973 = vunpack.c.l.s4 1934713408
        %v3974 = vunpack.c.0.s8 %v3973
        %v3975 = vperm.slane %v3969, %v3974
        %v3977 = vunpack.c.l.s4 1934713408
        %v3978 = vunpack.c.0.s8 %v3977
        %v3979 = vperm.slane %v3971, %v3978
        %v3980 = vrot.slane %v3943, 4
        %v3981 = vsel %vm2103, %v3980, %v3931
        %v3982 = vrot.slane %v3931, 4
        %v3983 = vsel %vm2103, %v3943, %v3982
        %v3985 = vunpack.c.l.s4 1934713408
        %v3986 = vunpack.c.0.s8 %v3985
        %v3987 = vperm.slane %v3981, %v3986
        %v3989 = vunpack.c.l.s4 1934713408
        %v3990 = vunpack.c.0.s8 %v3989
        %v3991 = vperm.slane %v3983, %v3990
        %v3992 = vrot.slane %v3975, 4
        %v3993 = vsel %vm2103, %v3992, %v3951
        %v3994 = vrot.slane %v3951, 4
        %v3995 = vsel %vm2103, %v3975, %v3994
        %v3996 = vrot.slane %v3979, 4
        %v3997 = vsel %vm2103, %v3996, %v3955
        %v3998 = vrot.slane %v3955, 4
        %v3999 = vsel %vm2103, %v3979, %v3998
        %v4000 = vrot.slane %v3987, 4
        %v4001 = vsel %vm2103, %v4000, %v3963
        %v4002 = vrot.slane %v3963, 4
        %v4003 = vsel %vm2103, %v3987, %v4002
        %v4004 = vrot.slane %v3991, 4
        %v4005 = vsel %vm2103, %v4004, %v3967
        %v4006 = vrot.slane %v3967, 4
        %v4007 = vsel %vm2103, %v3991, %v4006
        %v4009 = vunpack.c.l.s4 1966171168
        %v4010 = vunpack.c.0.s8 %v4009
        %v4011 = vperm.slane %v3881, %v4010
        %v4013 = vunpack.c.l.s4 1966171168
        %v4014 = vunpack.c.0.s8 %v4013
        %v4015 = vperm.slane %v3993, %v4014
        %v4017 = vunpack.c.l.s4 1966171168
        %v4018 = vunpack.c.0.s8 %v4017
        %v4019 = vperm.slane %v3883, %v4018
        %v4021 = vunpack.c.l.s4 1966171168
        %v4022 = vunpack.c.0.s8 %v4021
        %v4023 = vperm.slane %v3995, %v4022
        %v4025 = vunpack.c.l.s4 1966171168
        %v4026 = vunpack.c.0.s8 %v4025
        %v4027 = vperm.slane %v3885, %v4026
        %v4029 = vunpack.c.l.s4 1966171168
        %v4030 = vunpack.c.0.s8 %v4029
        %v4031 = vperm.slane %v3997, %v4030
        %v4033 = vunpack.c.l.s4 1966171168
        %v4034 = vunpack.c.0.s8 %v4033
        %v4035 = vperm.slane %v3887, %v4034
        %v4037 = vunpack.c.l.s4 1966171168
        %v4038 = vunpack.c.0.s8 %v4037
        %v4039 = vperm.slane %v3999, %v4038
        %v4041 = vunpack.c.l.s4 1966171168
        %v4042 = vunpack.c.0.s8 %v4041
        %v4043 = vperm.slane %v3889, %v4042
        %v4045 = vunpack.c.l.s4 1966171168
        %v4046 = vunpack.c.0.s8 %v4045
        %v4047 = vperm.slane %v4001, %v4046
        %v4049 = vunpack.c.l.s4 1966171168
        %v4050 = vunpack.c.0.s8 %v4049
        %v4051 = vperm.slane %v3891, %v4050
        %v4053 = vunpack.c.l.s4 1966171168
        %v4054 = vunpack.c.0.s8 %v4053
        %v4055 = vperm.slane %v4003, %v4054
        %v4057 = vunpack.c.l.s4 1966171168
        %v4058 = vunpack.c.0.s8 %v4057
        %v4059 = vperm.slane %v3893, %v4058
        %v4061 = vunpack.c.l.s4 1966171168
        %v4062 = vunpack.c.0.s8 %v4061
        %v4063 = vperm.slane %v4005, %v4062
        %v4065 = vunpack.c.l.s4 1966171168
        %v4066 = vunpack.c.0.s8 %v4065
        %v4067 = vperm.slane %v3895, %v4066
        %v4069 = vunpack.c.l.s4 1966171168
        %v4070 = vunpack.c.0.s8 %v4069
        %v4071 = vperm.slane %v4007, %v4070
        %4088 = vst [vmem:[#allocation1] ss:$2 sm:$0xff] %v4011
        %s4089 = scalar_lea.vmem [#allocation1], 1
        %4090 = vst [vmem:[%s4089] ss:$2 sm:$0xff] %v4015
        %s4091 = scalar_lea.vmem [#allocation1], 16
        %4092 = vst [vmem:[%s4091] ss:$2 sm:$0xff] %v4019
        %s4093 = scalar_lea.vmem [#allocation1], 17
        %4094 = vst [vmem:[%s4093] ss:$2 sm:$0xff] %v4023
        %s4095 = scalar_lea.vmem [#allocation1], 32
        %4096 = vst [vmem:[%s4095] ss:$2 sm:$0xff] %v4027
        %s4097 = scalar_lea.vmem [#allocation1], 33
        %4098 = vst [vmem:[%s4097] ss:$2 sm:$0xff] %v4031
        %s4099 = scalar_lea.vmem [#allocation1], 48
        %4100 = vst [vmem:[%s4099] ss:$2 sm:$0xff] %v4035
        %s4101 = scalar_lea.vmem [#allocation1], 49
        %4102 = vst [vmem:[%s4101] ss:$2 sm:$0xff] %v4039
        %v4103 = vld.sshfl [vmem:[#allocation1] sm:$0xff pattern:$0x75316420]
        %v4104 = vld.sshfl [vmem:[#allocation1 + $0x8] sm:$0xff pattern:$0x75316420]
        %v4105 = vld.sshfl [vmem:[#allocation1 + $0x10] sm:$0xff pattern:$0x75316420]
        %v4106 = vld.sshfl [vmem:[#allocation1 + $0x18] sm:$0xff pattern:$0x75316420]
        %v4107 = vld.sshfl [vmem:[#allocation1 + $0x20] sm:$0xff pattern:$0x75316420]
        %v4108 = vld.sshfl [vmem:[#allocation1 + $0x28] sm:$0xff pattern:$0x75316420]
        %v4109 = vld.sshfl [vmem:[#allocation1 + $0x30] sm:$0xff pattern:$0x75316420]
        %v4110 = vld.sshfl [vmem:[#allocation1 + $0x38] sm:$0xff pattern:$0x75316420]
        %4111 = vst [vmem:[#allocation1] ss:$2 sm:$0xff] %v4043
        %4112 = vst [vmem:[%s4089] ss:$2 sm:$0xff] %v4047
        %4113 = vst [vmem:[%s4091] ss:$2 sm:$0xff] %v4051
        %4114 = vst [vmem:[%s4093] ss:$2 sm:$0xff] %v4055
        %4115 = vst [vmem:[%s4095] ss:$2 sm:$0xff] %v4059
        %4116 = vst [vmem:[%s4097] ss:$2 sm:$0xff] %v4063
        %4117 = vst [vmem:[%s4099] ss:$2 sm:$0xff] %v4067
        %4118 = vst [vmem:[%s4101] ss:$2 sm:$0xff] %v4071
        %v4119 = vld.sshfl [vmem:[#allocation1] sm:$0xff pattern:$0x75316420]
        %v4120 = vld.sshfl [vmem:[#allocation1 + $0x8] sm:$0xff pattern:$0x75316420]
        %v4121 = vld.sshfl [vmem:[#allocation1 + $0x10] sm:$0xff pattern:$0x75316420]
        %v4122 = vld.sshfl [vmem:[#allocation1 + $0x18] sm:$0xff pattern:$0x75316420]
        %v4123 = vld.sshfl [vmem:[#allocation1 + $0x20] sm:$0xff pattern:$0x75316420]
        %v4124 = vld.sshfl [vmem:[#allocation1 + $0x28] sm:$0xff pattern:$0x75316420]
        %v4125 = vld.sshfl [vmem:[#allocation1 + $0x30] sm:$0xff pattern:$0x75316420]
        %v4126 = vld.sshfl [vmem:[#allocation1 + $0x38] sm:$0xff pattern:$0x75316420]
        %v4143 = vpack.c.bf16 %v4105, %v4103
        %v4144 = vpack.c.bf16 %v4106, %v4104
        %v4145 = vpack.c.bf16 %v4109, %v4107
        %v4146 = vpack.c.bf16 %v4110, %v4108
        %v4147 = vpack.c.bf16 %v4121, %v4119
        %v4148 = vpack.c.bf16 %v4122, %v4120
        %v4149 = vpack.c.bf16 %v4125, %v4123
        %v4150 = vpack.c.bf16 %v4126, %v4124
        %v4151 = vld [vmem:[#allocation14] sm:$0xff]
        %v4152 = vld [vmem:[#allocation14 + $0x8] sm:$0xff]
        %v4153 = vld [vmem:[#allocation14 + $0x10] sm:$0xff]
        %v4154 = vld [vmem:[#allocation14 + $0x18] sm:$0xff]
        %v4155 = vld [vmem:[#allocation14 + $0x20] sm:$0xff]
        %v4156 = vld [vmem:[#allocation14 + $0x28] sm:$0xff]
        %v4157 = vld [vmem:[#allocation14 + $0x30] sm:$0xff]
        %v4158 = vld [vmem:[#allocation14 + $0x38] sm:$0xff]
        %v4159 = vld [vmem:[#allocation14 + $0x40] sm:$0xff]
        %v4160 = vld [vmem:[#allocation14 + $0x48] sm:$0xff]
        %v4161 = vld [vmem:[#allocation14 + $0x50] sm:$0xff]
        %v4162 = vld [vmem:[#allocation14 + $0x58] sm:$0xff]
        %v4163 = vld [vmem:[#allocation14 + $0x60] sm:$0xff]
        %v4164 = vld [vmem:[#allocation14 + $0x68] sm:$0xff]
        %v4165 = vld [vmem:[#allocation14 + $0x70] sm:$0xff]
        %v4166 = vld [vmem:[#allocation14 + $0x78] sm:$0xff]
        %v4167 = vld [vmem:[#allocation14 + $0x80] sm:$0xff]
        %v4168 = vld [vmem:[#allocation14 + $0x88] sm:$0xff]
        %v4169 = vld [vmem:[#allocation14 + $0x90] sm:$0xff]
        %v4170 = vld [vmem:[#allocation14 + $0x98] sm:$0xff]
        %v4171 = vld [vmem:[#allocation14 + $0xa0] sm:$0xff]
        %v4172 = vld [vmem:[#allocation14 + $0xa8] sm:$0xff]
        %v4173 = vld [vmem:[#allocation14 + $0xb0] sm:$0xff]
        %v4174 = vld [vmem:[#allocation14 + $0xb8] sm:$0xff]
        %v4175 = vld [vmem:[#allocation14 + $0xc0] sm:$0xff]
        %v4176 = vld [vmem:[#allocation14 + $0xc8] sm:$0xff]
        %v4177 = vld [vmem:[#allocation14 + $0xd0] sm:$0xff]
        %v4178 = vld [vmem:[#allocation14 + $0xd8] sm:$0xff]
        %v4179 = vld [vmem:[#allocation14 + $0xe0] sm:$0xff]
        %v4180 = vld [vmem:[#allocation14 + $0xe8] sm:$0xff]
        %v4181 = vld [vmem:[#allocation14 + $0xf0] sm:$0xff]
        %v4182 = vld [vmem:[#allocation14 + $0xf8] sm:$0xff]
        %v4183 = vld [vmem:[#allocation16] sm:$0x3]
        %v4185 = vperm.slane %v4183, 0
        %v4186 = vperm.slane %v4183, 1
        %v4221 = vunpack.c.l.b16 %v4151
        %v4222 = vunpack.c.h.b16 %v4151
        %v4223 = vunpack.c.l.b16 %v4152
        %v4224 = vunpack.c.h.b16 %v4152
        %v4225 = vunpack.c.l.b16 %v4153
        %v4226 = vunpack.c.h.b16 %v4153
        %v4227 = vunpack.c.l.b16 %v4154
        %v4228 = vunpack.c.h.b16 %v4154
        %v4229 = vunpack.c.l.b16 %v4155
        %v4230 = vunpack.c.h.b16 %v4155
        %v4231 = vunpack.c.l.b16 %v4156
        %v4232 = vunpack.c.h.b16 %v4156
        %v4233 = vunpack.c.l.b16 %v4157
        %v4234 = vunpack.c.h.b16 %v4157
        %v4235 = vunpack.c.l.b16 %v4158
        %v4236 = vunpack.c.h.b16 %v4158
        %v4237 = vunpack.c.l.b16 %v4159
        %v4238 = vunpack.c.h.b16 %v4159
        %v4239 = vunpack.c.l.b16 %v4160
        %v4240 = vunpack.c.h.b16 %v4160
        %v4241 = vunpack.c.l.b16 %v4161
        %v4242 = vunpack.c.h.b16 %v4161
        %v4243 = vunpack.c.l.b16 %v4162
        %v4244 = vunpack.c.h.b16 %v4162
        %v4245 = vunpack.c.l.b16 %v4163
        %v4246 = vunpack.c.h.b16 %v4163
        %v4247 = vunpack.c.l.b16 %v4164
        %v4248 = vunpack.c.h.b16 %v4164
        %v4249 = vunpack.c.l.b16 %v4165
        %v4250 = vunpack.c.h.b16 %v4165
        %v4251 = vunpack.c.l.b16 %v4166
        %v4252 = vunpack.c.h.b16 %v4166
        %v4253 = vunpack.c.l.b16 %v4167
        %v4254 = vunpack.c.h.b16 %v4167
        %v4255 = vunpack.c.l.b16 %v4168
        %v4256 = vunpack.c.h.b16 %v4168
        %v4257 = vunpack.c.l.b16 %v4169
        %v4258 = vunpack.c.h.b16 %v4169
        %v4259 = vunpack.c.l.b16 %v4170
        %v4260 = vunpack.c.h.b16 %v4170
        %v4261 = vunpack.c.l.b16 %v4171
        %v4262 = vunpack.c.h.b16 %v4171
        %v4263 = vunpack.c.l.b16 %v4172
        %v4264 = vunpack.c.h.b16 %v4172
        %v4265 = vunpack.c.l.b16 %v4173
        %v4266 = vunpack.c.h.b16 %v4173
        %v4267 = vunpack.c.l.b16 %v4174
        %v4268 = vunpack.c.h.b16 %v4174
        %v4269 = vunpack.c.l.b16 %v4175
        %v4270 = vunpack.c.h.b16 %v4175
        %v4271 = vunpack.c.l.b16 %v4176
        %v4272 = vunpack.c.h.b16 %v4176
        %v4273 = vunpack.c.l.b16 %v4177
        %v4274 = vunpack.c.h.b16 %v4177
        %v4275 = vunpack.c.l.b16 %v4178
        %v4276 = vunpack.c.h.b16 %v4178
        %v4277 = vunpack.c.l.b16 %v4179
        %v4278 = vunpack.c.h.b16 %v4179
        %v4279 = vunpack.c.l.b16 %v4180
        %v4280 = vunpack.c.h.b16 %v4180
        %v4281 = vunpack.c.l.b16 %v4181
        %v4282 = vunpack.c.h.b16 %v4181
        %v4283 = vunpack.c.l.b16 %v4182
        %v4284 = vunpack.c.h.b16 %v4182
        %v4285 = vpack.c.b16 %v4223, %v4221
        %v4286 = vpack.c.b16 %v4224, %v4222
        %v4287 = vpack.c.b16 %v4227, %v4225
        %v4288 = vpack.c.b16 %v4228, %v4226
        %v4289 = vpack.c.b16 %v4231, %v4229
        %v4290 = vpack.c.b16 %v4232, %v4230
        %v4291 = vpack.c.b16 %v4235, %v4233
        %v4292 = vpack.c.b16 %v4236, %v4234
        %v4293 = vpack.c.b16 %v4239, %v4237
        %v4294 = vpack.c.b16 %v4240, %v4238
        %v4295 = vpack.c.b16 %v4243, %v4241
        %v4296 = vpack.c.b16 %v4244, %v4242
        %v4297 = vpack.c.b16 %v4247, %v4245
        %v4298 = vpack.c.b16 %v4248, %v4246
        %v4299 = vpack.c.b16 %v4251, %v4249
        %v4300 = vpack.c.b16 %v4252, %v4250
        %v4301 = vpack.c.b16 %v4255, %v4253
        %v4302 = vpack.c.b16 %v4256, %v4254
        %v4303 = vpack.c.b16 %v4259, %v4257
        %v4304 = vpack.c.b16 %v4260, %v4258
        %v4305 = vpack.c.b16 %v4263, %v4261
        %v4306 = vpack.c.b16 %v4264, %v4262
        %v4307 = vpack.c.b16 %v4267, %v4265
        %v4308 = vpack.c.b16 %v4268, %v4266
        %v4309 = vpack.c.b16 %v4271, %v4269
        %v4310 = vpack.c.b16 %v4272, %v4270
        %v4311 = vpack.c.b16 %v4275, %v4273
        %v4312 = vpack.c.b16 %v4276, %v4274
        %v4313 = vpack.c.b16 %v4279, %v4277
        %v4314 = vpack.c.b16 %v4280, %v4278
        %v4315 = vpack.c.b16 %v4283, %v4281
        %v4316 = vpack.c.b16 %v4284, %v4282
        %4349 = vmatpush.bf16.msra.mxu0 %v4299
        %4350 = vmatpush.bf16.msra.mxu0 %v4297
        %4351 = vmatpush.bf16.msra.mxu0 %v4295
        %4352 = vmatpush.bf16.msra.mxu0 %v4293
        %4353 = vmatpush.bf16.msra.mxu0 %v4291
        %4354 = vmatpush.bf16.msra.mxu0 %v4289
        %4355 = vmatpush.bf16.msra.mxu0 %v4287
        %4356 = vmatpush.bf16.msra.mxu0 %v4285
        %4357 = vmatmul.bf16.gmra.mxu0 %v4143
        %v4358 = vpop.f32.mrf.mxu0
        %v4359 = vadd.f32 %v4185, %v4358
        %v4360 = vpop.f32.mrf.mxu0
        %v4361 = vadd.f32 %v4185, %v4360
        %4362 = vmatmul.bf16.gmra.mxu0 %v4145
        %v4363 = vpop.f32.mrf.mxu0
        %v4364 = vadd.f32 %v4185, %v4363
        %v4365 = vpop.f32.mrf.mxu0
        %v4366 = vadd.f32 %v4185, %v4365
        %4367 = vmatmul.bf16.gmra.mxu0 %v4147
        %v4368 = vpop.f32.mrf.mxu0
        %v4369 = vadd.f32 %v4185, %v4368
        %v4370 = vpop.f32.mrf.mxu0
        %v4371 = vadd.f32 %v4185, %v4370
        %4372 = vmatmul.bf16.gmra.mxu0 %v4149
        %v4373 = vpop.f32.mrf.mxu0
        %v4374 = vadd.f32 %v4185, %v4373
        %v4375 = vpop.f32.mrf.mxu0
        %v4376 = vadd.f32 %v4185, %v4375
        %4377 = vdwg.mxu0
        %4378 = vmatpush.bf16.msra.mxu0 %v4315
        %4379 = vmatpush.bf16.msra.mxu0 %v4313
        %4380 = vmatpush.bf16.msra.mxu0 %v4311
        %4381 = vmatpush.bf16.msra.mxu0 %v4309
        %4382 = vmatpush.bf16.msra.mxu0 %v4307
        %4383 = vmatpush.bf16.msra.mxu0 %v4305
        %4384 = vmatpush.bf16.msra.mxu0 %v4303
        %4385 = vmatpush.bf16.msra.mxu0 %v4301
        %4386 = vmatmul.bf16.gmra.mxu0 %v4144
        %v4387 = vpop.f32.mrf.mxu0
        %v4388 = vadd.f32 %v4359, %v4387
        %v4389 = vpop.f32.mrf.mxu0
        %v4390 = vadd.f32 %v4361, %v4389
        %4391 = vmatmul.bf16.gmra.mxu0 %v4146
        %v4392 = vpop.f32.mrf.mxu0
        %v4393 = vadd.f32 %v4364, %v4392
        %v4394 = vpop.f32.mrf.mxu0
        %v4395 = vadd.f32 %v4366, %v4394
        %4396 = vmatmul.bf16.gmra.mxu0 %v4148
        %v4397 = vpop.f32.mrf.mxu0
        %v4398 = vadd.f32 %v4369, %v4397
        %v4399 = vpop.f32.mrf.mxu0
        %v4400 = vadd.f32 %v4371, %v4399
        %4401 = vmatmul.bf16.gmra.mxu0 %v4150
        %v4402 = vpop.f32.mrf.mxu0
        %v4403 = vadd.f32 %v4374, %v4402
        %v4404 = vpop.f32.mrf.mxu0
        %v4405 = vadd.f32 %v4376, %v4404
        %4406 = vdwg.mxu0
        %4407 = vmatpush.bf16.msra.mxu0 %v4300
        %4408 = vmatpush.bf16.msra.mxu0 %v4298
        %4409 = vmatpush.bf16.msra.mxu0 %v4296
        %4410 = vmatpush.bf16.msra.mxu0 %v4294
        %4411 = vmatpush.bf16.msra.mxu0 %v4292
        %4412 = vmatpush.bf16.msra.mxu0 %v4290
        %4413 = vmatpush.bf16.msra.mxu0 %v4288
        %4414 = vmatpush.bf16.msra.mxu0 %v4286
        %4415 = vmatmul.bf16.gmra.mxu0 %v4143
        %v4416 = vpop.f32.mrf.mxu0
        %v4417 = vadd.f32 %v4186, %v4416
        %v4418 = vpop.f32.mrf.mxu0
        %v4419 = vadd.f32 %v4186, %v4418
        %4420 = vmatmul.bf16.gmra.mxu0 %v4145
        %v4421 = vpop.f32.mrf.mxu0
        %v4422 = vadd.f32 %v4186, %v4421
        %v4423 = vpop.f32.mrf.mxu0
        %v4424 = vadd.f32 %v4186, %v4423
        %4425 = vmatmul.bf16.gmra.mxu0 %v4147
        %v4426 = vpop.f32.mrf.mxu0
        %v4427 = vadd.f32 %v4186, %v4426
        %v4428 = vpop.f32.mrf.mxu0
        %v4429 = vadd.f32 %v4186, %v4428
        %4430 = vmatmul.bf16.gmra.mxu0 %v4149
        %v4431 = vpop.f32.mrf.mxu0
        %v4432 = vadd.f32 %v4186, %v4431
        %v4433 = vpop.f32.mrf.mxu0
        %v4434 = vadd.f32 %v4186, %v4433
        %4435 = vdwg.mxu0
        %4436 = vmatpush.bf16.msra.mxu0 %v4316
        %4437 = vmatpush.bf16.msra.mxu0 %v4314
        %4438 = vmatpush.bf16.msra.mxu0 %v4312
        %4439 = vmatpush.bf16.msra.mxu0 %v4310
        %4440 = vmatpush.bf16.msra.mxu0 %v4308
        %4441 = vmatpush.bf16.msra.mxu0 %v4306
        %4442 = vmatpush.bf16.msra.mxu0 %v4304
        %4443 = vmatpush.bf16.msra.mxu0 %v4302
        %4444 = vmatmul.bf16.gmra.mxu0 %v4144
        %v4445 = vpop.f32.mrf.mxu0
        %v4446 = vadd.f32 %v4417, %v4445
        %v4447 = vpop.f32.mrf.mxu0
        %v4448 = vadd.f32 %v4419, %v4447
        %4449 = vmatmul.bf16.gmra.mxu0 %v4146
        %v4450 = vpop.f32.mrf.mxu0
        %v4451 = vadd.f32 %v4422, %v4450
        %v4452 = vpop.f32.mrf.mxu0
        %v4453 = vadd.f32 %v4424, %v4452
        %4454 = vmatmul.bf16.gmra.mxu0 %v4148
        %v4455 = vpop.f32.mrf.mxu0
        %v4456 = vadd.f32 %v4427, %v4455
        %v4457 = vpop.f32.mrf.mxu0
        %v4458 = vadd.f32 %v4429, %v4457
        %4459 = vmatmul.bf16.gmra.mxu0 %v4150
        %v4460 = vpop.f32.mrf.mxu0
        %v4461 = vadd.f32 %v4432, %v4460
        %v4462 = vpop.f32.mrf.mxu0
        %v4463 = vadd.f32 %v4434, %v4462
        %4464 = vdwg.mxu0
        %v4465 = vadd.f32 %v756, %v4388
        %v4466 = vadd.f32 %v757, %v4446
        %v4467 = vadd.f32 %v758, %v4390
        %v4468 = vadd.f32 %v759, %v4448
        %v4469 = vadd.f32 %v760, %v4393
        %v4470 = vadd.f32 %v761, %v4451
        %v4471 = vadd.f32 %v762, %v4395
        %v4472 = vadd.f32 %v763, %v4453
        %v4473 = vadd.f32 %v764, %v4398
        %v4474 = vadd.f32 %v765, %v4456
        %v4475 = vadd.f32 %v766, %v4400
        %v4476 = vadd.f32 %v767, %v4458
        %v4477 = vadd.f32 %v768, %v4403
        %v4478 = vadd.f32 %v769, %v4461
        %v4479 = vadd.f32 %v770, %v4405
        %v4480 = vadd.f32 %v771, %v4463
        %v4481 = vld [vmem:[#allocation17] sm:$0x3]
        %v4482 = vld [vmem:[#allocation19] sm:$0x3]
        %v4483 = vadd.f32 %v4465, %v4466
        %4484 = vadd.xlane.f32.xlu0 %v4483
        %v4485 = vpop.xlane.xlu0 %4484
        %v4486 = vadd.f32 %v4467, %v4468
        %4487 = vadd.xlane.f32.xlu0 %v4486
        %v4488 = vpop.xlane.xlu0 %4487
        %v4489 = vadd.f32 %v4469, %v4470
        %4490 = vadd.xlane.f32.xlu0 %v4489
        %v4491 = vpop.xlane.xlu0 %4490
        %v4492 = vadd.f32 %v4471, %v4472
        %4493 = vadd.xlane.f32.xlu0 %v4492
        %v4494 = vpop.xlane.xlu0 %4493
        %v4495 = vadd.f32 %v4473, %v4474
        %4496 = vadd.xlane.f32.xlu0 %v4495
        %v4497 = vpop.xlane.xlu0 %4496
        %v4498 = vadd.f32 %v4475, %v4476
        %4499 = vadd.xlane.f32.xlu0 %v4498
        %v4500 = vpop.xlane.xlu0 %4499
        %v4501 = vadd.f32 %v4477, %v4478
        %4502 = vadd.xlane.f32.xlu0 %v4501
        %v4503 = vpop.xlane.xlu0 %4502
        %v4504 = vadd.f32 %v4479, %v4480
        %4505 = vadd.xlane.f32.xlu0 %v4504
        %v4506 = vpop.xlane.xlu0 %4505
        %v4507 = vmul.f32 %v4485, %v804
        %v4508 = vmul.f32 %v4488, %v804
        %v4509 = vmul.f32 %v4491, %v804
        %v4510 = vmul.f32 %v4494, %v804
        %v4511 = vmul.f32 %v4497, %v804
        %v4512 = vmul.f32 %v4500, %v804
        %v4513 = vmul.f32 %v4503, %v804
        %v4514 = vmul.f32 %v4506, %v804
        %v4515 = vsub.f32 %v4465, %v4507
        %v4516 = vsub.f32 %v4466, %v4507
        %v4517 = vsub.f32 %v4467, %v4508
        %v4518 = vsub.f32 %v4468, %v4508
        %v4519 = vsub.f32 %v4469, %v4509
        %v4520 = vsub.f32 %v4470, %v4509
        %v4521 = vsub.f32 %v4471, %v4510
        %v4522 = vsub.f32 %v4472, %v4510
        %v4523 = vsub.f32 %v4473, %v4511
        %v4524 = vsub.f32 %v4474, %v4511
        %v4525 = vsub.f32 %v4475, %v4512
        %v4526 = vsub.f32 %v4476, %v4512
        %v4527 = vsub.f32 %v4477, %v4513
        %v4528 = vsub.f32 %v4478, %v4513
        %v4529 = vsub.f32 %v4479, %v4514
        %v4530 = vsub.f32 %v4480, %v4514
        %v4531 = vmul.f32 %v4515, %v4515
        %v4532 = vmul.f32 %v4516, %v4516
        %v4533 = vmul.f32 %v4517, %v4517
        %v4534 = vmul.f32 %v4518, %v4518
        %v4535 = vmul.f32 %v4519, %v4519
        %v4536 = vmul.f32 %v4520, %v4520
        %v4537 = vmul.f32 %v4521, %v4521
        %v4538 = vmul.f32 %v4522, %v4522
        %v4539 = vmul.f32 %v4523, %v4523
        %v4540 = vmul.f32 %v4524, %v4524
        %v4541 = vmul.f32 %v4525, %v4525
        %v4542 = vmul.f32 %v4526, %v4526
        %v4543 = vmul.f32 %v4527, %v4527
        %v4544 = vmul.f32 %v4528, %v4528
        %v4545 = vmul.f32 %v4529, %v4529
        %v4546 = vmul.f32 %v4530, %v4530
        %v4547 = vadd.f32 %v4531, %v4532
        %4548 = vadd.xlane.f32.xlu0 %v4547
        %v4549 = vpop.xlane.xlu0 %4548
        %v4550 = vadd.f32 %v4533, %v4534
        %4551 = vadd.xlane.f32.xlu0 %v4550
        %v4552 = vpop.xlane.xlu0 %4551
        %v4553 = vadd.f32 %v4535, %v4536
        %4554 = vadd.xlane.f32.xlu0 %v4553
        %v4555 = vpop.xlane.xlu0 %4554
        %v4556 = vadd.f32 %v4537, %v4538
        %4557 = vadd.xlane.f32.xlu0 %v4556
        %v4558 = vpop.xlane.xlu0 %4557
        %v4559 = vadd.f32 %v4539, %v4540
        %4560 = vadd.xlane.f32.xlu0 %v4559
        %v4561 = vpop.xlane.xlu0 %4560
        %v4562 = vadd.f32 %v4541, %v4542
        %4563 = vadd.xlane.f32.xlu0 %v4562
        %v4564 = vpop.xlane.xlu0 %4563
        %v4565 = vadd.f32 %v4543, %v4544
        %4566 = vadd.xlane.f32.xlu0 %v4565
        %v4567 = vpop.xlane.xlu0 %4566
        %v4568 = vadd.f32 %v4545, %v4546
        %4569 = vadd.xlane.f32.xlu0 %v4568
        %v4570 = vpop.xlane.xlu0 %4569
        %v4571 = vmul.f32 %v4549, %v804
        %v4572 = vmul.f32 %v4552, %v804
        %v4573 = vmul.f32 %v4555, %v804
        %v4574 = vmul.f32 %v4558, %v804
        %v4575 = vmul.f32 %v4561, %v804
        %v4576 = vmul.f32 %v4564, %v804
        %v4577 = vmul.f32 %v4567, %v804
        %v4578 = vmul.f32 %v4570, %v804
        %v4579 = vadd.f32 %v4571, 1e-05
        %v4580 = vadd.f32 %v4572, 1e-05
        %v4581 = vadd.f32 %v4573, 1e-05
        %v4582 = vadd.f32 %v4574, 1e-05
        %v4583 = vadd.f32 %v4575, 1e-05
        %v4584 = vadd.f32 %v4576, 1e-05
        %v4585 = vadd.f32 %v4577, 1e-05
        %v4586 = vadd.f32 %v4578, 1e-05
        %v4587 = vrsqrt.pop %v4579
        %v4588 = vmul.f32 %v4587, %v4579
        %v4589 = vmul.f32 %v4588, %v4587
        %v4590 = vmul.f32 0.5, %v4589
        %v4591 = vsub.f32 1.5, %v4590
        %v4592 = vmul.f32 %v4587, %v4591
        %vm4593 = vweird.f32 %v4579
        %vm4594 = vweird.f32 %v4587
        %vm4595 = vmor %vm4593, %vm4594
        %v4596 = vsel %vm4595, %v4587, %v4592
        %v4597 = vrsqrt.pop %v4580
        %v4598 = vmul.f32 %v4597, %v4580
        %v4599 = vmul.f32 %v4598, %v4597
        %v4600 = vmul.f32 0.5, %v4599
        %v4601 = vsub.f32 1.5, %v4600
        %v4602 = vmul.f32 %v4597, %v4601
        %vm4603 = vweird.f32 %v4580
        %vm4604 = vweird.f32 %v4597
        %vm4605 = vmor %vm4603, %vm4604
        %v4606 = vsel %vm4605, %v4597, %v4602
        %v4607 = vrsqrt.pop %v4581
        %v4608 = vmul.f32 %v4607, %v4581
        %v4609 = vmul.f32 %v4608, %v4607
        %v4610 = vmul.f32 0.5, %v4609
        %v4611 = vsub.f32 1.5, %v4610
        %v4612 = vmul.f32 %v4607, %v4611
        %vm4613 = vweird.f32 %v4581
        %vm4614 = vweird.f32 %v4607
        %vm4615 = vmor %vm4613, %vm4614
        %v4616 = vsel %vm4615, %v4607, %v4612
        %v4617 = vrsqrt.pop %v4582
        %v4618 = vmul.f32 %v4617, %v4582
        %v4619 = vmul.f32 %v4618, %v4617
        %v4620 = vmul.f32 0.5, %v4619
        %v4621 = vsub.f32 1.5, %v4620
        %v4622 = vmul.f32 %v4617, %v4621
        %vm4623 = vweird.f32 %v4582
        %vm4624 = vweird.f32 %v4617
        %vm4625 = vmor %vm4623, %vm4624
        %v4626 = vsel %vm4625, %v4617, %v4622
        %v4627 = vrsqrt.pop %v4583
        %v4628 = vmul.f32 %v4627, %v4583
        %v4629 = vmul.f32 %v4628, %v4627
        %v4630 = vmul.f32 0.5, %v4629
        %v4631 = vsub.f32 1.5, %v4630
        %v4632 = vmul.f32 %v4627, %v4631
        %vm4633 = vweird.f32 %v4583
        %vm4634 = vweird.f32 %v4627
        %vm4635 = vmor %vm4633, %vm4634
        %v4636 = vsel %vm4635, %v4627, %v4632
        %v4637 = vrsqrt.pop %v4584
        %v4638 = vmul.f32 %v4637, %v4584
        %v4639 = vmul.f32 %v4638, %v4637
        %v4640 = vmul.f32 0.5, %v4639
        %v4641 = vsub.f32 1.5, %v4640
        %v4642 = vmul.f32 %v4637, %v4641
        %vm4643 = vweird.f32 %v4584
        %vm4644 = vweird.f32 %v4637
        %vm4645 = vmor %vm4643, %vm4644
        %v4646 = vsel %vm4645, %v4637, %v4642
        %v4647 = vrsqrt.pop %v4585
        %v4648 = vmul.f32 %v4647, %v4585
        %v4649 = vmul.f32 %v4648, %v4647
        %v4650 = vmul.f32 0.5, %v4649
        %v4651 = vsub.f32 1.5, %v4650
        %v4652 = vmul.f32 %v4647, %v4651
        %vm4653 = vweird.f32 %v4585
        %vm4654 = vweird.f32 %v4647
        %vm4655 = vmor %vm4653, %vm4654
        %v4656 = vsel %vm4655, %v4647, %v4652
        %v4657 = vrsqrt.pop %v4586
        %v4658 = vmul.f32 %v4657, %v4586
        %v4659 = vmul.f32 %v4658, %v4657
        %v4660 = vmul.f32 0.5, %v4659
        %v4661 = vsub.f32 1.5, %v4660
        %v4662 = vmul.f32 %v4657, %v4661
        %vm4663 = vweird.f32 %v4586
        %vm4664 = vweird.f32 %v4657
        %vm4665 = vmor %vm4663, %vm4664
        %v4666 = vsel %vm4665, %v4657, %v4662
        %v4667 = vmul.f32 %v4515, %v4596
        %v4668 = vmul.f32 %v4516, %v4596
        %v4669 = vmul.f32 %v4517, %v4606
        %v4670 = vmul.f32 %v4518, %v4606
        %v4671 = vmul.f32 %v4519, %v4616
        %v4672 = vmul.f32 %v4520, %v4616
        %v4673 = vmul.f32 %v4521, %v4626
        %v4674 = vmul.f32 %v4522, %v4626
        %v4675 = vmul.f32 %v4523, %v4636
        %v4676 = vmul.f32 %v4524, %v4636
        %v4677 = vmul.f32 %v4525, %v4646
        %v4678 = vmul.f32 %v4526, %v4646
        %v4679 = vmul.f32 %v4527, %v4656
        %v4680 = vmul.f32 %v4528, %v4656
        %v4681 = vmul.f32 %v4529, %v4666
        %v4682 = vmul.f32 %v4530, %v4666
        %v4684 = vperm.slane %v4481, 0
        %v4685 = vperm.slane %v4481, 1
        %v4688 = vmul.f32 %v4667, %v4684
        %v4689 = vmul.f32 %v4668, %v4685
        %v4690 = vmul.f32 %v4669, %v4684
        %v4691 = vmul.f32 %v4670, %v4685
        %v4692 = vmul.f32 %v4671, %v4684
        %v4693 = vmul.f32 %v4672, %v4685
        %v4694 = vmul.f32 %v4673, %v4684
        %v4695 = vmul.f32 %v4674, %v4685
        %v4696 = vmul.f32 %v4675, %v4684
        %v4697 = vmul.f32 %v4676, %v4685
        %v4698 = vmul.f32 %v4677, %v4684
        %v4699 = vmul.f32 %v4678, %v4685
        %v4700 = vmul.f32 %v4679, %v4684
        %v4701 = vmul.f32 %v4680, %v4685
        %v4702 = vmul.f32 %v4681, %v4684
        %v4703 = vmul.f32 %v4682, %v4685
        %v4705 = vperm.slane %v4482, 0
        %v4706 = vperm.slane %v4482, 1
        %v4709 = vadd.f32 %v4688, %v4705
        %v4710 = vadd.f32 %v4689, %v4706
        %v4711 = vadd.f32 %v4690, %v4705
        %v4712 = vadd.f32 %v4691, %v4706
        %v4713 = vadd.f32 %v4692, %v4705
        %v4714 = vadd.f32 %v4693, %v4706
        %v4715 = vadd.f32 %v4694, %v4705
        %v4716 = vadd.f32 %v4695, %v4706
        %v4717 = vadd.f32 %v4696, %v4705
        %v4718 = vadd.f32 %v4697, %v4706
        %v4719 = vadd.f32 %v4698, %v4705
        %v4720 = vadd.f32 %v4699, %v4706
        %v4721 = vadd.f32 %v4700, %v4705
        %v4722 = vadd.f32 %v4701, %v4706
        %v4723 = vadd.f32 %v4702, %v4705
        %v4724 = vadd.f32 %v4703, %v4706
        %v4725 = vpack.c.bf16 %v4711, %v4709
        %v4726 = vpack.c.bf16 %v4712, %v4710
        %v4727 = vpack.c.bf16 %v4715, %v4713
        %v4728 = vpack.c.bf16 %v4716, %v4714
        %v4729 = vpack.c.bf16 %v4719, %v4717
        %v4730 = vpack.c.bf16 %v4720, %v4718
        %v4731 = vpack.c.bf16 %v4723, %v4721
        %v4732 = vpack.c.bf16 %v4724, %v4722
        %v4733 = vld [vmem:[#allocation20] sm:$0xff]
        %v4734 = vld [vmem:[#allocation20 + $0x8] sm:$0xff]
        %v4735 = vld [vmem:[#allocation20 + $0x20] sm:$0xff]
        %v4736 = vld [vmem:[#allocation20 + $0x28] sm:$0xff]
        %v4737 = vld [vmem:[#allocation20 + $0x40] sm:$0xff]
        %v4738 = vld [vmem:[#allocation20 + $0x48] sm:$0xff]
        %v4739 = vld [vmem:[#allocation20 + $0x60] sm:$0xff]
        %v4740 = vld [vmem:[#allocation20 + $0x68] sm:$0xff]
        %v4741 = vld [vmem:[#allocation20 + $0x80] sm:$0xff]
        %v4742 = vld [vmem:[#allocation20 + $0x88] sm:$0xff]
        %v4743 = vld [vmem:[#allocation20 + $0xa0] sm:$0xff]
        %v4744 = vld [vmem:[#allocation20 + $0xa8] sm:$0xff]
        %v4745 = vld [vmem:[#allocation20 + $0xc0] sm:$0xff]
        %v4746 = vld [vmem:[#allocation20 + $0xc8] sm:$0xff]
        %v4747 = vld [vmem:[#allocation20 + $0xe0] sm:$0xff]
        %v4748 = vld [vmem:[#allocation20 + $0xe8] sm:$0xff]
        %v4749 = vld [vmem:[#allocation20 + $0x100] sm:$0xff]
        %v4750 = vld [vmem:[#allocation20 + $0x108] sm:$0xff]
        %v4751 = vld [vmem:[#allocation20 + $0x120] sm:$0xff]
        %v4752 = vld [vmem:[#allocation20 + $0x128] sm:$0xff]
        %v4753 = vld [vmem:[#allocation20 + $0x140] sm:$0xff]
        %v4754 = vld [vmem:[#allocation20 + $0x148] sm:$0xff]
        %v4755 = vld [vmem:[#allocation20 + $0x160] sm:$0xff]
        %v4756 = vld [vmem:[#allocation20 + $0x168] sm:$0xff]
        %v4757 = vld [vmem:[#allocation20 + $0x180] sm:$0xff]
        %v4758 = vld [vmem:[#allocation20 + $0x188] sm:$0xff]
        %v4759 = vld [vmem:[#allocation20 + $0x1a0] sm:$0xff]
        %v4760 = vld [vmem:[#allocation20 + $0x1a8] sm:$0xff]
        %v4761 = vld [vmem:[#allocation20 + $0x1c0] sm:$0xff]
        %v4762 = vld [vmem:[#allocation20 + $0x1c8] sm:$0xff]
        %v4763 = vld [vmem:[#allocation20 + $0x1e0] sm:$0xff]
        %v4764 = vld [vmem:[#allocation20 + $0x1e8] sm:$0xff]
        %v4765 = vld [vmem:[#allocation20 + $0x200] sm:$0xff]
        %v4766 = vld [vmem:[#allocation20 + $0x208] sm:$0xff]
        %v4767 = vld [vmem:[#allocation20 + $0x220] sm:$0xff]
        %v4768 = vld [vmem:[#allocation20 + $0x228] sm:$0xff]
        %v4769 = vld [vmem:[#allocation20 + $0x240] sm:$0xff]
        %v4770 = vld [vmem:[#allocation20 + $0x248] sm:$0xff]
        %v4771 = vld [vmem:[#allocation20 + $0x260] sm:$0xff]
        %v4772 = vld [vmem:[#allocation20 + $0x268] sm:$0xff]
        %v4773 = vld [vmem:[#allocation20 + $0x280] sm:$0xff]
        %v4774 = vld [vmem:[#allocation20 + $0x288] sm:$0xff]
        %v4775 = vld [vmem:[#allocation20 + $0x2a0] sm:$0xff]
        %v4776 = vld [vmem:[#allocation20 + $0x2a8] sm:$0xff]
        %v4777 = vld [vmem:[#allocation20 + $0x2c0] sm:$0xff]
        %v4778 = vld [vmem:[#allocation20 + $0x2c8] sm:$0xff]
        %v4779 = vld [vmem:[#allocation20 + $0x2e0] sm:$0xff]
        %v4780 = vld [vmem:[#allocation20 + $0x2e8] sm:$0xff]
        %v4781 = vld [vmem:[#allocation20 + $0x300] sm:$0xff]
        %v4782 = vld [vmem:[#allocation20 + $0x308] sm:$0xff]
        %v4783 = vld [vmem:[#allocation20 + $0x320] sm:$0xff]
        %v4784 = vld [vmem:[#allocation20 + $0x328] sm:$0xff]
        %v4785 = vld [vmem:[#allocation20 + $0x340] sm:$0xff]
        %v4786 = vld [vmem:[#allocation20 + $0x348] sm:$0xff]
        %v4787 = vld [vmem:[#allocation20 + $0x360] sm:$0xff]
        %v4788 = vld [vmem:[#allocation20 + $0x368] sm:$0xff]
        %v4789 = vld [vmem:[#allocation20 + $0x380] sm:$0xff]
        %v4790 = vld [vmem:[#allocation20 + $0x388] sm:$0xff]
        %v4791 = vld [vmem:[#allocation20 + $0x3a0] sm:$0xff]
        %v4792 = vld [vmem:[#allocation20 + $0x3a8] sm:$0xff]
        %v4793 = vld [vmem:[#allocation20 + $0x3c0] sm:$0xff]
        %v4794 = vld [vmem:[#allocation20 + $0x3c8] sm:$0xff]
        %v4795 = vld [vmem:[#allocation20 + $0x3e0] sm:$0xff]
        %v4796 = vld [vmem:[#allocation20 + $0x3e8] sm:$0xff]
        %v4797 = vld [vmem:[%s14] sm:$0xf]
        %v4799 = vperm.slane %v4797, 0
        %v4800 = vperm.slane %v4797, 1
        %v4801 = vperm.slane %v4797, 2
        %v4802 = vperm.slane %v4797, 3
        %v4871 = vunpack.c.l.b16 %v4733
        %v4872 = vunpack.c.h.b16 %v4733
        %v4873 = vunpack.c.l.b16 %v4734
        %v4874 = vunpack.c.h.b16 %v4734
        %v4875 = vunpack.c.l.b16 %v4735
        %v4876 = vunpack.c.h.b16 %v4735
        %v4877 = vunpack.c.l.b16 %v4736
        %v4878 = vunpack.c.h.b16 %v4736
        %v4879 = vunpack.c.l.b16 %v4737
        %v4880 = vunpack.c.h.b16 %v4737
        %v4881 = vunpack.c.l.b16 %v4738
        %v4882 = vunpack.c.h.b16 %v4738
        %v4883 = vunpack.c.l.b16 %v4739
        %v4884 = vunpack.c.h.b16 %v4739
        %v4885 = vunpack.c.l.b16 %v4740
        %v4886 = vunpack.c.h.b16 %v4740
        %v4887 = vunpack.c.l.b16 %v4741
        %v4888 = vunpack.c.h.b16 %v4741
        %v4889 = vunpack.c.l.b16 %v4742
        %v4890 = vunpack.c.h.b16 %v4742
        %v4891 = vunpack.c.l.b16 %v4743
        %v4892 = vunpack.c.h.b16 %v4743
        %v4893 = vunpack.c.l.b16 %v4744
        %v4894 = vunpack.c.h.b16 %v4744
        %v4895 = vunpack.c.l.b16 %v4745
        %v4896 = vunpack.c.h.b16 %v4745
        %v4897 = vunpack.c.l.b16 %v4746
        %v4898 = vunpack.c.h.b16 %v4746
        %v4899 = vunpack.c.l.b16 %v4747
        %v4900 = vunpack.c.h.b16 %v4747
        %v4901 = vunpack.c.l.b16 %v4748
        %v4902 = vunpack.c.h.b16 %v4748
        %v4903 = vunpack.c.l.b16 %v4749
        %v4904 = vunpack.c.h.b16 %v4749
        %v4905 = vunpack.c.l.b16 %v4750
        %v4906 = vunpack.c.h.b16 %v4750
        %v4907 = vunpack.c.l.b16 %v4751
        %v4908 = vunpack.c.h.b16 %v4751
        %v4909 = vunpack.c.l.b16 %v4752
        %v4910 = vunpack.c.h.b16 %v4752
        %v4911 = vunpack.c.l.b16 %v4753
        %v4912 = vunpack.c.h.b16 %v4753
        %v4913 = vunpack.c.l.b16 %v4754
        %v4914 = vunpack.c.h.b16 %v4754
        %v4915 = vunpack.c.l.b16 %v4755
        %v4916 = vunpack.c.h.b16 %v4755
        %v4917 = vunpack.c.l.b16 %v4756
        %v4918 = vunpack.c.h.b16 %v4756
        %v4919 = vunpack.c.l.b16 %v4757
        %v4920 = vunpack.c.h.b16 %v4757
        %v4921 = vunpack.c.l.b16 %v4758
        %v4922 = vunpack.c.h.b16 %v4758
        %v4923 = vunpack.c.l.b16 %v4759
        %v4924 = vunpack.c.h.b16 %v4759
        %v4925 = vunpack.c.l.b16 %v4760
        %v4926 = vunpack.c.h.b16 %v4760
        %v4927 = vunpack.c.l.b16 %v4761
        %v4928 = vunpack.c.h.b16 %v4761
        %v4929 = vunpack.c.l.b16 %v4762
        %v4930 = vunpack.c.h.b16 %v4762
        %v4931 = vunpack.c.l.b16 %v4763
        %v4932 = vunpack.c.h.b16 %v4763
        %v4933 = vunpack.c.l.b16 %v4764
        %v4934 = vunpack.c.h.b16 %v4764
        %v4935 = vunpack.c.l.b16 %v4765
        %v4936 = vunpack.c.h.b16 %v4765
        %v4937 = vunpack.c.l.b16 %v4766
        %v4938 = vunpack.c.h.b16 %v4766
        %v4939 = vunpack.c.l.b16 %v4767
        %v4940 = vunpack.c.h.b16 %v4767
        %v4941 = vunpack.c.l.b16 %v4768
        %v4942 = vunpack.c.h.b16 %v4768
        %v4943 = vunpack.c.l.b16 %v4769
        %v4944 = vunpack.c.h.b16 %v4769
        %v4945 = vunpack.c.l.b16 %v4770
        %v4946 = vunpack.c.h.b16 %v4770
        %v4947 = vunpack.c.l.b16 %v4771
        %v4948 = vunpack.c.h.b16 %v4771
        %v4949 = vunpack.c.l.b16 %v4772
        %v4950 = vunpack.c.h.b16 %v4772
        %v4951 = vunpack.c.l.b16 %v4773
        %v4952 = vunpack.c.h.b16 %v4773
        %v4953 = vunpack.c.l.b16 %v4774
        %v4954 = vunpack.c.h.b16 %v4774
        %v4955 = vunpack.c.l.b16 %v4775
        %v4956 = vunpack.c.h.b16 %v4775
        %v4957 = vunpack.c.l.b16 %v4776
        %v4958 = vunpack.c.h.b16 %v4776
        %v4959 = vunpack.c.l.b16 %v4777
        %v4960 = vunpack.c.h.b16 %v4777
        %v4961 = vunpack.c.l.b16 %v4778
        %v4962 = vunpack.c.h.b16 %v4778
        %v4963 = vunpack.c.l.b16 %v4779
        %v4964 = vunpack.c.h.b16 %v4779
        %v4965 = vunpack.c.l.b16 %v4780
        %v4966 = vunpack.c.h.b16 %v4780
        %v4967 = vunpack.c.l.b16 %v4781
        %v4968 = vunpack.c.h.b16 %v4781
        %v4969 = vunpack.c.l.b16 %v4782
        %v4970 = vunpack.c.h.b16 %v4782
        %v4971 = vunpack.c.l.b16 %v4783
        %v4972 = vunpack.c.h.b16 %v4783
        %v4973 = vunpack.c.l.b16 %v4784
        %v4974 = vunpack.c.h.b16 %v4784
        %v4975 = vunpack.c.l.b16 %v4785
        %v4976 = vunpack.c.h.b16 %v4785
        %v4977 = vunpack.c.l.b16 %v4786
        %v4978 = vunpack.c.h.b16 %v4786
        %v4979 = vunpack.c.l.b16 %v4787
        %v4980 = vunpack.c.h.b16 %v4787
        %v4981 = vunpack.c.l.b16 %v4788
        %v4982 = vunpack.c.h.b16 %v4788
        %v4983 = vunpack.c.l.b16 %v4789
        %v4984 = vunpack.c.h.b16 %v4789
        %v4985 = vunpack.c.l.b16 %v4790
        %v4986 = vunpack.c.h.b16 %v4790
        %v4987 = vunpack.c.l.b16 %v4791
        %v4988 = vunpack.c.h.b16 %v4791
        %v4989 = vunpack.c.l.b16 %v4792
        %v4990 = vunpack.c.h.b16 %v4792
        %v4991 = vunpack.c.l.b16 %v4793
        %v4992 = vunpack.c.h.b16 %v4793
        %v4993 = vunpack.c.l.b16 %v4794
        %v4994 = vunpack.c.h.b16 %v4794
        %v4995 = vunpack.c.l.b16 %v4795
        %v4996 = vunpack.c.h.b16 %v4795
        %v4997 = vunpack.c.l.b16 %v4796
        %v4998 = vunpack.c.h.b16 %v4796
        %v4999 = vpack.c.b16 %v4875, %v4871
        %v5000 = vpack.c.b16 %v4876, %v4872
        %v5001 = vpack.c.b16 %v4877, %v4873
        %v5002 = vpack.c.b16 %v4878, %v4874
        %v5003 = vpack.c.b16 %v4883, %v4879
        %v5004 = vpack.c.b16 %v4884, %v4880
        %v5005 = vpack.c.b16 %v4885, %v4881
        %v5006 = vpack.c.b16 %v4886, %v4882
        %v5007 = vpack.c.b16 %v4891, %v4887
        %v5008 = vpack.c.b16 %v4892, %v4888
        %v5009 = vpack.c.b16 %v4893, %v4889
        %v5010 = vpack.c.b16 %v4894, %v4890
        %v5011 = vpack.c.b16 %v4899, %v4895
        %v5012 = vpack.c.b16 %v4900, %v4896
        %v5013 = vpack.c.b16 %v4901, %v4897
        %v5014 = vpack.c.b16 %v4902, %v4898
        %v5015 = vpack.c.b16 %v4907, %v4903
        %v5016 = vpack.c.b16 %v4908, %v4904
        %v5017 = vpack.c.b16 %v4909, %v4905
        %v5018 = vpack.c.b16 %v4910, %v4906
        %v5019 = vpack.c.b16 %v4915, %v4911
        %v5020 = vpack.c.b16 %v4916, %v4912
        %v5021 = vpack.c.b16 %v4917, %v4913
        %v5022 = vpack.c.b16 %v4918, %v4914
        %v5023 = vpack.c.b16 %v4923, %v4919
        %v5024 = vpack.c.b16 %v4924, %v4920
        %v5025 = vpack.c.b16 %v4925, %v4921
        %v5026 = vpack.c.b16 %v4926, %v4922
        %v5027 = vpack.c.b16 %v4931, %v4927
        %v5028 = vpack.c.b16 %v4932, %v4928
        %v5029 = vpack.c.b16 %v4933, %v4929
        %v5030 = vpack.c.b16 %v4934, %v4930
        %v5031 = vpack.c.b16 %v4939, %v4935
        %v5032 = vpack.c.b16 %v4940, %v4936
        %v5033 = vpack.c.b16 %v4941, %v4937
        %v5034 = vpack.c.b16 %v4942, %v4938
        %v5035 = vpack.c.b16 %v4947, %v4943
        %v5036 = vpack.c.b16 %v4948, %v4944
        %v5037 = vpack.c.b16 %v4949, %v4945
        %v5038 = vpack.c.b16 %v4950, %v4946
        %v5039 = vpack.c.b16 %v4955, %v4951
        %v5040 = vpack.c.b16 %v4956, %v4952
        %v5041 = vpack.c.b16 %v4957, %v4953
        %v5042 = vpack.c.b16 %v4958, %v4954
        %v5043 = vpack.c.b16 %v4963, %v4959
        %v5044 = vpack.c.b16 %v4964, %v4960
        %v5045 = vpack.c.b16 %v4965, %v4961
        %v5046 = vpack.c.b16 %v4966, %v4962
        %v5047 = vpack.c.b16 %v4971, %v4967
        %v5048 = vpack.c.b16 %v4972, %v4968
        %v5049 = vpack.c.b16 %v4973, %v4969
        %v5050 = vpack.c.b16 %v4974, %v4970
        %v5051 = vpack.c.b16 %v4979, %v4975
        %v5052 = vpack.c.b16 %v4980, %v4976
        %v5053 = vpack.c.b16 %v4981, %v4977
        %v5054 = vpack.c.b16 %v4982, %v4978
        %v5055 = vpack.c.b16 %v4987, %v4983
        %v5056 = vpack.c.b16 %v4988, %v4984
        %v5057 = vpack.c.b16 %v4989, %v4985
        %v5058 = vpack.c.b16 %v4990, %v4986
        %v5059 = vpack.c.b16 %v4995, %v4991
        %v5060 = vpack.c.b16 %v4996, %v4992
        %v5061 = vpack.c.b16 %v4997, %v4993
        %v5062 = vpack.c.b16 %v4998, %v4994
        %5127 = vmatpush.bf16.msra.mxu0 %v5027
        %5128 = vmatpush.bf16.msra.mxu0 %v5023
        %5129 = vmatpush.bf16.msra.mxu0 %v5019
        %5130 = vmatpush.bf16.msra.mxu0 %v5015
        %5131 = vmatpush.bf16.msra.mxu0 %v5011
        %5132 = vmatpush.bf16.msra.mxu0 %v5007
        %5133 = vmatpush.bf16.msra.mxu0 %v5003
        %5134 = vmatpush.bf16.msra.mxu0 %v4999
        %5135 = vmatmul.bf16.gmra.mxu0 %v4725
        %v5136 = vpop.f32.mrf.mxu0
        %v5137 = vadd.f32 %v4799, %v5136
        %v5138 = vpop.f32.mrf.mxu0
        %v5139 = vadd.f32 %v4799, %v5138
        %5140 = vmatmul.bf16.gmra.mxu0 %v4727
        %v5141 = vpop.f32.mrf.mxu0
        %v5142 = vadd.f32 %v4799, %v5141
        %v5143 = vpop.f32.mrf.mxu0
        %v5144 = vadd.f32 %v4799, %v5143
        %5145 = vmatmul.bf16.gmra.mxu0 %v4729
        %v5146 = vpop.f32.mrf.mxu0
        %v5147 = vadd.f32 %v4799, %v5146
        %v5148 = vpop.f32.mrf.mxu0
        %v5149 = vadd.f32 %v4799, %v5148
        %5150 = vmatmul.bf16.gmra.mxu0 %v4731
        %v5151 = vpop.f32.mrf.mxu0
        %v5152 = vadd.f32 %v4799, %v5151
        %v5153 = vpop.f32.mrf.mxu0
        %v5154 = vadd.f32 %v4799, %v5153
        %5155 = vdwg.mxu0
        %5156 = vmatpush.bf16.msra.mxu0 %v5059
        %5157 = vmatpush.bf16.msra.mxu0 %v5055
        %5158 = vmatpush.bf16.msra.mxu0 %v5051
        %5159 = vmatpush.bf16.msra.mxu0 %v5047
        %5160 = vmatpush.bf16.msra.mxu0 %v5043
        %5161 = vmatpush.bf16.msra.mxu0 %v5039
        %5162 = vmatpush.bf16.msra.mxu0 %v5035
        %5163 = vmatpush.bf16.msra.mxu0 %v5031
        %5164 = vmatmul.bf16.gmra.mxu0 %v4726
        %v5165 = vpop.f32.mrf.mxu0
        %v5166 = vadd.f32 %v5137, %v5165
        %v5167 = vpop.f32.mrf.mxu0
        %v5168 = vadd.f32 %v5139, %v5167
        %5169 = vmatmul.bf16.gmra.mxu0 %v4728
        %v5170 = vpop.f32.mrf.mxu0
        %v5171 = vadd.f32 %v5142, %v5170
        %v5172 = vpop.f32.mrf.mxu0
        %v5173 = vadd.f32 %v5144, %v5172
        %5174 = vmatmul.bf16.gmra.mxu0 %v4730
        %v5175 = vpop.f32.mrf.mxu0
        %v5176 = vadd.f32 %v5147, %v5175
        %v5177 = vpop.f32.mrf.mxu0
        %v5178 = vadd.f32 %v5149, %v5177
        %5179 = vmatmul.bf16.gmra.mxu0 %v4732
        %v5180 = vpop.f32.mrf.mxu0
        %v5181 = vadd.f32 %v5152, %v5180
        %v5182 = vpop.f32.mrf.mxu0
        %v5183 = vadd.f32 %v5154, %v5182
        %5184 = vdwg.mxu0
        %5185 = vmatpush.bf16.msra.mxu0 %v5028
        %5186 = vmatpush.bf16.msra.mxu0 %v5024
        %5187 = vmatpush.bf16.msra.mxu0 %v5020
        %5188 = vmatpush.bf16.msra.mxu0 %v5016
        %5189 = vmatpush.bf16.msra.mxu0 %v5012
        %5190 = vmatpush.bf16.msra.mxu0 %v5008
        %5191 = vmatpush.bf16.msra.mxu0 %v5004
        %5192 = vmatpush.bf16.msra.mxu0 %v5000
        %5193 = vmatmul.bf16.gmra.mxu0 %v4725
        %v5194 = vpop.f32.mrf.mxu0
        %v5195 = vadd.f32 %v4800, %v5194
        %v5196 = vpop.f32.mrf.mxu0
        %v5197 = vadd.f32 %v4800, %v5196
        %5198 = vmatmul.bf16.gmra.mxu0 %v4727
        %v5199 = vpop.f32.mrf.mxu0
        %v5200 = vadd.f32 %v4800, %v5199
        %v5201 = vpop.f32.mrf.mxu0
        %v5202 = vadd.f32 %v4800, %v5201
        %5203 = vmatmul.bf16.gmra.mxu0 %v4729
        %v5204 = vpop.f32.mrf.mxu0
        %v5205 = vadd.f32 %v4800, %v5204
        %v5206 = vpop.f32.mrf.mxu0
        %v5207 = vadd.f32 %v4800, %v5206
        %5208 = vmatmul.bf16.gmra.mxu0 %v4731
        %v5209 = vpop.f32.mrf.mxu0
        %v5210 = vadd.f32 %v4800, %v5209
        %v5211 = vpop.f32.mrf.mxu0
        %v5212 = vadd.f32 %v4800, %v5211
        %5213 = vdwg.mxu0
        %5214 = vmatpush.bf16.msra.mxu0 %v5060
        %5215 = vmatpush.bf16.msra.mxu0 %v5056
        %5216 = vmatpush.bf16.msra.mxu0 %v5052
        %5217 = vmatpush.bf16.msra.mxu0 %v5048
        %5218 = vmatpush.bf16.msra.mxu0 %v5044
        %5219 = vmatpush.bf16.msra.mxu0 %v5040
        %5220 = vmatpush.bf16.msra.mxu0 %v5036
        %5221 = vmatpush.bf16.msra.mxu0 %v5032
        %5222 = vmatmul.bf16.gmra.mxu0 %v4726
        %v5223 = vpop.f32.mrf.mxu0
        %v5224 = vadd.f32 %v5195, %v5223
        %v5225 = vpop.f32.mrf.mxu0
        %v5226 = vadd.f32 %v5197, %v5225
        %5227 = vmatmul.bf16.gmra.mxu0 %v4728
        %v5228 = vpop.f32.mrf.mxu0
        %v5229 = vadd.f32 %v5200, %v5228
        %v5230 = vpop.f32.mrf.mxu0
        %v5231 = vadd.f32 %v5202, %v5230
        %5232 = vmatmul.bf16.gmra.mxu0 %v4730
        %v5233 = vpop.f32.mrf.mxu0
        %v5234 = vadd.f32 %v5205, %v5233
        %v5235 = vpop.f32.mrf.mxu0
        %v5236 = vadd.f32 %v5207, %v5235
        %5237 = vmatmul.bf16.gmra.mxu0 %v4732
        %v5238 = vpop.f32.mrf.mxu0
        %v5239 = vadd.f32 %v5210, %v5238
        %v5240 = vpop.f32.mrf.mxu0
        %v5241 = vadd.f32 %v5212, %v5240
        %5242 = vdwg.mxu0
        %5243 = vmatpush.bf16.msra.mxu0 %v5029
        %5244 = vmatpush.bf16.msra.mxu0 %v5025
        %5245 = vmatpush.bf16.msra.mxu0 %v5021
        %5246 = vmatpush.bf16.msra.mxu0 %v5017
        %5247 = vmatpush.bf16.msra.mxu0 %v5013
        %5248 = vmatpush.bf16.msra.mxu0 %v5009
        %5249 = vmatpush.bf16.msra.mxu0 %v5005
        %5250 = vmatpush.bf16.msra.mxu0 %v5001
        %5251 = vmatmul.bf16.gmra.mxu0 %v4725
        %v5252 = vpop.f32.mrf.mxu0
        %v5253 = vadd.f32 %v4801, %v5252
        %v5254 = vpop.f32.mrf.mxu0
        %v5255 = vadd.f32 %v4801, %v5254
        %5256 = vmatmul.bf16.gmra.mxu0 %v4727
        %v5257 = vpop.f32.mrf.mxu0
        %v5258 = vadd.f32 %v4801, %v5257
        %v5259 = vpop.f32.mrf.mxu0
        %v5260 = vadd.f32 %v4801, %v5259
        %5261 = vmatmul.bf16.gmra.mxu0 %v4729
        %v5262 = vpop.f32.mrf.mxu0
        %v5263 = vadd.f32 %v4801, %v5262
        %v5264 = vpop.f32.mrf.mxu0
        %v5265 = vadd.f32 %v4801, %v5264
        %5266 = vmatmul.bf16.gmra.mxu0 %v4731
        %v5267 = vpop.f32.mrf.mxu0
        %v5268 = vadd.f32 %v4801, %v5267
        %v5269 = vpop.f32.mrf.mxu0
        %v5270 = vadd.f32 %v4801, %v5269
        %5271 = vdwg.mxu0
        %5272 = vmatpush.bf16.msra.mxu0 %v5061
        %5273 = vmatpush.bf16.msra.mxu0 %v5057
        %5274 = vmatpush.bf16.msra.mxu0 %v5053
        %5275 = vmatpush.bf16.msra.mxu0 %v5049
        %5276 = vmatpush.bf16.msra.mxu0 %v5045
        %5277 = vmatpush.bf16.msra.mxu0 %v5041
        %5278 = vmatpush.bf16.msra.mxu0 %v5037
        %5279 = vmatpush.bf16.msra.mxu0 %v5033
        %5280 = vmatmul.bf16.gmra.mxu0 %v4726
        %v5281 = vpop.f32.mrf.mxu0
        %v5282 = vadd.f32 %v5253, %v5281
        %v5283 = vpop.f32.mrf.mxu0
        %v5284 = vadd.f32 %v5255, %v5283
        %5285 = vmatmul.bf16.gmra.mxu0 %v4728
        %v5286 = vpop.f32.mrf.mxu0
        %v5287 = vadd.f32 %v5258, %v5286
        %v5288 = vpop.f32.mrf.mxu0
        %v5289 = vadd.f32 %v5260, %v5288
        %5290 = vmatmul.bf16.gmra.mxu0 %v4730
        %v5291 = vpop.f32.mrf.mxu0
        %v5292 = vadd.f32 %v5263, %v5291
        %v5293 = vpop.f32.mrf.mxu0
        %v5294 = vadd.f32 %v5265, %v5293
        %5295 = vmatmul.bf16.gmra.mxu0 %v4732
        %v5296 = vpop.f32.mrf.mxu0
        %v5297 = vadd.f32 %v5268, %v5296
        %v5298 = vpop.f32.mrf.mxu0
        %v5299 = vadd.f32 %v5270, %v5298
        %5300 = vdwg.mxu0
        %5301 = vmatpush.bf16.msra.mxu0 %v5030
        %5302 = vmatpush.bf16.msra.mxu0 %v5026
        %5303 = vmatpush.bf16.msra.mxu0 %v5022
        %5304 = vmatpush.bf16.msra.mxu0 %v5018
        %5305 = vmatpush.bf16.msra.mxu0 %v5014
        %5306 = vmatpush.bf16.msra.mxu0 %v5010
        %5307 = vmatpush.bf16.msra.mxu0 %v5006
        %5308 = vmatpush.bf16.msra.mxu0 %v5002
        %5309 = vmatmul.bf16.gmra.mxu0 %v4725
        %v5310 = vpop.f32.mrf.mxu0
        %v5311 = vadd.f32 %v4802, %v5310
        %v5312 = vpop.f32.mrf.mxu0
        %v5313 = vadd.f32 %v4802, %v5312
        %5314 = vmatmul.bf16.gmra.mxu0 %v4727
        %v5315 = vpop.f32.mrf.mxu0
        %v5316 = vadd.f32 %v4802, %v5315
        %v5317 = vpop.f32.mrf.mxu0
        %v5318 = vadd.f32 %v4802, %v5317
        %5319 = vmatmul.bf16.gmra.mxu0 %v4729
        %v5320 = vpop.f32.mrf.mxu0
        %v5321 = vadd.f32 %v4802, %v5320
        %v5322 = vpop.f32.mrf.mxu0
        %v5323 = vadd.f32 %v4802, %v5322
        %5324 = vmatmul.bf16.gmra.mxu0 %v4731
        %v5325 = vpop.f32.mrf.mxu0
        %v5326 = vadd.f32 %v4802, %v5325
        %v5327 = vpop.f32.mrf.mxu0
        %v5328 = vadd.f32 %v4802, %v5327
        %5329 = vdwg.mxu0
        %5330 = vmatpush.bf16.msra.mxu0 %v5062
        %5331 = vmatpush.bf16.msra.mxu0 %v5058
        %5332 = vmatpush.bf16.msra.mxu0 %v5054
        %5333 = vmatpush.bf16.msra.mxu0 %v5050
        %5334 = vmatpush.bf16.msra.mxu0 %v5046
        %5335 = vmatpush.bf16.msra.mxu0 %v5042
        %5336 = vmatpush.bf16.msra.mxu0 %v5038
        %5337 = vmatpush.bf16.msra.mxu0 %v5034
        %5338 = vmatmul.bf16.gmra.mxu0 %v4726
        %v5339 = vpop.f32.mrf.mxu0
        %v5340 = vadd.f32 %v5311, %v5339
        %v5341 = vpop.f32.mrf.mxu0
        %v5342 = vadd.f32 %v5313, %v5341
        %5343 = vmatmul.bf16.gmra.mxu0 %v4728
        %v5344 = vpop.f32.mrf.mxu0
        %v5345 = vadd.f32 %v5316, %v5344
        %v5346 = vpop.f32.mrf.mxu0
        %v5347 = vadd.f32 %v5318, %v5346
        %5348 = vmatmul.bf16.gmra.mxu0 %v4730
        %v5349 = vpop.f32.mrf.mxu0
        %v5350 = vadd.f32 %v5321, %v5349
        %v5351 = vpop.f32.mrf.mxu0
        %v5352 = vadd.f32 %v5323, %v5351
        %5353 = vmatmul.bf16.gmra.mxu0 %v4732
        %v5354 = vpop.f32.mrf.mxu0
        %v5355 = vadd.f32 %v5326, %v5354
        %v5356 = vpop.f32.mrf.mxu0
        %v5357 = vadd.f32 %v5328, %v5356
        %5358 = vdwg.mxu0
        %v5359 = vmul.f32 %v5166, 1.702
        %v5360 = vmul.f32 %v5224, 1.702
        %v5361 = vmul.f32 %v5282, 1.702
        %v5362 = vmul.f32 %v5340, 1.702
        %v5363 = vmul.f32 %v5168, 1.702
        %v5364 = vmul.f32 %v5226, 1.702
        %v5365 = vmul.f32 %v5284, 1.702
        %v5366 = vmul.f32 %v5342, 1.702
        %v5367 = vmul.f32 %v5171, 1.702
        %v5368 = vmul.f32 %v5229, 1.702
        %v5369 = vmul.f32 %v5287, 1.702
        %v5370 = vmul.f32 %v5345, 1.702
        %v5371 = vmul.f32 %v5173, 1.702
        %v5372 = vmul.f32 %v5231, 1.702
        %v5373 = vmul.f32 %v5289, 1.702
        %v5374 = vmul.f32 %v5347, 1.702
        %v5375 = vmul.f32 %v5176, 1.702
        %v5376 = vmul.f32 %v5234, 1.702
        %v5377 = vmul.f32 %v5292, 1.702
        %v5378 = vmul.f32 %v5350, 1.702
        %v5379 = vmul.f32 %v5178, 1.702
        %v5380 = vmul.f32 %v5236, 1.702
        %v5381 = vmul.f32 %v5294, 1.702
        %v5382 = vmul.f32 %v5352, 1.702
        %v5383 = vmul.f32 %v5181, 1.702
        %v5384 = vmul.f32 %v5239, 1.702
        %v5385 = vmul.f32 %v5297, 1.702
        %v5386 = vmul.f32 %v5355, 1.702
        %v5387 = vmul.f32 %v5183, 1.702
        %v5388 = vmul.f32 %v5241, 1.702
        %v5389 = vmul.f32 %v5299, 1.702
        %v5390 = vmul.f32 %v5357, 1.702
        %v5391 = vxor.u32 %v5359, 2147483648
        %v5392 = vxor.u32 %v5360, 2147483648
        %v5393 = vxor.u32 %v5361, 2147483648
        %v5394 = vxor.u32 %v5362, 2147483648
        %v5395 = vxor.u32 %v5363, 2147483648
        %v5396 = vxor.u32 %v5364, 2147483648
        %v5397 = vxor.u32 %v5365, 2147483648
        %v5398 = vxor.u32 %v5366, 2147483648
        %v5399 = vxor.u32 %v5367, 2147483648
        %v5400 = vxor.u32 %v5368, 2147483648
        %v5401 = vxor.u32 %v5369, 2147483648
        %v5402 = vxor.u32 %v5370, 2147483648
        %v5403 = vxor.u32 %v5371, 2147483648
        %v5404 = vxor.u32 %v5372, 2147483648
        %v5405 = vxor.u32 %v5373, 2147483648
        %v5406 = vxor.u32 %v5374, 2147483648
        %v5407 = vxor.u32 %v5375, 2147483648
        %v5408 = vxor.u32 %v5376, 2147483648
        %v5409 = vxor.u32 %v5377, 2147483648
        %v5410 = vxor.u32 %v5378, 2147483648
        %v5411 = vxor.u32 %v5379, 2147483648
        %v5412 = vxor.u32 %v5380, 2147483648
        %v5413 = vxor.u32 %v5381, 2147483648
        %v5414 = vxor.u32 %v5382, 2147483648
        %v5415 = vxor.u32 %v5383, 2147483648
        %v5416 = vxor.u32 %v5384, 2147483648
        %v5417 = vxor.u32 %v5385, 2147483648
        %v5418 = vxor.u32 %v5386, 2147483648
        %v5419 = vxor.u32 %v5387, 2147483648
        %v5420 = vxor.u32 %v5388, 2147483648
        %v5421 = vxor.u32 %v5389, 2147483648
        %v5422 = vxor.u32 %v5390, 2147483648
        %v5423 = vmul.f32 %v5391, 1.442695
        %v5424 = vpow.pop %v5423
        %v5425 = vmul.f32 %v5392, 1.442695
        %v5426 = vpow.pop %v5425
        %v5427 = vmul.f32 %v5393, 1.442695
        %v5428 = vpow.pop %v5427
        %v5429 = vmul.f32 %v5394, 1.442695
        %v5430 = vpow.pop %v5429
        %v5431 = vmul.f32 %v5395, 1.442695
        %v5432 = vpow.pop %v5431
        %v5433 = vmul.f32 %v5396, 1.442695
        %v5434 = vpow.pop %v5433
        %v5435 = vmul.f32 %v5397, 1.442695
        %v5436 = vpow.pop %v5435
        %v5437 = vmul.f32 %v5398, 1.442695
        %v5438 = vpow.pop %v5437
        %v5439 = vmul.f32 %v5399, 1.442695
        %v5440 = vpow.pop %v5439
        %v5441 = vmul.f32 %v5400, 1.442695
        %v5442 = vpow.pop %v5441
        %v5443 = vmul.f32 %v5401, 1.442695
        %v5444 = vpow.pop %v5443
        %v5445 = vmul.f32 %v5402, 1.442695
        %v5446 = vpow.pop %v5445
        %v5447 = vmul.f32 %v5403, 1.442695
        %v5448 = vpow.pop %v5447
        %v5449 = vmul.f32 %v5404, 1.442695
        %v5450 = vpow.pop %v5449
        %v5451 = vmul.f32 %v5405, 1.442695
        %v5452 = vpow.pop %v5451
        %v5453 = vmul.f32 %v5406, 1.442695
        %v5454 = vpow.pop %v5453
        %v5455 = vmul.f32 %v5407, 1.442695
        %v5456 = vpow.pop %v5455
        %v5457 = vmul.f32 %v5408, 1.442695
        %v5458 = vpow.pop %v5457
        %v5459 = vmul.f32 %v5409, 1.442695
        %v5460 = vpow.pop %v5459
        %v5461 = vmul.f32 %v5410, 1.442695
        %v5462 = vpow.pop %v5461
        %v5463 = vmul.f32 %v5411, 1.442695
        %v5464 = vpow.pop %v5463
        %v5465 = vmul.f32 %v5412, 1.442695
        %v5466 = vpow.pop %v5465
        %v5467 = vmul.f32 %v5413, 1.442695
        %v5468 = vpow.pop %v5467
        %v5469 = vmul.f32 %v5414, 1.442695
        %v5470 = vpow.pop %v5469
        %v5471 = vmul.f32 %v5415, 1.442695
        %v5472 = vpow.pop %v5471
        %v5473 = vmul.f32 %v5416, 1.442695
        %v5474 = vpow.pop %v5473
        %v5475 = vmul.f32 %v5417, 1.442695
        %v5476 = vpow.pop %v5475
        %v5477 = vmul.f32 %v5418, 1.442695
        %v5478 = vpow.pop %v5477
        %v5479 = vmul.f32 %v5419, 1.442695
        %v5480 = vpow.pop %v5479
        %v5481 = vmul.f32 %v5420, 1.442695
        %v5482 = vpow.pop %v5481
        %v5483 = vmul.f32 %v5421, 1.442695
        %v5484 = vpow.pop %v5483
        %v5485 = vmul.f32 %v5422, 1.442695
        %v5486 = vpow.pop %v5485
        %v5487 = vadd.f32 %v5424, 1.0
        %v5488 = vadd.f32 %v5426, 1.0
        %v5489 = vadd.f32 %v5428, 1.0
        %v5490 = vadd.f32 %v5430, 1.0
        %v5491 = vadd.f32 %v5432, 1.0
        %v5492 = vadd.f32 %v5434, 1.0
        %v5493 = vadd.f32 %v5436, 1.0
        %v5494 = vadd.f32 %v5438, 1.0
        %v5495 = vadd.f32 %v5440, 1.0
        %v5496 = vadd.f32 %v5442, 1.0
        %v5497 = vadd.f32 %v5444, 1.0
        %v5498 = vadd.f32 %v5446, 1.0
        %v5499 = vadd.f32 %v5448, 1.0
        %v5500 = vadd.f32 %v5450, 1.0
        %v5501 = vadd.f32 %v5452, 1.0
        %v5502 = vadd.f32 %v5454, 1.0
        %v5503 = vadd.f32 %v5456, 1.0
        %v5504 = vadd.f32 %v5458, 1.0
        %v5505 = vadd.f32 %v5460, 1.0
        %v5506 = vadd.f32 %v5462, 1.0
        %v5507 = vadd.f32 %v5464, 1.0
        %v5508 = vadd.f32 %v5466, 1.0
        %v5509 = vadd.f32 %v5468, 1.0
        %v5510 = vadd.f32 %v5470, 1.0
        %v5511 = vadd.f32 %v5472, 1.0
        %v5512 = vadd.f32 %v5474, 1.0
        %v5513 = vadd.f32 %v5476, 1.0
        %v5514 = vadd.f32 %v5478, 1.0
        %v5515 = vadd.f32 %v5480, 1.0
        %v5516 = vadd.f32 %v5482, 1.0
        %v5517 = vadd.f32 %v5484, 1.0
        %v5518 = vadd.f32 %v5486, 1.0
        %v5519 = vrcp.pop %v5487
        %v5520 = vmul.f32 %v5487, %v5519
        %v5521 = vsub.f32 1.0, %v5520
        %v5522 = vmul.f32 %v5519, %v5521
        %v5523 = vadd.f32 %v5519, %v5522
        %vm5524 = vweird.f32 %v5487
        %vm5525 = vweird.f32 %v5519
        %vm5526 = vmor %vm5524, %vm5525
        %v5527 = vsel %vm5526, %v5519, %v5523
        %v5528 = vand.u32 2147483647, %v5487
        %vm5529 = vcmp.eq.f32.partialorder %v5528, 8.507059e+37
        %v5530 = vand.u32 %v5487, 2147483648
        %v5531 = vor.u32 1.1754944e-38, %v5530
        %v5532 = vsel %vm5529, %v5531, %v5527
        %v5533 = vmul.f32 1.0, %v5532
        %v5534 = vrcp.pop %v5488
        %v5535 = vmul.f32 %v5488, %v5534
        %v5536 = vsub.f32 1.0, %v5535
        %v5537 = vmul.f32 %v5534, %v5536
        %v5538 = vadd.f32 %v5534, %v5537
        %vm5539 = vweird.f32 %v5488
        %vm5540 = vweird.f32 %v5534
        %vm5541 = vmor %vm5539, %vm5540
        %v5542 = vsel %vm5541, %v5534, %v5538
        %v5543 = vand.u32 2147483647, %v5488
        %vm5544 = vcmp.eq.f32.partialorder %v5543, 8.507059e+37
        %v5545 = vand.u32 %v5488, 2147483648
        %v5546 = vor.u32 1.1754944e-38, %v5545
        %v5547 = vsel %vm5544, %v5546, %v5542
        %v5548 = vmul.f32 1.0, %v5547
        %v5549 = vrcp.pop %v5489
        %v5550 = vmul.f32 %v5489, %v5549
        %v5551 = vsub.f32 1.0, %v5550
        %v5552 = vmul.f32 %v5549, %v5551
        %v5553 = vadd.f32 %v5549, %v5552
        %vm5554 = vweird.f32 %v5489
        %vm5555 = vweird.f32 %v5549
        %vm5556 = vmor %vm5554, %vm5555
        %v5557 = vsel %vm5556, %v5549, %v5553
        %v5558 = vand.u32 2147483647, %v5489
        %vm5559 = vcmp.eq.f32.partialorder %v5558, 8.507059e+37
        %v5560 = vand.u32 %v5489, 2147483648
        %v5561 = vor.u32 1.1754944e-38, %v5560
        %v5562 = vsel %vm5559, %v5561, %v5557
        %v5563 = vmul.f32 1.0, %v5562
        %v5564 = vrcp.pop %v5490
        %v5565 = vmul.f32 %v5490, %v5564
        %v5566 = vsub.f32 1.0, %v5565
        %v5567 = vmul.f32 %v5564, %v5566
        %v5568 = vadd.f32 %v5564, %v5567
        %vm5569 = vweird.f32 %v5490
        %vm5570 = vweird.f32 %v5564
        %vm5571 = vmor %vm5569, %vm5570
        %v5572 = vsel %vm5571, %v5564, %v5568
        %v5573 = vand.u32 2147483647, %v5490
        %vm5574 = vcmp.eq.f32.partialorder %v5573, 8.507059e+37
        %v5575 = vand.u32 %v5490, 2147483648
        %v5576 = vor.u32 1.1754944e-38, %v5575
        %v5577 = vsel %vm5574, %v5576, %v5572
        %v5578 = vmul.f32 1.0, %v5577
        %v5579 = vrcp.pop %v5491
        %v5580 = vmul.f32 %v5491, %v5579
        %v5581 = vsub.f32 1.0, %v5580
        %v5582 = vmul.f32 %v5579, %v5581
        %v5583 = vadd.f32 %v5579, %v5582
        %vm5584 = vweird.f32 %v5491
        %vm5585 = vweird.f32 %v5579
        %vm5586 = vmor %vm5584, %vm5585
        %v5587 = vsel %vm5586, %v5579, %v5583
        %v5588 = vand.u32 2147483647, %v5491
        %vm5589 = vcmp.eq.f32.partialorder %v5588, 8.507059e+37
        %v5590 = vand.u32 %v5491, 2147483648
        %v5591 = vor.u32 1.1754944e-38, %v5590
        %v5592 = vsel %vm5589, %v5591, %v5587
        %v5593 = vmul.f32 1.0, %v5592
        %v5594 = vrcp.pop %v5492
        %v5595 = vmul.f32 %v5492, %v5594
        %v5596 = vsub.f32 1.0, %v5595
        %v5597 = vmul.f32 %v5594, %v5596
        %v5598 = vadd.f32 %v5594, %v5597
        %vm5599 = vweird.f32 %v5492
        %vm5600 = vweird.f32 %v5594
        %vm5601 = vmor %vm5599, %vm5600
        %v5602 = vsel %vm5601, %v5594, %v5598
        %v5603 = vand.u32 2147483647, %v5492
        %vm5604 = vcmp.eq.f32.partialorder %v5603, 8.507059e+37
        %v5605 = vand.u32 %v5492, 2147483648
        %v5606 = vor.u32 1.1754944e-38, %v5605
        %v5607 = vsel %vm5604, %v5606, %v5602
        %v5608 = vmul.f32 1.0, %v5607
        %v5609 = vrcp.pop %v5493
        %v5610 = vmul.f32 %v5493, %v5609
        %v5611 = vsub.f32 1.0, %v5610
        %v5612 = vmul.f32 %v5609, %v5611
        %v5613 = vadd.f32 %v5609, %v5612
        %vm5614 = vweird.f32 %v5493
        %vm5615 = vweird.f32 %v5609
        %vm5616 = vmor %vm5614, %vm5615
        %v5617 = vsel %vm5616, %v5609, %v5613
        %v5618 = vand.u32 2147483647, %v5493
        %vm5619 = vcmp.eq.f32.partialorder %v5618, 8.507059e+37
        %v5620 = vand.u32 %v5493, 2147483648
        %v5621 = vor.u32 1.1754944e-38, %v5620
        %v5622 = vsel %vm5619, %v5621, %v5617
        %v5623 = vmul.f32 1.0, %v5622
        %v5624 = vrcp.pop %v5494
        %v5625 = vmul.f32 %v5494, %v5624
        %v5626 = vsub.f32 1.0, %v5625
        %v5627 = vmul.f32 %v5624, %v5626
        %v5628 = vadd.f32 %v5624, %v5627
        %vm5629 = vweird.f32 %v5494
        %vm5630 = vweird.f32 %v5624
        %vm5631 = vmor %vm5629, %vm5630
        %v5632 = vsel %vm5631, %v5624, %v5628
        %v5633 = vand.u32 2147483647, %v5494
        %vm5634 = vcmp.eq.f32.partialorder %v5633, 8.507059e+37
        %v5635 = vand.u32 %v5494, 2147483648
        %v5636 = vor.u32 1.1754944e-38, %v5635
        %v5637 = vsel %vm5634, %v5636, %v5632
        %v5638 = vmul.f32 1.0, %v5637
        %v5639 = vrcp.pop %v5495
        %v5640 = vmul.f32 %v5495, %v5639
        %v5641 = vsub.f32 1.0, %v5640
        %v5642 = vmul.f32 %v5639, %v5641
        %v5643 = vadd.f32 %v5639, %v5642
        %vm5644 = vweird.f32 %v5495
        %vm5645 = vweird.f32 %v5639
        %vm5646 = vmor %vm5644, %vm5645
        %v5647 = vsel %vm5646, %v5639, %v5643
        %v5648 = vand.u32 2147483647, %v5495
        %vm5649 = vcmp.eq.f32.partialorder %v5648, 8.507059e+37
        %v5650 = vand.u32 %v5495, 2147483648
        %v5651 = vor.u32 1.1754944e-38, %v5650
        %v5652 = vsel %vm5649, %v5651, %v5647
        %v5653 = vmul.f32 1.0, %v5652
        %v5654 = vrcp.pop %v5496
        %v5655 = vmul.f32 %v5496, %v5654
        %v5656 = vsub.f32 1.0, %v5655
        %v5657 = vmul.f32 %v5654, %v5656
        %v5658 = vadd.f32 %v5654, %v5657
        %vm5659 = vweird.f32 %v5496
        %vm5660 = vweird.f32 %v5654
        %vm5661 = vmor %vm5659, %vm5660
        %v5662 = vsel %vm5661, %v5654, %v5658
        %v5663 = vand.u32 2147483647, %v5496
        %vm5664 = vcmp.eq.f32.partialorder %v5663, 8.507059e+37
        %v5665 = vand.u32 %v5496, 2147483648
        %v5666 = vor.u32 1.1754944e-38, %v5665
        %v5667 = vsel %vm5664, %v5666, %v5662
        %v5668 = vmul.f32 1.0, %v5667
        %v5669 = vrcp.pop %v5497
        %v5670 = vmul.f32 %v5497, %v5669
        %v5671 = vsub.f32 1.0, %v5670
        %v5672 = vmul.f32 %v5669, %v5671
        %v5673 = vadd.f32 %v5669, %v5672
        %vm5674 = vweird.f32 %v5497
        %vm5675 = vweird.f32 %v5669
        %vm5676 = vmor %vm5674, %vm5675
        %v5677 = vsel %vm5676, %v5669, %v5673
        %v5678 = vand.u32 2147483647, %v5497
        %vm5679 = vcmp.eq.f32.partialorder %v5678, 8.507059e+37
        %v5680 = vand.u32 %v5497, 2147483648
        %v5681 = vor.u32 1.1754944e-38, %v5680
        %v5682 = vsel %vm5679, %v5681, %v5677
        %v5683 = vmul.f32 1.0, %v5682
        %v5684 = vrcp.pop %v5498
        %v5685 = vmul.f32 %v5498, %v5684
        %v5686 = vsub.f32 1.0, %v5685
        %v5687 = vmul.f32 %v5684, %v5686
        %v5688 = vadd.f32 %v5684, %v5687
        %vm5689 = vweird.f32 %v5498
        %vm5690 = vweird.f32 %v5684
        %vm5691 = vmor %vm5689, %vm5690
        %v5692 = vsel %vm5691, %v5684, %v5688
        %v5693 = vand.u32 2147483647, %v5498
        %vm5694 = vcmp.eq.f32.partialorder %v5693, 8.507059e+37
        %v5695 = vand.u32 %v5498, 2147483648
        %v5696 = vor.u32 1.1754944e-38, %v5695
        %v5697 = vsel %vm5694, %v5696, %v5692
        %v5698 = vmul.f32 1.0, %v5697
        %v5699 = vrcp.pop %v5499
        %v5700 = vmul.f32 %v5499, %v5699
        %v5701 = vsub.f32 1.0, %v5700
        %v5702 = vmul.f32 %v5699, %v5701
        %v5703 = vadd.f32 %v5699, %v5702
        %vm5704 = vweird.f32 %v5499
        %vm5705 = vweird.f32 %v5699
        %vm5706 = vmor %vm5704, %vm5705
        %v5707 = vsel %vm5706, %v5699, %v5703
        %v5708 = vand.u32 2147483647, %v5499
        %vm5709 = vcmp.eq.f32.partialorder %v5708, 8.507059e+37
        %v5710 = vand.u32 %v5499, 2147483648
        %v5711 = vor.u32 1.1754944e-38, %v5710
        %v5712 = vsel %vm5709, %v5711, %v5707
        %v5713 = vmul.f32 1.0, %v5712
        %v5714 = vrcp.pop %v5500
        %v5715 = vmul.f32 %v5500, %v5714
        %v5716 = vsub.f32 1.0, %v5715
        %v5717 = vmul.f32 %v5714, %v5716
        %v5718 = vadd.f32 %v5714, %v5717
        %vm5719 = vweird.f32 %v5500
        %vm5720 = vweird.f32 %v5714
        %vm5721 = vmor %vm5719, %vm5720
        %v5722 = vsel %vm5721, %v5714, %v5718
        %v5723 = vand.u32 2147483647, %v5500
        %vm5724 = vcmp.eq.f32.partialorder %v5723, 8.507059e+37
        %v5725 = vand.u32 %v5500, 2147483648
        %v5726 = vor.u32 1.1754944e-38, %v5725
        %v5727 = vsel %vm5724, %v5726, %v5722
        %v5728 = vmul.f32 1.0, %v5727
        %v5729 = vrcp.pop %v5501
        %v5730 = vmul.f32 %v5501, %v5729
        %v5731 = vsub.f32 1.0, %v5730
        %v5732 = vmul.f32 %v5729, %v5731
        %v5733 = vadd.f32 %v5729, %v5732
        %vm5734 = vweird.f32 %v5501
        %vm5735 = vweird.f32 %v5729
        %vm5736 = vmor %vm5734, %vm5735
        %v5737 = vsel %vm5736, %v5729, %v5733
        %v5738 = vand.u32 2147483647, %v5501
        %vm5739 = vcmp.eq.f32.partialorder %v5738, 8.507059e+37
        %v5740 = vand.u32 %v5501, 2147483648
        %v5741 = vor.u32 1.1754944e-38, %v5740
        %v5742 = vsel %vm5739, %v5741, %v5737
        %v5743 = vmul.f32 1.0, %v5742
        %v5744 = vrcp.pop %v5502
        %v5745 = vmul.f32 %v5502, %v5744
        %v5746 = vsub.f32 1.0, %v5745
        %v5747 = vmul.f32 %v5744, %v5746
        %v5748 = vadd.f32 %v5744, %v5747
        %vm5749 = vweird.f32 %v5502
        %vm5750 = vweird.f32 %v5744
        %vm5751 = vmor %vm5749, %vm5750
        %v5752 = vsel %vm5751, %v5744, %v5748
        %v5753 = vand.u32 2147483647, %v5502
        %vm5754 = vcmp.eq.f32.partialorder %v5753, 8.507059e+37
        %v5755 = vand.u32 %v5502, 2147483648
        %v5756 = vor.u32 1.1754944e-38, %v5755
        %v5757 = vsel %vm5754, %v5756, %v5752
        %v5758 = vmul.f32 1.0, %v5757
        %v5759 = vrcp.pop %v5503
        %v5760 = vmul.f32 %v5503, %v5759
        %v5761 = vsub.f32 1.0, %v5760
        %v5762 = vmul.f32 %v5759, %v5761
        %v5763 = vadd.f32 %v5759, %v5762
        %vm5764 = vweird.f32 %v5503
        %vm5765 = vweird.f32 %v5759
        %vm5766 = vmor %vm5764, %vm5765
        %v5767 = vsel %vm5766, %v5759, %v5763
        %v5768 = vand.u32 2147483647, %v5503
        %vm5769 = vcmp.eq.f32.partialorder %v5768, 8.507059e+37
        %v5770 = vand.u32 %v5503, 2147483648
        %v5771 = vor.u32 1.1754944e-38, %v5770
        %v5772 = vsel %vm5769, %v5771, %v5767
        %v5773 = vmul.f32 1.0, %v5772
        %v5774 = vrcp.pop %v5504
        %v5775 = vmul.f32 %v5504, %v5774
        %v5776 = vsub.f32 1.0, %v5775
        %v5777 = vmul.f32 %v5774, %v5776
        %v5778 = vadd.f32 %v5774, %v5777
        %vm5779 = vweird.f32 %v5504
        %vm5780 = vweird.f32 %v5774
        %vm5781 = vmor %vm5779, %vm5780
        %v5782 = vsel %vm5781, %v5774, %v5778
        %v5783 = vand.u32 2147483647, %v5504
        %vm5784 = vcmp.eq.f32.partialorder %v5783, 8.507059e+37
        %v5785 = vand.u32 %v5504, 2147483648
        %v5786 = vor.u32 1.1754944e-38, %v5785
        %v5787 = vsel %vm5784, %v5786, %v5782
        %v5788 = vmul.f32 1.0, %v5787
        %v5789 = vrcp.pop %v5505
        %v5790 = vmul.f32 %v5505, %v5789
        %v5791 = vsub.f32 1.0, %v5790
        %v5792 = vmul.f32 %v5789, %v5791
        %v5793 = vadd.f32 %v5789, %v5792
        %vm5794 = vweird.f32 %v5505
        %vm5795 = vweird.f32 %v5789
        %vm5796 = vmor %vm5794, %vm5795
        %v5797 = vsel %vm5796, %v5789, %v5793
        %v5798 = vand.u32 2147483647, %v5505
        %vm5799 = vcmp.eq.f32.partialorder %v5798, 8.507059e+37
        %v5800 = vand.u32 %v5505, 2147483648
        %v5801 = vor.u32 1.1754944e-38, %v5800
        %v5802 = vsel %vm5799, %v5801, %v5797
        %v5803 = vmul.f32 1.0, %v5802
        %v5804 = vrcp.pop %v5506
        %v5805 = vmul.f32 %v5506, %v5804
        %v5806 = vsub.f32 1.0, %v5805
        %v5807 = vmul.f32 %v5804, %v5806
        %v5808 = vadd.f32 %v5804, %v5807
        %vm5809 = vweird.f32 %v5506
        %vm5810 = vweird.f32 %v5804
        %vm5811 = vmor %vm5809, %vm5810
        %v5812 = vsel %vm5811, %v5804, %v5808
        %v5813 = vand.u32 2147483647, %v5506
        %vm5814 = vcmp.eq.f32.partialorder %v5813, 8.507059e+37
        %v5815 = vand.u32 %v5506, 2147483648
        %v5816 = vor.u32 1.1754944e-38, %v5815
        %v5817 = vsel %vm5814, %v5816, %v5812
        %v5818 = vmul.f32 1.0, %v5817
        %v5819 = vrcp.pop %v5507
        %v5820 = vmul.f32 %v5507, %v5819
        %v5821 = vsub.f32 1.0, %v5820
        %v5822 = vmul.f32 %v5819, %v5821
        %v5823 = vadd.f32 %v5819, %v5822
        %vm5824 = vweird.f32 %v5507
        %vm5825 = vweird.f32 %v5819
        %vm5826 = vmor %vm5824, %vm5825
        %v5827 = vsel %vm5826, %v5819, %v5823
        %v5828 = vand.u32 2147483647, %v5507
        %vm5829 = vcmp.eq.f32.partialorder %v5828, 8.507059e+37
        %v5830 = vand.u32 %v5507, 2147483648
        %v5831 = vor.u32 1.1754944e-38, %v5830
        %v5832 = vsel %vm5829, %v5831, %v5827
        %v5833 = vmul.f32 1.0, %v5832
        %v5834 = vrcp.pop %v5508
        %v5835 = vmul.f32 %v5508, %v5834
        %v5836 = vsub.f32 1.0, %v5835
        %v5837 = vmul.f32 %v5834, %v5836
        %v5838 = vadd.f32 %v5834, %v5837
        %vm5839 = vweird.f32 %v5508
        %vm5840 = vweird.f32 %v5834
        %vm5841 = vmor %vm5839, %vm5840
        %v5842 = vsel %vm5841, %v5834, %v5838
        %v5843 = vand.u32 2147483647, %v5508
        %vm5844 = vcmp.eq.f32.partialorder %v5843, 8.507059e+37
        %v5845 = vand.u32 %v5508, 2147483648
        %v5846 = vor.u32 1.1754944e-38, %v5845
        %v5847 = vsel %vm5844, %v5846, %v5842
        %v5848 = vmul.f32 1.0, %v5847
        %v5849 = vrcp.pop %v5509
        %v5850 = vmul.f32 %v5509, %v5849
        %v5851 = vsub.f32 1.0, %v5850
        %v5852 = vmul.f32 %v5849, %v5851
        %v5853 = vadd.f32 %v5849, %v5852
        %vm5854 = vweird.f32 %v5509
        %vm5855 = vweird.f32 %v5849
        %vm5856 = vmor %vm5854, %vm5855
        %v5857 = vsel %vm5856, %v5849, %v5853
        %v5858 = vand.u32 2147483647, %v5509
        %vm5859 = vcmp.eq.f32.partialorder %v5858, 8.507059e+37
        %v5860 = vand.u32 %v5509, 2147483648
        %v5861 = vor.u32 1.1754944e-38, %v5860
        %v5862 = vsel %vm5859, %v5861, %v5857
        %v5863 = vmul.f32 1.0, %v5862
        %v5864 = vrcp.pop %v5510
        %v5865 = vmul.f32 %v5510, %v5864
        %v5866 = vsub.f32 1.0, %v5865
        %v5867 = vmul.f32 %v5864, %v5866
        %v5868 = vadd.f32 %v5864, %v5867
        %vm5869 = vweird.f32 %v5510
        %vm5870 = vweird.f32 %v5864
        %vm5871 = vmor %vm5869, %vm5870
        %v5872 = vsel %vm5871, %v5864, %v5868
        %v5873 = vand.u32 2147483647, %v5510
        %vm5874 = vcmp.eq.f32.partialorder %v5873, 8.507059e+37
        %v5875 = vand.u32 %v5510, 2147483648
        %v5876 = vor.u32 1.1754944e-38, %v5875
        %v5877 = vsel %vm5874, %v5876, %v5872
        %v5878 = vmul.f32 1.0, %v5877
        %v5879 = vrcp.pop %v5511
        %v5880 = vmul.f32 %v5511, %v5879
        %v5881 = vsub.f32 1.0, %v5880
        %v5882 = vmul.f32 %v5879, %v5881
        %v5883 = vadd.f32 %v5879, %v5882
        %vm5884 = vweird.f32 %v5511
        %vm5885 = vweird.f32 %v5879
        %vm5886 = vmor %vm5884, %vm5885
        %v5887 = vsel %vm5886, %v5879, %v5883
        %v5888 = vand.u32 2147483647, %v5511
        %vm5889 = vcmp.eq.f32.partialorder %v5888, 8.507059e+37
        %v5890 = vand.u32 %v5511, 2147483648
        %v5891 = vor.u32 1.1754944e-38, %v5890
        %v5892 = vsel %vm5889, %v5891, %v5887
        %v5893 = vmul.f32 1.0, %v5892
        %v5894 = vrcp.pop %v5512
        %v5895 = vmul.f32 %v5512, %v5894
        %v5896 = vsub.f32 1.0, %v5895
        %v5897 = vmul.f32 %v5894, %v5896
        %v5898 = vadd.f32 %v5894, %v5897
        %vm5899 = vweird.f32 %v5512
        %vm5900 = vweird.f32 %v5894
        %vm5901 = vmor %vm5899, %vm5900
        %v5902 = vsel %vm5901, %v5894, %v5898
        %v5903 = vand.u32 2147483647, %v5512
        %vm5904 = vcmp.eq.f32.partialorder %v5903, 8.507059e+37
        %v5905 = vand.u32 %v5512, 2147483648
        %v5906 = vor.u32 1.1754944e-38, %v5905
        %v5907 = vsel %vm5904, %v5906, %v5902
        %v5908 = vmul.f32 1.0, %v5907
        %v5909 = vrcp.pop %v5513
        %v5910 = vmul.f32 %v5513, %v5909
        %v5911 = vsub.f32 1.0, %v5910
        %v5912 = vmul.f32 %v5909, %v5911
        %v5913 = vadd.f32 %v5909, %v5912
        %vm5914 = vweird.f32 %v5513
        %vm5915 = vweird.f32 %v5909
        %vm5916 = vmor %vm5914, %vm5915
        %v5917 = vsel %vm5916, %v5909, %v5913
        %v5918 = vand.u32 2147483647, %v5513
        %vm5919 = vcmp.eq.f32.partialorder %v5918, 8.507059e+37
        %v5920 = vand.u32 %v5513, 2147483648
        %v5921 = vor.u32 1.1754944e-38, %v5920
        %v5922 = vsel %vm5919, %v5921, %v5917
        %v5923 = vmul.f32 1.0, %v5922
        %v5924 = vrcp.pop %v5514
        %v5925 = vmul.f32 %v5514, %v5924
        %v5926 = vsub.f32 1.0, %v5925
        %v5927 = vmul.f32 %v5924, %v5926
        %v5928 = vadd.f32 %v5924, %v5927
        %vm5929 = vweird.f32 %v5514
        %vm5930 = vweird.f32 %v5924
        %vm5931 = vmor %vm5929, %vm5930
        %v5932 = vsel %vm5931, %v5924, %v5928
        %v5933 = vand.u32 2147483647, %v5514
        %vm5934 = vcmp.eq.f32.partialorder %v5933, 8.507059e+37
        %v5935 = vand.u32 %v5514, 2147483648
        %v5936 = vor.u32 1.1754944e-38, %v5935
        %v5937 = vsel %vm5934, %v5936, %v5932
        %v5938 = vmul.f32 1.0, %v5937
        %v5939 = vrcp.pop %v5515
        %v5940 = vmul.f32 %v5515, %v5939
        %v5941 = vsub.f32 1.0, %v5940
        %v5942 = vmul.f32 %v5939, %v5941
        %v5943 = vadd.f32 %v5939, %v5942
        %vm5944 = vweird.f32 %v5515
        %vm5945 = vweird.f32 %v5939
        %vm5946 = vmor %vm5944, %vm5945
        %v5947 = vsel %vm5946, %v5939, %v5943
        %v5948 = vand.u32 2147483647, %v5515
        %vm5949 = vcmp.eq.f32.partialorder %v5948, 8.507059e+37
        %v5950 = vand.u32 %v5515, 2147483648
        %v5951 = vor.u32 1.1754944e-38, %v5950
        %v5952 = vsel %vm5949, %v5951, %v5947
        %v5953 = vmul.f32 1.0, %v5952
        %v5954 = vrcp.pop %v5516
        %v5955 = vmul.f32 %v5516, %v5954
        %v5956 = vsub.f32 1.0, %v5955
        %v5957 = vmul.f32 %v5954, %v5956
        %v5958 = vadd.f32 %v5954, %v5957
        %vm5959 = vweird.f32 %v5516
        %vm5960 = vweird.f32 %v5954
        %vm5961 = vmor %vm5959, %vm5960
        %v5962 = vsel %vm5961, %v5954, %v5958
        %v5963 = vand.u32 2147483647, %v5516
        %vm5964 = vcmp.eq.f32.partialorder %v5963, 8.507059e+37
        %v5965 = vand.u32 %v5516, 2147483648
        %v5966 = vor.u32 1.1754944e-38, %v5965
        %v5967 = vsel %vm5964, %v5966, %v5962
        %v5968 = vmul.f32 1.0, %v5967
        %v5969 = vrcp.pop %v5517
        %v5970 = vmul.f32 %v5517, %v5969
        %v5971 = vsub.f32 1.0, %v5970
        %v5972 = vmul.f32 %v5969, %v5971
        %v5973 = vadd.f32 %v5969, %v5972
        %vm5974 = vweird.f32 %v5517
        %vm5975 = vweird.f32 %v5969
        %vm5976 = vmor %vm5974, %vm5975
        %v5977 = vsel %vm5976, %v5969, %v5973
        %v5978 = vand.u32 2147483647, %v5517
        %vm5979 = vcmp.eq.f32.partialorder %v5978, 8.507059e+37
        %v5980 = vand.u32 %v5517, 2147483648
        %v5981 = vor.u32 1.1754944e-38, %v5980
        %v5982 = vsel %vm5979, %v5981, %v5977
        %v5983 = vmul.f32 1.0, %v5982
        %v5984 = vrcp.pop %v5518
        %v5985 = vmul.f32 %v5518, %v5984
        %v5986 = vsub.f32 1.0, %v5985
        %v5987 = vmul.f32 %v5984, %v5986
        %v5988 = vadd.f32 %v5984, %v5987
        %vm5989 = vweird.f32 %v5518
        %vm5990 = vweird.f32 %v5984
        %vm5991 = vmor %vm5989, %vm5990
        %v5992 = vsel %vm5991, %v5984, %v5988
        %v5993 = vand.u32 2147483647, %v5518
        %vm5994 = vcmp.eq.f32.partialorder %v5993, 8.507059e+37
        %v5995 = vand.u32 %v5518, 2147483648
        %v5996 = vor.u32 1.1754944e-38, %v5995
        %v5997 = vsel %vm5994, %v5996, %v5992
        %v5998 = vmul.f32 1.0, %v5997
        %v5999 = vmul.f32 %v5166, %v5533
        %v6000 = vmul.f32 %v5224, %v5548
        %v6001 = vmul.f32 %v5282, %v5563
        %v6002 = vmul.f32 %v5340, %v5578
        %v6003 = vmul.f32 %v5168, %v5593
        %v6004 = vmul.f32 %v5226, %v5608
        %v6005 = vmul.f32 %v5284, %v5623
        %v6006 = vmul.f32 %v5342, %v5638
        %v6007 = vmul.f32 %v5171, %v5653
        %v6008 = vmul.f32 %v5229, %v5668
        %v6009 = vmul.f32 %v5287, %v5683
        %v6010 = vmul.f32 %v5345, %v5698
        %v6011 = vmul.f32 %v5173, %v5713
        %v6012 = vmul.f32 %v5231, %v5728
        %v6013 = vmul.f32 %v5289, %v5743
        %v6014 = vmul.f32 %v5347, %v5758
        %v6015 = vmul.f32 %v5176, %v5773
        %v6016 = vmul.f32 %v5234, %v5788
        %v6017 = vmul.f32 %v5292, %v5803
        %v6018 = vmul.f32 %v5350, %v5818
        %v6019 = vmul.f32 %v5178, %v5833
        %v6020 = vmul.f32 %v5236, %v5848
        %v6021 = vmul.f32 %v5294, %v5863
        %v6022 = vmul.f32 %v5352, %v5878
        %v6023 = vmul.f32 %v5181, %v5893
        %v6024 = vmul.f32 %v5239, %v5908
        %v6025 = vmul.f32 %v5297, %v5923
        %v6026 = vmul.f32 %v5355, %v5938
        %v6027 = vmul.f32 %v5183, %v5953
        %v6028 = vmul.f32 %v5241, %v5968
        %v6029 = vmul.f32 %v5299, %v5983
        %v6030 = vmul.f32 %v5357, %v5998
        %v6031 = vpack.c.bf16 %v6003, %v5999
        %v6032 = vpack.c.bf16 %v6004, %v6000
        %v6033 = vpack.c.bf16 %v6005, %v6001
        %v6034 = vpack.c.bf16 %v6006, %v6002
        %v6035 = vpack.c.bf16 %v6011, %v6007
        %v6036 = vpack.c.bf16 %v6012, %v6008
        %v6037 = vpack.c.bf16 %v6013, %v6009
        %v6038 = vpack.c.bf16 %v6014, %v6010
        %v6039 = vpack.c.bf16 %v6019, %v6015
        %v6040 = vpack.c.bf16 %v6020, %v6016
        %v6041 = vpack.c.bf16 %v6021, %v6017
        %v6042 = vpack.c.bf16 %v6022, %v6018
        %v6043 = vpack.c.bf16 %v6027, %v6023
        %v6044 = vpack.c.bf16 %v6028, %v6024
        %v6045 = vpack.c.bf16 %v6029, %v6025
        %v6046 = vpack.c.bf16 %v6030, %v6026
        %v6047 = vld [vmem:[#allocation22] sm:$0xff]
        %v6048 = vld [vmem:[#allocation22 + $0x8] sm:$0xff]
        %v6049 = vld [vmem:[#allocation22 + $0x10] sm:$0xff]
        %v6050 = vld [vmem:[#allocation22 + $0x18] sm:$0xff]
        %v6051 = vld [vmem:[#allocation22 + $0x20] sm:$0xff]
        %v6052 = vld [vmem:[#allocation22 + $0x28] sm:$0xff]
        %v6053 = vld [vmem:[#allocation22 + $0x30] sm:$0xff]
        %v6054 = vld [vmem:[#allocation22 + $0x38] sm:$0xff]
        %v6055 = vld [vmem:[#allocation22 + $0x40] sm:$0xff]
        %v6056 = vld [vmem:[#allocation22 + $0x48] sm:$0xff]
        %v6057 = vld [vmem:[#allocation22 + $0x50] sm:$0xff]
        %v6058 = vld [vmem:[#allocation22 + $0x58] sm:$0xff]
        %v6059 = vld [vmem:[#allocation22 + $0x60] sm:$0xff]
        %v6060 = vld [vmem:[#allocation22 + $0x68] sm:$0xff]
        %v6061 = vld [vmem:[#allocation22 + $0x70] sm:$0xff]
        %v6062 = vld [vmem:[#allocation22 + $0x78] sm:$0xff]
        %v6063 = vld [vmem:[#allocation22 + $0x80] sm:$0xff]
        %v6064 = vld [vmem:[#allocation22 + $0x88] sm:$0xff]
        %v6065 = vld [vmem:[#allocation22 + $0x90] sm:$0xff]
        %v6066 = vld [vmem:[#allocation22 + $0x98] sm:$0xff]
        %v6067 = vld [vmem:[#allocation22 + $0xa0] sm:$0xff]
        %v6068 = vld [vmem:[#allocation22 + $0xa8] sm:$0xff]
        %v6069 = vld [vmem:[#allocation22 + $0xb0] sm:$0xff]
        %v6070 = vld [vmem:[#allocation22 + $0xb8] sm:$0xff]
        %v6071 = vld [vmem:[#allocation22 + $0xc0] sm:$0xff]
        %v6072 = vld [vmem:[#allocation22 + $0xc8] sm:$0xff]
        %v6073 = vld [vmem:[#allocation22 + $0xd0] sm:$0xff]
        %v6074 = vld [vmem:[#allocation22 + $0xd8] sm:$0xff]
        %v6075 = vld [vmem:[#allocation22 + $0xe0] sm:$0xff]
        %v6076 = vld [vmem:[#allocation22 + $0xe8] sm:$0xff]
        %v6077 = vld [vmem:[#allocation22 + $0xf0] sm:$0xff]
        %v6078 = vld [vmem:[#allocation22 + $0xf8] sm:$0xff]
        %v6079 = vld [vmem:[#allocation22 + $0x100] sm:$0xff]
        %v6080 = vld [vmem:[#allocation22 + $0x108] sm:$0xff]
        %v6081 = vld [vmem:[#allocation22 + $0x110] sm:$0xff]
        %v6082 = vld [vmem:[#allocation22 + $0x118] sm:$0xff]
        %v6083 = vld [vmem:[#allocation22 + $0x120] sm:$0xff]
        %v6084 = vld [vmem:[#allocation22 + $0x128] sm:$0xff]
        %v6085 = vld [vmem:[#allocation22 + $0x130] sm:$0xff]
        %v6086 = vld [vmem:[#allocation22 + $0x138] sm:$0xff]
        %v6087 = vld [vmem:[#allocation22 + $0x140] sm:$0xff]
        %v6088 = vld [vmem:[#allocation22 + $0x148] sm:$0xff]
        %v6089 = vld [vmem:[#allocation22 + $0x150] sm:$0xff]
        %v6090 = vld [vmem:[#allocation22 + $0x158] sm:$0xff]
        %v6091 = vld [vmem:[#allocation22 + $0x160] sm:$0xff]
        %v6092 = vld [vmem:[#allocation22 + $0x168] sm:$0xff]
        %v6093 = vld [vmem:[#allocation22 + $0x170] sm:$0xff]
        %v6094 = vld [vmem:[#allocation22 + $0x178] sm:$0xff]
        %v6095 = vld [vmem:[#allocation22 + $0x180] sm:$0xff]
        %v6096 = vld [vmem:[#allocation22 + $0x188] sm:$0xff]
        %v6097 = vld [vmem:[#allocation22 + $0x190] sm:$0xff]
        %v6098 = vld [vmem:[#allocation22 + $0x198] sm:$0xff]
        %v6099 = vld [vmem:[#allocation22 + $0x1a0] sm:$0xff]
        %v6100 = vld [vmem:[#allocation22 + $0x1a8] sm:$0xff]
        %v6101 = vld [vmem:[#allocation22 + $0x1b0] sm:$0xff]
        %v6102 = vld [vmem:[#allocation22 + $0x1b8] sm:$0xff]
        %v6103 = vld [vmem:[#allocation22 + $0x1c0] sm:$0xff]
        %v6104 = vld [vmem:[#allocation22 + $0x1c8] sm:$0xff]
        %v6105 = vld [vmem:[#allocation22 + $0x1d0] sm:$0xff]
        %v6106 = vld [vmem:[#allocation22 + $0x1d8] sm:$0xff]
        %v6107 = vld [vmem:[#allocation22 + $0x1e0] sm:$0xff]
        %v6108 = vld [vmem:[#allocation22 + $0x1e8] sm:$0xff]
        %v6109 = vld [vmem:[#allocation22 + $0x1f0] sm:$0xff]
        %v6110 = vld [vmem:[#allocation22 + $0x1f8] sm:$0xff]
        %v6111 = vld [vmem:[#allocation20 + $0x10] sm:$0xff]
        %v6112 = vld [vmem:[#allocation20 + $0x18] sm:$0xff]
        %v6113 = vld [vmem:[#allocation20 + $0x30] sm:$0xff]
        %v6114 = vld [vmem:[#allocation20 + $0x38] sm:$0xff]
        %v6115 = vld [vmem:[#allocation20 + $0x50] sm:$0xff]
        %v6116 = vld [vmem:[#allocation20 + $0x58] sm:$0xff]
        %v6117 = vld [vmem:[#allocation20 + $0x70] sm:$0xff]
        %v6118 = vld [vmem:[#allocation20 + $0x78] sm:$0xff]
        %v6119 = vld [vmem:[#allocation20 + $0x90] sm:$0xff]
        %v6120 = vld [vmem:[#allocation20 + $0x98] sm:$0xff]
        %v6121 = vld [vmem:[#allocation20 + $0xb0] sm:$0xff]
        %v6122 = vld [vmem:[#allocation20 + $0xb8] sm:$0xff]
        %v6123 = vld [vmem:[#allocation20 + $0xd0] sm:$0xff]
        %v6124 = vld [vmem:[#allocation20 + $0xd8] sm:$0xff]
        %v6125 = vld [vmem:[#allocation20 + $0xf0] sm:$0xff]
        %v6126 = vld [vmem:[#allocation20 + $0xf8] sm:$0xff]
        %v6127 = vld [vmem:[#allocation20 + $0x110] sm:$0xff]
        %v6128 = vld [vmem:[#allocation20 + $0x118] sm:$0xff]
        %v6129 = vld [vmem:[#allocation20 + $0x130] sm:$0xff]
        %v6130 = vld [vmem:[#allocation20 + $0x138] sm:$0xff]
        %v6131 = vld [vmem:[#allocation20 + $0x150] sm:$0xff]
        %v6132 = vld [vmem:[#allocation20 + $0x158] sm:$0xff]
        %v6133 = vld [vmem:[#allocation20 + $0x170] sm:$0xff]
        %v6134 = vld [vmem:[#allocation20 + $0x178] sm:$0xff]
        %v6135 = vld [vmem:[#allocation20 + $0x190] sm:$0xff]
        %v6136 = vld [vmem:[#allocation20 + $0x198] sm:$0xff]
        %v6137 = vld [vmem:[#allocation20 + $0x1b0] sm:$0xff]
        %v6138 = vld [vmem:[#allocation20 + $0x1b8] sm:$0xff]
        %v6139 = vld [vmem:[#allocation20 + $0x1d0] sm:$0xff]
        %v6140 = vld [vmem:[#allocation20 + $0x1d8] sm:$0xff]
        %v6141 = vld [vmem:[#allocation20 + $0x1f0] sm:$0xff]
        %v6142 = vld [vmem:[#allocation20 + $0x1f8] sm:$0xff]
        %v6143 = vld [vmem:[#allocation20 + $0x210] sm:$0xff]
        %v6144 = vld [vmem:[#allocation20 + $0x218] sm:$0xff]
        %v6145 = vld [vmem:[#allocation20 + $0x230] sm:$0xff]
        %v6146 = vld [vmem:[#allocation20 + $0x238] sm:$0xff]
        %v6147 = vld [vmem:[#allocation20 + $0x250] sm:$0xff]
        %v6148 = vld [vmem:[#allocation20 + $0x258] sm:$0xff]
        %v6149 = vld [vmem:[#allocation20 + $0x270] sm:$0xff]
        %v6150 = vld [vmem:[#allocation20 + $0x278] sm:$0xff]
        %v6151 = vld [vmem:[#allocation20 + $0x290] sm:$0xff]
        %v6152 = vld [vmem:[#allocation20 + $0x298] sm:$0xff]
        %v6153 = vld [vmem:[#allocation20 + $0x2b0] sm:$0xff]
        %v6154 = vld [vmem:[#allocation20 + $0x2b8] sm:$0xff]
        %v6155 = vld [vmem:[#allocation20 + $0x2d0] sm:$0xff]
        %v6156 = vld [vmem:[#allocation20 + $0x2d8] sm:$0xff]
        %v6157 = vld [vmem:[#allocation20 + $0x2f0] sm:$0xff]
        %v6158 = vld [vmem:[#allocation20 + $0x2f8] sm:$0xff]
        %v6159 = vld [vmem:[#allocation20 + $0x310] sm:$0xff]
        %v6160 = vld [vmem:[#allocation20 + $0x318] sm:$0xff]
        %v6161 = vld [vmem:[#allocation20 + $0x330] sm:$0xff]
        %v6162 = vld [vmem:[#allocation20 + $0x338] sm:$0xff]
        %v6163 = vld [vmem:[#allocation20 + $0x350] sm:$0xff]
        %v6164 = vld [vmem:[#allocation20 + $0x358] sm:$0xff]
        %v6165 = vld [vmem:[#allocation20 + $0x370] sm:$0xff]
        %v6166 = vld [vmem:[#allocation20 + $0x378] sm:$0xff]
        %v6167 = vld [vmem:[#allocation20 + $0x390] sm:$0xff]
        %v6168 = vld [vmem:[#allocation20 + $0x398] sm:$0xff]
        %v6169 = vld [vmem:[#allocation20 + $0x3b0] sm:$0xff]
        %v6170 = vld [vmem:[#allocation20 + $0x3b8] sm:$0xff]
        %v6171 = vld [vmem:[#allocation20 + $0x3d0] sm:$0xff]
        %v6172 = vld [vmem:[#allocation20 + $0x3d8] sm:$0xff]
        %v6173 = vld [vmem:[#allocation20 + $0x3f0] sm:$0xff]
        %v6174 = vld [vmem:[#allocation20 + $0x3f8] sm:$0xff]
        %v6175 = vld [vmem:[%s14 + $0x4] sm:$0xf]
        %v6177 = vperm.slane %v6175, 0
        %v6178 = vperm.slane %v6175, 1
        %v6179 = vperm.slane %v6175, 2
        %v6180 = vperm.slane %v6175, 3
        %v6249 = vunpack.c.l.b16 %v6111
        %v6250 = vunpack.c.h.b16 %v6111
        %v6251 = vunpack.c.l.b16 %v6112
        %v6252 = vunpack.c.h.b16 %v6112
        %v6253 = vunpack.c.l.b16 %v6113
        %v6254 = vunpack.c.h.b16 %v6113
        %v6255 = vunpack.c.l.b16 %v6114
        %v6256 = vunpack.c.h.b16 %v6114
        %v6257 = vunpack.c.l.b16 %v6115
        %v6258 = vunpack.c.h.b16 %v6115
        %v6259 = vunpack.c.l.b16 %v6116
        %v6260 = vunpack.c.h.b16 %v6116
        %v6261 = vunpack.c.l.b16 %v6117
        %v6262 = vunpack.c.h.b16 %v6117
        %v6263 = vunpack.c.l.b16 %v6118
        %v6264 = vunpack.c.h.b16 %v6118
        %v6265 = vunpack.c.l.b16 %v6119
        %v6266 = vunpack.c.h.b16 %v6119
        %v6267 = vunpack.c.l.b16 %v6120
        %v6268 = vunpack.c.h.b16 %v6120
        %v6269 = vunpack.c.l.b16 %v6121
        %v6270 = vunpack.c.h.b16 %v6121
        %v6271 = vunpack.c.l.b16 %v6122
        %v6272 = vunpack.c.h.b16 %v6122
        %v6273 = vunpack.c.l.b16 %v6123
        %v6274 = vunpack.c.h.b16 %v6123
        %v6275 = vunpack.c.l.b16 %v6124
        %v6276 = vunpack.c.h.b16 %v6124
        %v6277 = vunpack.c.l.b16 %v6125
        %v6278 = vunpack.c.h.b16 %v6125
        %v6279 = vunpack.c.l.b16 %v6126
        %v6280 = vunpack.c.h.b16 %v6126
        %v6281 = vunpack.c.l.b16 %v6127
        %v6282 = vunpack.c.h.b16 %v6127
        %v6283 = vunpack.c.l.b16 %v6128
        %v6284 = vunpack.c.h.b16 %v6128
        %v6285 = vunpack.c.l.b16 %v6129
        %v6286 = vunpack.c.h.b16 %v6129
        %v6287 = vunpack.c.l.b16 %v6130
        %v6288 = vunpack.c.h.b16 %v6130
        %v6289 = vunpack.c.l.b16 %v6131
        %v6290 = vunpack.c.h.b16 %v6131
        %v6291 = vunpack.c.l.b16 %v6132
        %v6292 = vunpack.c.h.b16 %v6132
        %v6293 = vunpack.c.l.b16 %v6133
        %v6294 = vunpack.c.h.b16 %v6133
        %v6295 = vunpack.c.l.b16 %v6134
        %v6296 = vunpack.c.h.b16 %v6134
        %v6297 = vunpack.c.l.b16 %v6135
        %v6298 = vunpack.c.h.b16 %v6135
        %v6299 = vunpack.c.l.b16 %v6136
        %v6300 = vunpack.c.h.b16 %v6136
        %v6301 = vunpack.c.l.b16 %v6137
        %v6302 = vunpack.c.h.b16 %v6137
        %v6303 = vunpack.c.l.b16 %v6138
        %v6304 = vunpack.c.h.b16 %v6138
        %v6305 = vunpack.c.l.b16 %v6139
        %v6306 = vunpack.c.h.b16 %v6139
        %v6307 = vunpack.c.l.b16 %v6140
        %v6308 = vunpack.c.h.b16 %v6140
        %v6309 = vunpack.c.l.b16 %v6141
        %v6310 = vunpack.c.h.b16 %v6141
        %v6311 = vunpack.c.l.b16 %v6142
        %v6312 = vunpack.c.h.b16 %v6142
        %v6313 = vunpack.c.l.b16 %v6143
        %v6314 = vunpack.c.h.b16 %v6143
        %v6315 = vunpack.c.l.b16 %v6144
        %v6316 = vunpack.c.h.b16 %v6144
        %v6317 = vunpack.c.l.b16 %v6145
        %v6318 = vunpack.c.h.b16 %v6145
        %v6319 = vunpack.c.l.b16 %v6146
        %v6320 = vunpack.c.h.b16 %v6146
        %v6321 = vunpack.c.l.b16 %v6147
        %v6322 = vunpack.c.h.b16 %v6147
        %v6323 = vunpack.c.l.b16 %v6148
        %v6324 = vunpack.c.h.b16 %v6148
        %v6325 = vunpack.c.l.b16 %v6149
        %v6326 = vunpack.c.h.b16 %v6149
        %v6327 = vunpack.c.l.b16 %v6150
        %v6328 = vunpack.c.h.b16 %v6150
        %v6329 = vunpack.c.l.b16 %v6151
        %v6330 = vunpack.c.h.b16 %v6151
        %v6331 = vunpack.c.l.b16 %v6152
        %v6332 = vunpack.c.h.b16 %v6152
        %v6333 = vunpack.c.l.b16 %v6153
        %v6334 = vunpack.c.h.b16 %v6153
        %v6335 = vunpack.c.l.b16 %v6154
        %v6336 = vunpack.c.h.b16 %v6154
        %v6337 = vunpack.c.l.b16 %v6155
        %v6338 = vunpack.c.h.b16 %v6155
        %v6339 = vunpack.c.l.b16 %v6156
        %v6340 = vunpack.c.h.b16 %v6156
        %v6341 = vunpack.c.l.b16 %v6157
        %v6342 = vunpack.c.h.b16 %v6157
        %v6343 = vunpack.c.l.b16 %v6158
        %v6344 = vunpack.c.h.b16 %v6158
        %v6345 = vunpack.c.l.b16 %v6159
        %v6346 = vunpack.c.h.b16 %v6159
        %v6347 = vunpack.c.l.b16 %v6160
        %v6348 = vunpack.c.h.b16 %v6160
        %v6349 = vunpack.c.l.b16 %v6161
        %v6350 = vunpack.c.h.b16 %v6161
        %v6351 = vunpack.c.l.b16 %v6162
        %v6352 = vunpack.c.h.b16 %v6162
        %v6353 = vunpack.c.l.b16 %v6163
        %v6354 = vunpack.c.h.b16 %v6163
        %v6355 = vunpack.c.l.b16 %v6164
        %v6356 = vunpack.c.h.b16 %v6164
        %v6357 = vunpack.c.l.b16 %v6165
        %v6358 = vunpack.c.h.b16 %v6165
        %v6359 = vunpack.c.l.b16 %v6166
        %v6360 = vunpack.c.h.b16 %v6166
        %v6361 = vunpack.c.l.b16 %v6167
        %v6362 = vunpack.c.h.b16 %v6167
        %v6363 = vunpack.c.l.b16 %v6168
        %v6364 = vunpack.c.h.b16 %v6168
        %v6365 = vunpack.c.l.b16 %v6169
        %v6366 = vunpack.c.h.b16 %v6169
        %v6367 = vunpack.c.l.b16 %v6170
        %v6368 = vunpack.c.h.b16 %v6170
        %v6369 = vunpack.c.l.b16 %v6171
        %v6370 = vunpack.c.h.b16 %v6171
        %v6371 = vunpack.c.l.b16 %v6172
        %v6372 = vunpack.c.h.b16 %v6172
        %v6373 = vunpack.c.l.b16 %v6173
        %v6374 = vunpack.c.h.b16 %v6173
        %v6375 = vunpack.c.l.b16 %v6174
        %v6376 = vunpack.c.h.b16 %v6174
        %v6377 = vpack.c.b16 %v6253, %v6249
        %v6378 = vpack.c.b16 %v6254, %v6250
        %v6379 = vpack.c.b16 %v6255, %v6251
        %v6380 = vpack.c.b16 %v6256, %v6252
        %v6381 = vpack.c.b16 %v6261, %v6257
        %v6382 = vpack.c.b16 %v6262, %v6258
        %v6383 = vpack.c.b16 %v6263, %v6259
        %v6384 = vpack.c.b16 %v6264, %v6260
        %v6385 = vpack.c.b16 %v6269, %v6265
        %v6386 = vpack.c.b16 %v6270, %v6266
        %v6387 = vpack.c.b16 %v6271, %v6267
        %v6388 = vpack.c.b16 %v6272, %v6268
        %v6389 = vpack.c.b16 %v6277, %v6273
        %v6390 = vpack.c.b16 %v6278, %v6274
        %v6391 = vpack.c.b16 %v6279, %v6275
        %v6392 = vpack.c.b16 %v6280, %v6276
        %v6393 = vpack.c.b16 %v6285, %v6281
        %v6394 = vpack.c.b16 %v6286, %v6282
        %v6395 = vpack.c.b16 %v6287, %v6283
        %v6396 = vpack.c.b16 %v6288, %v6284
        %v6397 = vpack.c.b16 %v6293, %v6289
        %v6398 = vpack.c.b16 %v6294, %v6290
        %v6399 = vpack.c.b16 %v6295, %v6291
        %v6400 = vpack.c.b16 %v6296, %v6292
        %v6401 = vpack.c.b16 %v6301, %v6297
        %v6402 = vpack.c.b16 %v6302, %v6298
        %v6403 = vpack.c.b16 %v6303, %v6299
        %v6404 = vpack.c.b16 %v6304, %v6300
        %v6405 = vpack.c.b16 %v6309, %v6305
        %v6406 = vpack.c.b16 %v6310, %v6306
        %v6407 = vpack.c.b16 %v6311, %v6307
        %v6408 = vpack.c.b16 %v6312, %v6308
        %v6409 = vpack.c.b16 %v6317, %v6313
        %v6410 = vpack.c.b16 %v6318, %v6314
        %v6411 = vpack.c.b16 %v6319, %v6315
        %v6412 = vpack.c.b16 %v6320, %v6316
        %v6413 = vpack.c.b16 %v6325, %v6321
        %v6414 = vpack.c.b16 %v6326, %v6322
        %v6415 = vpack.c.b16 %v6327, %v6323
        %v6416 = vpack.c.b16 %v6328, %v6324
        %v6417 = vpack.c.b16 %v6333, %v6329
        %v6418 = vpack.c.b16 %v6334, %v6330
        %v6419 = vpack.c.b16 %v6335, %v6331
        %v6420 = vpack.c.b16 %v6336, %v6332
        %v6421 = vpack.c.b16 %v6341, %v6337
        %v6422 = vpack.c.b16 %v6342, %v6338
        %v6423 = vpack.c.b16 %v6343, %v6339
        %v6424 = vpack.c.b16 %v6344, %v6340
        %v6425 = vpack.c.b16 %v6349, %v6345
        %v6426 = vpack.c.b16 %v6350, %v6346
        %v6427 = vpack.c.b16 %v6351, %v6347
        %v6428 = vpack.c.b16 %v6352, %v6348
        %v6429 = vpack.c.b16 %v6357, %v6353
        %v6430 = vpack.c.b16 %v6358, %v6354
        %v6431 = vpack.c.b16 %v6359, %v6355
        %v6432 = vpack.c.b16 %v6360, %v6356
        %v6433 = vpack.c.b16 %v6365, %v6361
        %v6434 = vpack.c.b16 %v6366, %v6362
        %v6435 = vpack.c.b16 %v6367, %v6363
        %v6436 = vpack.c.b16 %v6368, %v6364
        %v6437 = vpack.c.b16 %v6373, %v6369
        %v6438 = vpack.c.b16 %v6374, %v6370
        %v6439 = vpack.c.b16 %v6375, %v6371
        %v6440 = vpack.c.b16 %v6376, %v6372
        %6505 = vmatpush.bf16.msra.mxu0 %v6405
        %6506 = vmatpush.bf16.msra.mxu0 %v6401
        %6507 = vmatpush.bf16.msra.mxu0 %v6397
        %6508 = vmatpush.bf16.msra.mxu0 %v6393
        %6509 = vmatpush.bf16.msra.mxu0 %v6389
        %6510 = vmatpush.bf16.msra.mxu0 %v6385
        %6511 = vmatpush.bf16.msra.mxu0 %v6381
        %6512 = vmatpush.bf16.msra.mxu0 %v6377
        %6513 = vmatmul.bf16.gmra.mxu0 %v4725
        %v6514 = vpop.f32.mrf.mxu0
        %v6515 = vadd.f32 %v6177, %v6514
        %v6516 = vpop.f32.mrf.mxu0
        %v6517 = vadd.f32 %v6177, %v6516
        %6518 = vmatmul.bf16.gmra.mxu0 %v4727
        %v6519 = vpop.f32.mrf.mxu0
        %v6520 = vadd.f32 %v6177, %v6519
        %v6521 = vpop.f32.mrf.mxu0
        %v6522 = vadd.f32 %v6177, %v6521
        %6523 = vmatmul.bf16.gmra.mxu0 %v4729
        %v6524 = vpop.f32.mrf.mxu0
        %v6525 = vadd.f32 %v6177, %v6524
        %v6526 = vpop.f32.mrf.mxu0
        %v6527 = vadd.f32 %v6177, %v6526
        %6528 = vmatmul.bf16.gmra.mxu0 %v4731
        %v6529 = vpop.f32.mrf.mxu0
        %v6530 = vadd.f32 %v6177, %v6529
        %v6531 = vpop.f32.mrf.mxu0
        %v6532 = vadd.f32 %v6177, %v6531
        %6533 = vdwg.mxu0
        %6534 = vmatpush.bf16.msra.mxu0 %v6437
        %6535 = vmatpush.bf16.msra.mxu0 %v6433
        %6536 = vmatpush.bf16.msra.mxu0 %v6429
        %6537 = vmatpush.bf16.msra.mxu0 %v6425
        %6538 = vmatpush.bf16.msra.mxu0 %v6421
        %6539 = vmatpush.bf16.msra.mxu0 %v6417
        %6540 = vmatpush.bf16.msra.mxu0 %v6413
        %6541 = vmatpush.bf16.msra.mxu0 %v6409
        %6542 = vmatmul.bf16.gmra.mxu0 %v4726
        %v6543 = vpop.f32.mrf.mxu0
        %v6544 = vadd.f32 %v6515, %v6543
        %v6545 = vpop.f32.mrf.mxu0
        %v6546 = vadd.f32 %v6517, %v6545
        %6547 = vmatmul.bf16.gmra.mxu0 %v4728
        %v6548 = vpop.f32.mrf.mxu0
        %v6549 = vadd.f32 %v6520, %v6548
        %v6550 = vpop.f32.mrf.mxu0
        %v6551 = vadd.f32 %v6522, %v6550
        %6552 = vmatmul.bf16.gmra.mxu0 %v4730
        %v6553 = vpop.f32.mrf.mxu0
        %v6554 = vadd.f32 %v6525, %v6553
        %v6555 = vpop.f32.mrf.mxu0
        %v6556 = vadd.f32 %v6527, %v6555
        %6557 = vmatmul.bf16.gmra.mxu0 %v4732
        %v6558 = vpop.f32.mrf.mxu0
        %v6559 = vadd.f32 %v6530, %v6558
        %v6560 = vpop.f32.mrf.mxu0
        %v6561 = vadd.f32 %v6532, %v6560
        %6562 = vdwg.mxu0
        %6563 = vmatpush.bf16.msra.mxu0 %v6406
        %6564 = vmatpush.bf16.msra.mxu0 %v6402
        %6565 = vmatpush.bf16.msra.mxu0 %v6398
        %6566 = vmatpush.bf16.msra.mxu0 %v6394
        %6567 = vmatpush.bf16.msra.mxu0 %v6390
        %6568 = vmatpush.bf16.msra.mxu0 %v6386
        %6569 = vmatpush.bf16.msra.mxu0 %v6382
        %6570 = vmatpush.bf16.msra.mxu0 %v6378
        %6571 = vmatmul.bf16.gmra.mxu0 %v4725
        %v6572 = vpop.f32.mrf.mxu0
        %v6573 = vadd.f32 %v6178, %v6572
        %v6574 = vpop.f32.mrf.mxu0
        %v6575 = vadd.f32 %v6178, %v6574
        %6576 = vmatmul.bf16.gmra.mxu0 %v4727
        %v6577 = vpop.f32.mrf.mxu0
        %v6578 = vadd.f32 %v6178, %v6577
        %v6579 = vpop.f32.mrf.mxu0
        %v6580 = vadd.f32 %v6178, %v6579
        %6581 = vmatmul.bf16.gmra.mxu0 %v4729
        %v6582 = vpop.f32.mrf.mxu0
        %v6583 = vadd.f32 %v6178, %v6582
        %v6584 = vpop.f32.mrf.mxu0
        %v6585 = vadd.f32 %v6178, %v6584
        %6586 = vmatmul.bf16.gmra.mxu0 %v4731
        %v6587 = vpop.f32.mrf.mxu0
        %v6588 = vadd.f32 %v6178, %v6587
        %v6589 = vpop.f32.mrf.mxu0
        %v6590 = vadd.f32 %v6178, %v6589
        %6591 = vdwg.mxu0
        %6592 = vmatpush.bf16.msra.mxu0 %v6438
        %6593 = vmatpush.bf16.msra.mxu0 %v6434
        %6594 = vmatpush.bf16.msra.mxu0 %v6430
        %6595 = vmatpush.bf16.msra.mxu0 %v6426
        %6596 = vmatpush.bf16.msra.mxu0 %v6422
        %6597 = vmatpush.bf16.msra.mxu0 %v6418
        %6598 = vmatpush.bf16.msra.mxu0 %v6414
        %6599 = vmatpush.bf16.msra.mxu0 %v6410
        %6600 = vmatmul.bf16.gmra.mxu0 %v4726
        %v6601 = vpop.f32.mrf.mxu0
        %v6602 = vadd.f32 %v6573, %v6601
        %v6603 = vpop.f32.mrf.mxu0
        %v6604 = vadd.f32 %v6575, %v6603
        %6605 = vmatmul.bf16.gmra.mxu0 %v4728
        %v6606 = vpop.f32.mrf.mxu0
        %v6607 = vadd.f32 %v6578, %v6606
        %v6608 = vpop.f32.mrf.mxu0
        %v6609 = vadd.f32 %v6580, %v6608
        %6610 = vmatmul.bf16.gmra.mxu0 %v4730
        %v6611 = vpop.f32.mrf.mxu0
        %v6612 = vadd.f32 %v6583, %v6611
        %v6613 = vpop.f32.mrf.mxu0
        %v6614 = vadd.f32 %v6585, %v6613
        %6615 = vmatmul.bf16.gmra.mxu0 %v4732
        %v6616 = vpop.f32.mrf.mxu0
        %v6617 = vadd.f32 %v6588, %v6616
        %v6618 = vpop.f32.mrf.mxu0
        %v6619 = vadd.f32 %v6590, %v6618
        %6620 = vdwg.mxu0
        %6621 = vmatpush.bf16.msra.mxu0 %v6407
        %6622 = vmatpush.bf16.msra.mxu0 %v6403
        %6623 = vmatpush.bf16.msra.mxu0 %v6399
        %6624 = vmatpush.bf16.msra.mxu0 %v6395
        %6625 = vmatpush.bf16.msra.mxu0 %v6391
        %6626 = vmatpush.bf16.msra.mxu0 %v6387
        %6627 = vmatpush.bf16.msra.mxu0 %v6383
        %6628 = vmatpush.bf16.msra.mxu0 %v6379
        %6629 = vmatmul.bf16.gmra.mxu0 %v4725
        %v6630 = vpop.f32.mrf.mxu0
        %v6631 = vadd.f32 %v6179, %v6630
        %v6632 = vpop.f32.mrf.mxu0
        %v6633 = vadd.f32 %v6179, %v6632
        %6634 = vmatmul.bf16.gmra.mxu0 %v4727
        %v6635 = vpop.f32.mrf.mxu0
        %v6636 = vadd.f32 %v6179, %v6635
        %v6637 = vpop.f32.mrf.mxu0
        %v6638 = vadd.f32 %v6179, %v6637
        %6639 = vmatmul.bf16.gmra.mxu0 %v4729
        %v6640 = vpop.f32.mrf.mxu0
        %v6641 = vadd.f32 %v6179, %v6640
        %v6642 = vpop.f32.mrf.mxu0
        %v6643 = vadd.f32 %v6179, %v6642
        %6644 = vmatmul.bf16.gmra.mxu0 %v4731
        %v6645 = vpop.f32.mrf.mxu0
        %v6646 = vadd.f32 %v6179, %v6645
        %v6647 = vpop.f32.mrf.mxu0
        %v6648 = vadd.f32 %v6179, %v6647
        %6649 = vdwg.mxu0
        %6650 = vmatpush.bf16.msra.mxu0 %v6439
        %6651 = vmatpush.bf16.msra.mxu0 %v6435
        %6652 = vmatpush.bf16.msra.mxu0 %v6431
        %6653 = vmatpush.bf16.msra.mxu0 %v6427
        %6654 = vmatpush.bf16.msra.mxu0 %v6423
        %6655 = vmatpush.bf16.msra.mxu0 %v6419
        %6656 = vmatpush.bf16.msra.mxu0 %v6415
        %6657 = vmatpush.bf16.msra.mxu0 %v6411
        %6658 = vmatmul.bf16.gmra.mxu0 %v4726
        %v6659 = vpop.f32.mrf.mxu0
        %v6660 = vadd.f32 %v6631, %v6659
        %v6661 = vpop.f32.mrf.mxu0
        %v6662 = vadd.f32 %v6633, %v6661
        %6663 = vmatmul.bf16.gmra.mxu0 %v4728
        %v6664 = vpop.f32.mrf.mxu0
        %v6665 = vadd.f32 %v6636, %v6664
        %v6666 = vpop.f32.mrf.mxu0
        %v6667 = vadd.f32 %v6638, %v6666
        %6668 = vmatmul.bf16.gmra.mxu0 %v4730
        %v6669 = vpop.f32.mrf.mxu0
        %v6670 = vadd.f32 %v6641, %v6669
        %v6671 = vpop.f32.mrf.mxu0
        %v6672 = vadd.f32 %v6643, %v6671
        %6673 = vmatmul.bf16.gmra.mxu0 %v4732
        %v6674 = vpop.f32.mrf.mxu0
        %v6675 = vadd.f32 %v6646, %v6674
        %v6676 = vpop.f32.mrf.mxu0
        %v6677 = vadd.f32 %v6648, %v6676
        %6678 = vdwg.mxu0
        %6679 = vmatpush.bf16.msra.mxu0 %v6408
        %6680 = vmatpush.bf16.msra.mxu0 %v6404
        %6681 = vmatpush.bf16.msra.mxu0 %v6400
        %6682 = vmatpush.bf16.msra.mxu0 %v6396
        %6683 = vmatpush.bf16.msra.mxu0 %v6392
        %6684 = vmatpush.bf16.msra.mxu0 %v6388
        %6685 = vmatpush.bf16.msra.mxu0 %v6384
        %6686 = vmatpush.bf16.msra.mxu0 %v6380
        %6687 = vmatmul.bf16.gmra.mxu0 %v4725
        %v6688 = vpop.f32.mrf.mxu0
        %v6689 = vadd.f32 %v6180, %v6688
        %v6690 = vpop.f32.mrf.mxu0
        %v6691 = vadd.f32 %v6180, %v6690
        %6692 = vmatmul.bf16.gmra.mxu0 %v4727
        %v6693 = vpop.f32.mrf.mxu0
        %v6694 = vadd.f32 %v6180, %v6693
        %v6695 = vpop.f32.mrf.mxu0
        %v6696 = vadd.f32 %v6180, %v6695
        %6697 = vmatmul.bf16.gmra.mxu0 %v4729
        %v6698 = vpop.f32.mrf.mxu0
        %v6699 = vadd.f32 %v6180, %v6698
        %v6700 = vpop.f32.mrf.mxu0
        %v6701 = vadd.f32 %v6180, %v6700
        %6702 = vmatmul.bf16.gmra.mxu0 %v4731
        %v6703 = vpop.f32.mrf.mxu0
        %v6704 = vadd.f32 %v6180, %v6703
        %v6705 = vpop.f32.mrf.mxu0
        %v6706 = vadd.f32 %v6180, %v6705
        %6707 = vdwg.mxu0
        %6708 = vmatpush.bf16.msra.mxu0 %v6440
        %6709 = vmatpush.bf16.msra.mxu0 %v6436
        %6710 = vmatpush.bf16.msra.mxu0 %v6432
        %6711 = vmatpush.bf16.msra.mxu0 %v6428
        %6712 = vmatpush.bf16.msra.mxu0 %v6424
        %6713 = vmatpush.bf16.msra.mxu0 %v6420
        %6714 = vmatpush.bf16.msra.mxu0 %v6416
        %6715 = vmatpush.bf16.msra.mxu0 %v6412
        %6716 = vmatmul.bf16.gmra.mxu0 %v4726
        %v6717 = vpop.f32.mrf.mxu0
        %v6718 = vadd.f32 %v6689, %v6717
        %v6719 = vpop.f32.mrf.mxu0
        %v6720 = vadd.f32 %v6691, %v6719
        %6721 = vmatmul.bf16.gmra.mxu0 %v4728
        %v6722 = vpop.f32.mrf.mxu0
        %v6723 = vadd.f32 %v6694, %v6722
        %v6724 = vpop.f32.mrf.mxu0
        %v6725 = vadd.f32 %v6696, %v6724
        %6726 = vmatmul.bf16.gmra.mxu0 %v4730
        %v6727 = vpop.f32.mrf.mxu0
        %v6728 = vadd.f32 %v6699, %v6727
        %v6729 = vpop.f32.mrf.mxu0
        %v6730 = vadd.f32 %v6701, %v6729
        %6731 = vmatmul.bf16.gmra.mxu0 %v4732
        %v6732 = vpop.f32.mrf.mxu0
        %v6733 = vadd.f32 %v6704, %v6732
        %v6734 = vpop.f32.mrf.mxu0
        %v6735 = vadd.f32 %v6706, %v6734
        %6736 = vdwg.mxu0
        %v6737 = vmul.f32 %v6544, 1.702
        %v6738 = vmul.f32 %v6602, 1.702
        %v6739 = vmul.f32 %v6660, 1.702
        %v6740 = vmul.f32 %v6718, 1.702
        %v6741 = vmul.f32 %v6546, 1.702
        %v6742 = vmul.f32 %v6604, 1.702
        %v6743 = vmul.f32 %v6662, 1.702
        %v6744 = vmul.f32 %v6720, 1.702
        %v6745 = vmul.f32 %v6549, 1.702
        %v6746 = vmul.f32 %v6607, 1.702
        %v6747 = vmul.f32 %v6665, 1.702
        %v6748 = vmul.f32 %v6723, 1.702
        %v6749 = vmul.f32 %v6551, 1.702
        %v6750 = vmul.f32 %v6609, 1.702
        %v6751 = vmul.f32 %v6667, 1.702
        %v6752 = vmul.f32 %v6725, 1.702
        %v6753 = vmul.f32 %v6554, 1.702
        %v6754 = vmul.f32 %v6612, 1.702
        %v6755 = vmul.f32 %v6670, 1.702
        %v6756 = vmul.f32 %v6728, 1.702
        %v6757 = vmul.f32 %v6556, 1.702
        %v6758 = vmul.f32 %v6614, 1.702
        %v6759 = vmul.f32 %v6672, 1.702
        %v6760 = vmul.f32 %v6730, 1.702
        %v6761 = vmul.f32 %v6559, 1.702
        %v6762 = vmul.f32 %v6617, 1.702
        %v6763 = vmul.f32 %v6675, 1.702
        %v6764 = vmul.f32 %v6733, 1.702
        %v6765 = vmul.f32 %v6561, 1.702
        %v6766 = vmul.f32 %v6619, 1.702
        %v6767 = vmul.f32 %v6677, 1.702
        %v6768 = vmul.f32 %v6735, 1.702
        %v6769 = vxor.u32 %v6737, 2147483648
        %v6770 = vxor.u32 %v6738, 2147483648
        %v6771 = vxor.u32 %v6739, 2147483648
        %v6772 = vxor.u32 %v6740, 2147483648
        %v6773 = vxor.u32 %v6741, 2147483648
        %v6774 = vxor.u32 %v6742, 2147483648
        %v6775 = vxor.u32 %v6743, 2147483648
        %v6776 = vxor.u32 %v6744, 2147483648
        %v6777 = vxor.u32 %v6745, 2147483648
        %v6778 = vxor.u32 %v6746, 2147483648
        %v6779 = vxor.u32 %v6747, 2147483648
        %v6780 = vxor.u32 %v6748, 2147483648
        %v6781 = vxor.u32 %v6749, 2147483648
        %v6782 = vxor.u32 %v6750, 2147483648
        %v6783 = vxor.u32 %v6751, 2147483648
        %v6784 = vxor.u32 %v6752, 2147483648
        %v6785 = vxor.u32 %v6753, 2147483648
        %v6786 = vxor.u32 %v6754, 2147483648
        %v6787 = vxor.u32 %v6755, 2147483648
        %v6788 = vxor.u32 %v6756, 2147483648
        %v6789 = vxor.u32 %v6757, 2147483648
        %v6790 = vxor.u32 %v6758, 2147483648
        %v6791 = vxor.u32 %v6759, 2147483648
        %v6792 = vxor.u32 %v6760, 2147483648
        %v6793 = vxor.u32 %v6761, 2147483648
        %v6794 = vxor.u32 %v6762, 2147483648
        %v6795 = vxor.u32 %v6763, 2147483648
        %v6796 = vxor.u32 %v6764, 2147483648
        %v6797 = vxor.u32 %v6765, 2147483648
        %v6798 = vxor.u32 %v6766, 2147483648
        %v6799 = vxor.u32 %v6767, 2147483648
        %v6800 = vxor.u32 %v6768, 2147483648
        %v6801 = vmul.f32 %v6769, 1.442695
        %v6802 = vpow.pop %v6801
        %v6803 = vmul.f32 %v6770, 1.442695
        %v6804 = vpow.pop %v6803
        %v6805 = vmul.f32 %v6771, 1.442695
        %v6806 = vpow.pop %v6805
        %v6807 = vmul.f32 %v6772, 1.442695
        %v6808 = vpow.pop %v6807
        %v6809 = vmul.f32 %v6773, 1.442695
        %v6810 = vpow.pop %v6809
        %v6811 = vmul.f32 %v6774, 1.442695
        %v6812 = vpow.pop %v6811
        %v6813 = vmul.f32 %v6775, 1.442695
        %v6814 = vpow.pop %v6813
        %v6815 = vmul.f32 %v6776, 1.442695
        %v6816 = vpow.pop %v6815
        %v6817 = vmul.f32 %v6777, 1.442695
        %v6818 = vpow.pop %v6817
        %v6819 = vmul.f32 %v6778, 1.442695
        %v6820 = vpow.pop %v6819
        %v6821 = vmul.f32 %v6779, 1.442695
        %v6822 = vpow.pop %v6821
        %v6823 = vmul.f32 %v6780, 1.442695
        %v6824 = vpow.pop %v6823
        %v6825 = vmul.f32 %v6781, 1.442695
        %v6826 = vpow.pop %v6825
        %v6827 = vmul.f32 %v6782, 1.442695
        %v6828 = vpow.pop %v6827
        %v6829 = vmul.f32 %v6783, 1.442695
        %v6830 = vpow.pop %v6829
        %v6831 = vmul.f32 %v6784, 1.442695
        %v6832 = vpow.pop %v6831
        %v6833 = vmul.f32 %v6785, 1.442695
        %v6834 = vpow.pop %v6833
        %v6835 = vmul.f32 %v6786, 1.442695
        %v6836 = vpow.pop %v6835
        %v6837 = vmul.f32 %v6787, 1.442695
        %v6838 = vpow.pop %v6837
        %v6839 = vmul.f32 %v6788, 1.442695
        %v6840 = vpow.pop %v6839
        %v6841 = vmul.f32 %v6789, 1.442695
        %v6842 = vpow.pop %v6841
        %v6843 = vmul.f32 %v6790, 1.442695
        %v6844 = vpow.pop %v6843
        %v6845 = vmul.f32 %v6791, 1.442695
        %v6846 = vpow.pop %v6845
        %v6847 = vmul.f32 %v6792, 1.442695
        %v6848 = vpow.pop %v6847
        %v6849 = vmul.f32 %v6793, 1.442695
        %v6850 = vpow.pop %v6849
        %v6851 = vmul.f32 %v6794, 1.442695
        %v6852 = vpow.pop %v6851
        %v6853 = vmul.f32 %v6795, 1.442695
        %v6854 = vpow.pop %v6853
        %v6855 = vmul.f32 %v6796, 1.442695
        %v6856 = vpow.pop %v6855
        %v6857 = vmul.f32 %v6797, 1.442695
        %v6858 = vpow.pop %v6857
        %v6859 = vmul.f32 %v6798, 1.442695
        %v6860 = vpow.pop %v6859
        %v6861 = vmul.f32 %v6799, 1.442695
        %v6862 = vpow.pop %v6861
        %v6863 = vmul.f32 %v6800, 1.442695
        %v6864 = vpow.pop %v6863
        %v6865 = vadd.f32 %v6802, 1.0
        %v6866 = vadd.f32 %v6804, 1.0
        %v6867 = vadd.f32 %v6806, 1.0
        %v6868 = vadd.f32 %v6808, 1.0
        %v6869 = vadd.f32 %v6810, 1.0
        %v6870 = vadd.f32 %v6812, 1.0
        %v6871 = vadd.f32 %v6814, 1.0
        %v6872 = vadd.f32 %v6816, 1.0
        %v6873 = vadd.f32 %v6818, 1.0
        %v6874 = vadd.f32 %v6820, 1.0
        %v6875 = vadd.f32 %v6822, 1.0
        %v6876 = vadd.f32 %v6824, 1.0
        %v6877 = vadd.f32 %v6826, 1.0
        %v6878 = vadd.f32 %v6828, 1.0
        %v6879 = vadd.f32 %v6830, 1.0
        %v6880 = vadd.f32 %v6832, 1.0
        %v6881 = vadd.f32 %v6834, 1.0
        %v6882 = vadd.f32 %v6836, 1.0
        %v6883 = vadd.f32 %v6838, 1.0
        %v6884 = vadd.f32 %v6840, 1.0
        %v6885 = vadd.f32 %v6842, 1.0
        %v6886 = vadd.f32 %v6844, 1.0
        %v6887 = vadd.f32 %v6846, 1.0
        %v6888 = vadd.f32 %v6848, 1.0
        %v6889 = vadd.f32 %v6850, 1.0
        %v6890 = vadd.f32 %v6852, 1.0
        %v6891 = vadd.f32 %v6854, 1.0
        %v6892 = vadd.f32 %v6856, 1.0
        %v6893 = vadd.f32 %v6858, 1.0
        %v6894 = vadd.f32 %v6860, 1.0
        %v6895 = vadd.f32 %v6862, 1.0
        %v6896 = vadd.f32 %v6864, 1.0
        %v6897 = vrcp.pop %v6865
        %v6898 = vmul.f32 %v6865, %v6897
        %v6899 = vsub.f32 1.0, %v6898
        %v6900 = vmul.f32 %v6897, %v6899
        %v6901 = vadd.f32 %v6897, %v6900
        %vm6902 = vweird.f32 %v6865
        %vm6903 = vweird.f32 %v6897
        %vm6904 = vmor %vm6902, %vm6903
        %v6905 = vsel %vm6904, %v6897, %v6901
        %v6906 = vand.u32 2147483647, %v6865
        %vm6907 = vcmp.eq.f32.partialorder %v6906, 8.507059e+37
        %v6908 = vand.u32 %v6865, 2147483648
        %v6909 = vor.u32 1.1754944e-38, %v6908
        %v6910 = vsel %vm6907, %v6909, %v6905
        %v6911 = vmul.f32 1.0, %v6910
        %v6912 = vrcp.pop %v6866
        %v6913 = vmul.f32 %v6866, %v6912
        %v6914 = vsub.f32 1.0, %v6913
        %v6915 = vmul.f32 %v6912, %v6914
        %v6916 = vadd.f32 %v6912, %v6915
        %vm6917 = vweird.f32 %v6866
        %vm6918 = vweird.f32 %v6912
        %vm6919 = vmor %vm6917, %vm6918
        %v6920 = vsel %vm6919, %v6912, %v6916
        %v6921 = vand.u32 2147483647, %v6866
        %vm6922 = vcmp.eq.f32.partialorder %v6921, 8.507059e+37
        %v6923 = vand.u32 %v6866, 2147483648
        %v6924 = vor.u32 1.1754944e-38, %v6923
        %v6925 = vsel %vm6922, %v6924, %v6920
        %v6926 = vmul.f32 1.0, %v6925
        %v6927 = vrcp.pop %v6867
        %v6928 = vmul.f32 %v6867, %v6927
        %v6929 = vsub.f32 1.0, %v6928
        %v6930 = vmul.f32 %v6927, %v6929
        %v6931 = vadd.f32 %v6927, %v6930
        %vm6932 = vweird.f32 %v6867
        %vm6933 = vweird.f32 %v6927
        %vm6934 = vmor %vm6932, %vm6933
        %v6935 = vsel %vm6934, %v6927, %v6931
        %v6936 = vand.u32 2147483647, %v6867
        %vm6937 = vcmp.eq.f32.partialorder %v6936, 8.507059e+37
        %v6938 = vand.u32 %v6867, 2147483648
        %v6939 = vor.u32 1.1754944e-38, %v6938
        %v6940 = vsel %vm6937, %v6939, %v6935
        %v6941 = vmul.f32 1.0, %v6940
        %v6942 = vrcp.pop %v6868
        %v6943 = vmul.f32 %v6868, %v6942
        %v6944 = vsub.f32 1.0, %v6943
        %v6945 = vmul.f32 %v6942, %v6944
        %v6946 = vadd.f32 %v6942, %v6945
        %vm6947 = vweird.f32 %v6868
        %vm6948 = vweird.f32 %v6942
        %vm6949 = vmor %vm6947, %vm6948
        %v6950 = vsel %vm6949, %v6942, %v6946
        %v6951 = vand.u32 2147483647, %v6868
        %vm6952 = vcmp.eq.f32.partialorder %v6951, 8.507059e+37
        %v6953 = vand.u32 %v6868, 2147483648
        %v6954 = vor.u32 1.1754944e-38, %v6953
        %v6955 = vsel %vm6952, %v6954, %v6950
        %v6956 = vmul.f32 1.0, %v6955
        %v6957 = vrcp.pop %v6869
        %v6958 = vmul.f32 %v6869, %v6957
        %v6959 = vsub.f32 1.0, %v6958
        %v6960 = vmul.f32 %v6957, %v6959
        %v6961 = vadd.f32 %v6957, %v6960
        %vm6962 = vweird.f32 %v6869
        %vm6963 = vweird.f32 %v6957
        %vm6964 = vmor %vm6962, %vm6963
        %v6965 = vsel %vm6964, %v6957, %v6961
        %v6966 = vand.u32 2147483647, %v6869
        %vm6967 = vcmp.eq.f32.partialorder %v6966, 8.507059e+37
        %v6968 = vand.u32 %v6869, 2147483648
        %v6969 = vor.u32 1.1754944e-38, %v6968
        %v6970 = vsel %vm6967, %v6969, %v6965
        %v6971 = vmul.f32 1.0, %v6970
        %v6972 = vrcp.pop %v6870
        %v6973 = vmul.f32 %v6870, %v6972
        %v6974 = vsub.f32 1.0, %v6973
        %v6975 = vmul.f32 %v6972, %v6974
        %v6976 = vadd.f32 %v6972, %v6975
        %vm6977 = vweird.f32 %v6870
        %vm6978 = vweird.f32 %v6972
        %vm6979 = vmor %vm6977, %vm6978
        %v6980 = vsel %vm6979, %v6972, %v6976
        %v6981 = vand.u32 2147483647, %v6870
        %vm6982 = vcmp.eq.f32.partialorder %v6981, 8.507059e+37
        %v6983 = vand.u32 %v6870, 2147483648
        %v6984 = vor.u32 1.1754944e-38, %v6983
        %v6985 = vsel %vm6982, %v6984, %v6980
        %v6986 = vmul.f32 1.0, %v6985
        %v6987 = vrcp.pop %v6871
        %v6988 = vmul.f32 %v6871, %v6987
        %v6989 = vsub.f32 1.0, %v6988
        %v6990 = vmul.f32 %v6987, %v6989
        %v6991 = vadd.f32 %v6987, %v6990
        %vm6992 = vweird.f32 %v6871
        %vm6993 = vweird.f32 %v6987
        %vm6994 = vmor %vm6992, %vm6993
        %v6995 = vsel %vm6994, %v6987, %v6991
        %v6996 = vand.u32 2147483647, %v6871
        %vm6997 = vcmp.eq.f32.partialorder %v6996, 8.507059e+37
        %v6998 = vand.u32 %v6871, 2147483648
        %v6999 = vor.u32 1.1754944e-38, %v6998
        %v7000 = vsel %vm6997, %v6999, %v6995
        %v7001 = vmul.f32 1.0, %v7000
        %v7002 = vrcp.pop %v6872
        %v7003 = vmul.f32 %v6872, %v7002
        %v7004 = vsub.f32 1.0, %v7003
        %v7005 = vmul.f32 %v7002, %v7004
        %v7006 = vadd.f32 %v7002, %v7005
        %vm7007 = vweird.f32 %v6872
        %vm7008 = vweird.f32 %v7002
        %vm7009 = vmor %vm7007, %vm7008
        %v7010 = vsel %vm7009, %v7002, %v7006
        %v7011 = vand.u32 2147483647, %v6872
        %vm7012 = vcmp.eq.f32.partialorder %v7011, 8.507059e+37
        %v7013 = vand.u32 %v6872, 2147483648
        %v7014 = vor.u32 1.1754944e-38, %v7013
        %v7015 = vsel %vm7012, %v7014, %v7010
        %v7016 = vmul.f32 1.0, %v7015
        %v7017 = vrcp.pop %v6873
        %v7018 = vmul.f32 %v6873, %v7017
        %v7019 = vsub.f32 1.0, %v7018
        %v7020 = vmul.f32 %v7017, %v7019
        %v7021 = vadd.f32 %v7017, %v7020
        %vm7022 = vweird.f32 %v6873
        %vm7023 = vweird.f32 %v7017
        %vm7024 = vmor %vm7022, %vm7023
        %v7025 = vsel %vm7024, %v7017, %v7021
        %v7026 = vand.u32 2147483647, %v6873
        %vm7027 = vcmp.eq.f32.partialorder %v7026, 8.507059e+37
        %v7028 = vand.u32 %v6873, 2147483648
        %v7029 = vor.u32 1.1754944e-38, %v7028
        %v7030 = vsel %vm7027, %v7029, %v7025
        %v7031 = vmul.f32 1.0, %v7030
        %v7032 = vrcp.pop %v6874
        %v7033 = vmul.f32 %v6874, %v7032
        %v7034 = vsub.f32 1.0, %v7033
        %v7035 = vmul.f32 %v7032, %v7034
        %v7036 = vadd.f32 %v7032, %v7035
        %vm7037 = vweird.f32 %v6874
        %vm7038 = vweird.f32 %v7032
        %vm7039 = vmor %vm7037, %vm7038
        %v7040 = vsel %vm7039, %v7032, %v7036
        %v7041 = vand.u32 2147483647, %v6874
        %vm7042 = vcmp.eq.f32.partialorder %v7041, 8.507059e+37
        %v7043 = vand.u32 %v6874, 2147483648
        %v7044 = vor.u32 1.1754944e-38, %v7043
        %v7045 = vsel %vm7042, %v7044, %v7040
        %v7046 = vmul.f32 1.0, %v7045
        %v7047 = vrcp.pop %v6875
        %v7048 = vmul.f32 %v6875, %v7047
        %v7049 = vsub.f32 1.0, %v7048
        %v7050 = vmul.f32 %v7047, %v7049
        %v7051 = vadd.f32 %v7047, %v7050
        %vm7052 = vweird.f32 %v6875
        %vm7053 = vweird.f32 %v7047
        %vm7054 = vmor %vm7052, %vm7053
        %v7055 = vsel %vm7054, %v7047, %v7051
        %v7056 = vand.u32 2147483647, %v6875
        %vm7057 = vcmp.eq.f32.partialorder %v7056, 8.507059e+37
        %v7058 = vand.u32 %v6875, 2147483648
        %v7059 = vor.u32 1.1754944e-38, %v7058
        %v7060 = vsel %vm7057, %v7059, %v7055
        %v7061 = vmul.f32 1.0, %v7060
        %v7062 = vrcp.pop %v6876
        %v7063 = vmul.f32 %v6876, %v7062
        %v7064 = vsub.f32 1.0, %v7063
        %v7065 = vmul.f32 %v7062, %v7064
        %v7066 = vadd.f32 %v7062, %v7065
        %vm7067 = vweird.f32 %v6876
        %vm7068 = vweird.f32 %v7062
        %vm7069 = vmor %vm7067, %vm7068
        %v7070 = vsel %vm7069, %v7062, %v7066
        %v7071 = vand.u32 2147483647, %v6876
        %vm7072 = vcmp.eq.f32.partialorder %v7071, 8.507059e+37
        %v7073 = vand.u32 %v6876, 2147483648
        %v7074 = vor.u32 1.1754944e-38, %v7073
        %v7075 = vsel %vm7072, %v7074, %v7070
        %v7076 = vmul.f32 1.0, %v7075
        %v7077 = vrcp.pop %v6877
        %v7078 = vmul.f32 %v6877, %v7077
        %v7079 = vsub.f32 1.0, %v7078
        %v7080 = vmul.f32 %v7077, %v7079
        %v7081 = vadd.f32 %v7077, %v7080
        %vm7082 = vweird.f32 %v6877
        %vm7083 = vweird.f32 %v7077
        %vm7084 = vmor %vm7082, %vm7083
        %v7085 = vsel %vm7084, %v7077, %v7081
        %v7086 = vand.u32 2147483647, %v6877
        %vm7087 = vcmp.eq.f32.partialorder %v7086, 8.507059e+37
        %v7088 = vand.u32 %v6877, 2147483648
        %v7089 = vor.u32 1.1754944e-38, %v7088
        %v7090 = vsel %vm7087, %v7089, %v7085
        %v7091 = vmul.f32 1.0, %v7090
        %v7092 = vrcp.pop %v6878
        %v7093 = vmul.f32 %v6878, %v7092
        %v7094 = vsub.f32 1.0, %v7093
        %v7095 = vmul.f32 %v7092, %v7094
        %v7096 = vadd.f32 %v7092, %v7095
        %vm7097 = vweird.f32 %v6878
        %vm7098 = vweird.f32 %v7092
        %vm7099 = vmor %vm7097, %vm7098
        %v7100 = vsel %vm7099, %v7092, %v7096
        %v7101 = vand.u32 2147483647, %v6878
        %vm7102 = vcmp.eq.f32.partialorder %v7101, 8.507059e+37
        %v7103 = vand.u32 %v6878, 2147483648
        %v7104 = vor.u32 1.1754944e-38, %v7103
        %v7105 = vsel %vm7102, %v7104, %v7100
        %v7106 = vmul.f32 1.0, %v7105
        %v7107 = vrcp.pop %v6879
        %v7108 = vmul.f32 %v6879, %v7107
        %v7109 = vsub.f32 1.0, %v7108
        %v7110 = vmul.f32 %v7107, %v7109
        %v7111 = vadd.f32 %v7107, %v7110
        %vm7112 = vweird.f32 %v6879
        %vm7113 = vweird.f32 %v7107
        %vm7114 = vmor %vm7112, %vm7113
        %v7115 = vsel %vm7114, %v7107, %v7111
        %v7116 = vand.u32 2147483647, %v6879
        %vm7117 = vcmp.eq.f32.partialorder %v7116, 8.507059e+37
        %v7118 = vand.u32 %v6879, 2147483648
        %v7119 = vor.u32 1.1754944e-38, %v7118
        %v7120 = vsel %vm7117, %v7119, %v7115
        %v7121 = vmul.f32 1.0, %v7120
        %v7122 = vrcp.pop %v6880
        %v7123 = vmul.f32 %v6880, %v7122
        %v7124 = vsub.f32 1.0, %v7123
        %v7125 = vmul.f32 %v7122, %v7124
        %v7126 = vadd.f32 %v7122, %v7125
        %vm7127 = vweird.f32 %v6880
        %vm7128 = vweird.f32 %v7122
        %vm7129 = vmor %vm7127, %vm7128
        %v7130 = vsel %vm7129, %v7122, %v7126
        %v7131 = vand.u32 2147483647, %v6880
        %vm7132 = vcmp.eq.f32.partialorder %v7131, 8.507059e+37
        %v7133 = vand.u32 %v6880, 2147483648
        %v7134 = vor.u32 1.1754944e-38, %v7133
        %v7135 = vsel %vm7132, %v7134, %v7130
        %v7136 = vmul.f32 1.0, %v7135
        %v7137 = vrcp.pop %v6881
        %v7138 = vmul.f32 %v6881, %v7137
        %v7139 = vsub.f32 1.0, %v7138
        %v7140 = vmul.f32 %v7137, %v7139
        %v7141 = vadd.f32 %v7137, %v7140
        %vm7142 = vweird.f32 %v6881
        %vm7143 = vweird.f32 %v7137
        %vm7144 = vmor %vm7142, %vm7143
        %v7145 = vsel %vm7144, %v7137, %v7141
        %v7146 = vand.u32 2147483647, %v6881
        %vm7147 = vcmp.eq.f32.partialorder %v7146, 8.507059e+37
        %v7148 = vand.u32 %v6881, 2147483648
        %v7149 = vor.u32 1.1754944e-38, %v7148
        %v7150 = vsel %vm7147, %v7149, %v7145
        %v7151 = vmul.f32 1.0, %v7150
        %v7152 = vrcp.pop %v6882
        %v7153 = vmul.f32 %v6882, %v7152
        %v7154 = vsub.f32 1.0, %v7153
        %v7155 = vmul.f32 %v7152, %v7154
        %v7156 = vadd.f32 %v7152, %v7155
        %vm7157 = vweird.f32 %v6882
        %vm7158 = vweird.f32 %v7152
        %vm7159 = vmor %vm7157, %vm7158
        %v7160 = vsel %vm7159, %v7152, %v7156
        %v7161 = vand.u32 2147483647, %v6882
        %vm7162 = vcmp.eq.f32.partialorder %v7161, 8.507059e+37
        %v7163 = vand.u32 %v6882, 2147483648
        %v7164 = vor.u32 1.1754944e-38, %v7163
        %v7165 = vsel %vm7162, %v7164, %v7160
        %v7166 = vmul.f32 1.0, %v7165
        %v7167 = vrcp.pop %v6883
        %v7168 = vmul.f32 %v6883, %v7167
        %v7169 = vsub.f32 1.0, %v7168
        %v7170 = vmul.f32 %v7167, %v7169
        %v7171 = vadd.f32 %v7167, %v7170
        %vm7172 = vweird.f32 %v6883
        %vm7173 = vweird.f32 %v7167
        %vm7174 = vmor %vm7172, %vm7173
        %v7175 = vsel %vm7174, %v7167, %v7171
        %v7176 = vand.u32 2147483647, %v6883
        %vm7177 = vcmp.eq.f32.partialorder %v7176, 8.507059e+37
        %v7178 = vand.u32 %v6883, 2147483648
        %v7179 = vor.u32 1.1754944e-38, %v7178
        %v7180 = vsel %vm7177, %v7179, %v7175
        %v7181 = vmul.f32 1.0, %v7180
        %v7182 = vrcp.pop %v6884
        %v7183 = vmul.f32 %v6884, %v7182
        %v7184 = vsub.f32 1.0, %v7183
        %v7185 = vmul.f32 %v7182, %v7184
        %v7186 = vadd.f32 %v7182, %v7185
        %vm7187 = vweird.f32 %v6884
        %vm7188 = vweird.f32 %v7182
        %vm7189 = vmor %vm7187, %vm7188
        %v7190 = vsel %vm7189, %v7182, %v7186
        %v7191 = vand.u32 2147483647, %v6884
        %vm7192 = vcmp.eq.f32.partialorder %v7191, 8.507059e+37
        %v7193 = vand.u32 %v6884, 2147483648
        %v7194 = vor.u32 1.1754944e-38, %v7193
        %v7195 = vsel %vm7192, %v7194, %v7190
        %v7196 = vmul.f32 1.0, %v7195
        %v7197 = vrcp.pop %v6885
        %v7198 = vmul.f32 %v6885, %v7197
        %v7199 = vsub.f32 1.0, %v7198
        %v7200 = vmul.f32 %v7197, %v7199
        %v7201 = vadd.f32 %v7197, %v7200
        %vm7202 = vweird.f32 %v6885
        %vm7203 = vweird.f32 %v7197
        %vm7204 = vmor %vm7202, %vm7203
        %v7205 = vsel %vm7204, %v7197, %v7201
        %v7206 = vand.u32 2147483647, %v6885
        %vm7207 = vcmp.eq.f32.partialorder %v7206, 8.507059e+37
        %v7208 = vand.u32 %v6885, 2147483648
        %v7209 = vor.u32 1.1754944e-38, %v7208
        %v7210 = vsel %vm7207, %v7209, %v7205
        %v7211 = vmul.f32 1.0, %v7210
        %v7212 = vrcp.pop %v6886
        %v7213 = vmul.f32 %v6886, %v7212
        %v7214 = vsub.f32 1.0, %v7213
        %v7215 = vmul.f32 %v7212, %v7214
        %v7216 = vadd.f32 %v7212, %v7215
        %vm7217 = vweird.f32 %v6886
        %vm7218 = vweird.f32 %v7212
        %vm7219 = vmor %vm7217, %vm7218
        %v7220 = vsel %vm7219, %v7212, %v7216
        %v7221 = vand.u32 2147483647, %v6886
        %vm7222 = vcmp.eq.f32.partialorder %v7221, 8.507059e+37
        %v7223 = vand.u32 %v6886, 2147483648
        %v7224 = vor.u32 1.1754944e-38, %v7223
        %v7225 = vsel %vm7222, %v7224, %v7220
        %v7226 = vmul.f32 1.0, %v7225
        %v7227 = vrcp.pop %v6887
        %v7228 = vmul.f32 %v6887, %v7227
        %v7229 = vsub.f32 1.0, %v7228
        %v7230 = vmul.f32 %v7227, %v7229
        %v7231 = vadd.f32 %v7227, %v7230
        %vm7232 = vweird.f32 %v6887
        %vm7233 = vweird.f32 %v7227
        %vm7234 = vmor %vm7232, %vm7233
        %v7235 = vsel %vm7234, %v7227, %v7231
        %v7236 = vand.u32 2147483647, %v6887
        %vm7237 = vcmp.eq.f32.partialorder %v7236, 8.507059e+37
        %v7238 = vand.u32 %v6887, 2147483648
        %v7239 = vor.u32 1.1754944e-38, %v7238
        %v7240 = vsel %vm7237, %v7239, %v7235
        %v7241 = vmul.f32 1.0, %v7240
        %v7242 = vrcp.pop %v6888
        %v7243 = vmul.f32 %v6888, %v7242
        %v7244 = vsub.f32 1.0, %v7243
        %v7245 = vmul.f32 %v7242, %v7244
        %v7246 = vadd.f32 %v7242, %v7245
        %vm7247 = vweird.f32 %v6888
        %vm7248 = vweird.f32 %v7242
        %vm7249 = vmor %vm7247, %vm7248
        %v7250 = vsel %vm7249, %v7242, %v7246
        %v7251 = vand.u32 2147483647, %v6888
        %vm7252 = vcmp.eq.f32.partialorder %v7251, 8.507059e+37
        %v7253 = vand.u32 %v6888, 2147483648
        %v7254 = vor.u32 1.1754944e-38, %v7253
        %v7255 = vsel %vm7252, %v7254, %v7250
        %v7256 = vmul.f32 1.0, %v7255
        %v7257 = vrcp.pop %v6889
        %v7258 = vmul.f32 %v6889, %v7257
        %v7259 = vsub.f32 1.0, %v7258
        %v7260 = vmul.f32 %v7257, %v7259
        %v7261 = vadd.f32 %v7257, %v7260
        %vm7262 = vweird.f32 %v6889
        %vm7263 = vweird.f32 %v7257
        %vm7264 = vmor %vm7262, %vm7263
        %v7265 = vsel %vm7264, %v7257, %v7261
        %v7266 = vand.u32 2147483647, %v6889
        %vm7267 = vcmp.eq.f32.partialorder %v7266, 8.507059e+37
        %v7268 = vand.u32 %v6889, 2147483648
        %v7269 = vor.u32 1.1754944e-38, %v7268
        %v7270 = vsel %vm7267, %v7269, %v7265
        %v7271 = vmul.f32 1.0, %v7270
        %v7272 = vrcp.pop %v6890
        %v7273 = vmul.f32 %v6890, %v7272
        %v7274 = vsub.f32 1.0, %v7273
        %v7275 = vmul.f32 %v7272, %v7274
        %v7276 = vadd.f32 %v7272, %v7275
        %vm7277 = vweird.f32 %v6890
        %vm7278 = vweird.f32 %v7272
        %vm7279 = vmor %vm7277, %vm7278
        %v7280 = vsel %vm7279, %v7272, %v7276
        %v7281 = vand.u32 2147483647, %v6890
        %vm7282 = vcmp.eq.f32.partialorder %v7281, 8.507059e+37
        %v7283 = vand.u32 %v6890, 2147483648
        %v7284 = vor.u32 1.1754944e-38, %v7283
        %v7285 = vsel %vm7282, %v7284, %v7280
        %v7286 = vmul.f32 1.0, %v7285
        %v7287 = vrcp.pop %v6891
        %v7288 = vmul.f32 %v6891, %v7287
        %v7289 = vsub.f32 1.0, %v7288
        %v7290 = vmul.f32 %v7287, %v7289
        %v7291 = vadd.f32 %v7287, %v7290
        %vm7292 = vweird.f32 %v6891
        %vm7293 = vweird.f32 %v7287
        %vm7294 = vmor %vm7292, %vm7293
        %v7295 = vsel %vm7294, %v7287, %v7291
        %v7296 = vand.u32 2147483647, %v6891
        %vm7297 = vcmp.eq.f32.partialorder %v7296, 8.507059e+37
        %v7298 = vand.u32 %v6891, 2147483648
        %v7299 = vor.u32 1.1754944e-38, %v7298
        %v7300 = vsel %vm7297, %v7299, %v7295
        %v7301 = vmul.f32 1.0, %v7300
        %v7302 = vrcp.pop %v6892
        %v7303 = vmul.f32 %v6892, %v7302
        %v7304 = vsub.f32 1.0, %v7303
        %v7305 = vmul.f32 %v7302, %v7304
        %v7306 = vadd.f32 %v7302, %v7305
        %vm7307 = vweird.f32 %v6892
        %vm7308 = vweird.f32 %v7302
        %vm7309 = vmor %vm7307, %vm7308
        %v7310 = vsel %vm7309, %v7302, %v7306
        %v7311 = vand.u32 2147483647, %v6892
        %vm7312 = vcmp.eq.f32.partialorder %v7311, 8.507059e+37
        %v7313 = vand.u32 %v6892, 2147483648
        %v7314 = vor.u32 1.1754944e-38, %v7313
        %v7315 = vsel %vm7312, %v7314, %v7310
        %v7316 = vmul.f32 1.0, %v7315
        %v7317 = vrcp.pop %v6893
        %v7318 = vmul.f32 %v6893, %v7317
        %v7319 = vsub.f32 1.0, %v7318
        %v7320 = vmul.f32 %v7317, %v7319
        %v7321 = vadd.f32 %v7317, %v7320
        %vm7322 = vweird.f32 %v6893
        %vm7323 = vweird.f32 %v7317
        %vm7324 = vmor %vm7322, %vm7323
        %v7325 = vsel %vm7324, %v7317, %v7321
        %v7326 = vand.u32 2147483647, %v6893
        %vm7327 = vcmp.eq.f32.partialorder %v7326, 8.507059e+37
        %v7328 = vand.u32 %v6893, 2147483648
        %v7329 = vor.u32 1.1754944e-38, %v7328
        %v7330 = vsel %vm7327, %v7329, %v7325
        %v7331 = vmul.f32 1.0, %v7330
        %v7332 = vrcp.pop %v6894
        %v7333 = vmul.f32 %v6894, %v7332
        %v7334 = vsub.f32 1.0, %v7333
        %v7335 = vmul.f32 %v7332, %v7334
        %v7336 = vadd.f32 %v7332, %v7335
        %vm7337 = vweird.f32 %v6894
        %vm7338 = vweird.f32 %v7332
        %vm7339 = vmor %vm7337, %vm7338
        %v7340 = vsel %vm7339, %v7332, %v7336
        %v7341 = vand.u32 2147483647, %v6894
        %vm7342 = vcmp.eq.f32.partialorder %v7341, 8.507059e+37
        %v7343 = vand.u32 %v6894, 2147483648
        %v7344 = vor.u32 1.1754944e-38, %v7343
        %v7345 = vsel %vm7342, %v7344, %v7340
        %v7346 = vmul.f32 1.0, %v7345
        %v7347 = vrcp.pop %v6895
        %v7348 = vmul.f32 %v6895, %v7347
        %v7349 = vsub.f32 1.0, %v7348
        %v7350 = vmul.f32 %v7347, %v7349
        %v7351 = vadd.f32 %v7347, %v7350
        %vm7352 = vweird.f32 %v6895
        %vm7353 = vweird.f32 %v7347
        %vm7354 = vmor %vm7352, %vm7353
        %v7355 = vsel %vm7354, %v7347, %v7351
        %v7356 = vand.u32 2147483647, %v6895
        %vm7357 = vcmp.eq.f32.partialorder %v7356, 8.507059e+37
        %v7358 = vand.u32 %v6895, 2147483648
        %v7359 = vor.u32 1.1754944e-38, %v7358
        %v7360 = vsel %vm7357, %v7359, %v7355
        %v7361 = vmul.f32 1.0, %v7360
        %v7362 = vrcp.pop %v6896
        %v7363 = vmul.f32 %v6896, %v7362
        %v7364 = vsub.f32 1.0, %v7363
        %v7365 = vmul.f32 %v7362, %v7364
        %v7366 = vadd.f32 %v7362, %v7365
        %vm7367 = vweird.f32 %v6896
        %vm7368 = vweird.f32 %v7362
        %vm7369 = vmor %vm7367, %vm7368
        %v7370 = vsel %vm7369, %v7362, %v7366
        %v7371 = vand.u32 2147483647, %v6896
        %vm7372 = vcmp.eq.f32.partialorder %v7371, 8.507059e+37
        %v7373 = vand.u32 %v6896, 2147483648
        %v7374 = vor.u32 1.1754944e-38, %v7373
        %v7375 = vsel %vm7372, %v7374, %v7370
        %v7376 = vmul.f32 1.0, %v7375
        %v7377 = vmul.f32 %v6544, %v6911
        %v7378 = vmul.f32 %v6602, %v6926
        %v7379 = vmul.f32 %v6660, %v6941
        %v7380 = vmul.f32 %v6718, %v6956
        %v7381 = vmul.f32 %v6546, %v6971
        %v7382 = vmul.f32 %v6604, %v6986
        %v7383 = vmul.f32 %v6662, %v7001
        %v7384 = vmul.f32 %v6720, %v7016
        %v7385 = vmul.f32 %v6549, %v7031
        %v7386 = vmul.f32 %v6607, %v7046
        %v7387 = vmul.f32 %v6665, %v7061
        %v7388 = vmul.f32 %v6723, %v7076
        %v7389 = vmul.f32 %v6551, %v7091
        %v7390 = vmul.f32 %v6609, %v7106
        %v7391 = vmul.f32 %v6667, %v7121
        %v7392 = vmul.f32 %v6725, %v7136
        %v7393 = vmul.f32 %v6554, %v7151
        %v7394 = vmul.f32 %v6612, %v7166
        %v7395 = vmul.f32 %v6670, %v7181
        %v7396 = vmul.f32 %v6728, %v7196
        %v7397 = vmul.f32 %v6556, %v7211
        %v7398 = vmul.f32 %v6614, %v7226
        %v7399 = vmul.f32 %v6672, %v7241
        %v7400 = vmul.f32 %v6730, %v7256
        %v7401 = vmul.f32 %v6559, %v7271
        %v7402 = vmul.f32 %v6617, %v7286
        %v7403 = vmul.f32 %v6675, %v7301
        %v7404 = vmul.f32 %v6733, %v7316
        %v7405 = vmul.f32 %v6561, %v7331
        %v7406 = vmul.f32 %v6619, %v7346
        %v7407 = vmul.f32 %v6677, %v7361
        %v7408 = vmul.f32 %v6735, %v7376
        %v7409 = vpack.c.bf16 %v7381, %v7377
        %v7410 = vpack.c.bf16 %v7382, %v7378
        %v7411 = vpack.c.bf16 %v7383, %v7379
        %v7412 = vpack.c.bf16 %v7384, %v7380
        %v7413 = vpack.c.bf16 %v7389, %v7385
        %v7414 = vpack.c.bf16 %v7390, %v7386
        %v7415 = vpack.c.bf16 %v7391, %v7387
        %v7416 = vpack.c.bf16 %v7392, %v7388
        %v7417 = vpack.c.bf16 %v7397, %v7393
        %v7418 = vpack.c.bf16 %v7398, %v7394
        %v7419 = vpack.c.bf16 %v7399, %v7395
        %v7420 = vpack.c.bf16 %v7400, %v7396
        %v7421 = vpack.c.bf16 %v7405, %v7401
        %v7422 = vpack.c.bf16 %v7406, %v7402
        %v7423 = vpack.c.bf16 %v7407, %v7403
        %v7424 = vpack.c.bf16 %v7408, %v7404
        %v7425 = vld [vmem:[#allocation22 + $0x200] sm:$0xff]
        %v7426 = vld [vmem:[#allocation22 + $0x208] sm:$0xff]
        %v7427 = vld [vmem:[#allocation22 + $0x210] sm:$0xff]
        %v7428 = vld [vmem:[#allocation22 + $0x218] sm:$0xff]
        %v7429 = vld [vmem:[#allocation22 + $0x220] sm:$0xff]
        %v7430 = vld [vmem:[#allocation22 + $0x228] sm:$0xff]
        %v7431 = vld [vmem:[#allocation22 + $0x230] sm:$0xff]
        %v7432 = vld [vmem:[#allocation22 + $0x238] sm:$0xff]
        %v7433 = vld [vmem:[#allocation22 + $0x240] sm:$0xff]
        %v7434 = vld [vmem:[#allocation22 + $0x248] sm:$0xff]
        %v7435 = vld [vmem:[#allocation22 + $0x250] sm:$0xff]
        %v7436 = vld [vmem:[#allocation22 + $0x258] sm:$0xff]
        %v7437 = vld [vmem:[#allocation22 + $0x260] sm:$0xff]
        %v7438 = vld [vmem:[#allocation22 + $0x268] sm:$0xff]
        %v7439 = vld [vmem:[#allocation22 + $0x270] sm:$0xff]
        %v7440 = vld [vmem:[#allocation22 + $0x278] sm:$0xff]
        %v7441 = vld [vmem:[#allocation22 + $0x280] sm:$0xff]
        %v7442 = vld [vmem:[#allocation22 + $0x288] sm:$0xff]
        %v7443 = vld [vmem:[#allocation22 + $0x290] sm:$0xff]
        %v7444 = vld [vmem:[#allocation22 + $0x298] sm:$0xff]
        %v7445 = vld [vmem:[#allocation22 + $0x2a0] sm:$0xff]
        %v7446 = vld [vmem:[#allocation22 + $0x2a8] sm:$0xff]
        %v7447 = vld [vmem:[#allocation22 + $0x2b0] sm:$0xff]
        %v7448 = vld [vmem:[#allocation22 + $0x2b8] sm:$0xff]
        %v7449 = vld [vmem:[#allocation22 + $0x2c0] sm:$0xff]
        %v7450 = vld [vmem:[#allocation22 + $0x2c8] sm:$0xff]
        %v7451 = vld [vmem:[#allocation22 + $0x2d0] sm:$0xff]
        %v7452 = vld [vmem:[#allocation22 + $0x2d8] sm:$0xff]
        %v7453 = vld [vmem:[#allocation22 + $0x2e0] sm:$0xff]
        %v7454 = vld [vmem:[#allocation22 + $0x2e8] sm:$0xff]
        %v7455 = vld [vmem:[#allocation22 + $0x2f0] sm:$0xff]
        %v7456 = vld [vmem:[#allocation22 + $0x2f8] sm:$0xff]
        %v7457 = vld [vmem:[#allocation22 + $0x300] sm:$0xff]
        %v7458 = vld [vmem:[#allocation22 + $0x308] sm:$0xff]
        %v7459 = vld [vmem:[#allocation22 + $0x310] sm:$0xff]
        %v7460 = vld [vmem:[#allocation22 + $0x318] sm:$0xff]
        %v7461 = vld [vmem:[#allocation22 + $0x320] sm:$0xff]
        %v7462 = vld [vmem:[#allocation22 + $0x328] sm:$0xff]
        %v7463 = vld [vmem:[#allocation22 + $0x330] sm:$0xff]
        %v7464 = vld [vmem:[#allocation22 + $0x338] sm:$0xff]
        %v7465 = vld [vmem:[#allocation22 + $0x340] sm:$0xff]
        %v7466 = vld [vmem:[#allocation22 + $0x348] sm:$0xff]
        %v7467 = vld [vmem:[#allocation22 + $0x350] sm:$0xff]
        %v7468 = vld [vmem:[#allocation22 + $0x358] sm:$0xff]
        %v7469 = vld [vmem:[#allocation22 + $0x360] sm:$0xff]
        %v7470 = vld [vmem:[#allocation22 + $0x368] sm:$0xff]
        %v7471 = vld [vmem:[#allocation22 + $0x370] sm:$0xff]
        %v7472 = vld [vmem:[#allocation22 + $0x378] sm:$0xff]
        %v7473 = vld [vmem:[#allocation22 + $0x380] sm:$0xff]
        %v7474 = vld [vmem:[#allocation22 + $0x388] sm:$0xff]
        %v7475 = vld [vmem:[#allocation22 + $0x390] sm:$0xff]
        %v7476 = vld [vmem:[#allocation22 + $0x398] sm:$0xff]
        %v7477 = vld [vmem:[#allocation22 + $0x3a0] sm:$0xff]
        %v7478 = vld [vmem:[#allocation22 + $0x3a8] sm:$0xff]
        %v7479 = vld [vmem:[#allocation22 + $0x3b0] sm:$0xff]
        %v7480 = vld [vmem:[#allocation22 + $0x3b8] sm:$0xff]
        %v7481 = vld [vmem:[#allocation22 + $0x3c0] sm:$0xff]
        %v7482 = vld [vmem:[#allocation22 + $0x3c8] sm:$0xff]
        %v7483 = vld [vmem:[#allocation22 + $0x3d0] sm:$0xff]
        %v7484 = vld [vmem:[#allocation22 + $0x3d8] sm:$0xff]
        %v7485 = vld [vmem:[#allocation22 + $0x3e0] sm:$0xff]
        %v7486 = vld [vmem:[#allocation22 + $0x3e8] sm:$0xff]
        %v7487 = vld [vmem:[#allocation22 + $0x3f0] sm:$0xff]
        %v7488 = vld [vmem:[#allocation22 + $0x3f8] sm:$0xff]
        %v7553 = vunpack.c.l.b16 %v7425
        %v7554 = vunpack.c.h.b16 %v7425
        %v7555 = vunpack.c.l.b16 %v7426
        %v7556 = vunpack.c.h.b16 %v7426
        %v7557 = vunpack.c.l.b16 %v7427
        %v7558 = vunpack.c.h.b16 %v7427
        %v7559 = vunpack.c.l.b16 %v7428
        %v7560 = vunpack.c.h.b16 %v7428
        %v7561 = vunpack.c.l.b16 %v7429
        %v7562 = vunpack.c.h.b16 %v7429
        %v7563 = vunpack.c.l.b16 %v7430
        %v7564 = vunpack.c.h.b16 %v7430
        %v7565 = vunpack.c.l.b16 %v7431
        %v7566 = vunpack.c.h.b16 %v7431
        %v7567 = vunpack.c.l.b16 %v7432
        %v7568 = vunpack.c.h.b16 %v7432
        %v7569 = vunpack.c.l.b16 %v7433
        %v7570 = vunpack.c.h.b16 %v7433
        %v7571 = vunpack.c.l.b16 %v7434
        %v7572 = vunpack.c.h.b16 %v7434
        %v7573 = vunpack.c.l.b16 %v7435
        %v7574 = vunpack.c.h.b16 %v7435
        %v7575 = vunpack.c.l.b16 %v7436
        %v7576 = vunpack.c.h.b16 %v7436
        %v7577 = vunpack.c.l.b16 %v7437
        %v7578 = vunpack.c.h.b16 %v7437
        %v7579 = vunpack.c.l.b16 %v7438
        %v7580 = vunpack.c.h.b16 %v7438
        %v7581 = vunpack.c.l.b16 %v7439
        %v7582 = vunpack.c.h.b16 %v7439
        %v7583 = vunpack.c.l.b16 %v7440
        %v7584 = vunpack.c.h.b16 %v7440
        %v7585 = vunpack.c.l.b16 %v7441
        %v7586 = vunpack.c.h.b16 %v7441
        %v7587 = vunpack.c.l.b16 %v7442
        %v7588 = vunpack.c.h.b16 %v7442
        %v7589 = vunpack.c.l.b16 %v7443
        %v7590 = vunpack.c.h.b16 %v7443
        %v7591 = vunpack.c.l.b16 %v7444
        %v7592 = vunpack.c.h.b16 %v7444
        %v7593 = vunpack.c.l.b16 %v7445
        %v7594 = vunpack.c.h.b16 %v7445
        %v7595 = vunpack.c.l.b16 %v7446
        %v7596 = vunpack.c.h.b16 %v7446
        %v7597 = vunpack.c.l.b16 %v7447
        %v7598 = vunpack.c.h.b16 %v7447
        %v7599 = vunpack.c.l.b16 %v7448
        %v7600 = vunpack.c.h.b16 %v7448
        %v7601 = vunpack.c.l.b16 %v7449
        %v7602 = vunpack.c.h.b16 %v7449
        %v7603 = vunpack.c.l.b16 %v7450
        %v7604 = vunpack.c.h.b16 %v7450
        %v7605 = vunpack.c.l.b16 %v7451
        %v7606 = vunpack.c.h.b16 %v7451
        %v7607 = vunpack.c.l.b16 %v7452
        %v7608 = vunpack.c.h.b16 %v7452
        %v7609 = vunpack.c.l.b16 %v7453
        %v7610 = vunpack.c.h.b16 %v7453
        %v7611 = vunpack.c.l.b16 %v7454
        %v7612 = vunpack.c.h.b16 %v7454
        %v7613 = vunpack.c.l.b16 %v7455
        %v7614 = vunpack.c.h.b16 %v7455
        %v7615 = vunpack.c.l.b16 %v7456
        %v7616 = vunpack.c.h.b16 %v7456
        %v7617 = vunpack.c.l.b16 %v7457
        %v7618 = vunpack.c.h.b16 %v7457
        %v7619 = vunpack.c.l.b16 %v7458
        %v7620 = vunpack.c.h.b16 %v7458
        %v7621 = vunpack.c.l.b16 %v7459
        %v7622 = vunpack.c.h.b16 %v7459
        %v7623 = vunpack.c.l.b16 %v7460
        %v7624 = vunpack.c.h.b16 %v7460
        %v7625 = vunpack.c.l.b16 %v7461
        %v7626 = vunpack.c.h.b16 %v7461
        %v7627 = vunpack.c.l.b16 %v7462
        %v7628 = vunpack.c.h.b16 %v7462
        %v7629 = vunpack.c.l.b16 %v7463
        %v7630 = vunpack.c.h.b16 %v7463
        %v7631 = vunpack.c.l.b16 %v7464
        %v7632 = vunpack.c.h.b16 %v7464
        %v7633 = vunpack.c.l.b16 %v7465
        %v7634 = vunpack.c.h.b16 %v7465
        %v7635 = vunpack.c.l.b16 %v7466
        %v7636 = vunpack.c.h.b16 %v7466
        %v7637 = vunpack.c.l.b16 %v7467
        %v7638 = vunpack.c.h.b16 %v7467
        %v7639 = vunpack.c.l.b16 %v7468
        %v7640 = vunpack.c.h.b16 %v7468
        %v7641 = vunpack.c.l.b16 %v7469
        %v7642 = vunpack.c.h.b16 %v7469
        %v7643 = vunpack.c.l.b16 %v7470
        %v7644 = vunpack.c.h.b16 %v7470
        %v7645 = vunpack.c.l.b16 %v7471
        %v7646 = vunpack.c.h.b16 %v7471
        %v7647 = vunpack.c.l.b16 %v7472
        %v7648 = vunpack.c.h.b16 %v7472
        %v7649 = vunpack.c.l.b16 %v7473
        %v7650 = vunpack.c.h.b16 %v7473
        %v7651 = vunpack.c.l.b16 %v7474
        %v7652 = vunpack.c.h.b16 %v7474
        %v7653 = vunpack.c.l.b16 %v7475
        %v7654 = vunpack.c.h.b16 %v7475
        %v7655 = vunpack.c.l.b16 %v7476
        %v7656 = vunpack.c.h.b16 %v7476
        %v7657 = vunpack.c.l.b16 %v7477
        %v7658 = vunpack.c.h.b16 %v7477
        %v7659 = vunpack.c.l.b16 %v7478
        %v7660 = vunpack.c.h.b16 %v7478
        %v7661 = vunpack.c.l.b16 %v7479
        %v7662 = vunpack.c.h.b16 %v7479
        %v7663 = vunpack.c.l.b16 %v7480
        %v7664 = vunpack.c.h.b16 %v7480
        %v7665 = vunpack.c.l.b16 %v7481
        %v7666 = vunpack.c.h.b16 %v7481
        %v7667 = vunpack.c.l.b16 %v7482
        %v7668 = vunpack.c.h.b16 %v7482
        %v7669 = vunpack.c.l.b16 %v7483
        %v7670 = vunpack.c.h.b16 %v7483
        %v7671 = vunpack.c.l.b16 %v7484
        %v7672 = vunpack.c.h.b16 %v7484
        %v7673 = vunpack.c.l.b16 %v7485
        %v7674 = vunpack.c.h.b16 %v7485
        %v7675 = vunpack.c.l.b16 %v7486
        %v7676 = vunpack.c.h.b16 %v7486
        %v7677 = vunpack.c.l.b16 %v7487
        %v7678 = vunpack.c.h.b16 %v7487
        %v7679 = vunpack.c.l.b16 %v7488
        %v7680 = vunpack.c.h.b16 %v7488
        %v7681 = vpack.c.b16 %v7555, %v7553
        %v7682 = vpack.c.b16 %v7556, %v7554
        %v7683 = vpack.c.b16 %v7559, %v7557
        %v7684 = vpack.c.b16 %v7560, %v7558
        %v7685 = vpack.c.b16 %v7563, %v7561
        %v7686 = vpack.c.b16 %v7564, %v7562
        %v7687 = vpack.c.b16 %v7567, %v7565
        %v7688 = vpack.c.b16 %v7568, %v7566
        %v7689 = vpack.c.b16 %v7571, %v7569
        %v7690 = vpack.c.b16 %v7572, %v7570
        %v7691 = vpack.c.b16 %v7575, %v7573
        %v7692 = vpack.c.b16 %v7576, %v7574
        %v7693 = vpack.c.b16 %v7579, %v7577
        %v7694 = vpack.c.b16 %v7580, %v7578
        %v7695 = vpack.c.b16 %v7583, %v7581
        %v7696 = vpack.c.b16 %v7584, %v7582
        %v7697 = vpack.c.b16 %v7587, %v7585
        %v7698 = vpack.c.b16 %v7588, %v7586
        %v7699 = vpack.c.b16 %v7591, %v7589
        %v7700 = vpack.c.b16 %v7592, %v7590
        %v7701 = vpack.c.b16 %v7595, %v7593
        %v7702 = vpack.c.b16 %v7596, %v7594
        %v7703 = vpack.c.b16 %v7599, %v7597
        %v7704 = vpack.c.b16 %v7600, %v7598
        %v7705 = vpack.c.b16 %v7603, %v7601
        %v7706 = vpack.c.b16 %v7604, %v7602
        %v7707 = vpack.c.b16 %v7607, %v7605
        %v7708 = vpack.c.b16 %v7608, %v7606
        %v7709 = vpack.c.b16 %v7611, %v7609
        %v7710 = vpack.c.b16 %v7612, %v7610
        %v7711 = vpack.c.b16 %v7615, %v7613
        %v7712 = vpack.c.b16 %v7616, %v7614
        %v7713 = vpack.c.b16 %v7619, %v7617
        %v7714 = vpack.c.b16 %v7620, %v7618
        %v7715 = vpack.c.b16 %v7623, %v7621
        %v7716 = vpack.c.b16 %v7624, %v7622
        %v7717 = vpack.c.b16 %v7627, %v7625
        %v7718 = vpack.c.b16 %v7628, %v7626
        %v7719 = vpack.c.b16 %v7631, %v7629
        %v7720 = vpack.c.b16 %v7632, %v7630
        %v7721 = vpack.c.b16 %v7635, %v7633
        %v7722 = vpack.c.b16 %v7636, %v7634
        %v7723 = vpack.c.b16 %v7639, %v7637
        %v7724 = vpack.c.b16 %v7640, %v7638
        %v7725 = vpack.c.b16 %v7643, %v7641
        %v7726 = vpack.c.b16 %v7644, %v7642
        %v7727 = vpack.c.b16 %v7647, %v7645
        %v7728 = vpack.c.b16 %v7648, %v7646
        %v7729 = vpack.c.b16 %v7651, %v7649
        %v7730 = vpack.c.b16 %v7652, %v7650
        %v7731 = vpack.c.b16 %v7655, %v7653
        %v7732 = vpack.c.b16 %v7656, %v7654
        %v7733 = vpack.c.b16 %v7659, %v7657
        %v7734 = vpack.c.b16 %v7660, %v7658
        %v7735 = vpack.c.b16 %v7663, %v7661
        %v7736 = vpack.c.b16 %v7664, %v7662
        %v7737 = vpack.c.b16 %v7667, %v7665
        %v7738 = vpack.c.b16 %v7668, %v7666
        %v7739 = vpack.c.b16 %v7671, %v7669
        %v7740 = vpack.c.b16 %v7672, %v7670
        %v7741 = vpack.c.b16 %v7675, %v7673
        %v7742 = vpack.c.b16 %v7676, %v7674
        %v7743 = vpack.c.b16 %v7679, %v7677
        %v7744 = vpack.c.b16 %v7680, %v7678
        %7809 = vmatpush.bf16.msra.mxu0 %v7695
        %7810 = vmatpush.bf16.msra.mxu0 %v7693
        %7811 = vmatpush.bf16.msra.mxu0 %v7691
        %7812 = vmatpush.bf16.msra.mxu0 %v7689
        %7813 = vmatpush.bf16.msra.mxu0 %v7687
        %7814 = vmatpush.bf16.msra.mxu0 %v7685
        %7815 = vmatpush.bf16.msra.mxu0 %v7683
        %7816 = vmatpush.bf16.msra.mxu0 %v7681
        %7817 = vmatmul.bf16.gmra.mxu0 %v7409
        %v7818 = vpop.f32.mrf.mxu0
        %v7819 = vadd.f32 0.0, %v7818
        %v7820 = vpop.f32.mrf.mxu0
        %v7821 = vadd.f32 0.0, %v7820
        %7822 = vmatmul.bf16.gmra.mxu0 %v7413
        %v7823 = vpop.f32.mrf.mxu0
        %v7824 = vadd.f32 0.0, %v7823
        %v7825 = vpop.f32.mrf.mxu0
        %v7826 = vadd.f32 0.0, %v7825
        %7827 = vmatmul.bf16.gmra.mxu0 %v7417
        %v7828 = vpop.f32.mrf.mxu0
        %v7829 = vadd.f32 0.0, %v7828
        %v7830 = vpop.f32.mrf.mxu0
        %v7831 = vadd.f32 0.0, %v7830
        %7832 = vmatmul.bf16.gmra.mxu0 %v7421
        %v7833 = vpop.f32.mrf.mxu0
        %v7834 = vadd.f32 0.0, %v7833
        %v7835 = vpop.f32.mrf.mxu0
        %v7836 = vadd.f32 0.0, %v7835
        %7837 = vdwg.mxu0
        %7838 = vmatpush.bf16.msra.mxu0 %v7711
        %7839 = vmatpush.bf16.msra.mxu0 %v7709
        %7840 = vmatpush.bf16.msra.mxu0 %v7707
        %7841 = vmatpush.bf16.msra.mxu0 %v7705
        %7842 = vmatpush.bf16.msra.mxu0 %v7703
        %7843 = vmatpush.bf16.msra.mxu0 %v7701
        %7844 = vmatpush.bf16.msra.mxu0 %v7699
        %7845 = vmatpush.bf16.msra.mxu0 %v7697
        %7846 = vmatmul.bf16.gmra.mxu0 %v7410
        %v7847 = vpop.f32.mrf.mxu0
        %v7848 = vadd.f32 %v7819, %v7847
        %v7849 = vpop.f32.mrf.mxu0
        %v7850 = vadd.f32 %v7821, %v7849
        %7851 = vmatmul.bf16.gmra.mxu0 %v7414
        %v7852 = vpop.f32.mrf.mxu0
        %v7853 = vadd.f32 %v7824, %v7852
        %v7854 = vpop.f32.mrf.mxu0
        %v7855 = vadd.f32 %v7826, %v7854
        %7856 = vmatmul.bf16.gmra.mxu0 %v7418
        %v7857 = vpop.f32.mrf.mxu0
        %v7858 = vadd.f32 %v7829, %v7857
        %v7859 = vpop.f32.mrf.mxu0
        %v7860 = vadd.f32 %v7831, %v7859
        %7861 = vmatmul.bf16.gmra.mxu0 %v7422
        %v7862 = vpop.f32.mrf.mxu0
        %v7863 = vadd.f32 %v7834, %v7862
        %v7864 = vpop.f32.mrf.mxu0
        %v7865 = vadd.f32 %v7836, %v7864
        %7866 = vdwg.mxu0
        %7867 = vmatpush.bf16.msra.mxu0 %v7727
        %7868 = vmatpush.bf16.msra.mxu0 %v7725
        %7869 = vmatpush.bf16.msra.mxu0 %v7723
        %7870 = vmatpush.bf16.msra.mxu0 %v7721
        %7871 = vmatpush.bf16.msra.mxu0 %v7719
        %7872 = vmatpush.bf16.msra.mxu0 %v7717
        %7873 = vmatpush.bf16.msra.mxu0 %v7715
        %7874 = vmatpush.bf16.msra.mxu0 %v7713
        %7875 = vmatmul.bf16.gmra.mxu0 %v7411
        %v7876 = vpop.f32.mrf.mxu0
        %v7877 = vadd.f32 %v7848, %v7876
        %v7878 = vpop.f32.mrf.mxu0
        %v7879 = vadd.f32 %v7850, %v7878
        %7880 = vmatmul.bf16.gmra.mxu0 %v7415
        %v7881 = vpop.f32.mrf.mxu0
        %v7882 = vadd.f32 %v7853, %v7881
        %v7883 = vpop.f32.mrf.mxu0
        %v7884 = vadd.f32 %v7855, %v7883
        %7885 = vmatmul.bf16.gmra.mxu0 %v7419
        %v7886 = vpop.f32.mrf.mxu0
        %v7887 = vadd.f32 %v7858, %v7886
        %v7888 = vpop.f32.mrf.mxu0
        %v7889 = vadd.f32 %v7860, %v7888
        %7890 = vmatmul.bf16.gmra.mxu0 %v7423
        %v7891 = vpop.f32.mrf.mxu0
        %v7892 = vadd.f32 %v7863, %v7891
        %v7893 = vpop.f32.mrf.mxu0
        %v7894 = vadd.f32 %v7865, %v7893
        %7895 = vdwg.mxu0
        %7896 = vmatpush.bf16.msra.mxu0 %v7743
        %7897 = vmatpush.bf16.msra.mxu0 %v7741
        %7898 = vmatpush.bf16.msra.mxu0 %v7739
        %7899 = vmatpush.bf16.msra.mxu0 %v7737
        %7900 = vmatpush.bf16.msra.mxu0 %v7735
        %7901 = vmatpush.bf16.msra.mxu0 %v7733
        %7902 = vmatpush.bf16.msra.mxu0 %v7731
        %7903 = vmatpush.bf16.msra.mxu0 %v7729
        %7904 = vmatmul.bf16.gmra.mxu0 %v7412
        %v7905 = vpop.f32.mrf.mxu0
        %v7906 = vadd.f32 %v7877, %v7905
        %v7907 = vpop.f32.mrf.mxu0
        %v7908 = vadd.f32 %v7879, %v7907
        %7909 = vmatmul.bf16.gmra.mxu0 %v7416
        %v7910 = vpop.f32.mrf.mxu0
        %v7911 = vadd.f32 %v7882, %v7910
        %v7912 = vpop.f32.mrf.mxu0
        %v7913 = vadd.f32 %v7884, %v7912
        %7914 = vmatmul.bf16.gmra.mxu0 %v7420
        %v7915 = vpop.f32.mrf.mxu0
        %v7916 = vadd.f32 %v7887, %v7915
        %v7917 = vpop.f32.mrf.mxu0
        %v7918 = vadd.f32 %v7889, %v7917
        %7919 = vmatmul.bf16.gmra.mxu0 %v7424
        %v7920 = vpop.f32.mrf.mxu0
        %v7921 = vadd.f32 %v7892, %v7920
        %v7922 = vpop.f32.mrf.mxu0
        %v7923 = vadd.f32 %v7894, %v7922
        %7924 = vdwg.mxu0
        %7925 = vmatpush.bf16.msra.mxu0 %v7696
        %7926 = vmatpush.bf16.msra.mxu0 %v7694
        %7927 = vmatpush.bf16.msra.mxu0 %v7692
        %7928 = vmatpush.bf16.msra.mxu0 %v7690
        %7929 = vmatpush.bf16.msra.mxu0 %v7688
        %7930 = vmatpush.bf16.msra.mxu0 %v7686
        %7931 = vmatpush.bf16.msra.mxu0 %v7684
        %7932 = vmatpush.bf16.msra.mxu0 %v7682
        %7933 = vmatmul.bf16.gmra.mxu0 %v7409
        %v7934 = vpop.f32.mrf.mxu0
        %v7935 = vadd.f32 0.0, %v7934
        %v7936 = vpop.f32.mrf.mxu0
        %v7937 = vadd.f32 0.0, %v7936
        %7938 = vmatmul.bf16.gmra.mxu0 %v7413
        %v7939 = vpop.f32.mrf.mxu0
        %v7940 = vadd.f32 0.0, %v7939
        %v7941 = vpop.f32.mrf.mxu0
        %v7942 = vadd.f32 0.0, %v7941
        %7943 = vmatmul.bf16.gmra.mxu0 %v7417
        %v7944 = vpop.f32.mrf.mxu0
        %v7945 = vadd.f32 0.0, %v7944
        %v7946 = vpop.f32.mrf.mxu0
        %v7947 = vadd.f32 0.0, %v7946
        %7948 = vmatmul.bf16.gmra.mxu0 %v7421
        %v7949 = vpop.f32.mrf.mxu0
        %v7950 = vadd.f32 0.0, %v7949
        %v7951 = vpop.f32.mrf.mxu0
        %v7952 = vadd.f32 0.0, %v7951
        %7953 = vdwg.mxu0
        %7954 = vmatpush.bf16.msra.mxu0 %v7712
        %7955 = vmatpush.bf16.msra.mxu0 %v7710
        %7956 = vmatpush.bf16.msra.mxu0 %v7708
        %7957 = vmatpush.bf16.msra.mxu0 %v7706
        %7958 = vmatpush.bf16.msra.mxu0 %v7704
        %7959 = vmatpush.bf16.msra.mxu0 %v7702
        %7960 = vmatpush.bf16.msra.mxu0 %v7700
        %7961 = vmatpush.bf16.msra.mxu0 %v7698
        %7962 = vmatmul.bf16.gmra.mxu0 %v7410
        %v7963 = vpop.f32.mrf.mxu0
        %v7964 = vadd.f32 %v7935, %v7963
        %v7965 = vpop.f32.mrf.mxu0
        %v7966 = vadd.f32 %v7937, %v7965
        %7967 = vmatmul.bf16.gmra.mxu0 %v7414
        %v7968 = vpop.f32.mrf.mxu0
        %v7969 = vadd.f32 %v7940, %v7968
        %v7970 = vpop.f32.mrf.mxu0
        %v7971 = vadd.f32 %v7942, %v7970
        %7972 = vmatmul.bf16.gmra.mxu0 %v7418
        %v7973 = vpop.f32.mrf.mxu0
        %v7974 = vadd.f32 %v7945, %v7973
        %v7975 = vpop.f32.mrf.mxu0
        %v7976 = vadd.f32 %v7947, %v7975
        %7977 = vmatmul.bf16.gmra.mxu0 %v7422
        %v7978 = vpop.f32.mrf.mxu0
        %v7979 = vadd.f32 %v7950, %v7978
        %v7980 = vpop.f32.mrf.mxu0
        %v7981 = vadd.f32 %v7952, %v7980
        %7982 = vdwg.mxu0
        %7983 = vmatpush.bf16.msra.mxu0 %v7728
        %7984 = vmatpush.bf16.msra.mxu0 %v7726
        %7985 = vmatpush.bf16.msra.mxu0 %v7724
        %7986 = vmatpush.bf16.msra.mxu0 %v7722
        %7987 = vmatpush.bf16.msra.mxu0 %v7720
        %7988 = vmatpush.bf16.msra.mxu0 %v7718
        %7989 = vmatpush.bf16.msra.mxu0 %v7716
        %7990 = vmatpush.bf16.msra.mxu0 %v7714
        %7991 = vmatmul.bf16.gmra.mxu0 %v7411
        %v7992 = vpop.f32.mrf.mxu0
        %v7993 = vadd.f32 %v7964, %v7992
        %v7994 = vpop.f32.mrf.mxu0
        %v7995 = vadd.f32 %v7966, %v7994
        %7996 = vmatmul.bf16.gmra.mxu0 %v7415
        %v7997 = vpop.f32.mrf.mxu0
        %v7998 = vadd.f32 %v7969, %v7997
        %v7999 = vpop.f32.mrf.mxu0
        %v8000 = vadd.f32 %v7971, %v7999
        %8001 = vmatmul.bf16.gmra.mxu0 %v7419
        %v8002 = vpop.f32.mrf.mxu0
        %v8003 = vadd.f32 %v7974, %v8002
        %v8004 = vpop.f32.mrf.mxu0
        %v8005 = vadd.f32 %v7976, %v8004
        %8006 = vmatmul.bf16.gmra.mxu0 %v7423
        %v8007 = vpop.f32.mrf.mxu0
        %v8008 = vadd.f32 %v7979, %v8007
        %v8009 = vpop.f32.mrf.mxu0
        %v8010 = vadd.f32 %v7981, %v8009
        %8011 = vdwg.mxu0
        %8012 = vmatpush.bf16.msra.mxu0 %v7744
        %8013 = vmatpush.bf16.msra.mxu0 %v7742
        %8014 = vmatpush.bf16.msra.mxu0 %v7740
        %8015 = vmatpush.bf16.msra.mxu0 %v7738
        %8016 = vmatpush.bf16.msra.mxu0 %v7736
        %8017 = vmatpush.bf16.msra.mxu0 %v7734
        %8018 = vmatpush.bf16.msra.mxu0 %v7732
        %8019 = vmatpush.bf16.msra.mxu0 %v7730
        %8020 = vmatmul.bf16.gmra.mxu0 %v7412
        %v8021 = vpop.f32.mrf.mxu0
        %v8022 = vadd.f32 %v7993, %v8021
        %v8023 = vpop.f32.mrf.mxu0
        %v8024 = vadd.f32 %v7995, %v8023
        %8025 = vmatmul.bf16.gmra.mxu0 %v7416
        %v8026 = vpop.f32.mrf.mxu0
        %v8027 = vadd.f32 %v7998, %v8026
        %v8028 = vpop.f32.mrf.mxu0
        %v8029 = vadd.f32 %v8000, %v8028
        %8030 = vmatmul.bf16.gmra.mxu0 %v7420
        %v8031 = vpop.f32.mrf.mxu0
        %v8032 = vadd.f32 %v8003, %v8031
        %v8033 = vpop.f32.mrf.mxu0
        %v8034 = vadd.f32 %v8005, %v8033
        %8035 = vmatmul.bf16.gmra.mxu0 %v7424
        %v8036 = vpop.f32.mrf.mxu0
        %v8037 = vadd.f32 %v8008, %v8036
        %v8038 = vpop.f32.mrf.mxu0
        %v8039 = vadd.f32 %v8010, %v8038
        %8040 = vdwg.mxu0
        %v8105 = vunpack.c.l.b16 %v6047
        %v8106 = vunpack.c.h.b16 %v6047
        %v8107 = vunpack.c.l.b16 %v6048
        %v8108 = vunpack.c.h.b16 %v6048
        %v8109 = vunpack.c.l.b16 %v6049
        %v8110 = vunpack.c.h.b16 %v6049
        %v8111 = vunpack.c.l.b16 %v6050
        %v8112 = vunpack.c.h.b16 %v6050
        %v8113 = vunpack.c.l.b16 %v6051
        %v8114 = vunpack.c.h.b16 %v6051
        %v8115 = vunpack.c.l.b16 %v6052
        %v8116 = vunpack.c.h.b16 %v6052
        %v8117 = vunpack.c.l.b16 %v6053
        %v8118 = vunpack.c.h.b16 %v6053
        %v8119 = vunpack.c.l.b16 %v6054
        %v8120 = vunpack.c.h.b16 %v6054
        %v8121 = vunpack.c.l.b16 %v6055
        %v8122 = vunpack.c.h.b16 %v6055
        %v8123 = vunpack.c.l.b16 %v6056
        %v8124 = vunpack.c.h.b16 %v6056
        %v8125 = vunpack.c.l.b16 %v6057
        %v8126 = vunpack.c.h.b16 %v6057
        %v8127 = vunpack.c.l.b16 %v6058
        %v8128 = vunpack.c.h.b16 %v6058
        %v8129 = vunpack.c.l.b16 %v6059
        %v8130 = vunpack.c.h.b16 %v6059
        %v8131 = vunpack.c.l.b16 %v6060
        %v8132 = vunpack.c.h.b16 %v6060
        %v8133 = vunpack.c.l.b16 %v6061
        %v8134 = vunpack.c.h.b16 %v6061
        %v8135 = vunpack.c.l.b16 %v6062
        %v8136 = vunpack.c.h.b16 %v6062
        %v8137 = vunpack.c.l.b16 %v6063
        %v8138 = vunpack.c.h.b16 %v6063
        %v8139 = vunpack.c.l.b16 %v6064
        %v8140 = vunpack.c.h.b16 %v6064
        %v8141 = vunpack.c.l.b16 %v6065
        %v8142 = vunpack.c.h.b16 %v6065
        %v8143 = vunpack.c.l.b16 %v6066
        %v8144 = vunpack.c.h.b16 %v6066
        %v8145 = vunpack.c.l.b16 %v6067
        %v8146 = vunpack.c.h.b16 %v6067
        %v8147 = vunpack.c.l.b16 %v6068
        %v8148 = vunpack.c.h.b16 %v6068
        %v8149 = vunpack.c.l.b16 %v6069
        %v8150 = vunpack.c.h.b16 %v6069
        %v8151 = vunpack.c.l.b16 %v6070
        %v8152 = vunpack.c.h.b16 %v6070
        %v8153 = vunpack.c.l.b16 %v6071
        %v8154 = vunpack.c.h.b16 %v6071
        %v8155 = vunpack.c.l.b16 %v6072
        %v8156 = vunpack.c.h.b16 %v6072
        %v8157 = vunpack.c.l.b16 %v6073
        %v8158 = vunpack.c.h.b16 %v6073
        %v8159 = vunpack.c.l.b16 %v6074
        %v8160 = vunpack.c.h.b16 %v6074
        %v8161 = vunpack.c.l.b16 %v6075
        %v8162 = vunpack.c.h.b16 %v6075
        %v8163 = vunpack.c.l.b16 %v6076
        %v8164 = vunpack.c.h.b16 %v6076
        %v8165 = vunpack.c.l.b16 %v6077
        %v8166 = vunpack.c.h.b16 %v6077
        %v8167 = vunpack.c.l.b16 %v6078
        %v8168 = vunpack.c.h.b16 %v6078
        %v8169 = vunpack.c.l.b16 %v6079
        %v8170 = vunpack.c.h.b16 %v6079
        %v8171 = vunpack.c.l.b16 %v6080
        %v8172 = vunpack.c.h.b16 %v6080
        %v8173 = vunpack.c.l.b16 %v6081
        %v8174 = vunpack.c.h.b16 %v6081
        %v8175 = vunpack.c.l.b16 %v6082
        %v8176 = vunpack.c.h.b16 %v6082
        %v8177 = vunpack.c.l.b16 %v6083
        %v8178 = vunpack.c.h.b16 %v6083
        %v8179 = vunpack.c.l.b16 %v6084
        %v8180 = vunpack.c.h.b16 %v6084
        %v8181 = vunpack.c.l.b16 %v6085
        %v8182 = vunpack.c.h.b16 %v6085
        %v8183 = vunpack.c.l.b16 %v6086
        %v8184 = vunpack.c.h.b16 %v6086
        %v8185 = vunpack.c.l.b16 %v6087
        %v8186 = vunpack.c.h.b16 %v6087
        %v8187 = vunpack.c.l.b16 %v6088
        %v8188 = vunpack.c.h.b16 %v6088
        %v8189 = vunpack.c.l.b16 %v6089
        %v8190 = vunpack.c.h.b16 %v6089
        %v8191 = vunpack.c.l.b16 %v6090
        %v8192 = vunpack.c.h.b16 %v6090
        %v8193 = vunpack.c.l.b16 %v6091
        %v8194 = vunpack.c.h.b16 %v6091
        %v8195 = vunpack.c.l.b16 %v6092
        %v8196 = vunpack.c.h.b16 %v6092
        %v8197 = vunpack.c.l.b16 %v6093
        %v8198 = vunpack.c.h.b16 %v6093
        %v8199 = vunpack.c.l.b16 %v6094
        %v8200 = vunpack.c.h.b16 %v6094
        %v8201 = vunpack.c.l.b16 %v6095
        %v8202 = vunpack.c.h.b16 %v6095
        %v8203 = vunpack.c.l.b16 %v6096
        %v8204 = vunpack.c.h.b16 %v6096
        %v8205 = vunpack.c.l.b16 %v6097
        %v8206 = vunpack.c.h.b16 %v6097
        %v8207 = vunpack.c.l.b16 %v6098
        %v8208 = vunpack.c.h.b16 %v6098
        %v8209 = vunpack.c.l.b16 %v6099
        %v8210 = vunpack.c.h.b16 %v6099
        %v8211 = vunpack.c.l.b16 %v6100
        %v8212 = vunpack.c.h.b16 %v6100
        %v8213 = vunpack.c.l.b16 %v6101
        %v8214 = vunpack.c.h.b16 %v6101
        %v8215 = vunpack.c.l.b16 %v6102
        %v8216 = vunpack.c.h.b16 %v6102
        %v8217 = vunpack.c.l.b16 %v6103
        %v8218 = vunpack.c.h.b16 %v6103
        %v8219 = vunpack.c.l.b16 %v6104
        %v8220 = vunpack.c.h.b16 %v6104
        %v8221 = vunpack.c.l.b16 %v6105
        %v8222 = vunpack.c.h.b16 %v6105
        %v8223 = vunpack.c.l.b16 %v6106
        %v8224 = vunpack.c.h.b16 %v6106
        %v8225 = vunpack.c.l.b16 %v6107
        %v8226 = vunpack.c.h.b16 %v6107
        %v8227 = vunpack.c.l.b16 %v6108
        %v8228 = vunpack.c.h.b16 %v6108
        %v8229 = vunpack.c.l.b16 %v6109
        %v8230 = vunpack.c.h.b16 %v6109
        %v8231 = vunpack.c.l.b16 %v6110
        %v8232 = vunpack.c.h.b16 %v6110
        %v8233 = vpack.c.b16 %v8107, %v8105
        %v8234 = vpack.c.b16 %v8108, %v8106
        %v8235 = vpack.c.b16 %v8111, %v8109
        %v8236 = vpack.c.b16 %v8112, %v8110
        %v8237 = vpack.c.b16 %v8115, %v8113
        %v8238 = vpack.c.b16 %v8116, %v8114
        %v8239 = vpack.c.b16 %v8119, %v8117
        %v8240 = vpack.c.b16 %v8120, %v8118
        %v8241 = vpack.c.b16 %v8123, %v8121
        %v8242 = vpack.c.b16 %v8124, %v8122
        %v8243 = vpack.c.b16 %v8127, %v8125
        %v8244 = vpack.c.b16 %v8128, %v8126
        %v8245 = vpack.c.b16 %v8131, %v8129
        %v8246 = vpack.c.b16 %v8132, %v8130
        %v8247 = vpack.c.b16 %v8135, %v8133
        %v8248 = vpack.c.b16 %v8136, %v8134
        %v8249 = vpack.c.b16 %v8139, %v8137
        %v8250 = vpack.c.b16 %v8140, %v8138
        %v8251 = vpack.c.b16 %v8143, %v8141
        %v8252 = vpack.c.b16 %v8144, %v8142
        %v8253 = vpack.c.b16 %v8147, %v8145
        %v8254 = vpack.c.b16 %v8148, %v8146
        %v8255 = vpack.c.b16 %v8151, %v8149
        %v8256 = vpack.c.b16 %v8152, %v8150
        %v8257 = vpack.c.b16 %v8155, %v8153
        %v8258 = vpack.c.b16 %v8156, %v8154
        %v8259 = vpack.c.b16 %v8159, %v8157
        %v8260 = vpack.c.b16 %v8160, %v8158
        %v8261 = vpack.c.b16 %v8163, %v8161
        %v8262 = vpack.c.b16 %v8164, %v8162
        %v8263 = vpack.c.b16 %v8167, %v8165
        %v8264 = vpack.c.b16 %v8168, %v8166
        %v8265 = vpack.c.b16 %v8171, %v8169
        %v8266 = vpack.c.b16 %v8172, %v8170
        %v8267 = vpack.c.b16 %v8175, %v8173
        %v8268 = vpack.c.b16 %v8176, %v8174
        %v8269 = vpack.c.b16 %v8179, %v8177
        %v8270 = vpack.c.b16 %v8180, %v8178
        %v8271 = vpack.c.b16 %v8183, %v8181
        %v8272 = vpack.c.b16 %v8184, %v8182
        %v8273 = vpack.c.b16 %v8187, %v8185
        %v8274 = vpack.c.b16 %v8188, %v8186
        %v8275 = vpack.c.b16 %v8191, %v8189
        %v8276 = vpack.c.b16 %v8192, %v8190
        %v8277 = vpack.c.b16 %v8195, %v8193
        %v8278 = vpack.c.b16 %v8196, %v8194
        %v8279 = vpack.c.b16 %v8199, %v8197
        %v8280 = vpack.c.b16 %v8200, %v8198
        %v8281 = vpack.c.b16 %v8203, %v8201
        %v8282 = vpack.c.b16 %v8204, %v8202
        %v8283 = vpack.c.b16 %v8207, %v8205
        %v8284 = vpack.c.b16 %v8208, %v8206
        %v8285 = vpack.c.b16 %v8211, %v8209
        %v8286 = vpack.c.b16 %v8212, %v8210
        %v8287 = vpack.c.b16 %v8215, %v8213
        %v8288 = vpack.c.b16 %v8216, %v8214
        %v8289 = vpack.c.b16 %v8219, %v8217
        %v8290 = vpack.c.b16 %v8220, %v8218
        %v8291 = vpack.c.b16 %v8223, %v8221
        %v8292 = vpack.c.b16 %v8224, %v8222
        %v8293 = vpack.c.b16 %v8227, %v8225
        %v8294 = vpack.c.b16 %v8228, %v8226
        %v8295 = vpack.c.b16 %v8231, %v8229
        %v8296 = vpack.c.b16 %v8232, %v8230
        %8361 = vmatpush.bf16.msra.mxu0 %v8247
        %8362 = vmatpush.bf16.msra.mxu0 %v8245
        %8363 = vmatpush.bf16.msra.mxu0 %v8243
        %8364 = vmatpush.bf16.msra.mxu0 %v8241
        %8365 = vmatpush.bf16.msra.mxu0 %v8239
        %8366 = vmatpush.bf16.msra.mxu0 %v8237
        %8367 = vmatpush.bf16.msra.mxu0 %v8235
        %8368 = vmatpush.bf16.msra.mxu0 %v8233
        %8369 = vmatmul.bf16.gmra.mxu0 %v6031
        %v8370 = vpop.f32.mrf.mxu0
        %v8371 = vadd.f32 %v7906, %v8370
        %v8372 = vpop.f32.mrf.mxu0
        %v8373 = vadd.f32 %v7908, %v8372
        %8374 = vmatmul.bf16.gmra.mxu0 %v6035
        %v8375 = vpop.f32.mrf.mxu0
        %v8376 = vadd.f32 %v7911, %v8375
        %v8377 = vpop.f32.mrf.mxu0
        %v8378 = vadd.f32 %v7913, %v8377
        %8379 = vmatmul.bf16.gmra.mxu0 %v6039
        %v8380 = vpop.f32.mrf.mxu0
        %v8381 = vadd.f32 %v7916, %v8380
        %v8382 = vpop.f32.mrf.mxu0
        %v8383 = vadd.f32 %v7918, %v8382
        %8384 = vmatmul.bf16.gmra.mxu0 %v6043
        %v8385 = vpop.f32.mrf.mxu0
        %v8386 = vadd.f32 %v7921, %v8385
        %v8387 = vpop.f32.mrf.mxu0
        %v8388 = vadd.f32 %v7923, %v8387
        %8389 = vdwg.mxu0
        %8390 = vmatpush.bf16.msra.mxu0 %v8263
        %8391 = vmatpush.bf16.msra.mxu0 %v8261
        %8392 = vmatpush.bf16.msra.mxu0 %v8259
        %8393 = vmatpush.bf16.msra.mxu0 %v8257
        %8394 = vmatpush.bf16.msra.mxu0 %v8255
        %8395 = vmatpush.bf16.msra.mxu0 %v8253
        %8396 = vmatpush.bf16.msra.mxu0 %v8251
        %8397 = vmatpush.bf16.msra.mxu0 %v8249
        %8398 = vmatmul.bf16.gmra.mxu0 %v6032
        %v8399 = vpop.f32.mrf.mxu0
        %v8400 = vadd.f32 %v8371, %v8399
        %v8401 = vpop.f32.mrf.mxu0
        %v8402 = vadd.f32 %v8373, %v8401
        %8403 = vmatmul.bf16.gmra.mxu0 %v6036
        %v8404 = vpop.f32.mrf.mxu0
        %v8405 = vadd.f32 %v8376, %v8404
        %v8406 = vpop.f32.mrf.mxu0
        %v8407 = vadd.f32 %v8378, %v8406
        %8408 = vmatmul.bf16.gmra.mxu0 %v6040
        %v8409 = vpop.f32.mrf.mxu0
        %v8410 = vadd.f32 %v8381, %v8409
        %v8411 = vpop.f32.mrf.mxu0
        %v8412 = vadd.f32 %v8383, %v8411
        %8413 = vmatmul.bf16.gmra.mxu0 %v6044
        %v8414 = vpop.f32.mrf.mxu0
        %v8415 = vadd.f32 %v8386, %v8414
        %v8416 = vpop.f32.mrf.mxu0
        %v8417 = vadd.f32 %v8388, %v8416
        %8418 = vdwg.mxu0
        %8419 = vmatpush.bf16.msra.mxu0 %v8279
        %8420 = vmatpush.bf16.msra.mxu0 %v8277
        %8421 = vmatpush.bf16.msra.mxu0 %v8275
        %8422 = vmatpush.bf16.msra.mxu0 %v8273
        %8423 = vmatpush.bf16.msra.mxu0 %v8271
        %8424 = vmatpush.bf16.msra.mxu0 %v8269
        %8425 = vmatpush.bf16.msra.mxu0 %v8267
        %8426 = vmatpush.bf16.msra.mxu0 %v8265
        %8427 = vmatmul.bf16.gmra.mxu0 %v6033
        %v8428 = vpop.f32.mrf.mxu0
        %v8429 = vadd.f32 %v8400, %v8428
        %v8430 = vpop.f32.mrf.mxu0
        %v8431 = vadd.f32 %v8402, %v8430
        %8432 = vmatmul.bf16.gmra.mxu0 %v6037
        %v8433 = vpop.f32.mrf.mxu0
        %v8434 = vadd.f32 %v8405, %v8433
        %v8435 = vpop.f32.mrf.mxu0
        %v8436 = vadd.f32 %v8407, %v8435
        %8437 = vmatmul.bf16.gmra.mxu0 %v6041
        %v8438 = vpop.f32.mrf.mxu0
        %v8439 = vadd.f32 %v8410, %v8438
        %v8440 = vpop.f32.mrf.mxu0
        %v8441 = vadd.f32 %v8412, %v8440
        %8442 = vmatmul.bf16.gmra.mxu0 %v6045
        %v8443 = vpop.f32.mrf.mxu0
        %v8444 = vadd.f32 %v8415, %v8443
        %v8445 = vpop.f32.mrf.mxu0
        %v8446 = vadd.f32 %v8417, %v8445
        %8447 = vdwg.mxu0
        %8448 = vmatpush.bf16.msra.mxu0 %v8295
        %8449 = vmatpush.bf16.msra.mxu0 %v8293
        %8450 = vmatpush.bf16.msra.mxu0 %v8291
        %8451 = vmatpush.bf16.msra.mxu0 %v8289
        %8452 = vmatpush.bf16.msra.mxu0 %v8287
        %8453 = vmatpush.bf16.msra.mxu0 %v8285
        %8454 = vmatpush.bf16.msra.mxu0 %v8283
        %8455 = vmatpush.bf16.msra.mxu0 %v8281
        %8456 = vmatmul.bf16.gmra.mxu0 %v6034
        %v8457 = vpop.f32.mrf.mxu0
        %v8458 = vadd.f32 %v8429, %v8457
        %v8459 = vpop.f32.mrf.mxu0
        %v8460 = vadd.f32 %v8431, %v8459
        %8461 = vmatmul.bf16.gmra.mxu0 %v6038
        %v8462 = vpop.f32.mrf.mxu0
        %v8463 = vadd.f32 %v8434, %v8462
        %v8464 = vpop.f32.mrf.mxu0
        %v8465 = vadd.f32 %v8436, %v8464
        %8466 = vmatmul.bf16.gmra.mxu0 %v6042
        %v8467 = vpop.f32.mrf.mxu0
        %v8468 = vadd.f32 %v8439, %v8467
        %v8469 = vpop.f32.mrf.mxu0
        %v8470 = vadd.f32 %v8441, %v8469
        %8471 = vmatmul.bf16.gmra.mxu0 %v6046
        %v8472 = vpop.f32.mrf.mxu0
        %v8473 = vadd.f32 %v8444, %v8472
        %v8474 = vpop.f32.mrf.mxu0
        %v8475 = vadd.f32 %v8446, %v8474
        %8476 = vdwg.mxu0
        %8477 = vmatpush.bf16.msra.mxu0 %v8248
        %8478 = vmatpush.bf16.msra.mxu0 %v8246
        %8479 = vmatpush.bf16.msra.mxu0 %v8244
        %8480 = vmatpush.bf16.msra.mxu0 %v8242
        %8481 = vmatpush.bf16.msra.mxu0 %v8240
        %8482 = vmatpush.bf16.msra.mxu0 %v8238
        %8483 = vmatpush.bf16.msra.mxu0 %v8236
        %8484 = vmatpush.bf16.msra.mxu0 %v8234
        %8485 = vmatmul.bf16.gmra.mxu0 %v6031
        %v8486 = vpop.f32.mrf.mxu0
        %v8487 = vadd.f32 %v8022, %v8486
        %v8488 = vpop.f32.mrf.mxu0
        %v8489 = vadd.f32 %v8024, %v8488
        %8490 = vmatmul.bf16.gmra.mxu0 %v6035
        %v8491 = vpop.f32.mrf.mxu0
        %v8492 = vadd.f32 %v8027, %v8491
        %v8493 = vpop.f32.mrf.mxu0
        %v8494 = vadd.f32 %v8029, %v8493
        %8495 = vmatmul.bf16.gmra.mxu0 %v6039
        %v8496 = vpop.f32.mrf.mxu0
        %v8497 = vadd.f32 %v8032, %v8496
        %v8498 = vpop.f32.mrf.mxu0
        %v8499 = vadd.f32 %v8034, %v8498
        %8500 = vmatmul.bf16.gmra.mxu0 %v6043
        %v8501 = vpop.f32.mrf.mxu0
        %v8502 = vadd.f32 %v8037, %v8501
        %v8503 = vpop.f32.mrf.mxu0
        %v8504 = vadd.f32 %v8039, %v8503
        %8505 = vdwg.mxu0
        %8506 = vmatpush.bf16.msra.mxu0 %v8264
        %8507 = vmatpush.bf16.msra.mxu0 %v8262
        %8508 = vmatpush.bf16.msra.mxu0 %v8260
        %8509 = vmatpush.bf16.msra.mxu0 %v8258
        %8510 = vmatpush.bf16.msra.mxu0 %v8256
        %8511 = vmatpush.bf16.msra.mxu0 %v8254
        %8512 = vmatpush.bf16.msra.mxu0 %v8252
        %8513 = vmatpush.bf16.msra.mxu0 %v8250
        %8514 = vmatmul.bf16.gmra.mxu0 %v6032
        %v8515 = vpop.f32.mrf.mxu0
        %v8516 = vadd.f32 %v8487, %v8515
        %v8517 = vpop.f32.mrf.mxu0
        %v8518 = vadd.f32 %v8489, %v8517
        %8519 = vmatmul.bf16.gmra.mxu0 %v6036
        %v8520 = vpop.f32.mrf.mxu0
        %v8521 = vadd.f32 %v8492, %v8520
        %v8522 = vpop.f32.mrf.mxu0
        %v8523 = vadd.f32 %v8494, %v8522
        %8524 = vmatmul.bf16.gmra.mxu0 %v6040
        %v8525 = vpop.f32.mrf.mxu0
        %v8526 = vadd.f32 %v8497, %v8525
        %v8527 = vpop.f32.mrf.mxu0
        %v8528 = vadd.f32 %v8499, %v8527
        %8529 = vmatmul.bf16.gmra.mxu0 %v6044
        %v8530 = vpop.f32.mrf.mxu0
        %v8531 = vadd.f32 %v8502, %v8530
        %v8532 = vpop.f32.mrf.mxu0
        %v8533 = vadd.f32 %v8504, %v8532
        %8534 = vdwg.mxu0
        %8535 = vmatpush.bf16.msra.mxu0 %v8280
        %8536 = vmatpush.bf16.msra.mxu0 %v8278
        %8537 = vmatpush.bf16.msra.mxu0 %v8276
        %8538 = vmatpush.bf16.msra.mxu0 %v8274
        %8539 = vmatpush.bf16.msra.mxu0 %v8272
        %8540 = vmatpush.bf16.msra.mxu0 %v8270
        %8541 = vmatpush.bf16.msra.mxu0 %v8268
        %8542 = vmatpush.bf16.msra.mxu0 %v8266
        %8543 = vmatmul.bf16.gmra.mxu0 %v6033
        %v8544 = vpop.f32.mrf.mxu0
        %v8545 = vadd.f32 %v8516, %v8544
        %v8546 = vpop.f32.mrf.mxu0
        %v8547 = vadd.f32 %v8518, %v8546
        %8548 = vmatmul.bf16.gmra.mxu0 %v6037
        %v8549 = vpop.f32.mrf.mxu0
        %v8550 = vadd.f32 %v8521, %v8549
        %v8551 = vpop.f32.mrf.mxu0
        %v8552 = vadd.f32 %v8523, %v8551
        %8553 = vmatmul.bf16.gmra.mxu0 %v6041
        %v8554 = vpop.f32.mrf.mxu0
        %v8555 = vadd.f32 %v8526, %v8554
        %v8556 = vpop.f32.mrf.mxu0
        %v8557 = vadd.f32 %v8528, %v8556
        %8558 = vmatmul.bf16.gmra.mxu0 %v6045
        %v8559 = vpop.f32.mrf.mxu0
        %v8560 = vadd.f32 %v8531, %v8559
        %v8561 = vpop.f32.mrf.mxu0
        %v8562 = vadd.f32 %v8533, %v8561
        %8563 = vdwg.mxu0
        %8564 = vmatpush.bf16.msra.mxu0 %v8296
        %8565 = vmatpush.bf16.msra.mxu0 %v8294
        %8566 = vmatpush.bf16.msra.mxu0 %v8292
        %8567 = vmatpush.bf16.msra.mxu0 %v8290
        %8568 = vmatpush.bf16.msra.mxu0 %v8288
        %8569 = vmatpush.bf16.msra.mxu0 %v8286
        %8570 = vmatpush.bf16.msra.mxu0 %v8284
        %8571 = vmatpush.bf16.msra.mxu0 %v8282
        %8572 = vmatmul.bf16.gmra.mxu0 %v6034
        %v8573 = vpop.f32.mrf.mxu0
        %v8574 = vadd.f32 %v8545, %v8573
        %v8575 = vpop.f32.mrf.mxu0
        %v8576 = vadd.f32 %v8547, %v8575
        %8577 = vmatmul.bf16.gmra.mxu0 %v6038
        %v8578 = vpop.f32.mrf.mxu0
        %v8579 = vadd.f32 %v8550, %v8578
        %v8580 = vpop.f32.mrf.mxu0
        %v8581 = vadd.f32 %v8552, %v8580
        %8582 = vmatmul.bf16.gmra.mxu0 %v6042
        %v8583 = vpop.f32.mrf.mxu0
        %v8584 = vadd.f32 %v8555, %v8583
        %v8585 = vpop.f32.mrf.mxu0
        %v8586 = vadd.f32 %v8557, %v8585
        %8587 = vmatmul.bf16.gmra.mxu0 %v6046
        %v8588 = vpop.f32.mrf.mxu0
        %v8589 = vadd.f32 %v8560, %v8588
        %v8590 = vpop.f32.mrf.mxu0
        %v8591 = vadd.f32 %v8562, %v8590
        %8592 = vdwg.mxu0
        %v8593 = vadd.f32 %v4465, %v8458
        %v8594 = vadd.f32 %v4466, %v8574
        %v8595 = vadd.f32 %v4467, %v8460
        %v8596 = vadd.f32 %v4468, %v8576
        %v8597 = vadd.f32 %v4469, %v8463
        %v8598 = vadd.f32 %v4470, %v8579
        %v8599 = vadd.f32 %v4471, %v8465
        %v8600 = vadd.f32 %v4472, %v8581
        %v8601 = vadd.f32 %v4473, %v8468
        %v8602 = vadd.f32 %v4474, %v8584
        %v8603 = vadd.f32 %v4475, %v8470
        %v8604 = vadd.f32 %v4476, %v8586
        %v8605 = vadd.f32 %v4477, %v8473
        %v8606 = vadd.f32 %v4478, %v8589
        %v8607 = vadd.f32 %v4479, %v8475
        %v8608 = vadd.f32 %v4480, %v8591
        %v8609 = vld [vmem:[%s16] sm:$0x3]
        %v8611 = vperm.slane %v8609, 0
        %v8612 = vperm.slane %v8609, 1
        %v8615 = vadd.f32 %v8593, %v8611
        %v8616 = vadd.f32 %v8594, %v8612
        %v8617 = vadd.f32 %v8595, %v8611
        %v8618 = vadd.f32 %v8596, %v8612
        %v8619 = vadd.f32 %v8597, %v8611
        %v8620 = vadd.f32 %v8598, %v8612
        %v8621 = vadd.f32 %v8599, %v8611
        %v8622 = vadd.f32 %v8600, %v8612
        %v8623 = vadd.f32 %v8601, %v8611
        %v8624 = vadd.f32 %v8602, %v8612
        %v8625 = vadd.f32 %v8603, %v8611
        %v8626 = vadd.f32 %v8604, %v8612
        %v8627 = vadd.f32 %v8605, %v8611
        %v8628 = vadd.f32 %v8606, %v8612
        %v8629 = vadd.f32 %v8607, %v8611
        %v8630 = vadd.f32 %v8608, %v8612
        %8631 = vst [vmem:[%s754] sm:$0xff] %v8615
        %8632 = vst [vmem:[%s754 + $0x8] sm:$0xff] %v8616
        %8633 = vst [vmem:[%s754 + $0x10] sm:$0xff] %v8617
        %8634 = vst [vmem:[%s754 + $0x18] sm:$0xff] %v8618
        %8635 = vst [vmem:[%s754 + $0x20] sm:$0xff] %v8619
        %8636 = vst [vmem:[%s754 + $0x28] sm:$0xff] %v8620
        %8637 = vst [vmem:[%s754 + $0x30] sm:$0xff] %v8621
        %8638 = vst [vmem:[%s754 + $0x38] sm:$0xff] %v8622
        %8639 = vst [vmem:[%s754 + $0x40] sm:$0xff] %v8623
        %8640 = vst [vmem:[%s754 + $0x48] sm:$0xff] %v8624
        %8641 = vst [vmem:[%s754 + $0x50] sm:$0xff] %v8625
        %8642 = vst [vmem:[%s754 + $0x58] sm:$0xff] %v8626
        %8643 = vst [vmem:[%s754 + $0x60] sm:$0xff] %v8627
        %8644 = vst [vmem:[%s754 + $0x68] sm:$0xff] %v8628
        %8645 = vst [vmem:[%s754 + $0x70] sm:$0xff] %v8629
        %8646 = vst [vmem:[%s754 + $0x78] sm:$0xff] %v8630
        %s8647 = sand.u32 %s410, 1
        %s8648 = scalar_lea.sflag [#allocation4], %s8647
        %s8649 = sand.u32 %s410, 1
        %s8650 = smul.addr %s8649, 128
        %s8651 = scalar_lea.vmem [#allocation23], %s8650
        // Predicated region
        $region141: #{tpu_custom_call.1} parent=87 // pred_check
          %p8652 = pneg %p420
        $region142: #{tpu_custom_call.1} parent=87 // pred_check_branch
          %8654 = sbr.rel (%p8652) target = $region144
        $region143: #{tpu_custom_call.1} parent=87 // pred_region
          %8656 = vsyncadd %s8648, 0
          %s8657 = smul.addr %s40, 2
          %s8658 = smul.addr %s8657, 8
          %s8659 = scalar_lea.hbm %s17, %s8658
          %s8660 = sshll.u32 %s8651, 4
          %s8661 = int_to_ptr.vmem [resolvable:$true] %s8660
          %s8662 = sshll.u32 %s8659, 4
          %s8663 = int_to_ptr.hbm [resolvable:$true] %s8662
          %8668 = dma.vmem_to_hbm [thread:$0]  %s8661, 2048, %s8663, %s8648, 256, 512, 16
        $region144: #{tpu_custom_call.1} parent=87 // pred_fallthru
          _
      $region88: #{tpu_custom_call.1} parent=5 // pred_fallthru
        _
      %p8669 = scmp.le.s32.totalorder 2, %s35
      // Predicated region
      $region145: #{tpu_custom_call.1} parent=5 // pred_check
        %p8670 = pneg %p8669
      $region146: #{tpu_custom_call.1} parent=5 // pred_check_branch
        %8672 = sbr.rel (%p8670) target = $region148
      $region147: #{tpu_custom_call.1} parent=5 // pred_region
        %s8673 = ssub.s32 %s35, 2
        // Predicated region
        $region149: #{tpu_custom_call.1} parent=147 // pred_check
          %p8674 = pneg %p426
        $region150: #{tpu_custom_call.1} parent=147 // pred_check_branch
          %8676 = sbr.rel (%p8674) target = $region152
        $region151: #{tpu_custom_call.1} parent=147 // pred_region
          %s8677 = sand.u32 %s411, 1
          %s8678 = scalar_lea.sflag [#allocation4], %s8677
          %s8679 = sand.u32 %s411, 1
          %s8680 = smul.addr %s8679, 128
          %s8681 = scalar_lea.vmem [#allocation23], %s8680
          %8683 = dma.done %s8678, 2048
        $region152: #{tpu_custom_call.1} parent=147 // pred_fallthru
          _
      $region148: #{tpu_custom_call.1} parent=5 // pred_fallthru
        _
    $region6: #{tpu_custom_call.1} parent=1 // loop_footer
      %s39 = sadd.s32 1, %s35
    $region7: #{tpu_custom_call.1} parent=1 // loop_footer_branch
      %34 = sbr.rel target = $region3
    $region8: #{tpu_custom_call.1} parent=1 // loop_exit
      _
    %8684 = vsyncpa [#allocation3], 1
    %s8685 = scalar_lea.sflag [#allocation3], 1
    %8686 = vsyncpa %s8685, 1
    %8687 = vsyncpa [#allocation6], 1
    %8688 = vsyncpa [#allocation9], 1
    %8689 = vsyncpa [#allocation12], 1
    %8690 = vsyncpa [#allocation15], 1
    %8691 = vsyncpa [#allocation18], 1
    %8692 = vsyncpa [#allocation21], 1
    %8693 = vsyncpa [#allocation4], 1
    %s8694 = scalar_lea.sflag [#allocation4], 1
    %8695 = vsyncpa %s8694, 1

</llo_original>
